<compile_context>
chip_gen: v7x
topology: tpu7x:2x2x1
jax: 0.10.0
libtpu: 0.0.40
codegen_flags: <defaults>
</compile_context>

<pallas_src>
import jax
import jax.numpy as jnp
from jax.experimental import pallas as pl
from jax.experimental.pallas import tpu as pltpu


D_MODEL = 64
N_HEAD = 4          # does not affect the seq_len==1 result (see header comment)
DFF = 2048          # nn.TransformerEncoderLayer default dim_feedforward
NUM_LAYERS = 2
LN_EPS = 1e-5       # nn.LayerNorm default eps


def _layer_norm(y, gamma, beta, eps=LN_EPS):
    mu = jnp.mean(y, axis=-1, keepdims=True)
    var = jnp.mean(jnp.square(y - mu), axis=-1, keepdims=True)
    return (y - mu) * jax.lax.rsqrt(var + eps) * gamma + beta


def _fused_forward_kernel(
    x_ref, wemb_ref, bemb_ref,
    wattn_ref, battn_ref,
    ln1g_ref, ln1b_ref,
    w1_ref, b1_ref, w2_ref, b2_ref,
    ln2g_ref, ln2b_ref,
    wfc_ref, bfc_ref,
    o_ref,
):
    f32 = jnp.float32
    bf16 = jnp.bfloat16

    # Embedding: bf16 MXU operands, f32 accumulation.
    x = x_ref[...].astype(bf16)
    h = jnp.dot(x, wemb_ref[...], preferred_element_type=f32) + bemb_ref[...]

    num_layers = wattn_ref.shape[0]
    dff = w1_ref.shape[2]
    ch = 512 if dff % 512 == 0 else (256 if dff % 256 == 0 else dff)
    n_chunks = dff // ch

    for l in range(num_layers):                 # static unroll (NUM_LAYERS == 2)
        # ---- Self-attention (seq_len == 1 => softmax weight == 1 exactly).
        # W_attn = Wv @ Wo was folded on the host; single (TB,D)@(D,D) matmul.
        # TODO(synk): general seq_len > 1 softmax-attention path not implemented
        # (never exercised by this module's forward).
        hb = h.astype(bf16)
        attn = jnp.dot(hb, wattn_ref[l], preferred_element_type=f32) + battn_ref[l]
        h = _layer_norm(h + attn, ln1g_ref[l], ln1b_ref[l])

        # ---- Feed-forward, chunked along DFF: the (TB, DFF) f32 intermediate
        # never materializes; live set bounded to one (TB, ch) chunk.
        hb = h.astype(bf16)
        ff_acc = jnp.zeros(h.shape, f32)
        for c in range(n_chunks):               # static unroll
            c0, c1 = c * ch, (c + 1) * ch
            ff = jnp.dot(hb, w1_ref[l, :, c0:c1], preferred_element_type=f32)
            ff = ff + b1_ref[l, :, c0:c1]
            ff = jnp.maximum(ff, 0.0).astype(bf16)       # dropout = identity
            ff_acc = ff_acc + jnp.dot(ff, w2_ref[l, c0:c1, :],
                                      preferred_element_type=f32)
        h = _layer_norm(h + ff_acc + b2_ref[l], ln2g_ref[l], ln2b_ref[l])

    # ---- Regression head: VPU multiply + row reduction (no 1-wide MXU matmul),
    # stored lane-dense as a (1, TB) row.
    out_row = jnp.sum(h * wfc_ref[...], axis=-1)[None, :] + bfc_ref[...]
    o_ref[...] = out_row.astype(o_ref.dtype)


def transformer_temperature_predictor_forward(x, params, *, block_b=256):
    """x: (batch, input_size) -> (batch, 1). Fused single-kernel forward pass."""
    B, IN = x.shape
    D = params["w_emb"].shape[1]
    L = params["wv"].shape[0]
    F = params["w1"].shape[2]
    f32 = jnp.float32
    bf16 = jnp.bfloat16

    # ---- Host-side weight prep ------------------------------------------------
    # Fold the seq_len==1 attention:  attn = (h @ Wv + bv) @ Wo + bo
    #                                      =  h @ (Wv@Wo) + (bv@Wo + bo).
    w_attn = jnp.einsum("lij,ljk->lik",
                        params["wv"].astype(f32), params["wo"].astype(f32))
    b_attn = (jnp.einsum("li,lij->lj",
                         params["bv"].astype(f32), params["wo"].astype(f32))
              + params["bo"].astype(f32))

    weight_args = (
        params["w_emb"].astype(bf16),                    # MXU operands -> bf16
        params["b_emb"].reshape(1, D).astype(f32),
        w_attn.astype(bf16),
        b_attn.reshape(L, 1, D).astype(f32),
        params["ln1_g"].reshape(L, 1, D).astype(f32),
        params["ln1_b"].reshape(L, 1, D).astype(f32),
        params["w1"].astype(bf16),
        params["b1"].reshape(L, 1, F).astype(f32),
        params["w2"].astype(bf16),
        params["b2"].reshape(L, 1, D).astype(f32),
        params["ln2_g"].reshape(L, 1, D).astype(f32),
        params["ln2_b"].reshape(L, 1, D).astype(f32),
        params["w_fc"].reshape(1, D).astype(f32),        # head row for VPU reduce
        params["b_fc"].reshape(1, 1).astype(f32),
    )

    # ---- Batch tiling -----------------------------------------------------------
    tb = min(block_b, max(B, 1))
    if B >= 16:
        tb = min(tb, -(-B // 2))          # keep >= 2 grid steps (v7x: 2 TCs)
    tb = max(8, ((tb + 7) // 8) * 8)      # sublane aligned
    padded_b = ((B + tb - 1) // tb) * tb
    xp = jnp.pad(x, ((0, padded_b - B), (0, 0))) if padded_b != B else x
    num_tiles = padded_b // tb

    # ---- VMEM budget / cost hints -------------------------------------------------
    weight_bytes = sum(int(a.size) * a.dtype.itemsize for a in weight_args)
    ch = 512 if F % 512 == 0 else (256 if F % 256 == 0 else F)
    act_bytes = tb * (2 * IN * 4 + 8 * D * 4 + ch * 6)   # x, h/residual/acc, ff chunk
    vmem_limit = int(min(96 * (1 << 20),
                         max(32 * (1 << 20), 2 * (2 * weight_bytes + act_bytes))))
    cost = pl.CostEstimate(
        flops=2 * padded_b * (IN * D + L * (D * D + 2 * D * F) + D),
        transcendentals=2 * L * padded_b,                # rsqrt in layernorms
        bytes_accessed=4 * padded_b * (IN + 1) + weight_bytes,
    )

    def run(single_buffer_weights):
        def wspec(shape):
            zeros = (0,) * len(shape)
            if single_buffer_weights:
                # Grid-invariant weights: no point double-buffering them.
                return pl.BlockSpec(shape, lambda i, z=zeros: z,
                                    pipeline_mode=pl.Buffered(1))
            return pl.BlockSpec(shape, lambda i, z=zeros: z)

        out = pl.pallas_call(
            _fused_forward_kernel,
            out_shape=jax.ShapeDtypeStruct((num_tiles, tb), x.dtype),
            grid=(num_tiles,),
            in_specs=[pl.BlockSpec((tb, IN), lambda i: (i, 0))]
                     + [wspec(a.shape) for a in weight_args],
            out_specs=pl.BlockSpec((1, tb), lambda i: (i, 0)),   # lane-dense rows
            compiler_params=pltpu.CompilerParams(
                dimension_semantics=("parallel",),
                vmem_limit_bytes=vmem_limit,
            ),
            cost_estimate=cost,
        )(xp, *weight_args)
        return jax.block_until_ready(out)

    try:
        out = run(True)
    except Exception:
        # pipeline_mode / Buffered(1) unsupported on this JAX: default buffering.
        out = run(False)

    return out.reshape(-1)[:B].reshape(B, 1)


if __name__ == "__main__":
    input_size = 16
    batch = 8
    d_model = D_MODEL
    num_layers = NUM_LAYERS
    dff = DFF

    key = jax.random.PRNGKey(0)
    keys = jax.random.split(key, 12)

    def rnd(k, shape, scale):
        return jax.random.normal(k, shape, dtype=jnp.float32) * scale

    # Weights stored already transposed to (in, out) layout (PyTorch Linear is
    # y = x @ W.T + b; here the kernel computes x @ W directly).
    params = {
        "w_emb": rnd(keys[0], (input_size, d_model), 0.1),
        "b_emb": rnd(keys[1], (1, d_model), 0.1),
        "wv": rnd(keys[2], (num_layers, d_model, d_model), 0.1),
        "bv": rnd(keys[3], (num_layers, d_model), 0.1),
        "wo": rnd(keys[4], (num_layers, d_model, d_model), 0.1),
        "bo": rnd(keys[5], (num_layers, d_model), 0.1),
        "ln1_g": jnp.ones((num_layers, d_model), jnp.float32),
        "ln1_b": jnp.zeros((num_layers, d_model), jnp.float32),
        "w1": rnd(keys[6], (num_layers, d_model, dff), 0.05),
        "b1": rnd(keys[7], (num_layers, dff), 0.05),
        "w2": rnd(keys[8], (num_layers, dff, d_model), 0.05),
        "b2": rnd(keys[9], (num_layers, d_model), 0.05),
        "ln2_g": jnp.ones((num_layers, d_model), jnp.float32),
        "ln2_b": jnp.zeros((num_layers, d_model), jnp.float32),
        "w_fc": rnd(keys[10], (d_model, 1), 0.1),
        "b_fc": jnp.zeros((1, 1), jnp.float32),
    }

    x = jax.random.normal(keys[11], (batch, input_size), dtype=jnp.float32)

    out = transformer_temperature_predictor_forward(x, params)
    out = jax.block_until_ready(out)

    # Pure-JAX f32 reference (eval mode: dropout = identity; seq_len == 1).
    def ref_forward(xr):
        def ln(y, g, b):
            mu = jnp.mean(y, axis=-1, keepdims=True)
            var = jnp.mean((y - mu) ** 2, axis=-1, keepdims=True)
            return (y - mu) / jnp.sqrt(var + LN_EPS) * g + b

        h = xr @ params["w_emb"] + params["b_emb"]
        for l in range(num_layers):
            v = h @ params["wv"][l] + params["bv"][l]
            attn = v @ params["wo"][l] + params["bo"][l]
            h = ln(h + attn, params["ln1_g"][l], params["ln1_b"][l])
            ff = jnp.maximum(h @ params["w1"][l] + params["b1"][l], 0.0)
            ff = ff @ params["w2"][l] + params["b2"][l]
            h = ln(h + ff, params["ln2_g"][l], params["ln2_b"][l])
        return h @ params["w_fc"] + params["b_fc"]

    ref = ref_forward(x)
    assert out.shape == (batch, 1)
    err = float(jnp.max(jnp.abs(out - ref)))
    # bf16 MXU operands with f32 accumulation: a few 1e-3 of absolute error is
    # expected; a real bug would give O(1) mismatch.
    assert err < 5e-2, f"mismatch vs reference, max abs err = {err}"

    print("KERNEL_OK")
</pallas_src>

<mosaic_0001>
module attributes {stable_mosaic.version = 11 : i64} {
  func.func @_fused_forward_kernel(%arg0: i32, %arg1: memref<8x16xf32, #tpu.memory_space<vmem>>, %arg2: memref<16x64xbf16, #tpu.memory_space<vmem>>, %arg3: memref<1x64xf32, #tpu.memory_space<vmem>>, %arg4: memref<2x64x64xbf16, #tpu.memory_space<vmem>>, %arg5: memref<2x1x64xf32, #tpu.memory_space<vmem>>, %arg6: memref<2x1x64xf32, #tpu.memory_space<vmem>>, %arg7: memref<2x1x64xf32, #tpu.memory_space<vmem>>, %arg8: memref<2x64x2048xbf16, #tpu.memory_space<vmem>>, %arg9: memref<2x1x2048xf32, #tpu.memory_space<vmem>>, %arg10: memref<2x2048x64xbf16, #tpu.memory_space<vmem>>, %arg11: memref<2x1x64xf32, #tpu.memory_space<vmem>>, %arg12: memref<2x1x64xf32, #tpu.memory_space<vmem>>, %arg13: memref<2x1x64xf32, #tpu.memory_space<vmem>>, %arg14: memref<1x64xf32, #tpu.memory_space<vmem>>, %arg15: memref<1x1xf32, #tpu.memory_space<vmem>>, %arg16: memref<1x8xf32, #tpu.memory_space<vmem>>) attributes {dimension_semantics = [#tpu.dimension_semantics<parallel>], iteration_bounds = array<i64: 1>, scalar_prefetch = 0 : i64, scratch_operands = 0 : i64, tpu.core_type = #tpu.core_type<tc>, window_params = [{transform_indices = @transform_0, window_bounds = array<i64: 8, 16>}, {pipeline_mode = #tpu.pipeline_mode<synchronous>, transform_indices = @transform_1, window_bounds = array<i64: 16, 64>}, {pipeline_mode = #tpu.pipeline_mode<synchronous>, transform_indices = @transform_2, window_bounds = array<i64: 1, 64>}, {pipeline_mode = #tpu.pipeline_mode<synchronous>, transform_indices = @transform_3, window_bounds = array<i64: 2, 64, 64>}, {pipeline_mode = #tpu.pipeline_mode<synchronous>, transform_indices = @transform_4, window_bounds = array<i64: 2, 1, 64>}, {pipeline_mode = #tpu.pipeline_mode<synchronous>, transform_indices = @transform_5, window_bounds = array<i64: 2, 1, 64>}, {pipeline_mode = #tpu.pipeline_mode<synchronous>, transform_indices = @transform_6, window_bounds = array<i64: 2, 1, 64>}, {pipeline_mode = #tpu.pipeline_mode<synchronous>, transform_indices = @transform_7, window_bounds = array<i64: 2, 64, 2048>}, {pipeline_mode = #tpu.pipeline_mode<synchronous>, transform_indices = @transform_8, window_bounds = array<i64: 2, 1, 2048>}, {pipeline_mode = #tpu.pipeline_mode<synchronous>, transform_indices = @transform_9, window_bounds = array<i64: 2, 2048, 64>}, {pipeline_mode = #tpu.pipeline_mode<synchronous>, transform_indices = @transform_10, window_bounds = array<i64: 2, 1, 64>}, {pipeline_mode = #tpu.pipeline_mode<synchronous>, transform_indices = @transform_11, window_bounds = array<i64: 2, 1, 64>}, {pipeline_mode = #tpu.pipeline_mode<synchronous>, transform_indices = @transform_12, window_bounds = array<i64: 2, 1, 64>}, {pipeline_mode = #tpu.pipeline_mode<synchronous>, transform_indices = @transform_13, window_bounds = array<i64: 1, 64>}, {pipeline_mode = #tpu.pipeline_mode<synchronous>, transform_indices = @transform_14, window_bounds = array<i64: 1, 1>}, {transform_indices = @transform_15, window_bounds = array<i64: 1, 8>}]} {
    %c0 = arith.constant 0 : index
    %c0_0 = arith.constant 0 : index
    %0 = vector.load %arg1[%c0, %c0_0] : memref<8x16xf32, #tpu.memory_space<vmem>>, vector<8x16xf32>
    %1 = arith.truncf %0 : vector<8x16xf32> to vector<8x16xbf16>
    %c0_1 = arith.constant 0 : index
    %c0_2 = arith.constant 0 : index
    %2 = vector.load %arg2[%c0_1, %c0_2] : memref<16x64xbf16, #tpu.memory_space<vmem>>, vector<16x64xbf16>
    %cst = arith.constant dense<0.000000e+00> : vector<8x64xf32>
    %3 = tpu.matmul %1, %2, %cst {dimension_numbers = #tpu.dot_dimension_numbers<[1], [0], [0], [1], [0, 0, 1, 1], [], []>} : vector<8x16xbf16>, vector<16x64xbf16>, vector<8x64xf32> -> vector<8x64xf32>
    %c0_3 = arith.constant 0 : index
    %c0_4 = arith.constant 0 : index
    %4 = vector.load %arg3[%c0_3, %c0_4] : memref<1x64xf32, #tpu.memory_space<vmem>>, vector<1x64xf32>
    %5 = vector.broadcast %4 : vector<1x64xf32> to vector<8x64xf32>
    %6 = arith.addf %3, %5 : vector<8x64xf32>
    %7 = arith.truncf %6 : vector<8x64xf32> to vector<8x64xbf16>
    %c0_5 = arith.constant 0 : index
    %c0_6 = arith.constant 0 : index
    %c0_7 = arith.constant 0 : index
    %8 = vector.load %arg4[%c0_5, %c0_6, %c0_7] : memref<2x64x64xbf16, #tpu.memory_space<vmem>>, vector<1x64x64xbf16>
    %9 = vector.shape_cast %8 : vector<1x64x64xbf16> to vector<64x64xbf16>
    %cst_8 = arith.constant dense<0.000000e+00> : vector<8x64xf32>
    %10 = tpu.matmul %7, %9, %cst_8 {dimension_numbers = #tpu.dot_dimension_numbers<[1], [0], [0], [1], [0, 0, 1, 1], [], []>} : vector<8x64xbf16>, vector<64x64xbf16>, vector<8x64xf32> -> vector<8x64xf32>
    %c0_9 = arith.constant 0 : index
    %c0_10 = arith.constant 0 : index
    %c0_11 = arith.constant 0 : index
    %11 = vector.load %arg5[%c0_9, %c0_10, %c0_11] : memref<2x1x64xf32, #tpu.memory_space<vmem>>, vector<1x1x64xf32>
    %12 = vector.shape_cast %11 : vector<1x1x64xf32> to vector<1x64xf32>
    %13 = vector.broadcast %12 : vector<1x64xf32> to vector<8x64xf32>
    %14 = arith.addf %10, %13 : vector<8x64xf32>
    %15 = arith.addf %6, %14 : vector<8x64xf32>
    %c0_12 = arith.constant 0 : index
    %c0_13 = arith.constant 0 : index
    %c0_14 = arith.constant 0 : index
    %16 = vector.load %arg6[%c0_12, %c0_13, %c0_14] : memref<2x1x64xf32, #tpu.memory_space<vmem>>, vector<1x1x64xf32>
    %17 = vector.shape_cast %16 : vector<1x1x64xf32> to vector<1x64xf32>
    %c0_15 = arith.constant 0 : index
    %c0_16 = arith.constant 0 : index
    %c0_17 = arith.constant 0 : index
    %18 = vector.load %arg7[%c0_15, %c0_16, %c0_17] : memref<2x1x64xf32, #tpu.memory_space<vmem>>, vector<1x1x64xf32>
    %19 = vector.shape_cast %18 : vector<1x1x64xf32> to vector<1x64xf32>
    %cst_18 = arith.constant dense<0.000000e+00> : vector<8xf32>
    %20 = vector.multi_reduction <add>, %15, %cst_18 [1] : vector<8x64xf32> to vector<8xf32>
    %21 = vector.shape_cast %20 : vector<8xf32> to vector<8x1xf32>
    %cst_19 = arith.constant 6.400000e+01 : f32
    %22 = vector.broadcast %cst_19 : f32 to vector<8x1xf32>
    %23 = arith.divf %21, %22 : vector<8x1xf32>
    %24 = vector.broadcast %23 : vector<8x1xf32> to vector<8x64xf32>
    %25 = arith.subf %15, %24 : vector<8x64xf32>
    %26 = arith.mulf %25, %25 : vector<8x64xf32>
    %cst_20 = arith.constant dense<0.000000e+00> : vector<8xf32>
    %27 = vector.multi_reduction <add>, %26, %cst_20 [1] : vector<8x64xf32> to vector<8xf32>
    %28 = vector.shape_cast %27 : vector<8xf32> to vector<8x1xf32>
    %cst_21 = arith.constant 6.400000e+01 : f32
    %29 = vector.broadcast %cst_21 : f32 to vector<8x1xf32>
    %30 = arith.divf %28, %29 : vector<8x1xf32>
    %31 = vector.broadcast %23 : vector<8x1xf32> to vector<8x64xf32>
    %32 = arith.subf %15, %31 : vector<8x64xf32>
    %cst_22 = arith.constant 9.99999974E-6 : f32
    %33 = vector.broadcast %cst_22 : f32 to vector<8x1xf32>
    %34 = arith.addf %30, %33 : vector<8x1xf32>
    %35 = math.rsqrt %34 : vector<8x1xf32>
    %36 = vector.broadcast %35 : vector<8x1xf32> to vector<8x64xf32>
    %37 = arith.mulf %32, %36 : vector<8x64xf32>
    %38 = vector.broadcast %17 : vector<1x64xf32> to vector<8x64xf32>
    %39 = arith.mulf %37, %38 : vector<8x64xf32>
    %40 = vector.broadcast %19 : vector<1x64xf32> to vector<8x64xf32>
    %41 = arith.addf %39, %40 : vector<8x64xf32>
    %42 = arith.truncf %41 : vector<8x64xf32> to vector<8x64xbf16>
    %cst_23 = arith.constant 0.000000e+00 : f32
    %43 = vector.broadcast %cst_23 : f32 to vector<8x64xf32>
    %c0_24 = arith.constant 0 : index
    %c0_25 = arith.constant 0 : index
    %c0_26 = arith.constant 0 : index
    %44 = vector.load %arg8[%c0_24, %c0_25, %c0_26] : memref<2x64x2048xbf16, #tpu.memory_space<vmem>>, vector<1x64x512xbf16>
    %45 = vector.shape_cast %44 : vector<1x64x512xbf16> to vector<64x512xbf16>
    %cst_27 = arith.constant dense<0.000000e+00> : vector<8x512xf32>
    %46 = tpu.matmul %42, %45, %cst_27 {dimension_numbers = #tpu.dot_dimension_numbers<[1], [0], [0], [1], [0, 0, 1, 1], [], []>} : vector<8x64xbf16>, vector<64x512xbf16>, vector<8x512xf32> -> vector<8x512xf32>
    %c0_28 = arith.constant 0 : index
    %c0_29 = arith.constant 0 : index
    %c0_30 = arith.constant 0 : index
    %47 = vector.load %arg9[%c0_28, %c0_29, %c0_30] : memref<2x1x2048xf32, #tpu.memory_space<vmem>>, vector<1x1x512xf32>
    %48 = vector.shape_cast %47 : vector<1x1x512xf32> to vector<1x512xf32>
    %49 = vector.broadcast %48 : vector<1x512xf32> to vector<8x512xf32>
    %50 = arith.addf %46, %49 : vector<8x512xf32>
    %cst_31 = arith.constant 0.000000e+00 : f32
    %51 = vector.broadcast %cst_31 : f32 to vector<8x512xf32>
    %52 = arith.maximumf %50, %51 : vector<8x512xf32>
    %53 = arith.truncf %52 : vector<8x512xf32> to vector<8x512xbf16>
    %c0_32 = arith.constant 0 : index
    %c0_33 = arith.constant 0 : index
    %c0_34 = arith.constant 0 : index
    %54 = vector.load %arg10[%c0_32, %c0_33, %c0_34] : memref<2x2048x64xbf16, #tpu.memory_space<vmem>>, vector<1x512x64xbf16>
    %55 = vector.shape_cast %54 : vector<1x512x64xbf16> to vector<512x64xbf16>
    %cst_35 = arith.constant dense<0.000000e+00> : vector<8x64xf32>
    %56 = tpu.matmul %53, %55, %cst_35 {dimension_numbers = #tpu.dot_dimension_numbers<[1], [0], [0], [1], [0, 0, 1, 1], [], []>} : vector<8x512xbf16>, vector<512x64xbf16>, vector<8x64xf32> -> vector<8x64xf32>
    %57 = arith.addf %43, %56 : vector<8x64xf32>
    %c0_36 = arith.constant 0 : index
    %c0_37 = arith.constant 0 : index
    %c512 = arith.constant 512 : index
    %58 = vector.load %arg8[%c0_36, %c0_37, %c512] : memref<2x64x2048xbf16, #tpu.memory_space<vmem>>, vector<1x64x512xbf16>
    %59 = vector.shape_cast %58 : vector<1x64x512xbf16> to vector<64x512xbf16>
    %cst_38 = arith.constant dense<0.000000e+00> : vector<8x512xf32>
    %60 = tpu.matmul %42, %59, %cst_38 {dimension_numbers = #tpu.dot_dimension_numbers<[1], [0], [0], [1], [0, 0, 1, 1], [], []>} : vector<8x64xbf16>, vector<64x512xbf16>, vector<8x512xf32> -> vector<8x512xf32>
    %c0_39 = arith.constant 0 : index
    %c0_40 = arith.constant 0 : index
    %c512_41 = arith.constant 512 : index
    %61 = vector.load %arg9[%c0_39, %c0_40, %c512_41] : memref<2x1x2048xf32, #tpu.memory_space<vmem>>, vector<1x1x512xf32>
    %62 = vector.shape_cast %61 : vector<1x1x512xf32> to vector<1x512xf32>
    %63 = vector.broadcast %62 : vector<1x512xf32> to vector<8x512xf32>
    %64 = arith.addf %60, %63 : vector<8x512xf32>
    %cst_42 = arith.constant 0.000000e+00 : f32
    %65 = vector.broadcast %cst_42 : f32 to vector<8x512xf32>
    %66 = arith.maximumf %64, %65 : vector<8x512xf32>
    %67 = arith.truncf %66 : vector<8x512xf32> to vector<8x512xbf16>
    %c0_43 = arith.constant 0 : index
    %c512_44 = arith.constant 512 : index
    %c0_45 = arith.constant 0 : index
    %68 = vector.load %arg10[%c0_43, %c512_44, %c0_45] : memref<2x2048x64xbf16, #tpu.memory_space<vmem>>, vector<1x512x64xbf16>
    %69 = vector.shape_cast %68 : vector<1x512x64xbf16> to vector<512x64xbf16>
    %cst_46 = arith.constant dense<0.000000e+00> : vector<8x64xf32>
    %70 = tpu.matmul %67, %69, %cst_46 {dimension_numbers = #tpu.dot_dimension_numbers<[1], [0], [0], [1], [0, 0, 1, 1], [], []>} : vector<8x512xbf16>, vector<512x64xbf16>, vector<8x64xf32> -> vector<8x64xf32>
    %71 = arith.addf %57, %70 : vector<8x64xf32>
    %c0_47 = arith.constant 0 : index
    %c0_48 = arith.constant 0 : index
    %c1024 = arith.constant 1024 : index
    %72 = vector.load %arg8[%c0_47, %c0_48, %c1024] : memref<2x64x2048xbf16, #tpu.memory_space<vmem>>, vector<1x64x512xbf16>
    %73 = vector.shape_cast %72 : vector<1x64x512xbf16> to vector<64x512xbf16>
    %cst_49 = arith.constant dense<0.000000e+00> : vector<8x512xf32>
    %74 = tpu.matmul %42, %73, %cst_49 {dimension_numbers = #tpu.dot_dimension_numbers<[1], [0], [0], [1], [0, 0, 1, 1], [], []>} : vector<8x64xbf16>, vector<64x512xbf16>, vector<8x512xf32> -> vector<8x512xf32>
    %c0_50 = arith.constant 0 : index
    %c0_51 = arith.constant 0 : index
    %c1024_52 = arith.constant 1024 : index
    %75 = vector.load %arg9[%c0_50, %c0_51, %c1024_52] : memref<2x1x2048xf32, #tpu.memory_space<vmem>>, vector<1x1x512xf32>
    %76 = vector.shape_cast %75 : vector<1x1x512xf32> to vector<1x512xf32>
    %77 = vector.broadcast %76 : vector<1x512xf32> to vector<8x512xf32>
    %78 = arith.addf %74, %77 : vector<8x512xf32>
    %cst_53 = arith.constant 0.000000e+00 : f32
    %79 = vector.broadcast %cst_53 : f32 to vector<8x512xf32>
    %80 = arith.maximumf %78, %79 : vector<8x512xf32>
    %81 = arith.truncf %80 : vector<8x512xf32> to vector<8x512xbf16>
    %c0_54 = arith.constant 0 : index
    %c1024_55 = arith.constant 1024 : index
    %c0_56 = arith.constant 0 : index
    %82 = vector.load %arg10[%c0_54, %c1024_55, %c0_56] : memref<2x2048x64xbf16, #tpu.memory_space<vmem>>, vector<1x512x64xbf16>
    %83 = vector.shape_cast %82 : vector<1x512x64xbf16> to vector<512x64xbf16>
    %cst_57 = arith.constant dense<0.000000e+00> : vector<8x64xf32>
    %84 = tpu.matmul %81, %83, %cst_57 {dimension_numbers = #tpu.dot_dimension_numbers<[1], [0], [0], [1], [0, 0, 1, 1], [], []>} : vector<8x512xbf16>, vector<512x64xbf16>, vector<8x64xf32> -> vector<8x64xf32>
    %85 = arith.addf %71, %84 : vector<8x64xf32>
    %c0_58 = arith.constant 0 : index
    %c0_59 = arith.constant 0 : index
    %c1536 = arith.constant 1536 : index
    %86 = vector.load %arg8[%c0_58, %c0_59, %c1536] : memref<2x64x2048xbf16, #tpu.memory_space<vmem>>, vector<1x64x512xbf16>
    %87 = vector.shape_cast %86 : vector<1x64x512xbf16> to vector<64x512xbf16>
    %cst_60 = arith.constant dense<0.000000e+00> : vector<8x512xf32>
    %88 = tpu.matmul %42, %87, %cst_60 {dimension_numbers = #tpu.dot_dimension_numbers<[1], [0], [0], [1], [0, 0, 1, 1], [], []>} : vector<8x64xbf16>, vector<64x512xbf16>, vector<8x512xf32> -> vector<8x512xf32>
    %c0_61 = arith.constant 0 : index
    %c0_62 = arith.constant 0 : index
    %c1536_63 = arith.constant 1536 : index
    %89 = vector.load %arg9[%c0_61, %c0_62, %c1536_63] : memref<2x1x2048xf32, #tpu.memory_space<vmem>>, vector<1x1x512xf32>
    %90 = vector.shape_cast %89 : vector<1x1x512xf32> to vector<1x512xf32>
    %91 = vector.broadcast %90 : vector<1x512xf32> to vector<8x512xf32>
    %92 = arith.addf %88, %91 : vector<8x512xf32>
    %cst_64 = arith.constant 0.000000e+00 : f32
    %93 = vector.broadcast %cst_64 : f32 to vector<8x512xf32>
    %94 = arith.maximumf %92, %93 : vector<8x512xf32>
    %95 = arith.truncf %94 : vector<8x512xf32> to vector<8x512xbf16>
    %c0_65 = arith.constant 0 : index
    %c1536_66 = arith.constant 1536 : index
    %c0_67 = arith.constant 0 : index
    %96 = vector.load %arg10[%c0_65, %c1536_66, %c0_67] : memref<2x2048x64xbf16, #tpu.memory_space<vmem>>, vector<1x512x64xbf16>
    %97 = vector.shape_cast %96 : vector<1x512x64xbf16> to vector<512x64xbf16>
    %cst_68 = arith.constant dense<0.000000e+00> : vector<8x64xf32>
    %98 = tpu.matmul %95, %97, %cst_68 {dimension_numbers = #tpu.dot_dimension_numbers<[1], [0], [0], [1], [0, 0, 1, 1], [], []>} : vector<8x512xbf16>, vector<512x64xbf16>, vector<8x64xf32> -> vector<8x64xf32>
    %99 = arith.addf %85, %98 : vector<8x64xf32>
    %100 = arith.addf %41, %99 : vector<8x64xf32>
    %c0_69 = arith.constant 0 : index
    %c0_70 = arith.constant 0 : index
    %c0_71 = arith.constant 0 : index
    %101 = vector.load %arg11[%c0_69, %c0_70, %c0_71] : memref<2x1x64xf32, #tpu.memory_space<vmem>>, vector<1x1x64xf32>
    %102 = vector.shape_cast %101 : vector<1x1x64xf32> to vector<1x64xf32>
    %103 = vector.broadcast %102 : vector<1x64xf32> to vector<8x64xf32>
    %104 = arith.addf %100, %103 : vector<8x64xf32>
    %c0_72 = arith.constant 0 : index
    %c0_73 = arith.constant 0 : index
    %c0_74 = arith.constant 0 : index
    %105 = vector.load %arg12[%c0_72, %c0_73, %c0_74] : memref<2x1x64xf32, #tpu.memory_space<vmem>>, vector<1x1x64xf32>
    %106 = vector.shape_cast %105 : vector<1x1x64xf32> to vector<1x64xf32>
    %c0_75 = arith.constant 0 : index
    %c0_76 = arith.constant 0 : index
    %c0_77 = arith.constant 0 : index
    %107 = vector.load %arg13[%c0_75, %c0_76, %c0_77] : memref<2x1x64xf32, #tpu.memory_space<vmem>>, vector<1x1x64xf32>
    %108 = vector.shape_cast %107 : vector<1x1x64xf32> to vector<1x64xf32>
    %cst_78 = arith.constant dense<0.000000e+00> : vector<8xf32>
    %109 = vector.multi_reduction <add>, %104, %cst_78 [1] : vector<8x64xf32> to vector<8xf32>
    %110 = vector.shape_cast %109 : vector<8xf32> to vector<8x1xf32>
    %cst_79 = arith.constant 6.400000e+01 : f32
    %111 = vector.broadcast %cst_79 : f32 to vector<8x1xf32>
    %112 = arith.divf %110, %111 : vector<8x1xf32>
    %113 = vector.broadcast %112 : vector<8x1xf32> to vector<8x64xf32>
    %114 = arith.subf %104, %113 : vector<8x64xf32>
    %115 = arith.mulf %114, %114 : vector<8x64xf32>
    %cst_80 = arith.constant dense<0.000000e+00> : vector<8xf32>
    %116 = vector.multi_reduction <add>, %115, %cst_80 [1] : vector<8x64xf32> to vector<8xf32>
    %117 = vector.shape_cast %116 : vector<8xf32> to vector<8x1xf32>
    %cst_81 = arith.constant 6.400000e+01 : f32
    %118 = vector.broadcast %cst_81 : f32 to vector<8x1xf32>
    %119 = arith.divf %117, %118 : vector<8x1xf32>
    %120 = vector.broadcast %112 : vector<8x1xf32> to vector<8x64xf32>
    %121 = arith.subf %104, %120 : vector<8x64xf32>
    %cst_82 = arith.constant 9.99999974E-6 : f32
    %122 = vector.broadcast %cst_82 : f32 to vector<8x1xf32>
    %123 = arith.addf %119, %122 : vector<8x1xf32>
    %124 = math.rsqrt %123 : vector<8x1xf32>
    %125 = vector.broadcast %124 : vector<8x1xf32> to vector<8x64xf32>
    %126 = arith.mulf %121, %125 : vector<8x64xf32>
    %127 = vector.broadcast %106 : vector<1x64xf32> to vector<8x64xf32>
    %128 = arith.mulf %126, %127 : vector<8x64xf32>
    %129 = vector.broadcast %108 : vector<1x64xf32> to vector<8x64xf32>
    %130 = arith.addf %128, %129 : vector<8x64xf32>
    %131 = arith.truncf %130 : vector<8x64xf32> to vector<8x64xbf16>
    %c1 = arith.constant 1 : index
    %c0_83 = arith.constant 0 : index
    %c0_84 = arith.constant 0 : index
    %132 = vector.load %arg4[%c1, %c0_83, %c0_84] : memref<2x64x64xbf16, #tpu.memory_space<vmem>>, vector<1x64x64xbf16>
    %133 = vector.shape_cast %132 : vector<1x64x64xbf16> to vector<64x64xbf16>
    %cst_85 = arith.constant dense<0.000000e+00> : vector<8x64xf32>
    %134 = tpu.matmul %131, %133, %cst_85 {dimension_numbers = #tpu.dot_dimension_numbers<[1], [0], [0], [1], [0, 0, 1, 1], [], []>} : vector<8x64xbf16>, vector<64x64xbf16>, vector<8x64xf32> -> vector<8x64xf32>
    %c1_86 = arith.constant 1 : index
    %c0_87 = arith.constant 0 : index
    %c0_88 = arith.constant 0 : index
    %135 = vector.load %arg5[%c1_86, %c0_87, %c0_88] : memref<2x1x64xf32, #tpu.memory_space<vmem>>, vector<1x1x64xf32>
    %136 = vector.shape_cast %135 : vector<1x1x64xf32> to vector<1x64xf32>
    %137 = vector.broadcast %136 : vector<1x64xf32> to vector<8x64xf32>
    %138 = arith.addf %134, %137 : vector<8x64xf32>
    %139 = arith.addf %130, %138 : vector<8x64xf32>
    %c1_89 = arith.constant 1 : index
    %c0_90 = arith.constant 0 : index
    %c0_91 = arith.constant 0 : index
    %140 = vector.load %arg6[%c1_89, %c0_90, %c0_91] : memref<2x1x64xf32, #tpu.memory_space<vmem>>, vector<1x1x64xf32>
    %141 = vector.shape_cast %140 : vector<1x1x64xf32> to vector<1x64xf32>
    %c1_92 = arith.constant 1 : index
    %c0_93 = arith.constant 0 : index
    %c0_94 = arith.constant 0 : index
    %142 = vector.load %arg7[%c1_92, %c0_93, %c0_94] : memref<2x1x64xf32, #tpu.memory_space<vmem>>, vector<1x1x64xf32>
    %143 = vector.shape_cast %142 : vector<1x1x64xf32> to vector<1x64xf32>
    %cst_95 = arith.constant dense<0.000000e+00> : vector<8xf32>
    %144 = vector.multi_reduction <add>, %139, %cst_95 [1] : vector<8x64xf32> to vector<8xf32>
    %145 = vector.shape_cast %144 : vector<8xf32> to vector<8x1xf32>
    %cst_96 = arith.constant 6.400000e+01 : f32
    %146 = vector.broadcast %cst_96 : f32 to vector<8x1xf32>
    %147 = arith.divf %145, %146 : vector<8x1xf32>
    %148 = vector.broadcast %147 : vector<8x1xf32> to vector<8x64xf32>
    %149 = arith.subf %139, %148 : vector<8x64xf32>
    %150 = arith.mulf %149, %149 : vector<8x64xf32>
    %cst_97 = arith.constant dense<0.000000e+00> : vector<8xf32>
    %151 = vector.multi_reduction <add>, %150, %cst_97 [1] : vector<8x64xf32> to vector<8xf32>
    %152 = vector.shape_cast %151 : vector<8xf32> to vector<8x1xf32>
    %cst_98 = arith.constant 6.400000e+01 : f32
    %153 = vector.broadcast %cst_98 : f32 to vector<8x1xf32>
    %154 = arith.divf %152, %153 : vector<8x1xf32>
    %155 = vector.broadcast %147 : vector<8x1xf32> to vector<8x64xf32>
    %156 = arith.subf %139, %155 : vector<8x64xf32>
    %cst_99 = arith.constant 9.99999974E-6 : f32
    %157 = vector.broadcast %cst_99 : f32 to vector<8x1xf32>
    %158 = arith.addf %154, %157 : vector<8x1xf32>
    %159 = math.rsqrt %158 : vector<8x1xf32>
    %160 = vector.broadcast %159 : vector<8x1xf32> to vector<8x64xf32>
    %161 = arith.mulf %156, %160 : vector<8x64xf32>
    %162 = vector.broadcast %141 : vector<1x64xf32> to vector<8x64xf32>
    %163 = arith.mulf %161, %162 : vector<8x64xf32>
    %164 = vector.broadcast %143 : vector<1x64xf32> to vector<8x64xf32>
    %165 = arith.addf %163, %164 : vector<8x64xf32>
    %166 = arith.truncf %165 : vector<8x64xf32> to vector<8x64xbf16>
    %cst_100 = arith.constant 0.000000e+00 : f32
    %167 = vector.broadcast %cst_100 : f32 to vector<8x64xf32>
    %c1_101 = arith.constant 1 : index
    %c0_102 = arith.constant 0 : index
    %c0_103 = arith.constant 0 : index
    %168 = vector.load %arg8[%c1_101, %c0_102, %c0_103] : memref<2x64x2048xbf16, #tpu.memory_space<vmem>>, vector<1x64x512xbf16>
    %169 = vector.shape_cast %168 : vector<1x64x512xbf16> to vector<64x512xbf16>
    %cst_104 = arith.constant dense<0.000000e+00> : vector<8x512xf32>
    %170 = tpu.matmul %166, %169, %cst_104 {dimension_numbers = #tpu.dot_dimension_numbers<[1], [0], [0], [1], [0, 0, 1, 1], [], []>} : vector<8x64xbf16>, vector<64x512xbf16>, vector<8x512xf32> -> vector<8x512xf32>
    %c1_105 = arith.constant 1 : index
    %c0_106 = arith.constant 0 : index
    %c0_107 = arith.constant 0 : index
    %171 = vector.load %arg9[%c1_105, %c0_106, %c0_107] : memref<2x1x2048xf32, #tpu.memory_space<vmem>>, vector<1x1x512xf32>
    %172 = vector.shape_cast %171 : vector<1x1x512xf32> to vector<1x512xf32>
    %173 = vector.broadcast %172 : vector<1x512xf32> to vector<8x512xf32>
    %174 = arith.addf %170, %173 : vector<8x512xf32>
    %cst_108 = arith.constant 0.000000e+00 : f32
    %175 = vector.broadcast %cst_108 : f32 to vector<8x512xf32>
    %176 = arith.maximumf %174, %175 : vector<8x512xf32>
    %177 = arith.truncf %176 : vector<8x512xf32> to vector<8x512xbf16>
    %c1_109 = arith.constant 1 : index
    %c0_110 = arith.constant 0 : index
    %c0_111 = arith.constant 0 : index
    %178 = vector.load %arg10[%c1_109, %c0_110, %c0_111] : memref<2x2048x64xbf16, #tpu.memory_space<vmem>>, vector<1x512x64xbf16>
    %179 = vector.shape_cast %178 : vector<1x512x64xbf16> to vector<512x64xbf16>
    %cst_112 = arith.constant dense<0.000000e+00> : vector<8x64xf32>
    %180 = tpu.matmul %177, %179, %cst_112 {dimension_numbers = #tpu.dot_dimension_numbers<[1], [0], [0], [1], [0, 0, 1, 1], [], []>} : vector<8x512xbf16>, vector<512x64xbf16>, vector<8x64xf32> -> vector<8x64xf32>
    %181 = arith.addf %167, %180 : vector<8x64xf32>
    %c1_113 = arith.constant 1 : index
    %c0_114 = arith.constant 0 : index
    %c512_115 = arith.constant 512 : index
    %182 = vector.load %arg8[%c1_113, %c0_114, %c512_115] : memref<2x64x2048xbf16, #tpu.memory_space<vmem>>, vector<1x64x512xbf16>
    %183 = vector.shape_cast %182 : vector<1x64x512xbf16> to vector<64x512xbf16>
    %cst_116 = arith.constant dense<0.000000e+00> : vector<8x512xf32>
    %184 = tpu.matmul %166, %183, %cst_116 {dimension_numbers = #tpu.dot_dimension_numbers<[1], [0], [0], [1], [0, 0, 1, 1], [], []>} : vector<8x64xbf16>, vector<64x512xbf16>, vector<8x512xf32> -> vector<8x512xf32>
    %c1_117 = arith.constant 1 : index
    %c0_118 = arith.constant 0 : index
    %c512_119 = arith.constant 512 : index
    %185 = vector.load %arg9[%c1_117, %c0_118, %c512_119] : memref<2x1x2048xf32, #tpu.memory_space<vmem>>, vector<1x1x512xf32>
    %186 = vector.shape_cast %185 : vector<1x1x512xf32> to vector<1x512xf32>
    %187 = vector.broadcast %186 : vector<1x512xf32> to vector<8x512xf32>
    %188 = arith.addf %184, %187 : vector<8x512xf32>
    %cst_120 = arith.constant 0.000000e+00 : f32
    %189 = vector.broadcast %cst_120 : f32 to vector<8x512xf32>
    %190 = arith.maximumf %188, %189 : vector<8x512xf32>
    %191 = arith.truncf %190 : vector<8x512xf32> to vector<8x512xbf16>
    %c1_121 = arith.constant 1 : index
    %c512_122 = arith.constant 512 : index
    %c0_123 = arith.constant 0 : index
    %192 = vector.load %arg10[%c1_121, %c512_122, %c0_123] : memref<2x2048x64xbf16, #tpu.memory_space<vmem>>, vector<1x512x64xbf16>
    %193 = vector.shape_cast %192 : vector<1x512x64xbf16> to vector<512x64xbf16>
    %cst_124 = arith.constant dense<0.000000e+00> : vector<8x64xf32>
    %194 = tpu.matmul %191, %193, %cst_124 {dimension_numbers = #tpu.dot_dimension_numbers<[1], [0], [0], [1], [0, 0, 1, 1], [], []>} : vector<8x512xbf16>, vector<512x64xbf16>, vector<8x64xf32> -> vector<8x64xf32>
    %195 = arith.addf %181, %194 : vector<8x64xf32>
    %c1_125 = arith.constant 1 : index
    %c0_126 = arith.constant 0 : index
    %c1024_127 = arith.constant 1024 : index
    %196 = vector.load %arg8[%c1_125, %c0_126, %c1024_127] : memref<2x64x2048xbf16, #tpu.memory_space<vmem>>, vector<1x64x512xbf16>
    %197 = vector.shape_cast %196 : vector<1x64x512xbf16> to vector<64x512xbf16>
    %cst_128 = arith.constant dense<0.000000e+00> : vector<8x512xf32>
    %198 = tpu.matmul %166, %197, %cst_128 {dimension_numbers = #tpu.dot_dimension_numbers<[1], [0], [0], [1], [0, 0, 1, 1], [], []>} : vector<8x64xbf16>, vector<64x512xbf16>, vector<8x512xf32> -> vector<8x512xf32>
    %c1_129 = arith.constant 1 : index
    %c0_130 = arith.constant 0 : index
    %c1024_131 = arith.constant 1024 : index
    %199 = vector.load %arg9[%c1_129, %c0_130, %c1024_131] : memref<2x1x2048xf32, #tpu.memory_space<vmem>>, vector<1x1x512xf32>
    %200 = vector.shape_cast %199 : vector<1x1x512xf32> to vector<1x512xf32>
    %201 = vector.broadcast %200 : vector<1x512xf32> to vector<8x512xf32>
    %202 = arith.addf %198, %201 : vector<8x512xf32>
    %cst_132 = arith.constant 0.000000e+00 : f32
    %203 = vector.broadcast %cst_132 : f32 to vector<8x512xf32>
    %204 = arith.maximumf %202, %203 : vector<8x512xf32>
    %205 = arith.truncf %204 : vector<8x512xf32> to vector<8x512xbf16>
    %c1_133 = arith.constant 1 : index
    %c1024_134 = arith.constant 1024 : index
    %c0_135 = arith.constant 0 : index
    %206 = vector.load %arg10[%c1_133, %c1024_134, %c0_135] : memref<2x2048x64xbf16, #tpu.memory_space<vmem>>, vector<1x512x64xbf16>
    %207 = vector.shape_cast %206 : vector<1x512x64xbf16> to vector<512x64xbf16>
    %cst_136 = arith.constant dense<0.000000e+00> : vector<8x64xf32>
    %208 = tpu.matmul %205, %207, %cst_136 {dimension_numbers = #tpu.dot_dimension_numbers<[1], [0], [0], [1], [0, 0, 1, 1], [], []>} : vector<8x512xbf16>, vector<512x64xbf16>, vector<8x64xf32> -> vector<8x64xf32>
    %209 = arith.addf %195, %208 : vector<8x64xf32>
    %c1_137 = arith.constant 1 : index
    %c0_138 = arith.constant 0 : index
    %c1536_139 = arith.constant 1536 : index
    %210 = vector.load %arg8[%c1_137, %c0_138, %c1536_139] : memref<2x64x2048xbf16, #tpu.memory_space<vmem>>, vector<1x64x512xbf16>
    %211 = vector.shape_cast %210 : vector<1x64x512xbf16> to vector<64x512xbf16>
    %cst_140 = arith.constant dense<0.000000e+00> : vector<8x512xf32>
    %212 = tpu.matmul %166, %211, %cst_140 {dimension_numbers = #tpu.dot_dimension_numbers<[1], [0], [0], [1], [0, 0, 1, 1], [], []>} : vector<8x64xbf16>, vector<64x512xbf16>, vector<8x512xf32> -> vector<8x512xf32>
    %c1_141 = arith.constant 1 : index
    %c0_142 = arith.constant 0 : index
    %c1536_143 = arith.constant 1536 : index
    %213 = vector.load %arg9[%c1_141, %c0_142, %c1536_143] : memref<2x1x2048xf32, #tpu.memory_space<vmem>>, vector<1x1x512xf32>
    %214 = vector.shape_cast %213 : vector<1x1x512xf32> to vector<1x512xf32>
    %215 = vector.broadcast %214 : vector<1x512xf32> to vector<8x512xf32>
    %216 = arith.addf %212, %215 : vector<8x512xf32>
    %cst_144 = arith.constant 0.000000e+00 : f32
    %217 = vector.broadcast %cst_144 : f32 to vector<8x512xf32>
    %218 = arith.maximumf %216, %217 : vector<8x512xf32>
    %219 = arith.truncf %218 : vector<8x512xf32> to vector<8x512xbf16>
    %c1_145 = arith.constant 1 : index
    %c1536_146 = arith.constant 1536 : index
    %c0_147 = arith.constant 0 : index
    %220 = vector.load %arg10[%c1_145, %c1536_146, %c0_147] : memref<2x2048x64xbf16, #tpu.memory_space<vmem>>, vector<1x512x64xbf16>
    %221 = vector.shape_cast %220 : vector<1x512x64xbf16> to vector<512x64xbf16>
    %cst_148 = arith.constant dense<0.000000e+00> : vector<8x64xf32>
    %222 = tpu.matmul %219, %221, %cst_148 {dimension_numbers = #tpu.dot_dimension_numbers<[1], [0], [0], [1], [0, 0, 1, 1], [], []>} : vector<8x512xbf16>, vector<512x64xbf16>, vector<8x64xf32> -> vector<8x64xf32>
    %223 = arith.addf %209, %222 : vector<8x64xf32>
    %224 = arith.addf %165, %223 : vector<8x64xf32>
    %c1_149 = arith.constant 1 : index
    %c0_150 = arith.constant 0 : index
    %c0_151 = arith.constant 0 : index
    %225 = vector.load %arg11[%c1_149, %c0_150, %c0_151] : memref<2x1x64xf32, #tpu.memory_space<vmem>>, vector<1x1x64xf32>
    %226 = vector.shape_cast %225 : vector<1x1x64xf32> to vector<1x64xf32>
    %227 = vector.broadcast %226 : vector<1x64xf32> to vector<8x64xf32>
    %228 = arith.addf %224, %227 : vector<8x64xf32>
    %c1_152 = arith.constant 1 : index
    %c0_153 = arith.constant 0 : index
    %c0_154 = arith.constant 0 : index
    %229 = vector.load %arg12[%c1_152, %c0_153, %c0_154] : memref<2x1x64xf32, #tpu.memory_space<vmem>>, vector<1x1x64xf32>
    %230 = vector.shape_cast %229 : vector<1x1x64xf32> to vector<1x64xf32>
    %c1_155 = arith.constant 1 : index
    %c0_156 = arith.constant 0 : index
    %c0_157 = arith.constant 0 : index
    %231 = vector.load %arg13[%c1_155, %c0_156, %c0_157] : memref<2x1x64xf32, #tpu.memory_space<vmem>>, vector<1x1x64xf32>
    %232 = vector.shape_cast %231 : vector<1x1x64xf32> to vector<1x64xf32>
    %cst_158 = arith.constant dense<0.000000e+00> : vector<8xf32>
    %233 = vector.multi_reduction <add>, %228, %cst_158 [1] : vector<8x64xf32> to vector<8xf32>
    %234 = vector.shape_cast %233 : vector<8xf32> to vector<8x1xf32>
    %cst_159 = arith.constant 6.400000e+01 : f32
    %235 = vector.broadcast %cst_159 : f32 to vector<8x1xf32>
    %236 = arith.divf %234, %235 : vector<8x1xf32>
    %237 = vector.broadcast %236 : vector<8x1xf32> to vector<8x64xf32>
    %238 = arith.subf %228, %237 : vector<8x64xf32>
    %239 = arith.mulf %238, %238 : vector<8x64xf32>
    %cst_160 = arith.constant dense<0.000000e+00> : vector<8xf32>
    %240 = vector.multi_reduction <add>, %239, %cst_160 [1] : vector<8x64xf32> to vector<8xf32>
    %241 = vector.shape_cast %240 : vector<8xf32> to vector<8x1xf32>
    %cst_161 = arith.constant 6.400000e+01 : f32
    %242 = vector.broadcast %cst_161 : f32 to vector<8x1xf32>
    %243 = arith.divf %241, %242 : vector<8x1xf32>
    %244 = vector.broadcast %236 : vector<8x1xf32> to vector<8x64xf32>
    %245 = arith.subf %228, %244 : vector<8x64xf32>
    %cst_162 = arith.constant 9.99999974E-6 : f32
    %246 = vector.broadcast %cst_162 : f32 to vector<8x1xf32>
    %247 = arith.addf %243, %246 : vector<8x1xf32>
    %248 = math.rsqrt %247 : vector<8x1xf32>
    %249 = vector.broadcast %248 : vector<8x1xf32> to vector<8x64xf32>
    %250 = arith.mulf %245, %249 : vector<8x64xf32>
    %251 = vector.broadcast %230 : vector<1x64xf32> to vector<8x64xf32>
    %252 = arith.mulf %250, %251 : vector<8x64xf32>
    %253 = vector.broadcast %232 : vector<1x64xf32> to vector<8x64xf32>
    %254 = arith.addf %252, %253 : vector<8x64xf32>
    %c0_163 = arith.constant 0 : index
    %c0_164 = arith.constant 0 : index
    %255 = vector.load %arg14[%c0_163, %c0_164] : memref<1x64xf32, #tpu.memory_space<vmem>>, vector<1x64xf32>
    %256 = vector.broadcast %255 : vector<1x64xf32> to vector<8x64xf32>
    %257 = arith.mulf %254, %256 : vector<8x64xf32>
    %cst_165 = arith.constant dense<0.000000e+00> : vector<8xf32>
    %258 = vector.multi_reduction <add>, %257, %cst_165 [1] : vector<8x64xf32> to vector<8xf32>
    %259 = vector.shape_cast %258 : vector<8xf32> to vector<1x8xf32>
    %c0_166 = arith.constant 0 : index
    %c0_167 = arith.constant 0 : index
    %260 = vector.load %arg15[%c0_166, %c0_167] : memref<1x1xf32, #tpu.memory_space<vmem>>, vector<1x1xf32>
    %261 = vector.broadcast %260 : vector<1x1xf32> to vector<1x8xf32>
    %262 = arith.addf %259, %261 : vector<1x8xf32>
    %c0_168 = arith.constant 0 : index
    %c0_169 = arith.constant 0 : index
    %263 = vector.load %arg16[%c0_168, %c0_169] : memref<1x8xf32, #tpu.memory_space<vmem>>, vector<1x8xf32>
    tpu.vector_store %arg16[%c0_168, %c0_169], %262 {strides = array<i32>} : memref<1x8xf32, #tpu.memory_space<vmem>>, vector<1x8xf32>,
    return
  }
  func.func @transform_0(%arg0: i32) -> (i32, i32) {
    %c0_i32 = arith.constant 0 : i32
    %c0_i32_0 = arith.constant 0 : i32
    return %arg0, %c0_i32 : i32, i32
  }
  func.func @transform_1(%arg0: i32) -> (i32, i32) {
    %c0_i32 = arith.constant 0 : i32
    %c0_i32_0 = arith.constant 0 : i32
    %c0_i32_1 = arith.constant 0 : i32
    return %c0_i32, %c0_i32_0 : i32, i32
  }
  func.func @transform_2(%arg0: i32) -> (i32, i32) {
    %c0_i32 = arith.constant 0 : i32
    %c0_i32_0 = arith.constant 0 : i32
    %c0_i32_1 = arith.constant 0 : i32
    return %c0_i32, %c0_i32_0 : i32, i32
  }
  func.func @transform_3(%arg0: i32) -> (i32, i32, i32) {
    %c0_i32 = arith.constant 0 : i32
    %c0_i32_0 = arith.constant 0 : i32
    %c0_i32_1 = arith.constant 0 : i32
    %c0_i32_2 = arith.constant 0 : i32
    return %c0_i32, %c0_i32_0, %c0_i32_1 : i32, i32, i32
  }
  func.func @transform_4(%arg0: i32) -> (i32, i32, i32) {
    %c0_i32 = arith.constant 0 : i32
    %c0_i32_0 = arith.constant 0 : i32
    %c0_i32_1 = arith.constant 0 : i32
    %c0_i32_2 = arith.constant 0 : i32
    return %c0_i32, %c0_i32_0, %c0_i32_1 : i32, i32, i32
  }
  func.func @transform_5(%arg0: i32) -> (i32, i32, i32) {
    %c0_i32 = arith.constant 0 : i32
    %c0_i32_0 = arith.constant 0 : i32
    %c0_i32_1 = arith.constant 0 : i32
    %c0_i32_2 = arith.constant 0 : i32
    return %c0_i32, %c0_i32_0, %c0_i32_1 : i32, i32, i32
  }
  func.func @transform_6(%arg0: i32) -> (i32, i32, i32) {
    %c0_i32 = arith.constant 0 : i32
    %c0_i32_0 = arith.constant 0 : i32
    %c0_i32_1 = arith.constant 0 : i32
    %c0_i32_2 = arith.constant 0 : i32
    return %c0_i32, %c0_i32_0, %c0_i32_1 : i32, i32, i32
  }
  func.func @transform_7(%arg0: i32) -> (i32, i32, i32) {
    %c0_i32 = arith.constant 0 : i32
    %c0_i32_0 = arith.constant 0 : i32
    %c0_i32_1 = arith.constant 0 : i32
    %c0_i32_2 = arith.constant 0 : i32
    return %c0_i32, %c0_i32_0, %c0_i32_1 : i32, i32, i32
  }
  func.func @transform_8(%arg0: i32) -> (i32, i32, i32) {
    %c0_i32 = arith.constant 0 : i32
    %c0_i32_0 = arith.constant 0 : i32
    %c0_i32_1 = arith.constant 0 : i32
    %c0_i32_2 = arith.constant 0 : i32
    return %c0_i32, %c0_i32_0, %c0_i32_1 : i32, i32, i32
  }
  func.func @transform_9(%arg0: i32) -> (i32, i32, i32) {
    %c0_i32 = arith.constant 0 : i32
    %c0_i32_0 = arith.constant 0 : i32
    %c0_i32_1 = arith.constant 0 : i32
    %c0_i32_2 = arith.constant 0 : i32
    return %c0_i32, %c0_i32_0, %c0_i32_1 : i32, i32, i32
  }
  func.func @transform_10(%arg0: i32) -> (i32, i32, i32) {
    %c0_i32 = arith.constant 0 : i32
    %c0_i32_0 = arith.constant 0 : i32
    %c0_i32_1 = arith.constant 0 : i32
    %c0_i32_2 = arith.constant 0 : i32
    return %c0_i32, %c0_i32_0, %c0_i32_1 : i32, i32, i32
  }
  func.func @transform_11(%arg0: i32) -> (i32, i32, i32) {
    %c0_i32 = arith.constant 0 : i32
    %c0_i32_0 = arith.constant 0 : i32
    %c0_i32_1 = arith.constant 0 : i32
    %c0_i32_2 = arith.constant 0 : i32
    return %c0_i32, %c0_i32_0, %c0_i32_1 : i32, i32, i32
  }
  func.func @transform_12(%arg0: i32) -> (i32, i32, i32) {
    %c0_i32 = arith.constant 0 : i32
    %c0_i32_0 = arith.constant 0 : i32
    %c0_i32_1 = arith.constant 0 : i32
    %c0_i32_2 = arith.constant 0 : i32
    return %c0_i32, %c0_i32_0, %c0_i32_1 : i32, i32, i32
  }
  func.func @transform_13(%arg0: i32) -> (i32, i32) {
    %c0_i32 = arith.constant 0 : i32
    %c0_i32_0 = arith.constant 0 : i32
    %c0_i32_1 = arith.constant 0 : i32
    return %c0_i32, %c0_i32_0 : i32, i32
  }
  func.func @transform_14(%arg0: i32) -> (i32, i32) {
    %c0_i32 = arith.constant 0 : i32
    %c0_i32_0 = arith.constant 0 : i32
    %c0_i32_1 = arith.constant 0 : i32
    return %c0_i32, %c0_i32_0 : i32, i32
  }
  func.func @transform_15(%arg0: i32) -> (i32, i32) {
    %c0_i32 = arith.constant 0 : i32
    %c0_i32_0 = arith.constant 0 : i32
    return %arg0, %c0_i32 : i32, i32
  }
}

module attributes {stable_mosaic.version = 11 : i64} {
  func.func @_fused_forward_kernel(%arg0: i32, %arg1: memref<8x16xf32, #tpu.memory_space<vmem>>, %arg2: memref<16x64xbf16, #tpu.memory_space<vmem>>, %arg3: memref<1x64xf32, #tpu.memory_space<vmem>>, %arg4: memref<2x64x64xbf16, #tpu.memory_space<vmem>>, %arg5: memref<2x1x64xf32, #tpu.memory_space<vmem>>, %arg6: memref<2x1x64xf32, #tpu.memory_space<vmem>>, %arg7: memref<2x1x64xf32, #tpu.memory_space<vmem>>, %arg8: memref<2x64x2048xbf16, #tpu.memory_space<vmem>>, %arg9: memref<2x1x2048xf32, #tpu.memory_space<vmem>>, %arg10: memref<2x2048x64xbf16, #tpu.memory_space<vmem>>, %arg11: memref<2x1x64xf32, #tpu.memory_space<vmem>>, %arg12: memref<2x1x64xf32, #tpu.memory_space<vmem>>, %arg13: memref<2x1x64xf32, #tpu.memory_space<vmem>>, %arg14: memref<1x64xf32, #tpu.memory_space<vmem>>, %arg15: memref<1x1xf32, #tpu.memory_space<vmem>>, %arg16: memref<1x8xf32, #tpu.memory_space<vmem>>) attributes {dimension_semantics = [#tpu.dimension_semantics<parallel>], iteration_bounds = array<i64: 1>, scalar_prefetch = 0 : i64, scratch_operands = 0 : i64, tpu.core_type = #tpu.core_type<tc>, window_params = [{transform_indices = @transform_0, window_bounds = array<i64: 8, 16>}, {pipeline_mode = #tpu.pipeline_mode<synchronous>, transform_indices = @transform_1, window_bounds = array<i64: 16, 64>}, {pipeline_mode = #tpu.pipeline_mode<synchronous>, transform_indices = @transform_2, window_bounds = array<i64: 1, 64>}, {pipeline_mode = #tpu.pipeline_mode<synchronous>, transform_indices = @transform_3, window_bounds = array<i64: 2, 64, 64>}, {pipeline_mode = #tpu.pipeline_mode<synchronous>, transform_indices = @transform_4, window_bounds = array<i64: 2, 1, 64>}, {pipeline_mode = #tpu.pipeline_mode<synchronous>, transform_indices = @transform_5, window_bounds = array<i64: 2, 1, 64>}, {pipeline_mode = #tpu.pipeline_mode<synchronous>, transform_indices = @transform_6, window_bounds = array<i64: 2, 1, 64>}, {pipeline_mode = #tpu.pipeline_mode<synchronous>, transform_indices = @transform_7, window_bounds = array<i64: 2, 64, 2048>}, {pipeline_mode = #tpu.pipeline_mode<synchronous>, transform_indices = @transform_8, window_bounds = array<i64: 2, 1, 2048>}, {pipeline_mode = #tpu.pipeline_mode<synchronous>, transform_indices = @transform_9, window_bounds = array<i64: 2, 2048, 64>}, {pipeline_mode = #tpu.pipeline_mode<synchronous>, transform_indices = @transform_10, window_bounds = array<i64: 2, 1, 64>}, {pipeline_mode = #tpu.pipeline_mode<synchronous>, transform_indices = @transform_11, window_bounds = array<i64: 2, 1, 64>}, {pipeline_mode = #tpu.pipeline_mode<synchronous>, transform_indices = @transform_12, window_bounds = array<i64: 2, 1, 64>}, {pipeline_mode = #tpu.pipeline_mode<synchronous>, transform_indices = @transform_13, window_bounds = array<i64: 1, 64>}, {pipeline_mode = #tpu.pipeline_mode<synchronous>, transform_indices = @transform_14, window_bounds = array<i64: 1, 1>}, {transform_indices = @transform_15, window_bounds = array<i64: 1, 8>}]} {
    %c0 = arith.constant 0 : index
    %c0_0 = arith.constant 0 : index
    %0 = vector.load %arg1[%c0, %c0_0] : memref<8x16xf32, #tpu.memory_space<vmem>>, vector<8x16xf32>
    %1 = arith.truncf %0 : vector<8x16xf32> to vector<8x16xbf16>
    %c0_1 = arith.constant 0 : index
    %c0_2 = arith.constant 0 : index
    %2 = vector.load %arg2[%c0_1, %c0_2] : memref<16x64xbf16, #tpu.memory_space<vmem>>, vector<16x64xbf16>
    %cst = arith.constant dense<0.000000e+00> : vector<8x64xf32>
    %3 = tpu.matmul %1, %2, %cst {dimension_numbers = #tpu.dot_dimension_numbers<[1], [0], [0], [1], [0, 0, 1, 1], [], []>} : vector<8x16xbf16>, vector<16x64xbf16>, vector<8x64xf32> -> vector<8x64xf32>
    %c0_3 = arith.constant 0 : index
    %c0_4 = arith.constant 0 : index
    %4 = vector.load %arg3[%c0_3, %c0_4] : memref<1x64xf32, #tpu.memory_space<vmem>>, vector<1x64xf32>
    %5 = vector.broadcast %4 : vector<1x64xf32> to vector<8x64xf32>
    %6 = arith.addf %3, %5 : vector<8x64xf32>
    %7 = arith.truncf %6 : vector<8x64xf32> to vector<8x64xbf16>
    %c0_5 = arith.constant 0 : index
    %c0_6 = arith.constant 0 : index
    %c0_7 = arith.constant 0 : index
    %8 = vector.load %arg4[%c0_5, %c0_6, %c0_7] : memref<2x64x64xbf16, #tpu.memory_space<vmem>>, vector<1x64x64xbf16>
    %9 = vector.shape_cast %8 : vector<1x64x64xbf16> to vector<64x64xbf16>
    %cst_8 = arith.constant dense<0.000000e+00> : vector<8x64xf32>
    %10 = tpu.matmul %7, %9, %cst_8 {dimension_numbers = #tpu.dot_dimension_numbers<[1], [0], [0], [1], [0, 0, 1, 1], [], []>} : vector<8x64xbf16>, vector<64x64xbf16>, vector<8x64xf32> -> vector<8x64xf32>
    %c0_9 = arith.constant 0 : index
    %c0_10 = arith.constant 0 : index
    %c0_11 = arith.constant 0 : index
    %11 = vector.load %arg5[%c0_9, %c0_10, %c0_11] : memref<2x1x64xf32, #tpu.memory_space<vmem>>, vector<1x1x64xf32>
    %12 = vector.shape_cast %11 : vector<1x1x64xf32> to vector<1x64xf32>
    %13 = vector.broadcast %12 : vector<1x64xf32> to vector<8x64xf32>
    %14 = arith.addf %10, %13 : vector<8x64xf32>
    %15 = arith.addf %6, %14 : vector<8x64xf32>
    %c0_12 = arith.constant 0 : index
    %c0_13 = arith.constant 0 : index
    %c0_14 = arith.constant 0 : index
    %16 = vector.load %arg6[%c0_12, %c0_13, %c0_14] : memref<2x1x64xf32, #tpu.memory_space<vmem>>, vector<1x1x64xf32>
    %17 = vector.shape_cast %16 : vector<1x1x64xf32> to vector<1x64xf32>
    %c0_15 = arith.constant 0 : index
    %c0_16 = arith.constant 0 : index
    %c0_17 = arith.constant 0 : index
    %18 = vector.load %arg7[%c0_15, %c0_16, %c0_17] : memref<2x1x64xf32, #tpu.memory_space<vmem>>, vector<1x1x64xf32>
    %19 = vector.shape_cast %18 : vector<1x1x64xf32> to vector<1x64xf32>
    %cst_18 = arith.constant dense<0.000000e+00> : vector<8xf32>
    %20 = vector.multi_reduction <add>, %15, %cst_18 [1] : vector<8x64xf32> to vector<8xf32>
    %21 = vector.shape_cast %20 : vector<8xf32> to vector<8x1xf32>
    %cst_19 = arith.constant 6.400000e+01 : f32
    %22 = vector.broadcast %cst_19 : f32 to vector<8x1xf32>
    %23 = arith.divf %21, %22 : vector<8x1xf32>
    %24 = vector.broadcast %23 : vector<8x1xf32> to vector<8x64xf32>
    %25 = arith.subf %15, %24 : vector<8x64xf32>
    %26 = arith.mulf %25, %25 : vector<8x64xf32>
    %cst_20 = arith.constant dense<0.000000e+00> : vector<8xf32>
    %27 = vector.multi_reduction <add>, %26, %cst_20 [1] : vector<8x64xf32> to vector<8xf32>
    %28 = vector.shape_cast %27 : vector<8xf32> to vector<8x1xf32>
    %cst_21 = arith.constant 6.400000e+01 : f32
    %29 = vector.broadcast %cst_21 : f32 to vector<8x1xf32>
    %30 = arith.divf %28, %29 : vector<8x1xf32>
    %31 = vector.broadcast %23 : vector<8x1xf32> to vector<8x64xf32>
    %32 = arith.subf %15, %31 : vector<8x64xf32>
    %cst_22 = arith.constant 9.99999974E-6 : f32
    %33 = vector.broadcast %cst_22 : f32 to vector<8x1xf32>
    %34 = arith.addf %30, %33 : vector<8x1xf32>
    %35 = math.rsqrt %34 : vector<8x1xf32>
    %36 = vector.broadcast %35 : vector<8x1xf32> to vector<8x64xf32>
    %37 = arith.mulf %32, %36 : vector<8x64xf32>
    %38 = vector.broadcast %17 : vector<1x64xf32> to vector<8x64xf32>
    %39 = arith.mulf %37, %38 : vector<8x64xf32>
    %40 = vector.broadcast %19 : vector<1x64xf32> to vector<8x64xf32>
    %41 = arith.addf %39, %40 : vector<8x64xf32>
    %42 = arith.truncf %41 : vector<8x64xf32> to vector<8x64xbf16>
    %cst_23 = arith.constant 0.000000e+00 : f32
    %43 = vector.broadcast %cst_23 : f32 to vector<8x64xf32>
    %c0_24 = arith.constant 0 : index
    %c0_25 = arith.constant 0 : index
    %c0_26 = arith.constant 0 : index
    %44 = vector.load %arg8[%c0_24, %c0_25, %c0_26] : memref<2x64x2048xbf16, #tpu.memory_space<vmem>>, vector<1x64x512xbf16>
    %45 = vector.shape_cast %44 : vector<1x64x512xbf16> to vector<64x512xbf16>
    %cst_27 = arith.constant dense<0.000000e+00> : vector<8x512xf32>
    %46 = tpu.matmul %42, %45, %cst_27 {dimension_numbers = #tpu.dot_dimension_numbers<[1], [0], [0], [1], [0, 0, 1, 1], [], []>} : vector<8x64xbf16>, vector<64x512xbf16>, vector<8x512xf32> -> vector<8x512xf32>
    %c0_28 = arith.constant 0 : index
    %c0_29 = arith.constant 0 : index
    %c0_30 = arith.constant 0 : index
    %47 = vector.load %arg9[%c0_28, %c0_29, %c0_30] : memref<2x1x2048xf32, #tpu.memory_space<vmem>>, vector<1x1x512xf32>
    %48 = vector.shape_cast %47 : vector<1x1x512xf32> to vector<1x512xf32>
    %49 = vector.broadcast %48 : vector<1x512xf32> to vector<8x512xf32>
    %50 = arith.addf %46, %49 : vector<8x512xf32>
    %cst_31 = arith.constant 0.000000e+00 : f32
    %51 = vector.broadcast %cst_31 : f32 to vector<8x512xf32>
    %52 = arith.maximumf %50, %51 : vector<8x512xf32>
    %53 = arith.truncf %52 : vector<8x512xf32> to vector<8x512xbf16>
    %c0_32 = arith.constant 0 : index
    %c0_33 = arith.constant 0 : index
    %c0_34 = arith.constant 0 : index
    %54 = vector.load %arg10[%c0_32, %c0_33, %c0_34] : memref<2x2048x64xbf16, #tpu.memory_space<vmem>>, vector<1x512x64xbf16>
    %55 = vector.shape_cast %54 : vector<1x512x64xbf16> to vector<512x64xbf16>
    %cst_35 = arith.constant dense<0.000000e+00> : vector<8x64xf32>
    %56 = tpu.matmul %53, %55, %cst_35 {dimension_numbers = #tpu.dot_dimension_numbers<[1], [0], [0], [1], [0, 0, 1, 1], [], []>} : vector<8x512xbf16>, vector<512x64xbf16>, vector<8x64xf32> -> vector<8x64xf32>
    %57 = arith.addf %43, %56 : vector<8x64xf32>
    %c0_36 = arith.constant 0 : index
    %c0_37 = arith.constant 0 : index
    %c512 = arith.constant 512 : index
    %58 = vector.load %arg8[%c0_36, %c0_37, %c512] : memref<2x64x2048xbf16, #tpu.memory_space<vmem>>, vector<1x64x512xbf16>
    %59 = vector.shape_cast %58 : vector<1x64x512xbf16> to vector<64x512xbf16>
    %cst_38 = arith.constant dense<0.000000e+00> : vector<8x512xf32>
    %60 = tpu.matmul %42, %59, %cst_38 {dimension_numbers = #tpu.dot_dimension_numbers<[1], [0], [0], [1], [0, 0, 1, 1], [], []>} : vector<8x64xbf16>, vector<64x512xbf16>, vector<8x512xf32> -> vector<8x512xf32>
    %c0_39 = arith.constant 0 : index
    %c0_40 = arith.constant 0 : index
    %c512_41 = arith.constant 512 : index
    %61 = vector.load %arg9[%c0_39, %c0_40, %c512_41] : memref<2x1x2048xf32, #tpu.memory_space<vmem>>, vector<1x1x512xf32>
    %62 = vector.shape_cast %61 : vector<1x1x512xf32> to vector<1x512xf32>
    %63 = vector.broadcast %62 : vector<1x512xf32> to vector<8x512xf32>
    %64 = arith.addf %60, %63 : vector<8x512xf32>
    %cst_42 = arith.constant 0.000000e+00 : f32
    %65 = vector.broadcast %cst_42 : f32 to vector<8x512xf32>
    %66 = arith.maximumf %64, %65 : vector<8x512xf32>
    %67 = arith.truncf %66 : vector<8x512xf32> to vector<8x512xbf16>
    %c0_43 = arith.constant 0 : index
    %c512_44 = arith.constant 512 : index
    %c0_45 = arith.constant 0 : index
    %68 = vector.load %arg10[%c0_43, %c512_44, %c0_45] : memref<2x2048x64xbf16, #tpu.memory_space<vmem>>, vector<1x512x64xbf16>
    %69 = vector.shape_cast %68 : vector<1x512x64xbf16> to vector<512x64xbf16>
    %cst_46 = arith.constant dense<0.000000e+00> : vector<8x64xf32>
    %70 = tpu.matmul %67, %69, %cst_46 {dimension_numbers = #tpu.dot_dimension_numbers<[1], [0], [0], [1], [0, 0, 1, 1], [], []>} : vector<8x512xbf16>, vector<512x64xbf16>, vector<8x64xf32> -> vector<8x64xf32>
    %71 = arith.addf %57, %70 : vector<8x64xf32>
    %c0_47 = arith.constant 0 : index
    %c0_48 = arith.constant 0 : index
    %c1024 = arith.constant 1024 : index
    %72 = vector.load %arg8[%c0_47, %c0_48, %c1024] : memref<2x64x2048xbf16, #tpu.memory_space<vmem>>, vector<1x64x512xbf16>
    %73 = vector.shape_cast %72 : vector<1x64x512xbf16> to vector<64x512xbf16>
    %cst_49 = arith.constant dense<0.000000e+00> : vector<8x512xf32>
    %74 = tpu.matmul %42, %73, %cst_49 {dimension_numbers = #tpu.dot_dimension_numbers<[1], [0], [0], [1], [0, 0, 1, 1], [], []>} : vector<8x64xbf16>, vector<64x512xbf16>, vector<8x512xf32> -> vector<8x512xf32>
    %c0_50 = arith.constant 0 : index
    %c0_51 = arith.constant 0 : index
    %c1024_52 = arith.constant 1024 : index
    %75 = vector.load %arg9[%c0_50, %c0_51, %c1024_52] : memref<2x1x2048xf32, #tpu.memory_space<vmem>>, vector<1x1x512xf32>
    %76 = vector.shape_cast %75 : vector<1x1x512xf32> to vector<1x512xf32>
    %77 = vector.broadcast %76 : vector<1x512xf32> to vector<8x512xf32>
    %78 = arith.addf %74, %77 : vector<8x512xf32>
    %cst_53 = arith.constant 0.000000e+00 : f32
    %79 = vector.broadcast %cst_53 : f32 to vector<8x512xf32>
    %80 = arith.maximumf %78, %79 : vector<8x512xf32>
    %81 = arith.truncf %80 : vector<8x512xf32> to vector<8x512xbf16>
    %c0_54 = arith.constant 0 : index
    %c1024_55 = arith.constant 1024 : index
    %c0_56 = arith.constant 0 : index
    %82 = vector.load %arg10[%c0_54, %c1024_55, %c0_56] : memref<2x2048x64xbf16, #tpu.memory_space<vmem>>, vector<1x512x64xbf16>
    %83 = vector.shape_cast %82 : vector<1x512x64xbf16> to vector<512x64xbf16>
    %cst_57 = arith.constant dense<0.000000e+00> : vector<8x64xf32>
    %84 = tpu.matmul %81, %83, %cst_57 {dimension_numbers = #tpu.dot_dimension_numbers<[1], [0], [0], [1], [0, 0, 1, 1], [], []>} : vector<8x512xbf16>, vector<512x64xbf16>, vector<8x64xf32> -> vector<8x64xf32>
    %85 = arith.addf %71, %84 : vector<8x64xf32>
    %c0_58 = arith.constant 0 : index
    %c0_59 = arith.constant 0 : index
    %c1536 = arith.constant 1536 : index
    %86 = vector.load %arg8[%c0_58, %c0_59, %c1536] : memref<2x64x2048xbf16, #tpu.memory_space<vmem>>, vector<1x64x512xbf16>
    %87 = vector.shape_cast %86 : vector<1x64x512xbf16> to vector<64x512xbf16>
    %cst_60 = arith.constant dense<0.000000e+00> : vector<8x512xf32>
    %88 = tpu.matmul %42, %87, %cst_60 {dimension_numbers = #tpu.dot_dimension_numbers<[1], [0], [0], [1], [0, 0, 1, 1], [], []>} : vector<8x64xbf16>, vector<64x512xbf16>, vector<8x512xf32> -> vector<8x512xf32>
    %c0_61 = arith.constant 0 : index
    %c0_62 = arith.constant 0 : index
    %c1536_63 = arith.constant 1536 : index
    %89 = vector.load %arg9[%c0_61, %c0_62, %c1536_63] : memref<2x1x2048xf32, #tpu.memory_space<vmem>>, vector<1x1x512xf32>
    %90 = vector.shape_cast %89 : vector<1x1x512xf32> to vector<1x512xf32>
    %91 = vector.broadcast %90 : vector<1x512xf32> to vector<8x512xf32>
    %92 = arith.addf %88, %91 : vector<8x512xf32>
    %cst_64 = arith.constant 0.000000e+00 : f32
    %93 = vector.broadcast %cst_64 : f32 to vector<8x512xf32>
    %94 = arith.maximumf %92, %93 : vector<8x512xf32>
    %95 = arith.truncf %94 : vector<8x512xf32> to vector<8x512xbf16>
    %c0_65 = arith.constant 0 : index
    %c1536_66 = arith.constant 1536 : index
    %c0_67 = arith.constant 0 : index
    %96 = vector.load %arg10[%c0_65, %c1536_66, %c0_67] : memref<2x2048x64xbf16, #tpu.memory_space<vmem>>, vector<1x512x64xbf16>
    %97 = vector.shape_cast %96 : vector<1x512x64xbf16> to vector<512x64xbf16>
    %cst_68 = arith.constant dense<0.000000e+00> : vector<8x64xf32>
    %98 = tpu.matmul %95, %97, %cst_68 {dimension_numbers = #tpu.dot_dimension_numbers<[1], [0], [0], [1], [0, 0, 1, 1], [], []>} : vector<8x512xbf16>, vector<512x64xbf16>, vector<8x64xf32> -> vector<8x64xf32>
    %99 = arith.addf %85, %98 : vector<8x64xf32>
    %100 = arith.addf %41, %99 : vector<8x64xf32>
    %c0_69 = arith.constant 0 : index
    %c0_70 = arith.constant 0 : index
    %c0_71 = arith.constant 0 : index
    %101 = vector.load %arg11[%c0_69, %c0_70, %c0_71] : memref<2x1x64xf32, #tpu.memory_space<vmem>>, vector<1x1x64xf32>
    %102 = vector.shape_cast %101 : vector<1x1x64xf32> to vector<1x64xf32>
    %103 = vector.broadcast %102 : vector<1x64xf32> to vector<8x64xf32>
    %104 = arith.addf %100, %103 : vector<8x64xf32>
    %c0_72 = arith.constant 0 : index
    %c0_73 = arith.constant 0 : index
    %c0_74 = arith.constant 0 : index
    %105 = vector.load %arg12[%c0_72, %c0_73, %c0_74] : memref<2x1x64xf32, #tpu.memory_space<vmem>>, vector<1x1x64xf32>
    %106 = vector.shape_cast %105 : vector<1x1x64xf32> to vector<1x64xf32>
    %c0_75 = arith.constant 0 : index
    %c0_76 = arith.constant 0 : index
    %c0_77 = arith.constant 0 : index
    %107 = vector.load %arg13[%c0_75, %c0_76, %c0_77] : memref<2x1x64xf32, #tpu.memory_space<vmem>>, vector<1x1x64xf32>
    %108 = vector.shape_cast %107 : vector<1x1x64xf32> to vector<1x64xf32>
    %cst_78 = arith.constant dense<0.000000e+00> : vector<8xf32>
    %109 = vector.multi_reduction <add>, %104, %cst_78 [1] : vector<8x64xf32> to vector<8xf32>
    %110 = vector.shape_cast %109 : vector<8xf32> to vector<8x1xf32>
    %cst_79 = arith.constant 6.400000e+01 : f32
    %111 = vector.broadcast %cst_79 : f32 to vector<8x1xf32>
    %112 = arith.divf %110, %111 : vector<8x1xf32>
    %113 = vector.broadcast %112 : vector<8x1xf32> to vector<8x64xf32>
    %114 = arith.subf %104, %113 : vector<8x64xf32>
    %115 = arith.mulf %114, %114 : vector<8x64xf32>
    %cst_80 = arith.constant dense<0.000000e+00> : vector<8xf32>
    %116 = vector.multi_reduction <add>, %115, %cst_80 [1] : vector<8x64xf32> to vector<8xf32>
    %117 = vector.shape_cast %116 : vector<8xf32> to vector<8x1xf32>
    %cst_81 = arith.constant 6.400000e+01 : f32
    %118 = vector.broadcast %cst_81 : f32 to vector<8x1xf32>
    %119 = arith.divf %117, %118 : vector<8x1xf32>
    %120 = vector.broadcast %112 : vector<8x1xf32> to vector<8x64xf32>
    %121 = arith.subf %104, %120 : vector<8x64xf32>
    %cst_82 = arith.constant 9.99999974E-6 : f32
    %122 = vector.broadcast %cst_82 : f32 to vector<8x1xf32>
    %123 = arith.addf %119, %122 : vector<8x1xf32>
    %124 = math.rsqrt %123 : vector<8x1xf32>
    %125 = vector.broadcast %124 : vector<8x1xf32> to vector<8x64xf32>
    %126 = arith.mulf %121, %125 : vector<8x64xf32>
    %127 = vector.broadcast %106 : vector<1x64xf32> to vector<8x64xf32>
    %128 = arith.mulf %126, %127 : vector<8x64xf32>
    %129 = vector.broadcast %108 : vector<1x64xf32> to vector<8x64xf32>
    %130 = arith.addf %128, %129 : vector<8x64xf32>
    %131 = arith.truncf %130 : vector<8x64xf32> to vector<8x64xbf16>
    %c1 = arith.constant 1 : index
    %c0_83 = arith.constant 0 : index
    %c0_84 = arith.constant 0 : index
    %132 = vector.load %arg4[%c1, %c0_83, %c0_84] : memref<2x64x64xbf16, #tpu.memory_space<vmem>>, vector<1x64x64xbf16>
    %133 = vector.shape_cast %132 : vector<1x64x64xbf16> to vector<64x64xbf16>
    %cst_85 = arith.constant dense<0.000000e+00> : vector<8x64xf32>
    %134 = tpu.matmul %131, %133, %cst_85 {dimension_numbers = #tpu.dot_dimension_numbers<[1], [0], [0], [1], [0, 0, 1, 1], [], []>} : vector<8x64xbf16>, vector<64x64xbf16>, vector<8x64xf32> -> vector<8x64xf32>
    %c1_86 = arith.constant 1 : index
    %c0_87 = arith.constant 0 : index
    %c0_88 = arith.constant 0 : index
    %135 = vector.load %arg5[%c1_86, %c0_87, %c0_88] : memref<2x1x64xf32, #tpu.memory_space<vmem>>, vector<1x1x64xf32>
    %136 = vector.shape_cast %135 : vector<1x1x64xf32> to vector<1x64xf32>
    %137 = vector.broadcast %136 : vector<1x64xf32> to vector<8x64xf32>
    %138 = arith.addf %134, %137 : vector<8x64xf32>
    %139 = arith.addf %130, %138 : vector<8x64xf32>
    %c1_89 = arith.constant 1 : index
    %c0_90 = arith.constant 0 : index
    %c0_91 = arith.constant 0 : index
    %140 = vector.load %arg6[%c1_89, %c0_90, %c0_91] : memref<2x1x64xf32, #tpu.memory_space<vmem>>, vector<1x1x64xf32>
    %141 = vector.shape_cast %140 : vector<1x1x64xf32> to vector<1x64xf32>
    %c1_92 = arith.constant 1 : index
    %c0_93 = arith.constant 0 : index
    %c0_94 = arith.constant 0 : index
    %142 = vector.load %arg7[%c1_92, %c0_93, %c0_94] : memref<2x1x64xf32, #tpu.memory_space<vmem>>, vector<1x1x64xf32>
    %143 = vector.shape_cast %142 : vector<1x1x64xf32> to vector<1x64xf32>
    %cst_95 = arith.constant dense<0.000000e+00> : vector<8xf32>
    %144 = vector.multi_reduction <add>, %139, %cst_95 [1] : vector<8x64xf32> to vector<8xf32>
    %145 = vector.shape_cast %144 : vector<8xf32> to vector<8x1xf32>
    %cst_96 = arith.constant 6.400000e+01 : f32
    %146 = vector.broadcast %cst_96 : f32 to vector<8x1xf32>
    %147 = arith.divf %145, %146 : vector<8x1xf32>
    %148 = vector.broadcast %147 : vector<8x1xf32> to vector<8x64xf32>
    %149 = arith.subf %139, %148 : vector<8x64xf32>
    %150 = arith.mulf %149, %149 : vector<8x64xf32>
    %cst_97 = arith.constant dense<0.000000e+00> : vector<8xf32>
    %151 = vector.multi_reduction <add>, %150, %cst_97 [1] : vector<8x64xf32> to vector<8xf32>
    %152 = vector.shape_cast %151 : vector<8xf32> to vector<8x1xf32>
    %cst_98 = arith.constant 6.400000e+01 : f32
    %153 = vector.broadcast %cst_98 : f32 to vector<8x1xf32>
    %154 = arith.divf %152, %153 : vector<8x1xf32>
    %155 = vector.broadcast %147 : vector<8x1xf32> to vector<8x64xf32>
    %156 = arith.subf %139, %155 : vector<8x64xf32>
    %cst_99 = arith.constant 9.99999974E-6 : f32
    %157 = vector.broadcast %cst_99 : f32 to vector<8x1xf32>
    %158 = arith.addf %154, %157 : vector<8x1xf32>
    %159 = math.rsqrt %158 : vector<8x1xf32>
    %160 = vector.broadcast %159 : vector<8x1xf32> to vector<8x64xf32>
    %161 = arith.mulf %156, %160 : vector<8x64xf32>
    %162 = vector.broadcast %141 : vector<1x64xf32> to vector<8x64xf32>
    %163 = arith.mulf %161, %162 : vector<8x64xf32>
    %164 = vector.broadcast %143 : vector<1x64xf32> to vector<8x64xf32>
    %165 = arith.addf %163, %164 : vector<8x64xf32>
    %166 = arith.truncf %165 : vector<8x64xf32> to vector<8x64xbf16>
    %cst_100 = arith.constant 0.000000e+00 : f32
    %167 = vector.broadcast %cst_100 : f32 to vector<8x64xf32>
    %c1_101 = arith.constant 1 : index
    %c0_102 = arith.constant 0 : index
    %c0_103 = arith.constant 0 : index
    %168 = vector.load %arg8[%c1_101, %c0_102, %c0_103] : memref<2x64x2048xbf16, #tpu.memory_space<vmem>>, vector<1x64x512xbf16>
    %169 = vector.shape_cast %168 : vector<1x64x512xbf16> to vector<64x512xbf16>
    %cst_104 = arith.constant dense<0.000000e+00> : vector<8x512xf32>
    %170 = tpu.matmul %166, %169, %cst_104 {dimension_numbers = #tpu.dot_dimension_numbers<[1], [0], [0], [1], [0, 0, 1, 1], [], []>} : vector<8x64xbf16>, vector<64x512xbf16>, vector<8x512xf32> -> vector<8x512xf32>
    %c1_105 = arith.constant 1 : index
    %c0_106 = arith.constant 0 : index
    %c0_107 = arith.constant 0 : index
    %171 = vector.load %arg9[%c1_105, %c0_106, %c0_107] : memref<2x1x2048xf32, #tpu.memory_space<vmem>>, vector<1x1x512xf32>
    %172 = vector.shape_cast %171 : vector<1x1x512xf32> to vector<1x512xf32>
    %173 = vector.broadcast %172 : vector<1x512xf32> to vector<8x512xf32>
    %174 = arith.addf %170, %173 : vector<8x512xf32>
    %cst_108 = arith.constant 0.000000e+00 : f32
    %175 = vector.broadcast %cst_108 : f32 to vector<8x512xf32>
    %176 = arith.maximumf %174, %175 : vector<8x512xf32>
    %177 = arith.truncf %176 : vector<8x512xf32> to vector<8x512xbf16>
    %c1_109 = arith.constant 1 : index
    %c0_110 = arith.constant 0 : index
    %c0_111 = arith.constant 0 : index
    %178 = vector.load %arg10[%c1_109, %c0_110, %c0_111] : memref<2x2048x64xbf16, #tpu.memory_space<vmem>>, vector<1x512x64xbf16>
    %179 = vector.shape_cast %178 : vector<1x512x64xbf16> to vector<512x64xbf16>
    %cst_112 = arith.constant dense<0.000000e+00> : vector<8x64xf32>
    %180 = tpu.matmul %177, %179, %cst_112 {dimension_numbers = #tpu.dot_dimension_numbers<[1], [0], [0], [1], [0, 0, 1, 1], [], []>} : vector<8x512xbf16>, vector<512x64xbf16>, vector<8x64xf32> -> vector<8x64xf32>
    %181 = arith.addf %167, %180 : vector<8x64xf32>
    %c1_113 = arith.constant 1 : index
    %c0_114 = arith.constant 0 : index
    %c512_115 = arith.constant 512 : index
    %182 = vector.load %arg8[%c1_113, %c0_114, %c512_115] : memref<2x64x2048xbf16, #tpu.memory_space<vmem>>, vector<1x64x512xbf16>
    %183 = vector.shape_cast %182 : vector<1x64x512xbf16> to vector<64x512xbf16>
    %cst_116 = arith.constant dense<0.000000e+00> : vector<8x512xf32>
    %184 = tpu.matmul %166, %183, %cst_116 {dimension_numbers = #tpu.dot_dimension_numbers<[1], [0], [0], [1], [0, 0, 1, 1], [], []>} : vector<8x64xbf16>, vector<64x512xbf16>, vector<8x512xf32> -> vector<8x512xf32>
    %c1_117 = arith.constant 1 : index
    %c0_118 = arith.constant 0 : index
    %c512_119 = arith.constant 512 : index
    %185 = vector.load %arg9[%c1_117, %c0_118, %c512_119] : memref<2x1x2048xf32, #tpu.memory_space<vmem>>, vector<1x1x512xf32>
    %186 = vector.shape_cast %185 : vector<1x1x512xf32> to vector<1x512xf32>
    %187 = vector.broadcast %186 : vector<1x512xf32> to vector<8x512xf32>
    %188 = arith.addf %184, %187 : vector<8x512xf32>
    %cst_120 = arith.constant 0.000000e+00 : f32
    %189 = vector.broadcast %cst_120 : f32 to vector<8x512xf32>
    %190 = arith.maximumf %188, %189 : vector<8x512xf32>
    %191 = arith.truncf %190 : vector<8x512xf32> to vector<8x512xbf16>
    %c1_121 = arith.constant 1 : index
    %c512_122 = arith.constant 512 : index
    %c0_123 = arith.constant 0 : index
    %192 = vector.load %arg10[%c1_121, %c512_122, %c0_123] : memref<2x2048x64xbf16, #tpu.memory_space<vmem>>, vector<1x512x64xbf16>
    %193 = vector.shape_cast %192 : vector<1x512x64xbf16> to vector<512x64xbf16>
    %cst_124 = arith.constant dense<0.000000e+00> : vector<8x64xf32>
    %194 = tpu.matmul %191, %193, %cst_124 {dimension_numbers = #tpu.dot_dimension_numbers<[1], [0], [0], [1], [0, 0, 1, 1], [], []>} : vector<8x512xbf16>, vector<512x64xbf16>, vector<8x64xf32> -> vector<8x64xf32>
    %195 = arith.addf %181, %194 : vector<8x64xf32>
    %c1_125 = arith.constant 1 : index
    %c0_126 = arith.constant 0 : index
    %c1024_127 = arith.constant 1024 : index
    %196 = vector.load %arg8[%c1_125, %c0_126, %c1024_127] : memref<2x64x2048xbf16, #tpu.memory_space<vmem>>, vector<1x64x512xbf16>
    %197 = vector.shape_cast %196 : vector<1x64x512xbf16> to vector<64x512xbf16>
    %cst_128 = arith.constant dense<0.000000e+00> : vector<8x512xf32>
    %198 = tpu.matmul %166, %197, %cst_128 {dimension_numbers = #tpu.dot_dimension_numbers<[1], [0], [0], [1], [0, 0, 1, 1], [], []>} : vector<8x64xbf16>, vector<64x512xbf16>, vector<8x512xf32> -> vector<8x512xf32>
    %c1_129 = arith.constant 1 : index
    %c0_130 = arith.constant 0 : index
    %c1024_131 = arith.constant 1024 : index
    %199 = vector.load %arg9[%c1_129, %c0_130, %c1024_131] : memref<2x1x2048xf32, #tpu.memory_space<vmem>>, vector<1x1x512xf32>
    %200 = vector.shape_cast %199 : vector<1x1x512xf32> to vector<1x512xf32>
    %201 = vector.broadcast %200 : vector<1x512xf32> to vector<8x512xf32>
    %202 = arith.addf %198, %201 : vector<8x512xf32>
    %cst_132 = arith.constant 0.000000e+00 : f32
    %203 = vector.broadcast %cst_132 : f32 to vector<8x512xf32>
    %204 = arith.maximumf %202, %203 : vector<8x512xf32>
    %205 = arith.truncf %204 : vector<8x512xf32> to vector<8x512xbf16>
    %c1_133 = arith.constant 1 : index
    %c1024_134 = arith.constant 1024 : index
    %c0_135 = arith.constant 0 : index
    %206 = vector.load %arg10[%c1_133, %c1024_134, %c0_135] : memref<2x2048x64xbf16, #tpu.memory_space<vmem>>, vector<1x512x64xbf16>
    %207 = vector.shape_cast %206 : vector<1x512x64xbf16> to vector<512x64xbf16>
    %cst_136 = arith.constant dense<0.000000e+00> : vector<8x64xf32>
    %208 = tpu.matmul %205, %207, %cst_136 {dimension_numbers = #tpu.dot_dimension_numbers<[1], [0], [0], [1], [0, 0, 1, 1], [], []>} : vector<8x512xbf16>, vector<512x64xbf16>, vector<8x64xf32> -> vector<8x64xf32>
    %209 = arith.addf %195, %208 : vector<8x64xf32>
    %c1_137 = arith.constant 1 : index
    %c0_138 = arith.constant 0 : index
    %c1536_139 = arith.constant 1536 : index
    %210 = vector.load %arg8[%c1_137, %c0_138, %c1536_139] : memref<2x64x2048xbf16, #tpu.memory_space<vmem>>, vector<1x64x512xbf16>
    %211 = vector.shape_cast %210 : vector<1x64x512xbf16> to vector<64x512xbf16>
    %cst_140 = arith.constant dense<0.000000e+00> : vector<8x512xf32>
    %212 = tpu.matmul %166, %211, %cst_140 {dimension_numbers = #tpu.dot_dimension_numbers<[1], [0], [0], [1], [0, 0, 1, 1], [], []>} : vector<8x64xbf16>, vector<64x512xbf16>, vector<8x512xf32> -> vector<8x512xf32>
    %c1_141 = arith.constant 1 : index
    %c0_142 = arith.constant 0 : index
    %c1536_143 = arith.constant 1536 : index
    %213 = vector.load %arg9[%c1_141, %c0_142, %c1536_143] : memref<2x1x2048xf32, #tpu.memory_space<vmem>>, vector<1x1x512xf32>
    %214 = vector.shape_cast %213 : vector<1x1x512xf32> to vector<1x512xf32>
    %215 = vector.broadcast %214 : vector<1x512xf32> to vector<8x512xf32>
    %216 = arith.addf %212, %215 : vector<8x512xf32>
    %cst_144 = arith.constant 0.000000e+00 : f32
    %217 = vector.broadcast %cst_144 : f32 to vector<8x512xf32>
    %218 = arith.maximumf %216, %217 : vector<8x512xf32>
    %219 = arith.truncf %218 : vector<8x512xf32> to vector<8x512xbf16>
    %c1_145 = arith.constant 1 : index
    %c1536_146 = arith.constant 1536 : index
    %c0_147 = arith.constant 0 : index
    %220 = vector.load %arg10[%c1_145, %c1536_146, %c0_147] : memref<2x2048x64xbf16, #tpu.memory_space<vmem>>, vector<1x512x64xbf16>
    %221 = vector.shape_cast %220 : vector<1x512x64xbf16> to vector<512x64xbf16>
    %cst_148 = arith.constant dense<0.000000e+00> : vector<8x64xf32>
    %222 = tpu.matmul %219, %221, %cst_148 {dimension_numbers = #tpu.dot_dimension_numbers<[1], [0], [0], [1], [0, 0, 1, 1], [], []>} : vector<8x512xbf16>, vector<512x64xbf16>, vector<8x64xf32> -> vector<8x64xf32>
    %223 = arith.addf %209, %222 : vector<8x64xf32>
    %224 = arith.addf %165, %223 : vector<8x64xf32>
    %c1_149 = arith.constant 1 : index
    %c0_150 = arith.constant 0 : index
    %c0_151 = arith.constant 0 : index
    %225 = vector.load %arg11[%c1_149, %c0_150, %c0_151] : memref<2x1x64xf32, #tpu.memory_space<vmem>>, vector<1x1x64xf32>
    %226 = vector.shape_cast %225 : vector<1x1x64xf32> to vector<1x64xf32>
    %227 = vector.broadcast %226 : vector<1x64xf32> to vector<8x64xf32>
    %228 = arith.addf %224, %227 : vector<8x64xf32>
    %c1_152 = arith.constant 1 : index
    %c0_153 = arith.constant 0 : index
    %c0_154 = arith.constant 0 : index
    %229 = vector.load %arg12[%c1_152, %c0_153, %c0_154] : memref<2x1x64xf32, #tpu.memory_space<vmem>>, vector<1x1x64xf32>
    %230 = vector.shape_cast %229 : vector<1x1x64xf32> to vector<1x64xf32>
    %c1_155 = arith.constant 1 : index
    %c0_156 = arith.constant 0 : index
    %c0_157 = arith.constant 0 : index
    %231 = vector.load %arg13[%c1_155, %c0_156, %c0_157] : memref<2x1x64xf32, #tpu.memory_space<vmem>>, vector<1x1x64xf32>
    %232 = vector.shape_cast %231 : vector<1x1x64xf32> to vector<1x64xf32>
    %cst_158 = arith.constant dense<0.000000e+00> : vector<8xf32>
    %233 = vector.multi_reduction <add>, %228, %cst_158 [1] : vector<8x64xf32> to vector<8xf32>
    %234 = vector.shape_cast %233 : vector<8xf32> to vector<8x1xf32>
    %cst_159 = arith.constant 6.400000e+01 : f32
    %235 = vector.broadcast %cst_159 : f32 to vector<8x1xf32>
    %236 = arith.divf %234, %235 : vector<8x1xf32>
    %237 = vector.broadcast %236 : vector<8x1xf32> to vector<8x64xf32>
    %238 = arith.subf %228, %237 : vector<8x64xf32>
    %239 = arith.mulf %238, %238 : vector<8x64xf32>
    %cst_160 = arith.constant dense<0.000000e+00> : vector<8xf32>
    %240 = vector.multi_reduction <add>, %239, %cst_160 [1] : vector<8x64xf32> to vector<8xf32>
    %241 = vector.shape_cast %240 : vector<8xf32> to vector<8x1xf32>
    %cst_161 = arith.constant 6.400000e+01 : f32
    %242 = vector.broadcast %cst_161 : f32 to vector<8x1xf32>
    %243 = arith.divf %241, %242 : vector<8x1xf32>
    %244 = vector.broadcast %236 : vector<8x1xf32> to vector<8x64xf32>
    %245 = arith.subf %228, %244 : vector<8x64xf32>
    %cst_162 = arith.constant 9.99999974E-6 : f32
    %246 = vector.broadcast %cst_162 : f32 to vector<8x1xf32>
    %247 = arith.addf %243, %246 : vector<8x1xf32>
    %248 = math.rsqrt %247 : vector<8x1xf32>
    %249 = vector.broadcast %248 : vector<8x1xf32> to vector<8x64xf32>
    %250 = arith.mulf %245, %249 : vector<8x64xf32>
    %251 = vector.broadcast %230 : vector<1x64xf32> to vector<8x64xf32>
    %252 = arith.mulf %250, %251 : vector<8x64xf32>
    %253 = vector.broadcast %232 : vector<1x64xf32> to vector<8x64xf32>
    %254 = arith.addf %252, %253 : vector<8x64xf32>
    %c0_163 = arith.constant 0 : index
    %c0_164 = arith.constant 0 : index
    %255 = vector.load %arg14[%c0_163, %c0_164] : memref<1x64xf32, #tpu.memory_space<vmem>>, vector<1x64xf32>
    %256 = vector.broadcast %255 : vector<1x64xf32> to vector<8x64xf32>
    %257 = arith.mulf %254, %256 : vector<8x64xf32>
    %cst_165 = arith.constant dense<0.000000e+00> : vector<8xf32>
    %258 = vector.multi_reduction <add>, %257, %cst_165 [1] : vector<8x64xf32> to vector<8xf32>
    %259 = vector.shape_cast %258 : vector<8xf32> to vector<1x8xf32>
    %c0_166 = arith.constant 0 : index
    %c0_167 = arith.constant 0 : index
    %260 = vector.load %arg15[%c0_166, %c0_167] : memref<1x1xf32, #tpu.memory_space<vmem>>, vector<1x1xf32>
    %261 = vector.broadcast %260 : vector<1x1xf32> to vector<1x8xf32>
    %262 = arith.addf %259, %261 : vector<1x8xf32>
    %c0_168 = arith.constant 0 : index
    %c0_169 = arith.constant 0 : index
    %263 = vector.load %arg16[%c0_168, %c0_169] : memref<1x8xf32, #tpu.memory_space<vmem>>, vector<1x8xf32>
    tpu.vector_store %arg16[%c0_168, %c0_169], %262 {strides = array<i32>} : memref<1x8xf32, #tpu.memory_space<vmem>>, vector<1x8xf32>,
    return
  }
  func.func @transform_0(%arg0: i32) -> (i32, i32) {
    %c0_i32 = arith.constant 0 : i32
    %c0_i32_0 = arith.constant 0 : i32
    return %arg0, %c0_i32 : i32, i32
  }
  func.func @transform_1(%arg0: i32) -> (i32, i32) {
    %c0_i32 = arith.constant 0 : i32
    %c0_i32_0 = arith.constant 0 : i32
    %c0_i32_1 = arith.constant 0 : i32
    return %c0_i32, %c0_i32_0 : i32, i32
  }
  func.func @transform_2(%arg0: i32) -> (i32, i32) {
    %c0_i32 = arith.constant 0 : i32
    %c0_i32_0 = arith.constant 0 : i32
    %c0_i32_1 = arith.constant 0 : i32
    return %c0_i32, %c0_i32_0 : i32, i32
  }
  func.func @transform_3(%arg0: i32) -> (i32, i32, i32) {
    %c0_i32 = arith.constant 0 : i32
    %c0_i32_0 = arith.constant 0 : i32
    %c0_i32_1 = arith.constant 0 : i32
    %c0_i32_2 = arith.constant 0 : i32
    return %c0_i32, %c0_i32_0, %c0_i32_1 : i32, i32, i32
  }
  func.func @transform_4(%arg0: i32) -> (i32, i32, i32) {
    %c0_i32 = arith.constant 0 : i32
    %c0_i32_0 = arith.constant 0 : i32
    %c0_i32_1 = arith.constant 0 : i32
    %c0_i32_2 = arith.constant 0 : i32
    return %c0_i32, %c0_i32_0, %c0_i32_1 : i32, i32, i32
  }
  func.func @transform_5(%arg0: i32) -> (i32, i32, i32) {
    %c0_i32 = arith.constant 0 : i32
    %c0_i32_0 = arith.constant 0 : i32
    %c0_i32_1 = arith.constant 0 : i32
    %c0_i32_2 = arith.constant 0 : i32
    return %c0_i32, %c0_i32_0, %c0_i32_1 : i32, i32, i32
  }
  func.func @transform_6(%arg0: i32) -> (i32, i32, i32) {
    %c0_i32 = arith.constant 0 : i32
    %c0_i32_0 = arith.constant 0 : i32
    %c0_i32_1 = arith.constant 0 : i32
    %c0_i32_2 = arith.constant 0 : i32
    return %c0_i32, %c0_i32_0, %c0_i32_1 : i32, i32, i32
  }
  func.func @transform_7(%arg0: i32) -> (i32, i32, i32) {
    %c0_i32 = arith.constant 0 : i32
    %c0_i32_0 = arith.constant 0 : i32
    %c0_i32_1 = arith.constant 0 : i32
    %c0_i32_2 = arith.constant 0 : i32
    return %c0_i32, %c0_i32_0, %c0_i32_1 : i32, i32, i32
  }
  func.func @transform_8(%arg0: i32) -> (i32, i32, i32) {
    %c0_i32 = arith.constant 0 : i32
    %c0_i32_0 = arith.constant 0 : i32
    %c0_i32_1 = arith.constant 0 : i32
    %c0_i32_2 = arith.constant 0 : i32
    return %c0_i32, %c0_i32_0, %c0_i32_1 : i32, i32, i32
  }
  func.func @transform_9(%arg0: i32) -> (i32, i32, i32) {
    %c0_i32 = arith.constant 0 : i32
    %c0_i32_0 = arith.constant 0 : i32
    %c0_i32_1 = arith.constant 0 : i32
    %c0_i32_2 = arith.constant 0 : i32
    return %c0_i32, %c0_i32_0, %c0_i32_1 : i32, i32, i32
  }
  func.func @transform_10(%arg0: i32) -> (i32, i32, i32) {
    %c0_i32 = arith.constant 0 : i32
    %c0_i32_0 = arith.constant 0 : i32
    %c0_i32_1 = arith.constant 0 : i32
    %c0_i32_2 = arith.constant 0 : i32
    return %c0_i32, %c0_i32_0, %c0_i32_1 : i32, i32, i32
  }
  func.func @transform_11(%arg0: i32) -> (i32, i32, i32) {
    %c0_i32 = arith.constant 0 : i32
    %c0_i32_0 = arith.constant 0 : i32
    %c0_i32_1 = arith.constant 0 : i32
    %c0_i32_2 = arith.constant 0 : i32
    return %c0_i32, %c0_i32_0, %c0_i32_1 : i32, i32, i32
  }
  func.func @transform_12(%arg0: i32) -> (i32, i32, i32) {
    %c0_i32 = arith.constant 0 : i32
    %c0_i32_0 = arith.constant 0 : i32
    %c0_i32_1 = arith.constant 0 : i32
    %c0_i32_2 = arith.constant 0 : i32
    return %c0_i32, %c0_i32_0, %c0_i32_1 : i32, i32, i32
  }
  func.func @transform_13(%arg0: i32) -> (i32, i32) {
    %c0_i32 = arith.constant 0 : i32
    %c0_i32_0 = arith.constant 0 : i32
    %c0_i32_1 = arith.constant 0 : i32
    return %c0_i32, %c0_i32_0 : i32, i32
  }
  func.func @transform_14(%arg0: i32) -> (i32, i32) {
    %c0_i32 = arith.constant 0 : i32
    %c0_i32_0 = arith.constant 0 : i32
    %c0_i32_1 = arith.constant 0 : i32
    return %c0_i32, %c0_i32_0 : i32, i32
  }
  func.func @transform_15(%arg0: i32) -> (i32, i32) {
    %c0_i32 = arith.constant 0 : i32
    %c0_i32_0 = arith.constant 0 : i32
    return %arg0, %c0_i32 : i32, i32
  }
}

</mosaic_0001>

<llo_original>
// kernel: tpu_custom_call.1
$region0: #{tpu_custom_call.1}
  #allocation0 [shape = 'u32[]', space=smem, size = 0x4, offset = 0x4, fixed_abs, tag = 'smem constant byte address 0x4 - core index']
  #allocation1 [shape = 'u32[144,128]{1,0:T(1,128)}', space=vmem, size = 0x12000, scoped, tag = 'internal scratch']
  #allocation2 [shape = 'f32[1,1]{1,0:T(1,128)S(1)}', space=vmem, size = 0x200, scoped, tag = 'scoped memory for tpu_custom_call.1']
  %s0 = inlined_call_operand.vmem [shape: f32[8,16], index: 0, kind: input, shape index: {}]
  %s1 = inlined_call_operand.vmem [shape: bf16[16,64], index: 1, kind: input, shape index: {}]
  %s2 = inlined_call_operand.vmem [shape: f32[1,64], index: 2, kind: input, shape index: {}]
  %s3 = inlined_call_operand.vmem [shape: bf16[2,64,64], index: 3, kind: input, shape index: {}]
  %s4 = inlined_call_operand.vmem [shape: f32[2,1,64], index: 4, kind: input, shape index: {}]
  %s5 = inlined_call_operand.vmem [shape: f32[2,1,64], index: 5, kind: input, shape index: {}]
  %s6 = inlined_call_operand.vmem [shape: f32[2,1,64], index: 6, kind: input, shape index: {}]
  %s7 = inlined_call_operand.vmem [shape: bf16[2,64,2048], index: 7, kind: input, shape index: {}]
  %s8 = inlined_call_operand.vmem [shape: f32[2,1,2048], index: 8, kind: input, shape index: {}]
  %s9 = inlined_call_operand.vmem [shape: bf16[2,2048,64], index: 9, kind: input, shape index: {}]
  %s10 = inlined_call_operand.vmem [shape: f32[2,1,64], index: 10, kind: input, shape index: {}]
  %s11 = inlined_call_operand.vmem [shape: f32[2,1,64], index: 11, kind: input, shape index: {}]
  %s12 = inlined_call_operand.vmem [shape: f32[2,1,64], index: 12, kind: input, shape index: {}]
  %s13 = inlined_call_operand.vmem [shape: f32[1,64], index: 13, kind: input, shape index: {}]
  %s14 = inlined_call_operand.<no memory space> [shape: f32[1,1], index: 14, kind: input, shape index: {}]
  %s15 = inlined_call_operand.hbm [shape: f32[1,8], index: 15, kind: output, shape index: {}]
  %s16 = sld [smem:[#allocation0]]
  $region70: #{tpu_custom_call.1} parent=0
    _
  %s18 = ssub.s32 1, %s16
  %s19 = scalar_select 0, %s18, %s16
  %v20 = vstv %s14
  %21 = vst [vmem:[#allocation2] sm:$0x1] %v20
  $region1: #{tpu_custom_call.1} parent=0
    #allocation3 [shape = 'u8[512]{0}', space=vmem, size = 0x400, scoped, tag = 'output window, operand 0, single buffered']
    #allocation4 [shape = 's32[1]{0}', space=sflag, size = 0x4, scoped, tag = 'scoped memory for tpu_custom_call.1']
    %22 = vsyncpa [#allocation4], 0
    // Predicated region
    $region2: #{tpu_custom_call.1} parent=1 // pred_check
      _
    $region3: #{tpu_custom_call.1} parent=1 // pred_check_branch
      %24 = sbr.rel (0) target = $region5
    $region4: #{tpu_custom_call.1} parent=1 // pred_region
      _
    $region5: #{tpu_custom_call.1} parent=1 // pred_fallthru
      _
    // Predicated region
    $region6: #{tpu_custom_call.1} parent=1 // pred_check
      _
    $region7: #{tpu_custom_call.1} parent=1 // pred_check_branch
      %26 = sbr.rel (0) target = $region9
    $region8: #{tpu_custom_call.1} parent=1 // pred_region
      _
    $region9: #{tpu_custom_call.1} parent=1 // pred_fallthru
      _
    // Predicated region
    $region10: #{tpu_custom_call.1} parent=1 // pred_check
      _
    $region11: #{tpu_custom_call.1} parent=1 // pred_check_branch
      %28 = sbr.rel (0) target = $region13
    $region12: #{tpu_custom_call.1} parent=1 // pred_region
      _
    $region13: #{tpu_custom_call.1} parent=1 // pred_fallthru
      _
    // Predicated region
    $region14: #{tpu_custom_call.1} parent=1 // pred_check
      _
    $region15: #{tpu_custom_call.1} parent=1 // pred_check_branch
      %30 = sbr.rel (0) target = $region17
    $region16: #{tpu_custom_call.1} parent=1 // pred_region
      _
    $region17: #{tpu_custom_call.1} parent=1 // pred_fallthru
      _
    // Predicated region
    $region18: #{tpu_custom_call.1} parent=1 // pred_check
      _
    $region19: #{tpu_custom_call.1} parent=1 // pred_check_branch
      %32 = sbr.rel (0) target = $region21
    $region20: #{tpu_custom_call.1} parent=1 // pred_region
      _
    $region21: #{tpu_custom_call.1} parent=1 // pred_fallthru
      _
    // Predicated region
    $region22: #{tpu_custom_call.1} parent=1 // pred_check
      _
    $region23: #{tpu_custom_call.1} parent=1 // pred_check_branch
      %34 = sbr.rel (0) target = $region25
    $region24: #{tpu_custom_call.1} parent=1 // pred_region
      _
    $region25: #{tpu_custom_call.1} parent=1 // pred_fallthru
      _
    // Predicated region
    $region26: #{tpu_custom_call.1} parent=1 // pred_check
      _
    $region27: #{tpu_custom_call.1} parent=1 // pred_check_branch
      %36 = sbr.rel (0) target = $region29
    $region28: #{tpu_custom_call.1} parent=1 // pred_region
      _
    $region29: #{tpu_custom_call.1} parent=1 // pred_fallthru
      _
    // Predicated region
    $region30: #{tpu_custom_call.1} parent=1 // pred_check
      _
    $region31: #{tpu_custom_call.1} parent=1 // pred_check_branch
      %38 = sbr.rel (0) target = $region33
    $region32: #{tpu_custom_call.1} parent=1 // pred_region
      _
    $region33: #{tpu_custom_call.1} parent=1 // pred_fallthru
      _
    // Predicated region
    $region34: #{tpu_custom_call.1} parent=1 // pred_check
      _
    $region35: #{tpu_custom_call.1} parent=1 // pred_check_branch
      %40 = sbr.rel (0) target = $region37
    $region36: #{tpu_custom_call.1} parent=1 // pred_region
      _
    $region37: #{tpu_custom_call.1} parent=1 // pred_fallthru
      _
    // Predicated region
    $region38: #{tpu_custom_call.1} parent=1 // pred_check
      _
    $region39: #{tpu_custom_call.1} parent=1 // pred_check_branch
      %42 = sbr.rel (0) target = $region41
    $region40: #{tpu_custom_call.1} parent=1 // pred_region
      _
    $region41: #{tpu_custom_call.1} parent=1 // pred_fallthru
      _
    // Predicated region
    $region42: #{tpu_custom_call.1} parent=1 // pred_check
      _
    $region43: #{tpu_custom_call.1} parent=1 // pred_check_branch
      %44 = sbr.rel (0) target = $region45
    $region44: #{tpu_custom_call.1} parent=1 // pred_region
      _
    $region45: #{tpu_custom_call.1} parent=1 // pred_fallthru
      _
    // Predicated region
    $region46: #{tpu_custom_call.1} parent=1 // pred_check
      _
    $region47: #{tpu_custom_call.1} parent=1 // pred_check_branch
      %46 = sbr.rel (0) target = $region49
    $region48: #{tpu_custom_call.1} parent=1 // pred_region
      _
    $region49: #{tpu_custom_call.1} parent=1 // pred_fallthru
      _
    // Predicated region
    $region50: #{tpu_custom_call.1} parent=1 // pred_check
      _
    $region51: #{tpu_custom_call.1} parent=1 // pred_check_branch
      %48 = sbr.rel (0) target = $region53
    $region52: #{tpu_custom_call.1} parent=1 // pred_region
      _
    $region53: #{tpu_custom_call.1} parent=1 // pred_fallthru
      _
    // Predicated region
    $region54: #{tpu_custom_call.1} parent=1 // pred_check
      _
    $region55: #{tpu_custom_call.1} parent=1 // pred_check_branch
      %50 = sbr.rel (0) target = $region57
    $region56: #{tpu_custom_call.1} parent=1 // pred_region
      _
    $region57: #{tpu_custom_call.1} parent=1 // pred_fallthru
      _
    // Predicated region
    $region58: #{tpu_custom_call.1} parent=1 // pred_check
      _
    $region59: #{tpu_custom_call.1} parent=1 // pred_check_branch
      %52 = sbr.rel (0) target = $region61
    $region60: #{tpu_custom_call.1} parent=1 // pred_region
      _
    $region61: #{tpu_custom_call.1} parent=1 // pred_fallthru
      _
    %v54 = vld [vmem:[%s0] sm:$0xff]
    %v55 = vpack.c.bf16 %v54, %v54
    %v56 = vld [vmem:[%s1] sm:$0xf]
    %v57 = vld [vmem:[%s1 + $0x4] sm:$0xf]
    %v58 = vld [vmem:[%s2] sm:$0x1]
    %v60 = vlaneseq
    %v61 = vshrl.u32 %v60, 7
    %v62 = vsub.s32 0, %v61
    %v63 = vrot.slane %v58, %v62
    %v67 = vunpack.c.l.b16 %v56
    %v68 = vunpack.c.l.b16 %v57
    %v69 = vpack.c.b16 %v68, %v67
    %vm71 = vcmask 130048
    %v73 = vsel %vm71, %v55, 0
    %75 = vmatprep.subr.bf16.mxu0 0
    %76 = vmatpush1.bf16.msra.mxu0 %v69
    %77 = vmatprep.subr.bf16.mxu0 0
    %78 = vmatpush1.bf16.msra.mxu0 0
    %79 = vmatprep.subr.bf16.mxu0 0
    %80 = vmatpush1.bf16.msra.mxu0 0
    %81 = vmatprep.subr.bf16.mxu0 0
    %82 = vmatpush1.bf16.msra.mxu0 0
    %83 = vmatprep.subr.bf16.mxu0 0
    %84 = vmatpush1.bf16.msra.mxu0 0
    %85 = vmatprep.subr.bf16.mxu0 0
    %86 = vmatpush1.bf16.msra.mxu0 0
    %87 = vmatprep.subr.bf16.mxu0 0
    %88 = vmatpush1.bf16.msra.mxu0 0
    %89 = vmatprep.subr.bf16.mxu0 0
    %90 = vmatpush1.bf16.msra.mxu0 0
    %91 = vmatprep.subr.bf16.mxu0 0
    %92 = vmatpush1.bf16.msra.mxu0 0
    %93 = vmatprep.subr.bf16.mxu0 0
    %94 = vmatpush1.bf16.msra.mxu0 0
    %95 = vmatprep.subr.bf16.mxu0 0
    %96 = vmatpush1.bf16.msra.mxu0 0
    %97 = vmatprep.subr.bf16.mxu0 0
    %98 = vmatpush1.bf16.msra.mxu0 0
    %99 = vmatprep.subr.bf16.mxu0 0
    %100 = vmatpush1.bf16.msra.mxu0 0
    %101 = vmatprep.subr.bf16.mxu0 0
    %102 = vmatpush1.bf16.msra.mxu0 0
    %103 = vmatprep.subr.bf16.mxu0 0
    %104 = vmatpush1.bf16.msra.mxu0 0
    %105 = vmatprep.subr.bf16.mxu0 0
    %106 = vmatpush1.bf16.msra.mxu0 0
    %107 = vmatprep.mubr.bf16.mxu0 0
    %108 = vmatmul.mubr.bf16.gmra.mrb[0].mxu0 %v73
    %v109 = vpop.f32.mrb[0].mxu0
    %v110 = vadd.f32 %v63, %v109
    %v111 = vpop.f32.mrb[0].mxu0
    %v112 = vpop.f32.mrb[0].mxu0
    %v113 = vpop.f32.mrb[0].mxu0
    %114 = vdwg.mxu0
    %v115 = vpack.c.bf16 %v110, %v110
    %v116 = vld [vmem:[%s3] sm:$0xf]
    %v117 = vld [vmem:[%s3 + $0x4] sm:$0xf]
    %v118 = vld [vmem:[%s3 + $0x8] sm:$0xf]
    %v119 = vld [vmem:[%s3 + $0xc] sm:$0xf]
    %v120 = vld [vmem:[%s3 + $0x10] sm:$0xf]
    %v121 = vld [vmem:[%s3 + $0x14] sm:$0xf]
    %v122 = vld [vmem:[%s3 + $0x18] sm:$0xf]
    %v123 = vld [vmem:[%s3 + $0x1c] sm:$0xf]
    %v124 = vld [vmem:[%s4] sm:$0x1]
    %v126 = vlaneseq
    %v127 = vshrl.u32 %v126, 7
    %v128 = vsub.s32 0, %v127
    %v129 = vrot.slane %v124, %v128
    %v139 = vunpack.c.l.b16 %v116
    %v140 = vunpack.c.l.b16 %v117
    %v141 = vunpack.c.l.b16 %v118
    %v142 = vunpack.c.l.b16 %v119
    %v143 = vunpack.c.l.b16 %v120
    %v144 = vunpack.c.l.b16 %v121
    %v145 = vunpack.c.l.b16 %v122
    %v146 = vunpack.c.l.b16 %v123
    %v147 = vpack.c.b16 %v140, %v139
    %v148 = vpack.c.b16 %v142, %v141
    %v149 = vpack.c.b16 %v144, %v143
    %v150 = vpack.c.b16 %v146, %v145
    %vm155 = vcmask 523264
    %v157 = vsel %vm155, %v115, 0
    %159 = vmatprep.subr.bf16.mxu0 0
    %160 = vmatpush1.bf16.msra.mxu0 %v147
    %161 = vmatprep.subr.bf16.mxu0 0
    %162 = vmatpush1.bf16.msra.mxu0 %v148
    %163 = vmatprep.subr.bf16.mxu0 0
    %164 = vmatpush1.bf16.msra.mxu0 %v149
    %165 = vmatprep.subr.bf16.mxu0 0
    %166 = vmatpush1.bf16.msra.mxu0 %v150
    %167 = vmatprep.subr.bf16.mxu0 0
    %168 = vmatpush1.bf16.msra.mxu0 0
    %169 = vmatprep.subr.bf16.mxu0 0
    %170 = vmatpush1.bf16.msra.mxu0 0
    %171 = vmatprep.subr.bf16.mxu0 0
    %172 = vmatpush1.bf16.msra.mxu0 0
    %173 = vmatprep.subr.bf16.mxu0 0
    %174 = vmatpush1.bf16.msra.mxu0 0
    %175 = vmatprep.subr.bf16.mxu0 0
    %176 = vmatpush1.bf16.msra.mxu0 0
    %177 = vmatprep.subr.bf16.mxu0 0
    %178 = vmatpush1.bf16.msra.mxu0 0
    %179 = vmatprep.subr.bf16.mxu0 0
    %180 = vmatpush1.bf16.msra.mxu0 0
    %181 = vmatprep.subr.bf16.mxu0 0
    %182 = vmatpush1.bf16.msra.mxu0 0
    %183 = vmatprep.subr.bf16.mxu0 0
    %184 = vmatpush1.bf16.msra.mxu0 0
    %185 = vmatprep.subr.bf16.mxu0 0
    %186 = vmatpush1.bf16.msra.mxu0 0
    %187 = vmatprep.subr.bf16.mxu0 0
    %188 = vmatpush1.bf16.msra.mxu0 0
    %189 = vmatprep.subr.bf16.mxu0 0
    %190 = vmatpush1.bf16.msra.mxu0 0
    %191 = vmatprep.mubr.bf16.mxu0 0
    %192 = vmatmul.mubr.bf16.gmra.mrb[0].mxu0 %v157
    %v193 = vpop.f32.mrb[0].mxu0
    %v194 = vadd.f32 %v129, %v193
    %v195 = vpop.f32.mrb[0].mxu0
    %v196 = vpop.f32.mrb[0].mxu0
    %v197 = vpop.f32.mrb[0].mxu0
    %198 = vdwg.mxu0
    %v199 = vadd.f32 %v110, %v194
    %v200 = vld [vmem:[%s5] sm:$0x1]
    %v201 = vld [vmem:[%s6] sm:$0x1]
    %v202 = vsel %vm155, %v199, 0.0
    %203 = vadd.xlane.f32.xlu0 %v202
    %v204 = vpop.xlane.xlu0 %203
    %v205 = vrcp.pop 64.0
    %v206 = vmul.f32 %v204, %v205
    %v207 = vsub.f32 %v199, %v206
    %v208 = vmul.f32 %v207, %v207
    %v209 = vsel %vm155, %v208, 0.0
    %210 = vadd.xlane.f32.xlu0 %v209
    %v211 = vpop.xlane.xlu0 %210
    %v212 = vmul.f32 %v211, %v205
    %v213 = vadd.f32 %v212, 1e-05
    %v214 = vrsqrt.pop %v213
    %v215 = vmul.f32 %v207, %v214
    %v217 = vlaneseq
    %v218 = vshrl.u32 %v217, 7
    %v219 = vsub.s32 0, %v218
    %v220 = vrot.slane %v200, %v219
    %v222 = vmul.f32 %v215, %v220
    %v224 = vlaneseq
    %v225 = vshrl.u32 %v224, 7
    %v226 = vsub.s32 0, %v225
    %v227 = vrot.slane %v201, %v226
    %v229 = vadd.f32 %v222, %v227
    %v230 = vpack.c.bf16 %v229, %v229
    %v231 = vld [vmem:[%s7] sm:$0xff]
    %v232 = vld [vmem:[%s7 + $0x8] sm:$0xff]
    %v233 = vld [vmem:[%s7 + $0x40] sm:$0xff]
    %v234 = vld [vmem:[%s7 + $0x48] sm:$0xff]
    %v235 = vld [vmem:[%s7 + $0x80] sm:$0xff]
    %v236 = vld [vmem:[%s7 + $0x88] sm:$0xff]
    %v237 = vld [vmem:[%s7 + $0xc0] sm:$0xff]
    %v238 = vld [vmem:[%s7 + $0xc8] sm:$0xff]
    %v239 = vld [vmem:[%s7 + $0x100] sm:$0xff]
    %v240 = vld [vmem:[%s7 + $0x108] sm:$0xff]
    %v241 = vld [vmem:[%s7 + $0x140] sm:$0xff]
    %v242 = vld [vmem:[%s7 + $0x148] sm:$0xff]
    %v243 = vld [vmem:[%s7 + $0x180] sm:$0xff]
    %v244 = vld [vmem:[%s7 + $0x188] sm:$0xff]
    %v245 = vld [vmem:[%s7 + $0x1c0] sm:$0xff]
    %v246 = vld [vmem:[%s7 + $0x1c8] sm:$0xff]
    %v247 = vld [vmem:[%s8] sm:$0xf]
    %v249 = vlaneseq
    %v250 = vshrl.u32 %v249, 7
    %v251 = vsub.s32 0, %v250
    %v252 = vrot.slane %v247, %v251
    %v253 = vlaneseq
    %v254 = vshrl.u32 %v253, 7
    %v255 = vsub.s32 1, %v254
    %v256 = vrot.slane %v247, %v255
    %v257 = vlaneseq
    %v258 = vshrl.u32 %v257, 7
    %v259 = vsub.s32 2, %v258
    %v260 = vrot.slane %v247, %v259
    %v261 = vlaneseq
    %v262 = vshrl.u32 %v261, 7
    %v263 = vsub.s32 3, %v262
    %v264 = vrot.slane %v247, %v263
    %v285 = vunpack.c.l.b16 %v231
    %v286 = vunpack.c.h.b16 %v231
    %v287 = vunpack.c.l.b16 %v232
    %v288 = vunpack.c.h.b16 %v232
    %v289 = vunpack.c.l.b16 %v233
    %v290 = vunpack.c.h.b16 %v233
    %v291 = vunpack.c.l.b16 %v234
    %v292 = vunpack.c.h.b16 %v234
    %v293 = vunpack.c.l.b16 %v235
    %v294 = vunpack.c.h.b16 %v235
    %v295 = vunpack.c.l.b16 %v236
    %v296 = vunpack.c.h.b16 %v236
    %v297 = vunpack.c.l.b16 %v237
    %v298 = vunpack.c.h.b16 %v237
    %v299 = vunpack.c.l.b16 %v238
    %v300 = vunpack.c.h.b16 %v238
    %v301 = vunpack.c.l.b16 %v239
    %v302 = vunpack.c.h.b16 %v239
    %v303 = vunpack.c.l.b16 %v240
    %v304 = vunpack.c.h.b16 %v240
    %v305 = vunpack.c.l.b16 %v241
    %v306 = vunpack.c.h.b16 %v241
    %v307 = vunpack.c.l.b16 %v242
    %v308 = vunpack.c.h.b16 %v242
    %v309 = vunpack.c.l.b16 %v243
    %v310 = vunpack.c.h.b16 %v243
    %v311 = vunpack.c.l.b16 %v244
    %v312 = vunpack.c.h.b16 %v244
    %v313 = vunpack.c.l.b16 %v245
    %v314 = vunpack.c.h.b16 %v245
    %v315 = vunpack.c.l.b16 %v246
    %v316 = vunpack.c.h.b16 %v246
    %v317 = vpack.c.b16 %v289, %v285
    %v318 = vpack.c.b16 %v290, %v286
    %v319 = vpack.c.b16 %v291, %v287
    %v320 = vpack.c.b16 %v292, %v288
    %v321 = vpack.c.b16 %v297, %v293
    %v322 = vpack.c.b16 %v298, %v294
    %v323 = vpack.c.b16 %v299, %v295
    %v324 = vpack.c.b16 %v300, %v296
    %v325 = vpack.c.b16 %v305, %v301
    %v326 = vpack.c.b16 %v306, %v302
    %v327 = vpack.c.b16 %v307, %v303
    %v328 = vpack.c.b16 %v308, %v304
    %v329 = vpack.c.b16 %v313, %v309
    %v330 = vpack.c.b16 %v314, %v310
    %v331 = vpack.c.b16 %v315, %v311
    %v332 = vpack.c.b16 %v316, %v312
    %v350 = vsel %vm155, %v230, 0
    %352 = vmatprep.subr.bf16.mxu0 %v318
    %353 = vmatpush1.bf16.msra.mxu0 %v317
    %354 = vmatprep.subr.bf16.mxu0 %v322
    %355 = vmatpush1.bf16.msra.mxu0 %v321
    %356 = vmatprep.subr.bf16.mxu0 %v326
    %357 = vmatpush1.bf16.msra.mxu0 %v325
    %358 = vmatprep.subr.bf16.mxu0 %v330
    %359 = vmatpush1.bf16.msra.mxu0 %v329
    %360 = vmatprep.subr.bf16.mxu0 0
    %361 = vmatpush1.bf16.msra.mxu0 0
    %362 = vmatprep.subr.bf16.mxu0 0
    %363 = vmatpush1.bf16.msra.mxu0 0
    %364 = vmatprep.subr.bf16.mxu0 0
    %365 = vmatpush1.bf16.msra.mxu0 0
    %366 = vmatprep.subr.bf16.mxu0 0
    %367 = vmatpush1.bf16.msra.mxu0 0
    %368 = vmatprep.subr.bf16.mxu0 0
    %369 = vmatpush1.bf16.msra.mxu0 0
    %370 = vmatprep.subr.bf16.mxu0 0
    %371 = vmatpush1.bf16.msra.mxu0 0
    %372 = vmatprep.subr.bf16.mxu0 0
    %373 = vmatpush1.bf16.msra.mxu0 0
    %374 = vmatprep.subr.bf16.mxu0 0
    %375 = vmatpush1.bf16.msra.mxu0 0
    %376 = vmatprep.subr.bf16.mxu0 0
    %377 = vmatpush1.bf16.msra.mxu0 0
    %378 = vmatprep.subr.bf16.mxu0 0
    %379 = vmatpush1.bf16.msra.mxu0 0
    %380 = vmatprep.subr.bf16.mxu0 0
    %381 = vmatpush1.bf16.msra.mxu0 0
    %382 = vmatprep.subr.bf16.mxu0 0
    %383 = vmatpush1.bf16.msra.mxu0 0
    %384 = vmatprep.mubr.bf16.mxu0 0
    %385 = vmatmul.mubr.bf16.gmra.mrb[0].mxu0 %v350
    %v386 = vpop.f32.mrb[0].mxu0
    %v387 = vadd.f32 %v252, %v386
    %v388 = vpop.f32.mrb[0].mxu0
    %v389 = vadd.f32 %v256, %v388
    %v390 = vpop.f32.mrb[0].mxu0
    %v391 = vpop.f32.mrb[0].mxu0
    %392 = vdwg.mxu0
    %393 = vmatprep.subr.bf16.mxu0 %v320
    %394 = vmatpush1.bf16.msra.mxu0 %v319
    %395 = vmatprep.subr.bf16.mxu0 %v324
    %396 = vmatpush1.bf16.msra.mxu0 %v323
    %397 = vmatprep.subr.bf16.mxu0 %v328
    %398 = vmatpush1.bf16.msra.mxu0 %v327
    %399 = vmatprep.subr.bf16.mxu0 %v332
    %400 = vmatpush1.bf16.msra.mxu0 %v331
    %401 = vmatprep.subr.bf16.mxu0 0
    %402 = vmatpush1.bf16.msra.mxu0 0
    %403 = vmatprep.subr.bf16.mxu0 0
    %404 = vmatpush1.bf16.msra.mxu0 0
    %405 = vmatprep.subr.bf16.mxu0 0
    %406 = vmatpush1.bf16.msra.mxu0 0
    %407 = vmatprep.subr.bf16.mxu0 0
    %408 = vmatpush1.bf16.msra.mxu0 0
    %409 = vmatprep.subr.bf16.mxu0 0
    %410 = vmatpush1.bf16.msra.mxu0 0
    %411 = vmatprep.subr.bf16.mxu0 0
    %412 = vmatpush1.bf16.msra.mxu0 0
    %413 = vmatprep.subr.bf16.mxu0 0
    %414 = vmatpush1.bf16.msra.mxu0 0
    %415 = vmatprep.subr.bf16.mxu0 0
    %416 = vmatpush1.bf16.msra.mxu0 0
    %417 = vmatprep.subr.bf16.mxu0 0
    %418 = vmatpush1.bf16.msra.mxu0 0
    %419 = vmatprep.subr.bf16.mxu0 0
    %420 = vmatpush1.bf16.msra.mxu0 0
    %421 = vmatprep.subr.bf16.mxu0 0
    %422 = vmatpush1.bf16.msra.mxu0 0
    %423 = vmatprep.subr.bf16.mxu0 0
    %424 = vmatpush1.bf16.msra.mxu0 0
    %425 = vmatprep.mubr.bf16.mxu0 0
    %426 = vmatmul.mubr.bf16.gmra.mrb[0].mxu0 %v350
    %v427 = vpop.f32.mrb[0].mxu0
    %v428 = vadd.f32 %v260, %v427
    %v429 = vpop.f32.mrb[0].mxu0
    %v430 = vadd.f32 %v264, %v429
    %v431 = vpop.f32.mrb[0].mxu0
    %v432 = vpop.f32.mrb[0].mxu0
    %433 = vdwg.mxu0
    %v434 = vmax.f32 %v387, 0.0
    %v435 = vmax.f32 %v389, 0.0
    %v436 = vmax.f32 %v428, 0.0
    %v437 = vmax.f32 %v430, 0.0
    %v438 = vpack.c.bf16 %v434, %v434
    %v439 = vpack.c.bf16 %v435, %v435
    %v440 = vpack.c.bf16 %v436, %v436
    %v441 = vpack.c.bf16 %v437, %v437
    %v442 = vld [vmem:[%s9] sm:$0xf]
    %v443 = vld [vmem:[%s9 + $0x4] sm:$0xf]
    %v444 = vld [vmem:[%s9 + $0x8] sm:$0xf]
    %v445 = vld [vmem:[%s9 + $0xc] sm:$0xf]
    %v446 = vld [vmem:[%s9 + $0x10] sm:$0xf]
    %v447 = vld [vmem:[%s9 + $0x14] sm:$0xf]
    %v448 = vld [vmem:[%s9 + $0x18] sm:$0xf]
    %v449 = vld [vmem:[%s9 + $0x1c] sm:$0xf]
    %v450 = vld [vmem:[%s9 + $0x20] sm:$0xf]
    %v451 = vld [vmem:[%s9 + $0x24] sm:$0xf]
    %v452 = vld [vmem:[%s9 + $0x28] sm:$0xf]
    %v453 = vld [vmem:[%s9 + $0x2c] sm:$0xf]
    %v454 = vld [vmem:[%s9 + $0x30] sm:$0xf]
    %v455 = vld [vmem:[%s9 + $0x34] sm:$0xf]
    %v456 = vld [vmem:[%s9 + $0x38] sm:$0xf]
    %v457 = vld [vmem:[%s9 + $0x3c] sm:$0xf]
    %v458 = vld [vmem:[%s9 + $0x40] sm:$0xf]
    %v459 = vld [vmem:[%s9 + $0x44] sm:$0xf]
    %v460 = vld [vmem:[%s9 + $0x48] sm:$0xf]
    %v461 = vld [vmem:[%s9 + $0x4c] sm:$0xf]
    %v462 = vld [vmem:[%s9 + $0x50] sm:$0xf]
    %v463 = vld [vmem:[%s9 + $0x54] sm:$0xf]
    %v464 = vld [vmem:[%s9 + $0x58] sm:$0xf]
    %v465 = vld [vmem:[%s9 + $0x5c] sm:$0xf]
    %v466 = vld [vmem:[%s9 + $0x60] sm:$0xf]
    %v467 = vld [vmem:[%s9 + $0x64] sm:$0xf]
    %v468 = vld [vmem:[%s9 + $0x68] sm:$0xf]
    %v469 = vld [vmem:[%s9 + $0x6c] sm:$0xf]
    %v470 = vld [vmem:[%s9 + $0x70] sm:$0xf]
    %v471 = vld [vmem:[%s9 + $0x74] sm:$0xf]
    %v472 = vld [vmem:[%s9 + $0x78] sm:$0xf]
    %v473 = vld [vmem:[%s9 + $0x7c] sm:$0xf]
    %v474 = vld [vmem:[%s9 + $0x80] sm:$0xf]
    %v475 = vld [vmem:[%s9 + $0x84] sm:$0xf]
    %v476 = vld [vmem:[%s9 + $0x88] sm:$0xf]
    %v477 = vld [vmem:[%s9 + $0x8c] sm:$0xf]
    %v478 = vld [vmem:[%s9 + $0x90] sm:$0xf]
    %v479 = vld [vmem:[%s9 + $0x94] sm:$0xf]
    %v480 = vld [vmem:[%s9 + $0x98] sm:$0xf]
    %v481 = vld [vmem:[%s9 + $0x9c] sm:$0xf]
    %v482 = vld [vmem:[%s9 + $0xa0] sm:$0xf]
    %v483 = vld [vmem:[%s9 + $0xa4] sm:$0xf]
    %v484 = vld [vmem:[%s9 + $0xa8] sm:$0xf]
    %v485 = vld [vmem:[%s9 + $0xac] sm:$0xf]
    %v486 = vld [vmem:[%s9 + $0xb0] sm:$0xf]
    %v487 = vld [vmem:[%s9 + $0xb4] sm:$0xf]
    %v488 = vld [vmem:[%s9 + $0xb8] sm:$0xf]
    %v489 = vld [vmem:[%s9 + $0xbc] sm:$0xf]
    %v490 = vld [vmem:[%s9 + $0xc0] sm:$0xf]
    %v491 = vld [vmem:[%s9 + $0xc4] sm:$0xf]
    %v492 = vld [vmem:[%s9 + $0xc8] sm:$0xf]
    %v493 = vld [vmem:[%s9 + $0xcc] sm:$0xf]
    %v494 = vld [vmem:[%s9 + $0xd0] sm:$0xf]
    %v495 = vld [vmem:[%s9 + $0xd4] sm:$0xf]
    %v496 = vld [vmem:[%s9 + $0xd8] sm:$0xf]
    %v497 = vld [vmem:[%s9 + $0xdc] sm:$0xf]
    %v498 = vld [vmem:[%s9 + $0xe0] sm:$0xf]
    %v499 = vld [vmem:[%s9 + $0xe4] sm:$0xf]
    %v500 = vld [vmem:[%s9 + $0xe8] sm:$0xf]
    %v501 = vld [vmem:[%s9 + $0xec] sm:$0xf]
    %v502 = vld [vmem:[%s9 + $0xf0] sm:$0xf]
    %v503 = vld [vmem:[%s9 + $0xf4] sm:$0xf]
    %v504 = vld [vmem:[%s9 + $0xf8] sm:$0xf]
    %v505 = vld [vmem:[%s9 + $0xfc] sm:$0xf]
    %v506 = vld [vmem:[%s7 + $0x10] sm:$0xff]
    %v507 = vld [vmem:[%s7 + $0x18] sm:$0xff]
    %v508 = vld [vmem:[%s7 + $0x50] sm:$0xff]
    %v509 = vld [vmem:[%s7 + $0x58] sm:$0xff]
    %v510 = vld [vmem:[%s7 + $0x90] sm:$0xff]
    %v511 = vld [vmem:[%s7 + $0x98] sm:$0xff]
    %v512 = vld [vmem:[%s7 + $0xd0] sm:$0xff]
    %v513 = vld [vmem:[%s7 + $0xd8] sm:$0xff]
    %v514 = vld [vmem:[%s7 + $0x110] sm:$0xff]
    %v515 = vld [vmem:[%s7 + $0x118] sm:$0xff]
    %v516 = vld [vmem:[%s7 + $0x150] sm:$0xff]
    %v517 = vld [vmem:[%s7 + $0x158] sm:$0xff]
    %v518 = vld [vmem:[%s7 + $0x190] sm:$0xff]
    %v519 = vld [vmem:[%s7 + $0x198] sm:$0xff]
    %v520 = vld [vmem:[%s7 + $0x1d0] sm:$0xff]
    %v521 = vld [vmem:[%s7 + $0x1d8] sm:$0xff]
    %v522 = vld [vmem:[%s8 + $0x4] sm:$0xf]
    %v524 = vlaneseq
    %v525 = vshrl.u32 %v524, 7
    %v526 = vsub.s32 0, %v525
    %v527 = vrot.slane %v522, %v526
    %v528 = vlaneseq
    %v529 = vshrl.u32 %v528, 7
    %v530 = vsub.s32 1, %v529
    %v531 = vrot.slane %v522, %v530
    %v532 = vlaneseq
    %v533 = vshrl.u32 %v532, 7
    %v534 = vsub.s32 2, %v533
    %v535 = vrot.slane %v522, %v534
    %v536 = vlaneseq
    %v537 = vshrl.u32 %v536, 7
    %v538 = vsub.s32 3, %v537
    %v539 = vrot.slane %v522, %v538
    %v560 = vunpack.c.l.b16 %v506
    %v561 = vunpack.c.h.b16 %v506
    %v562 = vunpack.c.l.b16 %v507
    %v563 = vunpack.c.h.b16 %v507
    %v564 = vunpack.c.l.b16 %v508
    %v565 = vunpack.c.h.b16 %v508
    %v566 = vunpack.c.l.b16 %v509
    %v567 = vunpack.c.h.b16 %v509
    %v568 = vunpack.c.l.b16 %v510
    %v569 = vunpack.c.h.b16 %v510
    %v570 = vunpack.c.l.b16 %v511
    %v571 = vunpack.c.h.b16 %v511
    %v572 = vunpack.c.l.b16 %v512
    %v573 = vunpack.c.h.b16 %v512
    %v574 = vunpack.c.l.b16 %v513
    %v575 = vunpack.c.h.b16 %v513
    %v576 = vunpack.c.l.b16 %v514
    %v577 = vunpack.c.h.b16 %v514
    %v578 = vunpack.c.l.b16 %v515
    %v579 = vunpack.c.h.b16 %v515
    %v580 = vunpack.c.l.b16 %v516
    %v581 = vunpack.c.h.b16 %v516
    %v582 = vunpack.c.l.b16 %v517
    %v583 = vunpack.c.h.b16 %v517
    %v584 = vunpack.c.l.b16 %v518
    %v585 = vunpack.c.h.b16 %v518
    %v586 = vunpack.c.l.b16 %v519
    %v587 = vunpack.c.h.b16 %v519
    %v588 = vunpack.c.l.b16 %v520
    %v589 = vunpack.c.h.b16 %v520
    %v590 = vunpack.c.l.b16 %v521
    %v591 = vunpack.c.h.b16 %v521
    %v592 = vpack.c.b16 %v564, %v560
    %v593 = vpack.c.b16 %v565, %v561
    %v594 = vpack.c.b16 %v566, %v562
    %v595 = vpack.c.b16 %v567, %v563
    %v596 = vpack.c.b16 %v572, %v568
    %v597 = vpack.c.b16 %v573, %v569
    %v598 = vpack.c.b16 %v574, %v570
    %v599 = vpack.c.b16 %v575, %v571
    %v600 = vpack.c.b16 %v580, %v576
    %v601 = vpack.c.b16 %v581, %v577
    %v602 = vpack.c.b16 %v582, %v578
    %v603 = vpack.c.b16 %v583, %v579
    %v604 = vpack.c.b16 %v588, %v584
    %v605 = vpack.c.b16 %v589, %v585
    %v606 = vpack.c.b16 %v590, %v586
    %v607 = vpack.c.b16 %v591, %v587
    %624 = vmatprep.subr.bf16.mxu0 %v593
    %625 = vmatpush1.bf16.msra.mxu0 %v592
    %626 = vmatprep.subr.bf16.mxu0 %v597
    %627 = vmatpush1.bf16.msra.mxu0 %v596
    %628 = vmatprep.subr.bf16.mxu0 %v601
    %629 = vmatpush1.bf16.msra.mxu0 %v600
    %630 = vmatprep.subr.bf16.mxu0 %v605
    %631 = vmatpush1.bf16.msra.mxu0 %v604
    %632 = vmatprep.subr.bf16.mxu0 0
    %633 = vmatpush1.bf16.msra.mxu0 0
    %634 = vmatprep.subr.bf16.mxu0 0
    %635 = vmatpush1.bf16.msra.mxu0 0
    %636 = vmatprep.subr.bf16.mxu0 0
    %637 = vmatpush1.bf16.msra.mxu0 0
    %638 = vmatprep.subr.bf16.mxu0 0
    %639 = vmatpush1.bf16.msra.mxu0 0
    %640 = vmatprep.subr.bf16.mxu0 0
    %641 = vmatpush1.bf16.msra.mxu0 0
    %642 = vmatprep.subr.bf16.mxu0 0
    %643 = vmatpush1.bf16.msra.mxu0 0
    %644 = vmatprep.subr.bf16.mxu0 0
    %645 = vmatpush1.bf16.msra.mxu0 0
    %646 = vmatprep.subr.bf16.mxu0 0
    %647 = vmatpush1.bf16.msra.mxu0 0
    %648 = vmatprep.subr.bf16.mxu0 0
    %649 = vmatpush1.bf16.msra.mxu0 0
    %650 = vmatprep.subr.bf16.mxu0 0
    %651 = vmatpush1.bf16.msra.mxu0 0
    %652 = vmatprep.subr.bf16.mxu0 0
    %653 = vmatpush1.bf16.msra.mxu0 0
    %654 = vmatprep.subr.bf16.mxu0 0
    %655 = vmatpush1.bf16.msra.mxu0 0
    %656 = vmatprep.mubr.bf16.mxu0 0
    %657 = vmatmul.mubr.bf16.gmra.mrb[0].mxu0 %v350
    %v658 = vpop.f32.mrb[0].mxu0
    %v659 = vadd.f32 %v527, %v658
    %v660 = vpop.f32.mrb[0].mxu0
    %v661 = vadd.f32 %v531, %v660
    %v662 = vpop.f32.mrb[0].mxu0
    %v663 = vpop.f32.mrb[0].mxu0
    %664 = vdwg.mxu0
    %665 = vmatprep.subr.bf16.mxu0 %v595
    %666 = vmatpush1.bf16.msra.mxu0 %v594
    %667 = vmatprep.subr.bf16.mxu0 %v599
    %668 = vmatpush1.bf16.msra.mxu0 %v598
    %669 = vmatprep.subr.bf16.mxu0 %v603
    %670 = vmatpush1.bf16.msra.mxu0 %v602
    %671 = vmatprep.subr.bf16.mxu0 %v607
    %672 = vmatpush1.bf16.msra.mxu0 %v606
    %673 = vmatprep.subr.bf16.mxu0 0
    %674 = vmatpush1.bf16.msra.mxu0 0
    %675 = vmatprep.subr.bf16.mxu0 0
    %676 = vmatpush1.bf16.msra.mxu0 0
    %677 = vmatprep.subr.bf16.mxu0 0
    %678 = vmatpush1.bf16.msra.mxu0 0
    %679 = vmatprep.subr.bf16.mxu0 0
    %680 = vmatpush1.bf16.msra.mxu0 0
    %681 = vmatprep.subr.bf16.mxu0 0
    %682 = vmatpush1.bf16.msra.mxu0 0
    %683 = vmatprep.subr.bf16.mxu0 0
    %684 = vmatpush1.bf16.msra.mxu0 0
    %685 = vmatprep.subr.bf16.mxu0 0
    %686 = vmatpush1.bf16.msra.mxu0 0
    %687 = vmatprep.subr.bf16.mxu0 0
    %688 = vmatpush1.bf16.msra.mxu0 0
    %689 = vmatprep.subr.bf16.mxu0 0
    %690 = vmatpush1.bf16.msra.mxu0 0
    %691 = vmatprep.subr.bf16.mxu0 0
    %692 = vmatpush1.bf16.msra.mxu0 0
    %693 = vmatprep.subr.bf16.mxu0 0
    %694 = vmatpush1.bf16.msra.mxu0 0
    %695 = vmatprep.subr.bf16.mxu0 0
    %696 = vmatpush1.bf16.msra.mxu0 0
    %697 = vmatprep.mubr.bf16.mxu0 0
    %698 = vmatmul.mubr.bf16.gmra.mrb[0].mxu0 %v350
    %v699 = vpop.f32.mrb[0].mxu0
    %v700 = vadd.f32 %v535, %v699
    %v701 = vpop.f32.mrb[0].mxu0
    %v702 = vadd.f32 %v539, %v701
    %v703 = vpop.f32.mrb[0].mxu0
    %v704 = vpop.f32.mrb[0].mxu0
    %705 = vdwg.mxu0
    %v706 = vmax.f32 %v659, 0.0
    %v707 = vmax.f32 %v661, 0.0
    %v708 = vmax.f32 %v700, 0.0
    %v709 = vmax.f32 %v702, 0.0
    %v710 = vpack.c.bf16 %v706, %v706
    %v711 = vpack.c.bf16 %v707, %v707
    %v712 = vpack.c.bf16 %v708, %v708
    %v713 = vpack.c.bf16 %v709, %v709
    %v714 = vld [vmem:[%s9 + $0x100] sm:$0xf]
    %v715 = vld [vmem:[%s9 + $0x104] sm:$0xf]
    %v716 = vld [vmem:[%s9 + $0x108] sm:$0xf]
    %v717 = vld [vmem:[%s9 + $0x10c] sm:$0xf]
    %v718 = vld [vmem:[%s9 + $0x110] sm:$0xf]
    %v719 = vld [vmem:[%s9 + $0x114] sm:$0xf]
    %v720 = vld [vmem:[%s9 + $0x118] sm:$0xf]
    %v721 = vld [vmem:[%s9 + $0x11c] sm:$0xf]
    %v722 = vld [vmem:[%s9 + $0x120] sm:$0xf]
    %v723 = vld [vmem:[%s9 + $0x124] sm:$0xf]
    %v724 = vld [vmem:[%s9 + $0x128] sm:$0xf]
    %v725 = vld [vmem:[%s9 + $0x12c] sm:$0xf]
    %v726 = vld [vmem:[%s9 + $0x130] sm:$0xf]
    %v727 = vld [vmem:[%s9 + $0x134] sm:$0xf]
    %v728 = vld [vmem:[%s9 + $0x138] sm:$0xf]
    %v729 = vld [vmem:[%s9 + $0x13c] sm:$0xf]
    %v730 = vld [vmem:[%s9 + $0x140] sm:$0xf]
    %v731 = vld [vmem:[%s9 + $0x144] sm:$0xf]
    %v732 = vld [vmem:[%s9 + $0x148] sm:$0xf]
    %v733 = vld [vmem:[%s9 + $0x14c] sm:$0xf]
    %v734 = vld [vmem:[%s9 + $0x150] sm:$0xf]
    %v735 = vld [vmem:[%s9 + $0x154] sm:$0xf]
    %v736 = vld [vmem:[%s9 + $0x158] sm:$0xf]
    %v737 = vld [vmem:[%s9 + $0x15c] sm:$0xf]
    %v738 = vld [vmem:[%s9 + $0x160] sm:$0xf]
    %v739 = vld [vmem:[%s9 + $0x164] sm:$0xf]
    %v740 = vld [vmem:[%s9 + $0x168] sm:$0xf]
    %v741 = vld [vmem:[%s9 + $0x16c] sm:$0xf]
    %v742 = vld [vmem:[%s9 + $0x170] sm:$0xf]
    %v743 = vld [vmem:[%s9 + $0x174] sm:$0xf]
    %v744 = vld [vmem:[%s9 + $0x178] sm:$0xf]
    %v745 = vld [vmem:[%s9 + $0x17c] sm:$0xf]
    %v746 = vld [vmem:[%s9 + $0x180] sm:$0xf]
    %v747 = vld [vmem:[%s9 + $0x184] sm:$0xf]
    %v748 = vld [vmem:[%s9 + $0x188] sm:$0xf]
    %v749 = vld [vmem:[%s9 + $0x18c] sm:$0xf]
    %v750 = vld [vmem:[%s9 + $0x190] sm:$0xf]
    %v751 = vld [vmem:[%s9 + $0x194] sm:$0xf]
    %v752 = vld [vmem:[%s9 + $0x198] sm:$0xf]
    %v753 = vld [vmem:[%s9 + $0x19c] sm:$0xf]
    %v754 = vld [vmem:[%s9 + $0x1a0] sm:$0xf]
    %v755 = vld [vmem:[%s9 + $0x1a4] sm:$0xf]
    %v756 = vld [vmem:[%s9 + $0x1a8] sm:$0xf]
    %v757 = vld [vmem:[%s9 + $0x1ac] sm:$0xf]
    %v758 = vld [vmem:[%s9 + $0x1b0] sm:$0xf]
    %v759 = vld [vmem:[%s9 + $0x1b4] sm:$0xf]
    %v760 = vld [vmem:[%s9 + $0x1b8] sm:$0xf]
    %v761 = vld [vmem:[%s9 + $0x1bc] sm:$0xf]
    %v762 = vld [vmem:[%s9 + $0x1c0] sm:$0xf]
    %v763 = vld [vmem:[%s9 + $0x1c4] sm:$0xf]
    %v764 = vld [vmem:[%s9 + $0x1c8] sm:$0xf]
    %v765 = vld [vmem:[%s9 + $0x1cc] sm:$0xf]
    %v766 = vld [vmem:[%s9 + $0x1d0] sm:$0xf]
    %v767 = vld [vmem:[%s9 + $0x1d4] sm:$0xf]
    %v768 = vld [vmem:[%s9 + $0x1d8] sm:$0xf]
    %v769 = vld [vmem:[%s9 + $0x1dc] sm:$0xf]
    %v770 = vld [vmem:[%s9 + $0x1e0] sm:$0xf]
    %v771 = vld [vmem:[%s9 + $0x1e4] sm:$0xf]
    %v772 = vld [vmem:[%s9 + $0x1e8] sm:$0xf]
    %v773 = vld [vmem:[%s9 + $0x1ec] sm:$0xf]
    %v774 = vld [vmem:[%s9 + $0x1f0] sm:$0xf]
    %v775 = vld [vmem:[%s9 + $0x1f4] sm:$0xf]
    %v776 = vld [vmem:[%s9 + $0x1f8] sm:$0xf]
    %v777 = vld [vmem:[%s9 + $0x1fc] sm:$0xf]
    %v842 = vunpack.c.l.b16 %v714
    %v843 = vunpack.c.l.b16 %v715
    %v844 = vunpack.c.l.b16 %v716
    %v845 = vunpack.c.l.b16 %v717
    %v846 = vunpack.c.l.b16 %v718
    %v847 = vunpack.c.l.b16 %v719
    %v848 = vunpack.c.l.b16 %v720
    %v849 = vunpack.c.l.b16 %v721
    %v850 = vunpack.c.l.b16 %v722
    %v851 = vunpack.c.l.b16 %v723
    %v852 = vunpack.c.l.b16 %v724
    %v853 = vunpack.c.l.b16 %v725
    %v854 = vunpack.c.l.b16 %v726
    %v855 = vunpack.c.l.b16 %v727
    %v856 = vunpack.c.l.b16 %v728
    %v857 = vunpack.c.l.b16 %v729
    %v858 = vunpack.c.l.b16 %v730
    %v859 = vunpack.c.l.b16 %v731
    %v860 = vunpack.c.l.b16 %v732
    %v861 = vunpack.c.l.b16 %v733
    %v862 = vunpack.c.l.b16 %v734
    %v863 = vunpack.c.l.b16 %v735
    %v864 = vunpack.c.l.b16 %v736
    %v865 = vunpack.c.l.b16 %v737
    %v866 = vunpack.c.l.b16 %v738
    %v867 = vunpack.c.l.b16 %v739
    %v868 = vunpack.c.l.b16 %v740
    %v869 = vunpack.c.l.b16 %v741
    %v870 = vunpack.c.l.b16 %v742
    %v871 = vunpack.c.l.b16 %v743
    %v872 = vunpack.c.l.b16 %v744
    %v873 = vunpack.c.l.b16 %v745
    %v874 = vunpack.c.l.b16 %v746
    %v875 = vunpack.c.l.b16 %v747
    %v876 = vunpack.c.l.b16 %v748
    %v877 = vunpack.c.l.b16 %v749
    %v878 = vunpack.c.l.b16 %v750
    %v879 = vunpack.c.l.b16 %v751
    %v880 = vunpack.c.l.b16 %v752
    %v881 = vunpack.c.l.b16 %v753
    %v882 = vunpack.c.l.b16 %v754
    %v883 = vunpack.c.l.b16 %v755
    %v884 = vunpack.c.l.b16 %v756
    %v885 = vunpack.c.l.b16 %v757
    %v886 = vunpack.c.l.b16 %v758
    %v887 = vunpack.c.l.b16 %v759
    %v888 = vunpack.c.l.b16 %v760
    %v889 = vunpack.c.l.b16 %v761
    %v890 = vunpack.c.l.b16 %v762
    %v891 = vunpack.c.l.b16 %v763
    %v892 = vunpack.c.l.b16 %v764
    %v893 = vunpack.c.l.b16 %v765
    %v894 = vunpack.c.l.b16 %v766
    %v895 = vunpack.c.l.b16 %v767
    %v896 = vunpack.c.l.b16 %v768
    %v897 = vunpack.c.l.b16 %v769
    %v898 = vunpack.c.l.b16 %v770
    %v899 = vunpack.c.l.b16 %v771
    %v900 = vunpack.c.l.b16 %v772
    %v901 = vunpack.c.l.b16 %v773
    %v902 = vunpack.c.l.b16 %v774
    %v903 = vunpack.c.l.b16 %v775
    %v904 = vunpack.c.l.b16 %v776
    %v905 = vunpack.c.l.b16 %v777
    %v906 = vpack.c.b16 %v843, %v842
    %v907 = vpack.c.b16 %v845, %v844
    %v908 = vpack.c.b16 %v847, %v846
    %v909 = vpack.c.b16 %v849, %v848
    %v910 = vpack.c.b16 %v851, %v850
    %v911 = vpack.c.b16 %v853, %v852
    %v912 = vpack.c.b16 %v855, %v854
    %v913 = vpack.c.b16 %v857, %v856
    %v914 = vpack.c.b16 %v859, %v858
    %v915 = vpack.c.b16 %v861, %v860
    %v916 = vpack.c.b16 %v863, %v862
    %v917 = vpack.c.b16 %v865, %v864
    %v918 = vpack.c.b16 %v867, %v866
    %v919 = vpack.c.b16 %v869, %v868
    %v920 = vpack.c.b16 %v871, %v870
    %v921 = vpack.c.b16 %v873, %v872
    %v922 = vpack.c.b16 %v875, %v874
    %v923 = vpack.c.b16 %v877, %v876
    %v924 = vpack.c.b16 %v879, %v878
    %v925 = vpack.c.b16 %v881, %v880
    %v926 = vpack.c.b16 %v883, %v882
    %v927 = vpack.c.b16 %v885, %v884
    %v928 = vpack.c.b16 %v887, %v886
    %v929 = vpack.c.b16 %v889, %v888
    %v930 = vpack.c.b16 %v891, %v890
    %v931 = vpack.c.b16 %v893, %v892
    %v932 = vpack.c.b16 %v895, %v894
    %v933 = vpack.c.b16 %v897, %v896
    %v934 = vpack.c.b16 %v899, %v898
    %v935 = vpack.c.b16 %v901, %v900
    %v936 = vpack.c.b16 %v903, %v902
    %v937 = vpack.c.b16 %v905, %v904
    %970 = vmatprep.subr.bf16.mxu0 0
    %971 = vmatpush1.bf16.msra.mxu0 %v906
    %972 = vmatprep.subr.bf16.mxu0 0
    %973 = vmatpush1.bf16.msra.mxu0 %v907
    %974 = vmatprep.subr.bf16.mxu0 0
    %975 = vmatpush1.bf16.msra.mxu0 %v908
    %976 = vmatprep.subr.bf16.mxu0 0
    %977 = vmatpush1.bf16.msra.mxu0 %v909
    %978 = vmatprep.subr.bf16.mxu0 0
    %979 = vmatpush1.bf16.msra.mxu0 %v910
    %980 = vmatprep.subr.bf16.mxu0 0
    %981 = vmatpush1.bf16.msra.mxu0 %v911
    %982 = vmatprep.subr.bf16.mxu0 0
    %983 = vmatpush1.bf16.msra.mxu0 %v912
    %984 = vmatprep.subr.bf16.mxu0 0
    %985 = vmatpush1.bf16.msra.mxu0 %v913
    %986 = vmatprep.subr.bf16.mxu0 0
    %987 = vmatpush1.bf16.msra.mxu0 %v914
    %988 = vmatprep.subr.bf16.mxu0 0
    %989 = vmatpush1.bf16.msra.mxu0 %v915
    %990 = vmatprep.subr.bf16.mxu0 0
    %991 = vmatpush1.bf16.msra.mxu0 %v916
    %992 = vmatprep.subr.bf16.mxu0 0
    %993 = vmatpush1.bf16.msra.mxu0 %v917
    %994 = vmatprep.subr.bf16.mxu0 0
    %995 = vmatpush1.bf16.msra.mxu0 %v918
    %996 = vmatprep.subr.bf16.mxu0 0
    %997 = vmatpush1.bf16.msra.mxu0 %v919
    %998 = vmatprep.subr.bf16.mxu0 0
    %999 = vmatpush1.bf16.msra.mxu0 %v920
    %1000 = vmatprep.subr.bf16.mxu0 0
    %1001 = vmatpush1.bf16.msra.mxu0 %v921
    %1002 = vmatprep.mubr.bf16.mxu0 %v711
    %1003 = vmatmul.mubr.bf16.gmra.mrb[0].mxu0 %v710
    %v1004 = vpop.f32.mrb[0].mxu0
    %v1005 = vadd.f32 0.0, %v1004
    %v1006 = vpop.f32.mrb[0].mxu0
    %v1007 = vpop.f32.mrb[0].mxu0
    %v1008 = vpop.f32.mrb[0].mxu0
    %1009 = vdwg.mxu0
    %1010 = vmatprep.subr.bf16.mxu0 0
    %1011 = vmatpush1.bf16.msra.mxu0 %v922
    %1012 = vmatprep.subr.bf16.mxu0 0
    %1013 = vmatpush1.bf16.msra.mxu0 %v923
    %1014 = vmatprep.subr.bf16.mxu0 0
    %1015 = vmatpush1.bf16.msra.mxu0 %v924
    %1016 = vmatprep.subr.bf16.mxu0 0
    %1017 = vmatpush1.bf16.msra.mxu0 %v925
    %1018 = vmatprep.subr.bf16.mxu0 0
    %1019 = vmatpush1.bf16.msra.mxu0 %v926
    %1020 = vmatprep.subr.bf16.mxu0 0
    %1021 = vmatpush1.bf16.msra.mxu0 %v927
    %1022 = vmatprep.subr.bf16.mxu0 0
    %1023 = vmatpush1.bf16.msra.mxu0 %v928
    %1024 = vmatprep.subr.bf16.mxu0 0
    %1025 = vmatpush1.bf16.msra.mxu0 %v929
    %1026 = vmatprep.subr.bf16.mxu0 0
    %1027 = vmatpush1.bf16.msra.mxu0 %v930
    %1028 = vmatprep.subr.bf16.mxu0 0
    %1029 = vmatpush1.bf16.msra.mxu0 %v931
    %1030 = vmatprep.subr.bf16.mxu0 0
    %1031 = vmatpush1.bf16.msra.mxu0 %v932
    %1032 = vmatprep.subr.bf16.mxu0 0
    %1033 = vmatpush1.bf16.msra.mxu0 %v933
    %1034 = vmatprep.subr.bf16.mxu0 0
    %1035 = vmatpush1.bf16.msra.mxu0 %v934
    %1036 = vmatprep.subr.bf16.mxu0 0
    %1037 = vmatpush1.bf16.msra.mxu0 %v935
    %1038 = vmatprep.subr.bf16.mxu0 0
    %1039 = vmatpush1.bf16.msra.mxu0 %v936
    %1040 = vmatprep.subr.bf16.mxu0 0
    %1041 = vmatpush1.bf16.msra.mxu0 %v937
    %1042 = vmatprep.mubr.bf16.mxu0 %v713
    %1043 = vmatmul.mubr.bf16.gmra.mrb[0].mxu0 %v712
    %v1044 = vpop.f32.mrb[0].mxu0
    %v1045 = vadd.f32 %v1005, %v1044
    %v1046 = vpop.f32.mrb[0].mxu0
    %v1047 = vpop.f32.mrb[0].mxu0
    %v1048 = vpop.f32.mrb[0].mxu0
    %1049 = vdwg.mxu0
    %v1114 = vunpack.c.l.b16 %v442
    %v1115 = vunpack.c.l.b16 %v443
    %v1116 = vunpack.c.l.b16 %v444
    %v1117 = vunpack.c.l.b16 %v445
    %v1118 = vunpack.c.l.b16 %v446
    %v1119 = vunpack.c.l.b16 %v447
    %v1120 = vunpack.c.l.b16 %v448
    %v1121 = vunpack.c.l.b16 %v449
    %v1122 = vunpack.c.l.b16 %v450
    %v1123 = vunpack.c.l.b16 %v451
    %v1124 = vunpack.c.l.b16 %v452
    %v1125 = vunpack.c.l.b16 %v453
    %v1126 = vunpack.c.l.b16 %v454
    %v1127 = vunpack.c.l.b16 %v455
    %v1128 = vunpack.c.l.b16 %v456
    %v1129 = vunpack.c.l.b16 %v457
    %v1130 = vunpack.c.l.b16 %v458
    %v1131 = vunpack.c.l.b16 %v459
    %v1132 = vunpack.c.l.b16 %v460
    %v1133 = vunpack.c.l.b16 %v461
    %v1134 = vunpack.c.l.b16 %v462
    %v1135 = vunpack.c.l.b16 %v463
    %v1136 = vunpack.c.l.b16 %v464
    %v1137 = vunpack.c.l.b16 %v465
    %v1138 = vunpack.c.l.b16 %v466
    %v1139 = vunpack.c.l.b16 %v467
    %v1140 = vunpack.c.l.b16 %v468
    %v1141 = vunpack.c.l.b16 %v469
    %v1142 = vunpack.c.l.b16 %v470
    %v1143 = vunpack.c.l.b16 %v471
    %v1144 = vunpack.c.l.b16 %v472
    %v1145 = vunpack.c.l.b16 %v473
    %v1146 = vunpack.c.l.b16 %v474
    %v1147 = vunpack.c.l.b16 %v475
    %v1148 = vunpack.c.l.b16 %v476
    %v1149 = vunpack.c.l.b16 %v477
    %v1150 = vunpack.c.l.b16 %v478
    %v1151 = vunpack.c.l.b16 %v479
    %v1152 = vunpack.c.l.b16 %v480
    %v1153 = vunpack.c.l.b16 %v481
    %v1154 = vunpack.c.l.b16 %v482
    %v1155 = vunpack.c.l.b16 %v483
    %v1156 = vunpack.c.l.b16 %v484
    %v1157 = vunpack.c.l.b16 %v485
    %v1158 = vunpack.c.l.b16 %v486
    %v1159 = vunpack.c.l.b16 %v487
    %v1160 = vunpack.c.l.b16 %v488
    %v1161 = vunpack.c.l.b16 %v489
    %v1162 = vunpack.c.l.b16 %v490
    %v1163 = vunpack.c.l.b16 %v491
    %v1164 = vunpack.c.l.b16 %v492
    %v1165 = vunpack.c.l.b16 %v493
    %v1166 = vunpack.c.l.b16 %v494
    %v1167 = vunpack.c.l.b16 %v495
    %v1168 = vunpack.c.l.b16 %v496
    %v1169 = vunpack.c.l.b16 %v497
    %v1170 = vunpack.c.l.b16 %v498
    %v1171 = vunpack.c.l.b16 %v499
    %v1172 = vunpack.c.l.b16 %v500
    %v1173 = vunpack.c.l.b16 %v501
    %v1174 = vunpack.c.l.b16 %v502
    %v1175 = vunpack.c.l.b16 %v503
    %v1176 = vunpack.c.l.b16 %v504
    %v1177 = vunpack.c.l.b16 %v505
    %v1178 = vpack.c.b16 %v1115, %v1114
    %v1179 = vpack.c.b16 %v1117, %v1116
    %v1180 = vpack.c.b16 %v1119, %v1118
    %v1181 = vpack.c.b16 %v1121, %v1120
    %v1182 = vpack.c.b16 %v1123, %v1122
    %v1183 = vpack.c.b16 %v1125, %v1124
    %v1184 = vpack.c.b16 %v1127, %v1126
    %v1185 = vpack.c.b16 %v1129, %v1128
    %v1186 = vpack.c.b16 %v1131, %v1130
    %v1187 = vpack.c.b16 %v1133, %v1132
    %v1188 = vpack.c.b16 %v1135, %v1134
    %v1189 = vpack.c.b16 %v1137, %v1136
    %v1190 = vpack.c.b16 %v1139, %v1138
    %v1191 = vpack.c.b16 %v1141, %v1140
    %v1192 = vpack.c.b16 %v1143, %v1142
    %v1193 = vpack.c.b16 %v1145, %v1144
    %v1194 = vpack.c.b16 %v1147, %v1146
    %v1195 = vpack.c.b16 %v1149, %v1148
    %v1196 = vpack.c.b16 %v1151, %v1150
    %v1197 = vpack.c.b16 %v1153, %v1152
    %v1198 = vpack.c.b16 %v1155, %v1154
    %v1199 = vpack.c.b16 %v1157, %v1156
    %v1200 = vpack.c.b16 %v1159, %v1158
    %v1201 = vpack.c.b16 %v1161, %v1160
    %v1202 = vpack.c.b16 %v1163, %v1162
    %v1203 = vpack.c.b16 %v1165, %v1164
    %v1204 = vpack.c.b16 %v1167, %v1166
    %v1205 = vpack.c.b16 %v1169, %v1168
    %v1206 = vpack.c.b16 %v1171, %v1170
    %v1207 = vpack.c.b16 %v1173, %v1172
    %v1208 = vpack.c.b16 %v1175, %v1174
    %v1209 = vpack.c.b16 %v1177, %v1176
    %1242 = vmatprep.subr.bf16.mxu0 0
    %1243 = vmatpush1.bf16.msra.mxu0 %v1178
    %1244 = vmatprep.subr.bf16.mxu0 0
    %1245 = vmatpush1.bf16.msra.mxu0 %v1179
    %1246 = vmatprep.subr.bf16.mxu0 0
    %1247 = vmatpush1.bf16.msra.mxu0 %v1180
    %1248 = vmatprep.subr.bf16.mxu0 0
    %1249 = vmatpush1.bf16.msra.mxu0 %v1181
    %1250 = vmatprep.subr.bf16.mxu0 0
    %1251 = vmatpush1.bf16.msra.mxu0 %v1182
    %1252 = vmatprep.subr.bf16.mxu0 0
    %1253 = vmatpush1.bf16.msra.mxu0 %v1183
    %1254 = vmatprep.subr.bf16.mxu0 0
    %1255 = vmatpush1.bf16.msra.mxu0 %v1184
    %1256 = vmatprep.subr.bf16.mxu0 0
    %1257 = vmatpush1.bf16.msra.mxu0 %v1185
    %1258 = vmatprep.subr.bf16.mxu0 0
    %1259 = vmatpush1.bf16.msra.mxu0 %v1186
    %1260 = vmatprep.subr.bf16.mxu0 0
    %1261 = vmatpush1.bf16.msra.mxu0 %v1187
    %1262 = vmatprep.subr.bf16.mxu0 0
    %1263 = vmatpush1.bf16.msra.mxu0 %v1188
    %1264 = vmatprep.subr.bf16.mxu0 0
    %1265 = vmatpush1.bf16.msra.mxu0 %v1189
    %1266 = vmatprep.subr.bf16.mxu0 0
    %1267 = vmatpush1.bf16.msra.mxu0 %v1190
    %1268 = vmatprep.subr.bf16.mxu0 0
    %1269 = vmatpush1.bf16.msra.mxu0 %v1191
    %1270 = vmatprep.subr.bf16.mxu0 0
    %1271 = vmatpush1.bf16.msra.mxu0 %v1192
    %1272 = vmatprep.subr.bf16.mxu0 0
    %1273 = vmatpush1.bf16.msra.mxu0 %v1193
    %1274 = vmatprep.mubr.bf16.mxu0 %v439
    %1275 = vmatmul.mubr.bf16.gmra.mrb[0].mxu0 %v438
    %v1276 = vpop.f32.mrb[0].mxu0
    %v1277 = vadd.f32 %v1045, %v1276
    %v1278 = vpop.f32.mrb[0].mxu0
    %v1279 = vpop.f32.mrb[0].mxu0
    %v1280 = vpop.f32.mrb[0].mxu0
    %1281 = vdwg.mxu0
    %1282 = vmatprep.subr.bf16.mxu0 0
    %1283 = vmatpush1.bf16.msra.mxu0 %v1194
    %1284 = vmatprep.subr.bf16.mxu0 0
    %1285 = vmatpush1.bf16.msra.mxu0 %v1195
    %1286 = vmatprep.subr.bf16.mxu0 0
    %1287 = vmatpush1.bf16.msra.mxu0 %v1196
    %1288 = vmatprep.subr.bf16.mxu0 0
    %1289 = vmatpush1.bf16.msra.mxu0 %v1197
    %1290 = vmatprep.subr.bf16.mxu0 0
    %1291 = vmatpush1.bf16.msra.mxu0 %v1198
    %1292 = vmatprep.subr.bf16.mxu0 0
    %1293 = vmatpush1.bf16.msra.mxu0 %v1199
    %1294 = vmatprep.subr.bf16.mxu0 0
    %1295 = vmatpush1.bf16.msra.mxu0 %v1200
    %1296 = vmatprep.subr.bf16.mxu0 0
    %1297 = vmatpush1.bf16.msra.mxu0 %v1201
    %1298 = vmatprep.subr.bf16.mxu0 0
    %1299 = vmatpush1.bf16.msra.mxu0 %v1202
    %1300 = vmatprep.subr.bf16.mxu0 0
    %1301 = vmatpush1.bf16.msra.mxu0 %v1203
    %1302 = vmatprep.subr.bf16.mxu0 0
    %1303 = vmatpush1.bf16.msra.mxu0 %v1204
    %1304 = vmatprep.subr.bf16.mxu0 0
    %1305 = vmatpush1.bf16.msra.mxu0 %v1205
    %1306 = vmatprep.subr.bf16.mxu0 0
    %1307 = vmatpush1.bf16.msra.mxu0 %v1206
    %1308 = vmatprep.subr.bf16.mxu0 0
    %1309 = vmatpush1.bf16.msra.mxu0 %v1207
    %1310 = vmatprep.subr.bf16.mxu0 0
    %1311 = vmatpush1.bf16.msra.mxu0 %v1208
    %1312 = vmatprep.subr.bf16.mxu0 0
    %1313 = vmatpush1.bf16.msra.mxu0 %v1209
    %1314 = vmatprep.mubr.bf16.mxu0 %v441
    %1315 = vmatmul.mubr.bf16.gmra.mrb[0].mxu0 %v440
    %v1316 = vpop.f32.mrb[0].mxu0
    %v1317 = vadd.f32 %v1277, %v1316
    %v1318 = vpop.f32.mrb[0].mxu0
    %v1319 = vpop.f32.mrb[0].mxu0
    %v1320 = vpop.f32.mrb[0].mxu0
    %1321 = vdwg.mxu0
    %v1322 = vld [vmem:[%s7 + $0x20] sm:$0xff]
    %v1323 = vld [vmem:[%s7 + $0x28] sm:$0xff]
    %v1324 = vld [vmem:[%s7 + $0x60] sm:$0xff]
    %v1325 = vld [vmem:[%s7 + $0x68] sm:$0xff]
    %v1326 = vld [vmem:[%s7 + $0xa0] sm:$0xff]
    %v1327 = vld [vmem:[%s7 + $0xa8] sm:$0xff]
    %v1328 = vld [vmem:[%s7 + $0xe0] sm:$0xff]
    %v1329 = vld [vmem:[%s7 + $0xe8] sm:$0xff]
    %v1330 = vld [vmem:[%s7 + $0x120] sm:$0xff]
    %v1331 = vld [vmem:[%s7 + $0x128] sm:$0xff]
    %v1332 = vld [vmem:[%s7 + $0x160] sm:$0xff]
    %v1333 = vld [vmem:[%s7 + $0x168] sm:$0xff]
    %v1334 = vld [vmem:[%s7 + $0x1a0] sm:$0xff]
    %v1335 = vld [vmem:[%s7 + $0x1a8] sm:$0xff]
    %v1336 = vld [vmem:[%s7 + $0x1e0] sm:$0xff]
    %v1337 = vld [vmem:[%s7 + $0x1e8] sm:$0xff]
    %v1338 = vld [vmem:[%s8 + $0x8] sm:$0xf]
    %v1340 = vlaneseq
    %v1341 = vshrl.u32 %v1340, 7
    %v1342 = vsub.s32 0, %v1341
    %v1343 = vrot.slane %v1338, %v1342
    %v1344 = vlaneseq
    %v1345 = vshrl.u32 %v1344, 7
    %v1346 = vsub.s32 1, %v1345
    %v1347 = vrot.slane %v1338, %v1346
    %v1348 = vlaneseq
    %v1349 = vshrl.u32 %v1348, 7
    %v1350 = vsub.s32 2, %v1349
    %v1351 = vrot.slane %v1338, %v1350
    %v1352 = vlaneseq
    %v1353 = vshrl.u32 %v1352, 7
    %v1354 = vsub.s32 3, %v1353
    %v1355 = vrot.slane %v1338, %v1354
    %v1376 = vunpack.c.l.b16 %v1322
    %v1377 = vunpack.c.h.b16 %v1322
    %v1378 = vunpack.c.l.b16 %v1323
    %v1379 = vunpack.c.h.b16 %v1323
    %v1380 = vunpack.c.l.b16 %v1324
    %v1381 = vunpack.c.h.b16 %v1324
    %v1382 = vunpack.c.l.b16 %v1325
    %v1383 = vunpack.c.h.b16 %v1325
    %v1384 = vunpack.c.l.b16 %v1326
    %v1385 = vunpack.c.h.b16 %v1326
    %v1386 = vunpack.c.l.b16 %v1327
    %v1387 = vunpack.c.h.b16 %v1327
    %v1388 = vunpack.c.l.b16 %v1328
    %v1389 = vunpack.c.h.b16 %v1328
    %v1390 = vunpack.c.l.b16 %v1329
    %v1391 = vunpack.c.h.b16 %v1329
    %v1392 = vunpack.c.l.b16 %v1330
    %v1393 = vunpack.c.h.b16 %v1330
    %v1394 = vunpack.c.l.b16 %v1331
    %v1395 = vunpack.c.h.b16 %v1331
    %v1396 = vunpack.c.l.b16 %v1332
    %v1397 = vunpack.c.h.b16 %v1332
    %v1398 = vunpack.c.l.b16 %v1333
    %v1399 = vunpack.c.h.b16 %v1333
    %v1400 = vunpack.c.l.b16 %v1334
    %v1401 = vunpack.c.h.b16 %v1334
    %v1402 = vunpack.c.l.b16 %v1335
    %v1403 = vunpack.c.h.b16 %v1335
    %v1404 = vunpack.c.l.b16 %v1336
    %v1405 = vunpack.c.h.b16 %v1336
    %v1406 = vunpack.c.l.b16 %v1337
    %v1407 = vunpack.c.h.b16 %v1337
    %v1408 = vpack.c.b16 %v1380, %v1376
    %v1409 = vpack.c.b16 %v1381, %v1377
    %v1410 = vpack.c.b16 %v1382, %v1378
    %v1411 = vpack.c.b16 %v1383, %v1379
    %v1412 = vpack.c.b16 %v1388, %v1384
    %v1413 = vpack.c.b16 %v1389, %v1385
    %v1414 = vpack.c.b16 %v1390, %v1386
    %v1415 = vpack.c.b16 %v1391, %v1387
    %v1416 = vpack.c.b16 %v1396, %v1392
    %v1417 = vpack.c.b16 %v1397, %v1393
    %v1418 = vpack.c.b16 %v1398, %v1394
    %v1419 = vpack.c.b16 %v1399, %v1395
    %v1420 = vpack.c.b16 %v1404, %v1400
    %v1421 = vpack.c.b16 %v1405, %v1401
    %v1422 = vpack.c.b16 %v1406, %v1402
    %v1423 = vpack.c.b16 %v1407, %v1403
    %1440 = vmatprep.subr.bf16.mxu0 %v1409
    %1441 = vmatpush1.bf16.msra.mxu0 %v1408
    %1442 = vmatprep.subr.bf16.mxu0 %v1413
    %1443 = vmatpush1.bf16.msra.mxu0 %v1412
    %1444 = vmatprep.subr.bf16.mxu0 %v1417
    %1445 = vmatpush1.bf16.msra.mxu0 %v1416
    %1446 = vmatprep.subr.bf16.mxu0 %v1421
    %1447 = vmatpush1.bf16.msra.mxu0 %v1420
    %1448 = vmatprep.subr.bf16.mxu0 0
    %1449 = vmatpush1.bf16.msra.mxu0 0
    %1450 = vmatprep.subr.bf16.mxu0 0
    %1451 = vmatpush1.bf16.msra.mxu0 0
    %1452 = vmatprep.subr.bf16.mxu0 0
    %1453 = vmatpush1.bf16.msra.mxu0 0
    %1454 = vmatprep.subr.bf16.mxu0 0
    %1455 = vmatpush1.bf16.msra.mxu0 0
    %1456 = vmatprep.subr.bf16.mxu0 0
    %1457 = vmatpush1.bf16.msra.mxu0 0
    %1458 = vmatprep.subr.bf16.mxu0 0
    %1459 = vmatpush1.bf16.msra.mxu0 0
    %1460 = vmatprep.subr.bf16.mxu0 0
    %1461 = vmatpush1.bf16.msra.mxu0 0
    %1462 = vmatprep.subr.bf16.mxu0 0
    %1463 = vmatpush1.bf16.msra.mxu0 0
    %1464 = vmatprep.subr.bf16.mxu0 0
    %1465 = vmatpush1.bf16.msra.mxu0 0
    %1466 = vmatprep.subr.bf16.mxu0 0
    %1467 = vmatpush1.bf16.msra.mxu0 0
    %1468 = vmatprep.subr.bf16.mxu0 0
    %1469 = vmatpush1.bf16.msra.mxu0 0
    %1470 = vmatprep.subr.bf16.mxu0 0
    %1471 = vmatpush1.bf16.msra.mxu0 0
    %1472 = vmatprep.mubr.bf16.mxu0 0
    %1473 = vmatmul.mubr.bf16.gmra.mrb[0].mxu0 %v350
    %v1474 = vpop.f32.mrb[0].mxu0
    %v1475 = vadd.f32 %v1343, %v1474
    %v1476 = vpop.f32.mrb[0].mxu0
    %v1477 = vadd.f32 %v1347, %v1476
    %v1478 = vpop.f32.mrb[0].mxu0
    %v1479 = vpop.f32.mrb[0].mxu0
    %1480 = vdwg.mxu0
    %1481 = vmatprep.subr.bf16.mxu0 %v1411
    %1482 = vmatpush1.bf16.msra.mxu0 %v1410
    %1483 = vmatprep.subr.bf16.mxu0 %v1415
    %1484 = vmatpush1.bf16.msra.mxu0 %v1414
    %1485 = vmatprep.subr.bf16.mxu0 %v1419
    %1486 = vmatpush1.bf16.msra.mxu0 %v1418
    %1487 = vmatprep.subr.bf16.mxu0 %v1423
    %1488 = vmatpush1.bf16.msra.mxu0 %v1422
    %1489 = vmatprep.subr.bf16.mxu0 0
    %1490 = vmatpush1.bf16.msra.mxu0 0
    %1491 = vmatprep.subr.bf16.mxu0 0
    %1492 = vmatpush1.bf16.msra.mxu0 0
    %1493 = vmatprep.subr.bf16.mxu0 0
    %1494 = vmatpush1.bf16.msra.mxu0 0
    %1495 = vmatprep.subr.bf16.mxu0 0
    %1496 = vmatpush1.bf16.msra.mxu0 0
    %1497 = vmatprep.subr.bf16.mxu0 0
    %1498 = vmatpush1.bf16.msra.mxu0 0
    %1499 = vmatprep.subr.bf16.mxu0 0
    %1500 = vmatpush1.bf16.msra.mxu0 0
    %1501 = vmatprep.subr.bf16.mxu0 0
    %1502 = vmatpush1.bf16.msra.mxu0 0
    %1503 = vmatprep.subr.bf16.mxu0 0
    %1504 = vmatpush1.bf16.msra.mxu0 0
    %1505 = vmatprep.subr.bf16.mxu0 0
    %1506 = vmatpush1.bf16.msra.mxu0 0
    %1507 = vmatprep.subr.bf16.mxu0 0
    %1508 = vmatpush1.bf16.msra.mxu0 0
    %1509 = vmatprep.subr.bf16.mxu0 0
    %1510 = vmatpush1.bf16.msra.mxu0 0
    %1511 = vmatprep.subr.bf16.mxu0 0
    %1512 = vmatpush1.bf16.msra.mxu0 0
    %1513 = vmatprep.mubr.bf16.mxu0 0
    %1514 = vmatmul.mubr.bf16.gmra.mrb[0].mxu0 %v350
    %v1515 = vpop.f32.mrb[0].mxu0
    %v1516 = vadd.f32 %v1351, %v1515
    %v1517 = vpop.f32.mrb[0].mxu0
    %v1518 = vadd.f32 %v1355, %v1517
    %v1519 = vpop.f32.mrb[0].mxu0
    %v1520 = vpop.f32.mrb[0].mxu0
    %1521 = vdwg.mxu0
    %v1522 = vmax.f32 %v1475, 0.0
    %v1523 = vmax.f32 %v1477, 0.0
    %v1524 = vmax.f32 %v1516, 0.0
    %v1525 = vmax.f32 %v1518, 0.0
    %v1526 = vpack.c.bf16 %v1522, %v1522
    %v1527 = vpack.c.bf16 %v1523, %v1523
    %v1528 = vpack.c.bf16 %v1524, %v1524
    %v1529 = vpack.c.bf16 %v1525, %v1525
    %v1530 = vld [vmem:[%s9 + $0x200] sm:$0xf]
    %v1531 = vld [vmem:[%s9 + $0x204] sm:$0xf]
    %v1532 = vld [vmem:[%s9 + $0x208] sm:$0xf]
    %v1533 = vld [vmem:[%s9 + $0x20c] sm:$0xf]
    %v1534 = vld [vmem:[%s9 + $0x210] sm:$0xf]
    %v1535 = vld [vmem:[%s9 + $0x214] sm:$0xf]
    %v1536 = vld [vmem:[%s9 + $0x218] sm:$0xf]
    %v1537 = vld [vmem:[%s9 + $0x21c] sm:$0xf]
    %v1538 = vld [vmem:[%s9 + $0x220] sm:$0xf]
    %v1539 = vld [vmem:[%s9 + $0x224] sm:$0xf]
    %v1540 = vld [vmem:[%s9 + $0x228] sm:$0xf]
    %v1541 = vld [vmem:[%s9 + $0x22c] sm:$0xf]
    %v1542 = vld [vmem:[%s9 + $0x230] sm:$0xf]
    %v1543 = vld [vmem:[%s9 + $0x234] sm:$0xf]
    %v1544 = vld [vmem:[%s9 + $0x238] sm:$0xf]
    %v1545 = vld [vmem:[%s9 + $0x23c] sm:$0xf]
    %v1546 = vld [vmem:[%s9 + $0x240] sm:$0xf]
    %v1547 = vld [vmem:[%s9 + $0x244] sm:$0xf]
    %v1548 = vld [vmem:[%s9 + $0x248] sm:$0xf]
    %v1549 = vld [vmem:[%s9 + $0x24c] sm:$0xf]
    %v1550 = vld [vmem:[%s9 + $0x250] sm:$0xf]
    %v1551 = vld [vmem:[%s9 + $0x254] sm:$0xf]
    %v1552 = vld [vmem:[%s9 + $0x258] sm:$0xf]
    %v1553 = vld [vmem:[%s9 + $0x25c] sm:$0xf]
    %v1554 = vld [vmem:[%s9 + $0x260] sm:$0xf]
    %v1555 = vld [vmem:[%s9 + $0x264] sm:$0xf]
    %v1556 = vld [vmem:[%s9 + $0x268] sm:$0xf]
    %v1557 = vld [vmem:[%s9 + $0x26c] sm:$0xf]
    %v1558 = vld [vmem:[%s9 + $0x270] sm:$0xf]
    %v1559 = vld [vmem:[%s9 + $0x274] sm:$0xf]
    %v1560 = vld [vmem:[%s9 + $0x278] sm:$0xf]
    %v1561 = vld [vmem:[%s9 + $0x27c] sm:$0xf]
    %v1562 = vld [vmem:[%s9 + $0x280] sm:$0xf]
    %v1563 = vld [vmem:[%s9 + $0x284] sm:$0xf]
    %v1564 = vld [vmem:[%s9 + $0x288] sm:$0xf]
    %v1565 = vld [vmem:[%s9 + $0x28c] sm:$0xf]
    %v1566 = vld [vmem:[%s9 + $0x290] sm:$0xf]
    %v1567 = vld [vmem:[%s9 + $0x294] sm:$0xf]
    %v1568 = vld [vmem:[%s9 + $0x298] sm:$0xf]
    %v1569 = vld [vmem:[%s9 + $0x29c] sm:$0xf]
    %v1570 = vld [vmem:[%s9 + $0x2a0] sm:$0xf]
    %v1571 = vld [vmem:[%s9 + $0x2a4] sm:$0xf]
    %v1572 = vld [vmem:[%s9 + $0x2a8] sm:$0xf]
    %v1573 = vld [vmem:[%s9 + $0x2ac] sm:$0xf]
    %v1574 = vld [vmem:[%s9 + $0x2b0] sm:$0xf]
    %v1575 = vld [vmem:[%s9 + $0x2b4] sm:$0xf]
    %v1576 = vld [vmem:[%s9 + $0x2b8] sm:$0xf]
    %v1577 = vld [vmem:[%s9 + $0x2bc] sm:$0xf]
    %v1578 = vld [vmem:[%s9 + $0x2c0] sm:$0xf]
    %v1579 = vld [vmem:[%s9 + $0x2c4] sm:$0xf]
    %v1580 = vld [vmem:[%s9 + $0x2c8] sm:$0xf]
    %v1581 = vld [vmem:[%s9 + $0x2cc] sm:$0xf]
    %v1582 = vld [vmem:[%s9 + $0x2d0] sm:$0xf]
    %v1583 = vld [vmem:[%s9 + $0x2d4] sm:$0xf]
    %v1584 = vld [vmem:[%s9 + $0x2d8] sm:$0xf]
    %v1585 = vld [vmem:[%s9 + $0x2dc] sm:$0xf]
    %v1586 = vld [vmem:[%s9 + $0x2e0] sm:$0xf]
    %v1587 = vld [vmem:[%s9 + $0x2e4] sm:$0xf]
    %v1588 = vld [vmem:[%s9 + $0x2e8] sm:$0xf]
    %v1589 = vld [vmem:[%s9 + $0x2ec] sm:$0xf]
    %v1590 = vld [vmem:[%s9 + $0x2f0] sm:$0xf]
    %v1591 = vld [vmem:[%s9 + $0x2f4] sm:$0xf]
    %v1592 = vld [vmem:[%s9 + $0x2f8] sm:$0xf]
    %v1593 = vld [vmem:[%s9 + $0x2fc] sm:$0xf]
    %v1658 = vunpack.c.l.b16 %v1530
    %v1659 = vunpack.c.l.b16 %v1531
    %v1660 = vunpack.c.l.b16 %v1532
    %v1661 = vunpack.c.l.b16 %v1533
    %v1662 = vunpack.c.l.b16 %v1534
    %v1663 = vunpack.c.l.b16 %v1535
    %v1664 = vunpack.c.l.b16 %v1536
    %v1665 = vunpack.c.l.b16 %v1537
    %v1666 = vunpack.c.l.b16 %v1538
    %v1667 = vunpack.c.l.b16 %v1539
    %v1668 = vunpack.c.l.b16 %v1540
    %v1669 = vunpack.c.l.b16 %v1541
    %v1670 = vunpack.c.l.b16 %v1542
    %v1671 = vunpack.c.l.b16 %v1543
    %v1672 = vunpack.c.l.b16 %v1544
    %v1673 = vunpack.c.l.b16 %v1545
    %v1674 = vunpack.c.l.b16 %v1546
    %v1675 = vunpack.c.l.b16 %v1547
    %v1676 = vunpack.c.l.b16 %v1548
    %v1677 = vunpack.c.l.b16 %v1549
    %v1678 = vunpack.c.l.b16 %v1550
    %v1679 = vunpack.c.l.b16 %v1551
    %v1680 = vunpack.c.l.b16 %v1552
    %v1681 = vunpack.c.l.b16 %v1553
    %v1682 = vunpack.c.l.b16 %v1554
    %v1683 = vunpack.c.l.b16 %v1555
    %v1684 = vunpack.c.l.b16 %v1556
    %v1685 = vunpack.c.l.b16 %v1557
    %v1686 = vunpack.c.l.b16 %v1558
    %v1687 = vunpack.c.l.b16 %v1559
    %v1688 = vunpack.c.l.b16 %v1560
    %v1689 = vunpack.c.l.b16 %v1561
    %v1690 = vunpack.c.l.b16 %v1562
    %v1691 = vunpack.c.l.b16 %v1563
    %v1692 = vunpack.c.l.b16 %v1564
    %v1693 = vunpack.c.l.b16 %v1565
    %v1694 = vunpack.c.l.b16 %v1566
    %v1695 = vunpack.c.l.b16 %v1567
    %v1696 = vunpack.c.l.b16 %v1568
    %v1697 = vunpack.c.l.b16 %v1569
    %v1698 = vunpack.c.l.b16 %v1570
    %v1699 = vunpack.c.l.b16 %v1571
    %v1700 = vunpack.c.l.b16 %v1572
    %v1701 = vunpack.c.l.b16 %v1573
    %v1702 = vunpack.c.l.b16 %v1574
    %v1703 = vunpack.c.l.b16 %v1575
    %v1704 = vunpack.c.l.b16 %v1576
    %v1705 = vunpack.c.l.b16 %v1577
    %v1706 = vunpack.c.l.b16 %v1578
    %v1707 = vunpack.c.l.b16 %v1579
    %v1708 = vunpack.c.l.b16 %v1580
    %v1709 = vunpack.c.l.b16 %v1581
    %v1710 = vunpack.c.l.b16 %v1582
    %v1711 = vunpack.c.l.b16 %v1583
    %v1712 = vunpack.c.l.b16 %v1584
    %v1713 = vunpack.c.l.b16 %v1585
    %v1714 = vunpack.c.l.b16 %v1586
    %v1715 = vunpack.c.l.b16 %v1587
    %v1716 = vunpack.c.l.b16 %v1588
    %v1717 = vunpack.c.l.b16 %v1589
    %v1718 = vunpack.c.l.b16 %v1590
    %v1719 = vunpack.c.l.b16 %v1591
    %v1720 = vunpack.c.l.b16 %v1592
    %v1721 = vunpack.c.l.b16 %v1593
    %v1722 = vpack.c.b16 %v1659, %v1658
    %v1723 = vpack.c.b16 %v1661, %v1660
    %v1724 = vpack.c.b16 %v1663, %v1662
    %v1725 = vpack.c.b16 %v1665, %v1664
    %v1726 = vpack.c.b16 %v1667, %v1666
    %v1727 = vpack.c.b16 %v1669, %v1668
    %v1728 = vpack.c.b16 %v1671, %v1670
    %v1729 = vpack.c.b16 %v1673, %v1672
    %v1730 = vpack.c.b16 %v1675, %v1674
    %v1731 = vpack.c.b16 %v1677, %v1676
    %v1732 = vpack.c.b16 %v1679, %v1678
    %v1733 = vpack.c.b16 %v1681, %v1680
    %v1734 = vpack.c.b16 %v1683, %v1682
    %v1735 = vpack.c.b16 %v1685, %v1684
    %v1736 = vpack.c.b16 %v1687, %v1686
    %v1737 = vpack.c.b16 %v1689, %v1688
    %v1738 = vpack.c.b16 %v1691, %v1690
    %v1739 = vpack.c.b16 %v1693, %v1692
    %v1740 = vpack.c.b16 %v1695, %v1694
    %v1741 = vpack.c.b16 %v1697, %v1696
    %v1742 = vpack.c.b16 %v1699, %v1698
    %v1743 = vpack.c.b16 %v1701, %v1700
    %v1744 = vpack.c.b16 %v1703, %v1702
    %v1745 = vpack.c.b16 %v1705, %v1704
    %v1746 = vpack.c.b16 %v1707, %v1706
    %v1747 = vpack.c.b16 %v1709, %v1708
    %v1748 = vpack.c.b16 %v1711, %v1710
    %v1749 = vpack.c.b16 %v1713, %v1712
    %v1750 = vpack.c.b16 %v1715, %v1714
    %v1751 = vpack.c.b16 %v1717, %v1716
    %v1752 = vpack.c.b16 %v1719, %v1718
    %v1753 = vpack.c.b16 %v1721, %v1720
    %1786 = vmatprep.subr.bf16.mxu0 0
    %1787 = vmatpush1.bf16.msra.mxu0 %v1722
    %1788 = vmatprep.subr.bf16.mxu0 0
    %1789 = vmatpush1.bf16.msra.mxu0 %v1723
    %1790 = vmatprep.subr.bf16.mxu0 0
    %1791 = vmatpush1.bf16.msra.mxu0 %v1724
    %1792 = vmatprep.subr.bf16.mxu0 0
    %1793 = vmatpush1.bf16.msra.mxu0 %v1725
    %1794 = vmatprep.subr.bf16.mxu0 0
    %1795 = vmatpush1.bf16.msra.mxu0 %v1726
    %1796 = vmatprep.subr.bf16.mxu0 0
    %1797 = vmatpush1.bf16.msra.mxu0 %v1727
    %1798 = vmatprep.subr.bf16.mxu0 0
    %1799 = vmatpush1.bf16.msra.mxu0 %v1728
    %1800 = vmatprep.subr.bf16.mxu0 0
    %1801 = vmatpush1.bf16.msra.mxu0 %v1729
    %1802 = vmatprep.subr.bf16.mxu0 0
    %1803 = vmatpush1.bf16.msra.mxu0 %v1730
    %1804 = vmatprep.subr.bf16.mxu0 0
    %1805 = vmatpush1.bf16.msra.mxu0 %v1731
    %1806 = vmatprep.subr.bf16.mxu0 0
    %1807 = vmatpush1.bf16.msra.mxu0 %v1732
    %1808 = vmatprep.subr.bf16.mxu0 0
    %1809 = vmatpush1.bf16.msra.mxu0 %v1733
    %1810 = vmatprep.subr.bf16.mxu0 0
    %1811 = vmatpush1.bf16.msra.mxu0 %v1734
    %1812 = vmatprep.subr.bf16.mxu0 0
    %1813 = vmatpush1.bf16.msra.mxu0 %v1735
    %1814 = vmatprep.subr.bf16.mxu0 0
    %1815 = vmatpush1.bf16.msra.mxu0 %v1736
    %1816 = vmatprep.subr.bf16.mxu0 0
    %1817 = vmatpush1.bf16.msra.mxu0 %v1737
    %1818 = vmatprep.mubr.bf16.mxu0 %v1527
    %1819 = vmatmul.mubr.bf16.gmra.mrb[0].mxu0 %v1526
    %v1820 = vpop.f32.mrb[0].mxu0
    %v1821 = vadd.f32 0.0, %v1820
    %v1822 = vpop.f32.mrb[0].mxu0
    %v1823 = vpop.f32.mrb[0].mxu0
    %v1824 = vpop.f32.mrb[0].mxu0
    %1825 = vdwg.mxu0
    %1826 = vmatprep.subr.bf16.mxu0 0
    %1827 = vmatpush1.bf16.msra.mxu0 %v1738
    %1828 = vmatprep.subr.bf16.mxu0 0
    %1829 = vmatpush1.bf16.msra.mxu0 %v1739
    %1830 = vmatprep.subr.bf16.mxu0 0
    %1831 = vmatpush1.bf16.msra.mxu0 %v1740
    %1832 = vmatprep.subr.bf16.mxu0 0
    %1833 = vmatpush1.bf16.msra.mxu0 %v1741
    %1834 = vmatprep.subr.bf16.mxu0 0
    %1835 = vmatpush1.bf16.msra.mxu0 %v1742
    %1836 = vmatprep.subr.bf16.mxu0 0
    %1837 = vmatpush1.bf16.msra.mxu0 %v1743
    %1838 = vmatprep.subr.bf16.mxu0 0
    %1839 = vmatpush1.bf16.msra.mxu0 %v1744
    %1840 = vmatprep.subr.bf16.mxu0 0
    %1841 = vmatpush1.bf16.msra.mxu0 %v1745
    %1842 = vmatprep.subr.bf16.mxu0 0
    %1843 = vmatpush1.bf16.msra.mxu0 %v1746
    %1844 = vmatprep.subr.bf16.mxu0 0
    %1845 = vmatpush1.bf16.msra.mxu0 %v1747
    %1846 = vmatprep.subr.bf16.mxu0 0
    %1847 = vmatpush1.bf16.msra.mxu0 %v1748
    %1848 = vmatprep.subr.bf16.mxu0 0
    %1849 = vmatpush1.bf16.msra.mxu0 %v1749
    %1850 = vmatprep.subr.bf16.mxu0 0
    %1851 = vmatpush1.bf16.msra.mxu0 %v1750
    %1852 = vmatprep.subr.bf16.mxu0 0
    %1853 = vmatpush1.bf16.msra.mxu0 %v1751
    %1854 = vmatprep.subr.bf16.mxu0 0
    %1855 = vmatpush1.bf16.msra.mxu0 %v1752
    %1856 = vmatprep.subr.bf16.mxu0 0
    %1857 = vmatpush1.bf16.msra.mxu0 %v1753
    %1858 = vmatprep.mubr.bf16.mxu0 %v1529
    %1859 = vmatmul.mubr.bf16.gmra.mrb[0].mxu0 %v1528
    %v1860 = vpop.f32.mrb[0].mxu0
    %v1861 = vadd.f32 %v1821, %v1860
    %v1862 = vpop.f32.mrb[0].mxu0
    %v1863 = vpop.f32.mrb[0].mxu0
    %v1864 = vpop.f32.mrb[0].mxu0
    %1865 = vdwg.mxu0
    %v1866 = vadd.f32 %v1317, %v1861
    %v1867 = vld [vmem:[%s7 + $0x30] sm:$0xff]
    %v1868 = vld [vmem:[%s7 + $0x38] sm:$0xff]
    %v1869 = vld [vmem:[%s7 + $0x70] sm:$0xff]
    %v1870 = vld [vmem:[%s7 + $0x78] sm:$0xff]
    %v1871 = vld [vmem:[%s7 + $0xb0] sm:$0xff]
    %v1872 = vld [vmem:[%s7 + $0xb8] sm:$0xff]
    %v1873 = vld [vmem:[%s7 + $0xf0] sm:$0xff]
    %v1874 = vld [vmem:[%s7 + $0xf8] sm:$0xff]
    %v1875 = vld [vmem:[%s7 + $0x130] sm:$0xff]
    %v1876 = vld [vmem:[%s7 + $0x138] sm:$0xff]
    %v1877 = vld [vmem:[%s7 + $0x170] sm:$0xff]
    %v1878 = vld [vmem:[%s7 + $0x178] sm:$0xff]
    %v1879 = vld [vmem:[%s7 + $0x1b0] sm:$0xff]
    %v1880 = vld [vmem:[%s7 + $0x1b8] sm:$0xff]
    %v1881 = vld [vmem:[%s7 + $0x1f0] sm:$0xff]
    %v1882 = vld [vmem:[%s7 + $0x1f8] sm:$0xff]
    %v1883 = vld [vmem:[%s8 + $0xc] sm:$0xf]
    %v1885 = vlaneseq
    %v1886 = vshrl.u32 %v1885, 7
    %v1887 = vsub.s32 0, %v1886
    %v1888 = vrot.slane %v1883, %v1887
    %v1889 = vlaneseq
    %v1890 = vshrl.u32 %v1889, 7
    %v1891 = vsub.s32 1, %v1890
    %v1892 = vrot.slane %v1883, %v1891
    %v1893 = vlaneseq
    %v1894 = vshrl.u32 %v1893, 7
    %v1895 = vsub.s32 2, %v1894
    %v1896 = vrot.slane %v1883, %v1895
    %v1897 = vlaneseq
    %v1898 = vshrl.u32 %v1897, 7
    %v1899 = vsub.s32 3, %v1898
    %v1900 = vrot.slane %v1883, %v1899
    %v1921 = vunpack.c.l.b16 %v1867
    %v1922 = vunpack.c.h.b16 %v1867
    %v1923 = vunpack.c.l.b16 %v1868
    %v1924 = vunpack.c.h.b16 %v1868
    %v1925 = vunpack.c.l.b16 %v1869
    %v1926 = vunpack.c.h.b16 %v1869
    %v1927 = vunpack.c.l.b16 %v1870
    %v1928 = vunpack.c.h.b16 %v1870
    %v1929 = vunpack.c.l.b16 %v1871
    %v1930 = vunpack.c.h.b16 %v1871
    %v1931 = vunpack.c.l.b16 %v1872
    %v1932 = vunpack.c.h.b16 %v1872
    %v1933 = vunpack.c.l.b16 %v1873
    %v1934 = vunpack.c.h.b16 %v1873
    %v1935 = vunpack.c.l.b16 %v1874
    %v1936 = vunpack.c.h.b16 %v1874
    %v1937 = vunpack.c.l.b16 %v1875
    %v1938 = vunpack.c.h.b16 %v1875
    %v1939 = vunpack.c.l.b16 %v1876
    %v1940 = vunpack.c.h.b16 %v1876
    %v1941 = vunpack.c.l.b16 %v1877
    %v1942 = vunpack.c.h.b16 %v1877
    %v1943 = vunpack.c.l.b16 %v1878
    %v1944 = vunpack.c.h.b16 %v1878
    %v1945 = vunpack.c.l.b16 %v1879
    %v1946 = vunpack.c.h.b16 %v1879
    %v1947 = vunpack.c.l.b16 %v1880
    %v1948 = vunpack.c.h.b16 %v1880
    %v1949 = vunpack.c.l.b16 %v1881
    %v1950 = vunpack.c.h.b16 %v1881
    %v1951 = vunpack.c.l.b16 %v1882
    %v1952 = vunpack.c.h.b16 %v1882
    %v1953 = vpack.c.b16 %v1925, %v1921
    %v1954 = vpack.c.b16 %v1926, %v1922
    %v1955 = vpack.c.b16 %v1927, %v1923
    %v1956 = vpack.c.b16 %v1928, %v1924
    %v1957 = vpack.c.b16 %v1933, %v1929
    %v1958 = vpack.c.b16 %v1934, %v1930
    %v1959 = vpack.c.b16 %v1935, %v1931
    %v1960 = vpack.c.b16 %v1936, %v1932
    %v1961 = vpack.c.b16 %v1941, %v1937
    %v1962 = vpack.c.b16 %v1942, %v1938
    %v1963 = vpack.c.b16 %v1943, %v1939
    %v1964 = vpack.c.b16 %v1944, %v1940
    %v1965 = vpack.c.b16 %v1949, %v1945
    %v1966 = vpack.c.b16 %v1950, %v1946
    %v1967 = vpack.c.b16 %v1951, %v1947
    %v1968 = vpack.c.b16 %v1952, %v1948
    %1985 = vmatprep.subr.bf16.mxu0 %v1954
    %1986 = vmatpush1.bf16.msra.mxu0 %v1953
    %1987 = vmatprep.subr.bf16.mxu0 %v1958
    %1988 = vmatpush1.bf16.msra.mxu0 %v1957
    %1989 = vmatprep.subr.bf16.mxu0 %v1962
    %1990 = vmatpush1.bf16.msra.mxu0 %v1961
    %1991 = vmatprep.subr.bf16.mxu0 %v1966
    %1992 = vmatpush1.bf16.msra.mxu0 %v1965
    %1993 = vmatprep.subr.bf16.mxu0 0
    %1994 = vmatpush1.bf16.msra.mxu0 0
    %1995 = vmatprep.subr.bf16.mxu0 0
    %1996 = vmatpush1.bf16.msra.mxu0 0
    %1997 = vmatprep.subr.bf16.mxu0 0
    %1998 = vmatpush1.bf16.msra.mxu0 0
    %1999 = vmatprep.subr.bf16.mxu0 0
    %2000 = vmatpush1.bf16.msra.mxu0 0
    %2001 = vmatprep.subr.bf16.mxu0 0
    %2002 = vmatpush1.bf16.msra.mxu0 0
    %2003 = vmatprep.subr.bf16.mxu0 0
    %2004 = vmatpush1.bf16.msra.mxu0 0
    %2005 = vmatprep.subr.bf16.mxu0 0
    %2006 = vmatpush1.bf16.msra.mxu0 0
    %2007 = vmatprep.subr.bf16.mxu0 0
    %2008 = vmatpush1.bf16.msra.mxu0 0
    %2009 = vmatprep.subr.bf16.mxu0 0
    %2010 = vmatpush1.bf16.msra.mxu0 0
    %2011 = vmatprep.subr.bf16.mxu0 0
    %2012 = vmatpush1.bf16.msra.mxu0 0
    %2013 = vmatprep.subr.bf16.mxu0 0
    %2014 = vmatpush1.bf16.msra.mxu0 0
    %2015 = vmatprep.subr.bf16.mxu0 0
    %2016 = vmatpush1.bf16.msra.mxu0 0
    %2017 = vmatprep.mubr.bf16.mxu0 0
    %2018 = vmatmul.mubr.bf16.gmra.mrb[0].mxu0 %v350
    %v2019 = vpop.f32.mrb[0].mxu0
    %v2020 = vadd.f32 %v1888, %v2019
    %v2021 = vpop.f32.mrb[0].mxu0
    %v2022 = vadd.f32 %v1892, %v2021
    %v2023 = vpop.f32.mrb[0].mxu0
    %v2024 = vpop.f32.mrb[0].mxu0
    %2025 = vdwg.mxu0
    %2026 = vmatprep.subr.bf16.mxu0 %v1956
    %2027 = vmatpush1.bf16.msra.mxu0 %v1955
    %2028 = vmatprep.subr.bf16.mxu0 %v1960
    %2029 = vmatpush1.bf16.msra.mxu0 %v1959
    %2030 = vmatprep.subr.bf16.mxu0 %v1964
    %2031 = vmatpush1.bf16.msra.mxu0 %v1963
    %2032 = vmatprep.subr.bf16.mxu0 %v1968
    %2033 = vmatpush1.bf16.msra.mxu0 %v1967
    %2034 = vmatprep.subr.bf16.mxu0 0
    %2035 = vmatpush1.bf16.msra.mxu0 0
    %2036 = vmatprep.subr.bf16.mxu0 0
    %2037 = vmatpush1.bf16.msra.mxu0 0
    %2038 = vmatprep.subr.bf16.mxu0 0
    %2039 = vmatpush1.bf16.msra.mxu0 0
    %2040 = vmatprep.subr.bf16.mxu0 0
    %2041 = vmatpush1.bf16.msra.mxu0 0
    %2042 = vmatprep.subr.bf16.mxu0 0
    %2043 = vmatpush1.bf16.msra.mxu0 0
    %2044 = vmatprep.subr.bf16.mxu0 0
    %2045 = vmatpush1.bf16.msra.mxu0 0
    %2046 = vmatprep.subr.bf16.mxu0 0
    %2047 = vmatpush1.bf16.msra.mxu0 0
    %2048 = vmatprep.subr.bf16.mxu0 0
    %2049 = vmatpush1.bf16.msra.mxu0 0
    %2050 = vmatprep.subr.bf16.mxu0 0
    %2051 = vmatpush1.bf16.msra.mxu0 0
    %2052 = vmatprep.subr.bf16.mxu0 0
    %2053 = vmatpush1.bf16.msra.mxu0 0
    %2054 = vmatprep.subr.bf16.mxu0 0
    %2055 = vmatpush1.bf16.msra.mxu0 0
    %2056 = vmatprep.subr.bf16.mxu0 0
    %2057 = vmatpush1.bf16.msra.mxu0 0
    %2058 = vmatprep.mubr.bf16.mxu0 0
    %2059 = vmatmul.mubr.bf16.gmra.mrb[0].mxu0 %v350
    %v2060 = vpop.f32.mrb[0].mxu0
    %v2061 = vadd.f32 %v1896, %v2060
    %v2062 = vpop.f32.mrb[0].mxu0
    %v2063 = vadd.f32 %v1900, %v2062
    %v2064 = vpop.f32.mrb[0].mxu0
    %v2065 = vpop.f32.mrb[0].mxu0
    %2066 = vdwg.mxu0
    %v2067 = vmax.f32 %v2020, 0.0
    %v2068 = vmax.f32 %v2022, 0.0
    %v2069 = vmax.f32 %v2061, 0.0
    %v2070 = vmax.f32 %v2063, 0.0
    %v2071 = vpack.c.bf16 %v2067, %v2067
    %v2072 = vpack.c.bf16 %v2068, %v2068
    %v2073 = vpack.c.bf16 %v2069, %v2069
    %v2074 = vpack.c.bf16 %v2070, %v2070
    %v2075 = vld [vmem:[%s9 + $0x300] sm:$0xf]
    %v2076 = vld [vmem:[%s9 + $0x304] sm:$0xf]
    %v2077 = vld [vmem:[%s9 + $0x308] sm:$0xf]
    %v2078 = vld [vmem:[%s9 + $0x30c] sm:$0xf]
    %v2079 = vld [vmem:[%s9 + $0x310] sm:$0xf]
    %v2080 = vld [vmem:[%s9 + $0x314] sm:$0xf]
    %v2081 = vld [vmem:[%s9 + $0x318] sm:$0xf]
    %v2082 = vld [vmem:[%s9 + $0x31c] sm:$0xf]
    %v2083 = vld [vmem:[%s9 + $0x320] sm:$0xf]
    %v2084 = vld [vmem:[%s9 + $0x324] sm:$0xf]
    %v2085 = vld [vmem:[%s9 + $0x328] sm:$0xf]
    %v2086 = vld [vmem:[%s9 + $0x32c] sm:$0xf]
    %v2087 = vld [vmem:[%s9 + $0x330] sm:$0xf]
    %v2088 = vld [vmem:[%s9 + $0x334] sm:$0xf]
    %v2089 = vld [vmem:[%s9 + $0x338] sm:$0xf]
    %v2090 = vld [vmem:[%s9 + $0x33c] sm:$0xf]
    %v2091 = vld [vmem:[%s9 + $0x340] sm:$0xf]
    %v2092 = vld [vmem:[%s9 + $0x344] sm:$0xf]
    %v2093 = vld [vmem:[%s9 + $0x348] sm:$0xf]
    %v2094 = vld [vmem:[%s9 + $0x34c] sm:$0xf]
    %v2095 = vld [vmem:[%s9 + $0x350] sm:$0xf]
    %v2096 = vld [vmem:[%s9 + $0x354] sm:$0xf]
    %v2097 = vld [vmem:[%s9 + $0x358] sm:$0xf]
    %v2098 = vld [vmem:[%s9 + $0x35c] sm:$0xf]
    %v2099 = vld [vmem:[%s9 + $0x360] sm:$0xf]
    %v2100 = vld [vmem:[%s9 + $0x364] sm:$0xf]
    %v2101 = vld [vmem:[%s9 + $0x368] sm:$0xf]
    %v2102 = vld [vmem:[%s9 + $0x36c] sm:$0xf]
    %v2103 = vld [vmem:[%s9 + $0x370] sm:$0xf]
    %v2104 = vld [vmem:[%s9 + $0x374] sm:$0xf]
    %v2105 = vld [vmem:[%s9 + $0x378] sm:$0xf]
    %v2106 = vld [vmem:[%s9 + $0x37c] sm:$0xf]
    %v2107 = vld [vmem:[%s9 + $0x380] sm:$0xf]
    %v2108 = vld [vmem:[%s9 + $0x384] sm:$0xf]
    %v2109 = vld [vmem:[%s9 + $0x388] sm:$0xf]
    %v2110 = vld [vmem:[%s9 + $0x38c] sm:$0xf]
    %v2111 = vld [vmem:[%s9 + $0x390] sm:$0xf]
    %v2112 = vld [vmem:[%s9 + $0x394] sm:$0xf]
    %v2113 = vld [vmem:[%s9 + $0x398] sm:$0xf]
    %v2114 = vld [vmem:[%s9 + $0x39c] sm:$0xf]
    %v2115 = vld [vmem:[%s9 + $0x3a0] sm:$0xf]
    %v2116 = vld [vmem:[%s9 + $0x3a4] sm:$0xf]
    %v2117 = vld [vmem:[%s9 + $0x3a8] sm:$0xf]
    %v2118 = vld [vmem:[%s9 + $0x3ac] sm:$0xf]
    %v2119 = vld [vmem:[%s9 + $0x3b0] sm:$0xf]
    %v2120 = vld [vmem:[%s9 + $0x3b4] sm:$0xf]
    %v2121 = vld [vmem:[%s9 + $0x3b8] sm:$0xf]
    %v2122 = vld [vmem:[%s9 + $0x3bc] sm:$0xf]
    %v2123 = vld [vmem:[%s9 + $0x3c0] sm:$0xf]
    %v2124 = vld [vmem:[%s9 + $0x3c4] sm:$0xf]
    %v2125 = vld [vmem:[%s9 + $0x3c8] sm:$0xf]
    %v2126 = vld [vmem:[%s9 + $0x3cc] sm:$0xf]
    %v2127 = vld [vmem:[%s9 + $0x3d0] sm:$0xf]
    %v2128 = vld [vmem:[%s9 + $0x3d4] sm:$0xf]
    %v2129 = vld [vmem:[%s9 + $0x3d8] sm:$0xf]
    %v2130 = vld [vmem:[%s9 + $0x3dc] sm:$0xf]
    %v2131 = vld [vmem:[%s9 + $0x3e0] sm:$0xf]
    %v2132 = vld [vmem:[%s9 + $0x3e4] sm:$0xf]
    %v2133 = vld [vmem:[%s9 + $0x3e8] sm:$0xf]
    %v2134 = vld [vmem:[%s9 + $0x3ec] sm:$0xf]
    %v2135 = vld [vmem:[%s9 + $0x3f0] sm:$0xf]
    %v2136 = vld [vmem:[%s9 + $0x3f4] sm:$0xf]
    %v2137 = vld [vmem:[%s9 + $0x3f8] sm:$0xf]
    %v2138 = vld [vmem:[%s9 + $0x3fc] sm:$0xf]
    %v2203 = vunpack.c.l.b16 %v2075
    %v2204 = vunpack.c.l.b16 %v2076
    %v2205 = vunpack.c.l.b16 %v2077
    %v2206 = vunpack.c.l.b16 %v2078
    %v2207 = vunpack.c.l.b16 %v2079
    %v2208 = vunpack.c.l.b16 %v2080
    %v2209 = vunpack.c.l.b16 %v2081
    %v2210 = vunpack.c.l.b16 %v2082
    %v2211 = vunpack.c.l.b16 %v2083
    %v2212 = vunpack.c.l.b16 %v2084
    %v2213 = vunpack.c.l.b16 %v2085
    %v2214 = vunpack.c.l.b16 %v2086
    %v2215 = vunpack.c.l.b16 %v2087
    %v2216 = vunpack.c.l.b16 %v2088
    %v2217 = vunpack.c.l.b16 %v2089
    %v2218 = vunpack.c.l.b16 %v2090
    %v2219 = vunpack.c.l.b16 %v2091
    %v2220 = vunpack.c.l.b16 %v2092
    %v2221 = vunpack.c.l.b16 %v2093
    %v2222 = vunpack.c.l.b16 %v2094
    %v2223 = vunpack.c.l.b16 %v2095
    %v2224 = vunpack.c.l.b16 %v2096
    %v2225 = vunpack.c.l.b16 %v2097
    %v2226 = vunpack.c.l.b16 %v2098
    %v2227 = vunpack.c.l.b16 %v2099
    %v2228 = vunpack.c.l.b16 %v2100
    %v2229 = vunpack.c.l.b16 %v2101
    %v2230 = vunpack.c.l.b16 %v2102
    %v2231 = vunpack.c.l.b16 %v2103
    %v2232 = vunpack.c.l.b16 %v2104
    %v2233 = vunpack.c.l.b16 %v2105
    %v2234 = vunpack.c.l.b16 %v2106
    %v2235 = vunpack.c.l.b16 %v2107
    %v2236 = vunpack.c.l.b16 %v2108
    %v2237 = vunpack.c.l.b16 %v2109
    %v2238 = vunpack.c.l.b16 %v2110
    %v2239 = vunpack.c.l.b16 %v2111
    %v2240 = vunpack.c.l.b16 %v2112
    %v2241 = vunpack.c.l.b16 %v2113
    %v2242 = vunpack.c.l.b16 %v2114
    %v2243 = vunpack.c.l.b16 %v2115
    %v2244 = vunpack.c.l.b16 %v2116
    %v2245 = vunpack.c.l.b16 %v2117
    %v2246 = vunpack.c.l.b16 %v2118
    %v2247 = vunpack.c.l.b16 %v2119
    %v2248 = vunpack.c.l.b16 %v2120
    %v2249 = vunpack.c.l.b16 %v2121
    %v2250 = vunpack.c.l.b16 %v2122
    %v2251 = vunpack.c.l.b16 %v2123
    %v2252 = vunpack.c.l.b16 %v2124
    %v2253 = vunpack.c.l.b16 %v2125
    %v2254 = vunpack.c.l.b16 %v2126
    %v2255 = vunpack.c.l.b16 %v2127
    %v2256 = vunpack.c.l.b16 %v2128
    %v2257 = vunpack.c.l.b16 %v2129
    %v2258 = vunpack.c.l.b16 %v2130
    %v2259 = vunpack.c.l.b16 %v2131
    %v2260 = vunpack.c.l.b16 %v2132
    %v2261 = vunpack.c.l.b16 %v2133
    %v2262 = vunpack.c.l.b16 %v2134
    %v2263 = vunpack.c.l.b16 %v2135
    %v2264 = vunpack.c.l.b16 %v2136
    %v2265 = vunpack.c.l.b16 %v2137
    %v2266 = vunpack.c.l.b16 %v2138
    %v2267 = vpack.c.b16 %v2204, %v2203
    %v2268 = vpack.c.b16 %v2206, %v2205
    %v2269 = vpack.c.b16 %v2208, %v2207
    %v2270 = vpack.c.b16 %v2210, %v2209
    %v2271 = vpack.c.b16 %v2212, %v2211
    %v2272 = vpack.c.b16 %v2214, %v2213
    %v2273 = vpack.c.b16 %v2216, %v2215
    %v2274 = vpack.c.b16 %v2218, %v2217
    %v2275 = vpack.c.b16 %v2220, %v2219
    %v2276 = vpack.c.b16 %v2222, %v2221
    %v2277 = vpack.c.b16 %v2224, %v2223
    %v2278 = vpack.c.b16 %v2226, %v2225
    %v2279 = vpack.c.b16 %v2228, %v2227
    %v2280 = vpack.c.b16 %v2230, %v2229
    %v2281 = vpack.c.b16 %v2232, %v2231
    %v2282 = vpack.c.b16 %v2234, %v2233
    %v2283 = vpack.c.b16 %v2236, %v2235
    %v2284 = vpack.c.b16 %v2238, %v2237
    %v2285 = vpack.c.b16 %v2240, %v2239
    %v2286 = vpack.c.b16 %v2242, %v2241
    %v2287 = vpack.c.b16 %v2244, %v2243
    %v2288 = vpack.c.b16 %v2246, %v2245
    %v2289 = vpack.c.b16 %v2248, %v2247
    %v2290 = vpack.c.b16 %v2250, %v2249
    %v2291 = vpack.c.b16 %v2252, %v2251
    %v2292 = vpack.c.b16 %v2254, %v2253
    %v2293 = vpack.c.b16 %v2256, %v2255
    %v2294 = vpack.c.b16 %v2258, %v2257
    %v2295 = vpack.c.b16 %v2260, %v2259
    %v2296 = vpack.c.b16 %v2262, %v2261
    %v2297 = vpack.c.b16 %v2264, %v2263
    %v2298 = vpack.c.b16 %v2266, %v2265
    %2331 = vmatprep.subr.bf16.mxu0 0
    %2332 = vmatpush1.bf16.msra.mxu0 %v2267
    %2333 = vmatprep.subr.bf16.mxu0 0
    %2334 = vmatpush1.bf16.msra.mxu0 %v2268
    %2335 = vmatprep.subr.bf16.mxu0 0
    %2336 = vmatpush1.bf16.msra.mxu0 %v2269
    %2337 = vmatprep.subr.bf16.mxu0 0
    %2338 = vmatpush1.bf16.msra.mxu0 %v2270
    %2339 = vmatprep.subr.bf16.mxu0 0
    %2340 = vmatpush1.bf16.msra.mxu0 %v2271
    %2341 = vmatprep.subr.bf16.mxu0 0
    %2342 = vmatpush1.bf16.msra.mxu0 %v2272
    %2343 = vmatprep.subr.bf16.mxu0 0
    %2344 = vmatpush1.bf16.msra.mxu0 %v2273
    %2345 = vmatprep.subr.bf16.mxu0 0
    %2346 = vmatpush1.bf16.msra.mxu0 %v2274
    %2347 = vmatprep.subr.bf16.mxu0 0
    %2348 = vmatpush1.bf16.msra.mxu0 %v2275
    %2349 = vmatprep.subr.bf16.mxu0 0
    %2350 = vmatpush1.bf16.msra.mxu0 %v2276
    %2351 = vmatprep.subr.bf16.mxu0 0
    %2352 = vmatpush1.bf16.msra.mxu0 %v2277
    %2353 = vmatprep.subr.bf16.mxu0 0
    %2354 = vmatpush1.bf16.msra.mxu0 %v2278
    %2355 = vmatprep.subr.bf16.mxu0 0
    %2356 = vmatpush1.bf16.msra.mxu0 %v2279
    %2357 = vmatprep.subr.bf16.mxu0 0
    %2358 = vmatpush1.bf16.msra.mxu0 %v2280
    %2359 = vmatprep.subr.bf16.mxu0 0
    %2360 = vmatpush1.bf16.msra.mxu0 %v2281
    %2361 = vmatprep.subr.bf16.mxu0 0
    %2362 = vmatpush1.bf16.msra.mxu0 %v2282
    %2363 = vmatprep.mubr.bf16.mxu0 %v2072
    %2364 = vmatmul.mubr.bf16.gmra.mrb[0].mxu0 %v2071
    %v2365 = vpop.f32.mrb[0].mxu0
    %v2366 = vadd.f32 0.0, %v2365
    %v2367 = vpop.f32.mrb[0].mxu0
    %v2368 = vpop.f32.mrb[0].mxu0
    %v2369 = vpop.f32.mrb[0].mxu0
    %2370 = vdwg.mxu0
    %2371 = vmatprep.subr.bf16.mxu0 0
    %2372 = vmatpush1.bf16.msra.mxu0 %v2283
    %2373 = vmatprep.subr.bf16.mxu0 0
    %2374 = vmatpush1.bf16.msra.mxu0 %v2284
    %2375 = vmatprep.subr.bf16.mxu0 0
    %2376 = vmatpush1.bf16.msra.mxu0 %v2285
    %2377 = vmatprep.subr.bf16.mxu0 0
    %2378 = vmatpush1.bf16.msra.mxu0 %v2286
    %2379 = vmatprep.subr.bf16.mxu0 0
    %2380 = vmatpush1.bf16.msra.mxu0 %v2287
    %2381 = vmatprep.subr.bf16.mxu0 0
    %2382 = vmatpush1.bf16.msra.mxu0 %v2288
    %2383 = vmatprep.subr.bf16.mxu0 0
    %2384 = vmatpush1.bf16.msra.mxu0 %v2289
    %2385 = vmatprep.subr.bf16.mxu0 0
    %2386 = vmatpush1.bf16.msra.mxu0 %v2290
    %2387 = vmatprep.subr.bf16.mxu0 0
    %2388 = vmatpush1.bf16.msra.mxu0 %v2291
    %2389 = vmatprep.subr.bf16.mxu0 0
    %2390 = vmatpush1.bf16.msra.mxu0 %v2292
    %2391 = vmatprep.subr.bf16.mxu0 0
    %2392 = vmatpush1.bf16.msra.mxu0 %v2293
    %2393 = vmatprep.subr.bf16.mxu0 0
    %2394 = vmatpush1.bf16.msra.mxu0 %v2294
    %2395 = vmatprep.subr.bf16.mxu0 0
    %2396 = vmatpush1.bf16.msra.mxu0 %v2295
    %2397 = vmatprep.subr.bf16.mxu0 0
    %2398 = vmatpush1.bf16.msra.mxu0 %v2296
    %2399 = vmatprep.subr.bf16.mxu0 0
    %2400 = vmatpush1.bf16.msra.mxu0 %v2297
    %2401 = vmatprep.subr.bf16.mxu0 0
    %2402 = vmatpush1.bf16.msra.mxu0 %v2298
    %2403 = vmatprep.mubr.bf16.mxu0 %v2074
    %2404 = vmatmul.mubr.bf16.gmra.mrb[0].mxu0 %v2073
    %v2405 = vpop.f32.mrb[0].mxu0
    %v2406 = vadd.f32 %v2366, %v2405
    %v2407 = vpop.f32.mrb[0].mxu0
    %v2408 = vpop.f32.mrb[0].mxu0
    %v2409 = vpop.f32.mrb[0].mxu0
    %2410 = vdwg.mxu0
    %v2411 = vadd.f32 %v1866, %v2406
    %v2412 = vadd.f32 %v229, %v2411
    %v2413 = vld [vmem:[%s10] sm:$0x1]
    %v2415 = vlaneseq
    %v2416 = vshrl.u32 %v2415, 7
    %v2417 = vsub.s32 0, %v2416
    %v2418 = vrot.slane %v2413, %v2417
    %v2420 = vadd.f32 %v2412, %v2418
    %v2421 = vld [vmem:[%s11] sm:$0x1]
    %v2422 = vld [vmem:[%s12] sm:$0x1]
    %v2423 = vsel %vm155, %v2420, 0.0
    %2424 = vadd.xlane.f32.xlu0 %v2423
    %v2425 = vpop.xlane.xlu0 %2424
    %v2426 = vmul.f32 %v2425, %v205
    %v2427 = vsub.f32 %v2420, %v2426
    %v2428 = vmul.f32 %v2427, %v2427
    %v2429 = vsel %vm155, %v2428, 0.0
    %2430 = vadd.xlane.f32.xlu0 %v2429
    %v2431 = vpop.xlane.xlu0 %2430
    %v2432 = vmul.f32 %v2431, %v205
    %v2433 = vadd.f32 %v2432, 1e-05
    %v2434 = vrsqrt.pop %v2433
    %v2435 = vmul.f32 %v2427, %v2434
    %v2437 = vlaneseq
    %v2438 = vshrl.u32 %v2437, 7
    %v2439 = vsub.s32 0, %v2438
    %v2440 = vrot.slane %v2421, %v2439
    %v2442 = vmul.f32 %v2435, %v2440
    %v2444 = vlaneseq
    %v2445 = vshrl.u32 %v2444, 7
    %v2446 = vsub.s32 0, %v2445
    %v2447 = vrot.slane %v2422, %v2446
    %v2449 = vadd.f32 %v2442, %v2447
    %v2450 = vpack.c.bf16 %v2449, %v2449
    %s2451 = scalar_lea.vmem %s3, 32
    %v2452 = vld [vmem:[%s2451] sm:$0xf]
    %v2453 = vld [vmem:[%s2451 + $0x4] sm:$0xf]
    %v2454 = vld [vmem:[%s2451 + $0x8] sm:$0xf]
    %v2455 = vld [vmem:[%s2451 + $0xc] sm:$0xf]
    %v2456 = vld [vmem:[%s2451 + $0x10] sm:$0xf]
    %v2457 = vld [vmem:[%s2451 + $0x14] sm:$0xf]
    %v2458 = vld [vmem:[%s2451 + $0x18] sm:$0xf]
    %v2459 = vld [vmem:[%s2451 + $0x1c] sm:$0xf]
    %s2460 = scalar_lea.vmem %s4, 1
    %v2461 = vld [vmem:[%s2460] sm:$0x1]
    %v2463 = vlaneseq
    %v2464 = vshrl.u32 %v2463, 7
    %v2465 = vsub.s32 0, %v2464
    %v2466 = vrot.slane %v2461, %v2465
    %v2476 = vunpack.c.l.b16 %v2452
    %v2477 = vunpack.c.l.b16 %v2453
    %v2478 = vunpack.c.l.b16 %v2454
    %v2479 = vunpack.c.l.b16 %v2455
    %v2480 = vunpack.c.l.b16 %v2456
    %v2481 = vunpack.c.l.b16 %v2457
    %v2482 = vunpack.c.l.b16 %v2458
    %v2483 = vunpack.c.l.b16 %v2459
    %v2484 = vpack.c.b16 %v2477, %v2476
    %v2485 = vpack.c.b16 %v2479, %v2478
    %v2486 = vpack.c.b16 %v2481, %v2480
    %v2487 = vpack.c.b16 %v2483, %v2482
    %v2493 = vsel %vm155, %v2450, 0
    %2495 = vmatprep.subr.bf16.mxu0 0
    %2496 = vmatpush1.bf16.msra.mxu0 %v2484
    %2497 = vmatprep.subr.bf16.mxu0 0
    %2498 = vmatpush1.bf16.msra.mxu0 %v2485
    %2499 = vmatprep.subr.bf16.mxu0 0
    %2500 = vmatpush1.bf16.msra.mxu0 %v2486
    %2501 = vmatprep.subr.bf16.mxu0 0
    %2502 = vmatpush1.bf16.msra.mxu0 %v2487
    %2503 = vmatprep.subr.bf16.mxu0 0
    %2504 = vmatpush1.bf16.msra.mxu0 0
    %2505 = vmatprep.subr.bf16.mxu0 0
    %2506 = vmatpush1.bf16.msra.mxu0 0
    %2507 = vmatprep.subr.bf16.mxu0 0
    %2508 = vmatpush1.bf16.msra.mxu0 0
    %2509 = vmatprep.subr.bf16.mxu0 0
    %2510 = vmatpush1.bf16.msra.mxu0 0
    %2511 = vmatprep.subr.bf16.mxu0 0
    %2512 = vmatpush1.bf16.msra.mxu0 0
    %2513 = vmatprep.subr.bf16.mxu0 0
    %2514 = vmatpush1.bf16.msra.mxu0 0
    %2515 = vmatprep.subr.bf16.mxu0 0
    %2516 = vmatpush1.bf16.msra.mxu0 0
    %2517 = vmatprep.subr.bf16.mxu0 0
    %2518 = vmatpush1.bf16.msra.mxu0 0
    %2519 = vmatprep.subr.bf16.mxu0 0
    %2520 = vmatpush1.bf16.msra.mxu0 0
    %2521 = vmatprep.subr.bf16.mxu0 0
    %2522 = vmatpush1.bf16.msra.mxu0 0
    %2523 = vmatprep.subr.bf16.mxu0 0
    %2524 = vmatpush1.bf16.msra.mxu0 0
    %2525 = vmatprep.subr.bf16.mxu0 0
    %2526 = vmatpush1.bf16.msra.mxu0 0
    %2527 = vmatprep.mubr.bf16.mxu0 0
    %2528 = vmatmul.mubr.bf16.gmra.mrb[0].mxu0 %v2493
    %v2529 = vpop.f32.mrb[0].mxu0
    %v2530 = vadd.f32 %v2466, %v2529
    %v2531 = vpop.f32.mrb[0].mxu0
    %v2532 = vpop.f32.mrb[0].mxu0
    %v2533 = vpop.f32.mrb[0].mxu0
    %2534 = vdwg.mxu0
    %v2535 = vadd.f32 %v2449, %v2530
    %s2536 = scalar_lea.vmem %s5, 1
    %v2537 = vld [vmem:[%s2536] sm:$0x1]
    %s2538 = scalar_lea.vmem %s6, 1
    %v2539 = vld [vmem:[%s2538] sm:$0x1]
    %v2540 = vsel %vm155, %v2535, 0.0
    %2541 = vadd.xlane.f32.xlu0 %v2540
    %v2542 = vpop.xlane.xlu0 %2541
    %v2543 = vmul.f32 %v2542, %v205
    %v2544 = vsub.f32 %v2535, %v2543
    %v2545 = vmul.f32 %v2544, %v2544
    %v2546 = vsel %vm155, %v2545, 0.0
    %2547 = vadd.xlane.f32.xlu0 %v2546
    %v2548 = vpop.xlane.xlu0 %2547
    %v2549 = vmul.f32 %v2548, %v205
    %v2550 = vadd.f32 %v2549, 1e-05
    %v2551 = vrsqrt.pop %v2550
    %v2552 = vmul.f32 %v2544, %v2551
    %v2554 = vlaneseq
    %v2555 = vshrl.u32 %v2554, 7
    %v2556 = vsub.s32 0, %v2555
    %v2557 = vrot.slane %v2537, %v2556
    %v2559 = vmul.f32 %v2552, %v2557
    %v2561 = vlaneseq
    %v2562 = vshrl.u32 %v2561, 7
    %v2563 = vsub.s32 0, %v2562
    %v2564 = vrot.slane %v2539, %v2563
    %v2566 = vadd.f32 %v2559, %v2564
    %v2567 = vpack.c.bf16 %v2566, %v2566
    %s2568 = scalar_lea.vmem %s7, 512
    %v2569 = vld [vmem:[%s2568] sm:$0xff]
    %v2570 = vld [vmem:[%s2568 + $0x8] sm:$0xff]
    %v2571 = vld [vmem:[%s2568 + $0x40] sm:$0xff]
    %v2572 = vld [vmem:[%s2568 + $0x48] sm:$0xff]
    %v2573 = vld [vmem:[%s2568 + $0x80] sm:$0xff]
    %v2574 = vld [vmem:[%s2568 + $0x88] sm:$0xff]
    %v2575 = vld [vmem:[%s2568 + $0xc0] sm:$0xff]
    %v2576 = vld [vmem:[%s2568 + $0xc8] sm:$0xff]
    %v2577 = vld [vmem:[%s2568 + $0x100] sm:$0xff]
    %v2578 = vld [vmem:[%s2568 + $0x108] sm:$0xff]
    %v2579 = vld [vmem:[%s2568 + $0x140] sm:$0xff]
    %v2580 = vld [vmem:[%s2568 + $0x148] sm:$0xff]
    %v2581 = vld [vmem:[%s2568 + $0x180] sm:$0xff]
    %v2582 = vld [vmem:[%s2568 + $0x188] sm:$0xff]
    %v2583 = vld [vmem:[%s2568 + $0x1c0] sm:$0xff]
    %v2584 = vld [vmem:[%s2568 + $0x1c8] sm:$0xff]
    %s2585 = scalar_lea.vmem %s8, 16
    %v2586 = vld [vmem:[%s2585] sm:$0xf]
    %v2588 = vlaneseq
    %v2589 = vshrl.u32 %v2588, 7
    %v2590 = vsub.s32 0, %v2589
    %v2591 = vrot.slane %v2586, %v2590
    %v2592 = vlaneseq
    %v2593 = vshrl.u32 %v2592, 7
    %v2594 = vsub.s32 1, %v2593
    %v2595 = vrot.slane %v2586, %v2594
    %v2596 = vlaneseq
    %v2597 = vshrl.u32 %v2596, 7
    %v2598 = vsub.s32 2, %v2597
    %v2599 = vrot.slane %v2586, %v2598
    %v2600 = vlaneseq
    %v2601 = vshrl.u32 %v2600, 7
    %v2602 = vsub.s32 3, %v2601
    %v2603 = vrot.slane %v2586, %v2602
    %v2624 = vunpack.c.l.b16 %v2569
    %v2625 = vunpack.c.h.b16 %v2569
    %v2626 = vunpack.c.l.b16 %v2570
    %v2627 = vunpack.c.h.b16 %v2570
    %v2628 = vunpack.c.l.b16 %v2571
    %v2629 = vunpack.c.h.b16 %v2571
    %v2630 = vunpack.c.l.b16 %v2572
    %v2631 = vunpack.c.h.b16 %v2572
    %v2632 = vunpack.c.l.b16 %v2573
    %v2633 = vunpack.c.h.b16 %v2573
    %v2634 = vunpack.c.l.b16 %v2574
    %v2635 = vunpack.c.h.b16 %v2574
    %v2636 = vunpack.c.l.b16 %v2575
    %v2637 = vunpack.c.h.b16 %v2575
    %v2638 = vunpack.c.l.b16 %v2576
    %v2639 = vunpack.c.h.b16 %v2576
    %v2640 = vunpack.c.l.b16 %v2577
    %v2641 = vunpack.c.h.b16 %v2577
    %v2642 = vunpack.c.l.b16 %v2578
    %v2643 = vunpack.c.h.b16 %v2578
    %v2644 = vunpack.c.l.b16 %v2579
    %v2645 = vunpack.c.h.b16 %v2579
    %v2646 = vunpack.c.l.b16 %v2580
    %v2647 = vunpack.c.h.b16 %v2580
    %v2648 = vunpack.c.l.b16 %v2581
    %v2649 = vunpack.c.h.b16 %v2581
    %v2650 = vunpack.c.l.b16 %v2582
    %v2651 = vunpack.c.h.b16 %v2582
    %v2652 = vunpack.c.l.b16 %v2583
    %v2653 = vunpack.c.h.b16 %v2583
    %v2654 = vunpack.c.l.b16 %v2584
    %v2655 = vunpack.c.h.b16 %v2584
    %v2656 = vpack.c.b16 %v2628, %v2624
    %v2657 = vpack.c.b16 %v2629, %v2625
    %v2658 = vpack.c.b16 %v2630, %v2626
    %v2659 = vpack.c.b16 %v2631, %v2627
    %v2660 = vpack.c.b16 %v2636, %v2632
    %v2661 = vpack.c.b16 %v2637, %v2633
    %v2662 = vpack.c.b16 %v2638, %v2634
    %v2663 = vpack.c.b16 %v2639, %v2635
    %v2664 = vpack.c.b16 %v2644, %v2640
    %v2665 = vpack.c.b16 %v2645, %v2641
    %v2666 = vpack.c.b16 %v2646, %v2642
    %v2667 = vpack.c.b16 %v2647, %v2643
    %v2668 = vpack.c.b16 %v2652, %v2648
    %v2669 = vpack.c.b16 %v2653, %v2649
    %v2670 = vpack.c.b16 %v2654, %v2650
    %v2671 = vpack.c.b16 %v2655, %v2651
    %v2689 = vsel %vm155, %v2567, 0
    %2691 = vmatprep.subr.bf16.mxu0 %v2657
    %2692 = vmatpush1.bf16.msra.mxu0 %v2656
    %2693 = vmatprep.subr.bf16.mxu0 %v2661
    %2694 = vmatpush1.bf16.msra.mxu0 %v2660
    %2695 = vmatprep.subr.bf16.mxu0 %v2665
    %2696 = vmatpush1.bf16.msra.mxu0 %v2664
    %2697 = vmatprep.subr.bf16.mxu0 %v2669
    %2698 = vmatpush1.bf16.msra.mxu0 %v2668
    %2699 = vmatprep.subr.bf16.mxu0 0
    %2700 = vmatpush1.bf16.msra.mxu0 0
    %2701 = vmatprep.subr.bf16.mxu0 0
    %2702 = vmatpush1.bf16.msra.mxu0 0
    %2703 = vmatprep.subr.bf16.mxu0 0
    %2704 = vmatpush1.bf16.msra.mxu0 0
    %2705 = vmatprep.subr.bf16.mxu0 0
    %2706 = vmatpush1.bf16.msra.mxu0 0
    %2707 = vmatprep.subr.bf16.mxu0 0
    %2708 = vmatpush1.bf16.msra.mxu0 0
    %2709 = vmatprep.subr.bf16.mxu0 0
    %2710 = vmatpush1.bf16.msra.mxu0 0
    %2711 = vmatprep.subr.bf16.mxu0 0
    %2712 = vmatpush1.bf16.msra.mxu0 0
    %2713 = vmatprep.subr.bf16.mxu0 0
    %2714 = vmatpush1.bf16.msra.mxu0 0
    %2715 = vmatprep.subr.bf16.mxu0 0
    %2716 = vmatpush1.bf16.msra.mxu0 0
    %2717 = vmatprep.subr.bf16.mxu0 0
    %2718 = vmatpush1.bf16.msra.mxu0 0
    %2719 = vmatprep.subr.bf16.mxu0 0
    %2720 = vmatpush1.bf16.msra.mxu0 0
    %2721 = vmatprep.subr.bf16.mxu0 0
    %2722 = vmatpush1.bf16.msra.mxu0 0
    %2723 = vmatprep.mubr.bf16.mxu0 0
    %2724 = vmatmul.mubr.bf16.gmra.mrb[0].mxu0 %v2689
    %v2725 = vpop.f32.mrb[0].mxu0
    %v2726 = vadd.f32 %v2591, %v2725
    %v2727 = vpop.f32.mrb[0].mxu0
    %v2728 = vadd.f32 %v2595, %v2727
    %v2729 = vpop.f32.mrb[0].mxu0
    %v2730 = vpop.f32.mrb[0].mxu0
    %2731 = vdwg.mxu0
    %2732 = vmatprep.subr.bf16.mxu0 %v2659
    %2733 = vmatpush1.bf16.msra.mxu0 %v2658
    %2734 = vmatprep.subr.bf16.mxu0 %v2663
    %2735 = vmatpush1.bf16.msra.mxu0 %v2662
    %2736 = vmatprep.subr.bf16.mxu0 %v2667
    %2737 = vmatpush1.bf16.msra.mxu0 %v2666
    %2738 = vmatprep.subr.bf16.mxu0 %v2671
    %2739 = vmatpush1.bf16.msra.mxu0 %v2670
    %2740 = vmatprep.subr.bf16.mxu0 0
    %2741 = vmatpush1.bf16.msra.mxu0 0
    %2742 = vmatprep.subr.bf16.mxu0 0
    %2743 = vmatpush1.bf16.msra.mxu0 0
    %2744 = vmatprep.subr.bf16.mxu0 0
    %2745 = vmatpush1.bf16.msra.mxu0 0
    %2746 = vmatprep.subr.bf16.mxu0 0
    %2747 = vmatpush1.bf16.msra.mxu0 0
    %2748 = vmatprep.subr.bf16.mxu0 0
    %2749 = vmatpush1.bf16.msra.mxu0 0
    %2750 = vmatprep.subr.bf16.mxu0 0
    %2751 = vmatpush1.bf16.msra.mxu0 0
    %2752 = vmatprep.subr.bf16.mxu0 0
    %2753 = vmatpush1.bf16.msra.mxu0 0
    %2754 = vmatprep.subr.bf16.mxu0 0
    %2755 = vmatpush1.bf16.msra.mxu0 0
    %2756 = vmatprep.subr.bf16.mxu0 0
    %2757 = vmatpush1.bf16.msra.mxu0 0
    %2758 = vmatprep.subr.bf16.mxu0 0
    %2759 = vmatpush1.bf16.msra.mxu0 0
    %2760 = vmatprep.subr.bf16.mxu0 0
    %2761 = vmatpush1.bf16.msra.mxu0 0
    %2762 = vmatprep.subr.bf16.mxu0 0
    %2763 = vmatpush1.bf16.msra.mxu0 0
    %2764 = vmatprep.mubr.bf16.mxu0 0
    %2765 = vmatmul.mubr.bf16.gmra.mrb[0].mxu0 %v2689
    %v2766 = vpop.f32.mrb[0].mxu0
    %v2767 = vadd.f32 %v2599, %v2766
    %v2768 = vpop.f32.mrb[0].mxu0
    %v2769 = vadd.f32 %v2603, %v2768
    %v2770 = vpop.f32.mrb[0].mxu0
    %v2771 = vpop.f32.mrb[0].mxu0
    %2772 = vdwg.mxu0
    %v2773 = vmax.f32 %v2726, 0.0
    %v2774 = vmax.f32 %v2728, 0.0
    %v2775 = vmax.f32 %v2767, 0.0
    %v2776 = vmax.f32 %v2769, 0.0
    %v2777 = vpack.c.bf16 %v2773, %v2773
    %v2778 = vpack.c.bf16 %v2774, %v2774
    %v2779 = vpack.c.bf16 %v2775, %v2775
    %v2780 = vpack.c.bf16 %v2776, %v2776
    %s2781 = scalar_lea.vmem %s9, 1024
    %v2782 = vld [vmem:[%s2781] sm:$0xf]
    %v2783 = vld [vmem:[%s2781 + $0x4] sm:$0xf]
    %v2784 = vld [vmem:[%s2781 + $0x8] sm:$0xf]
    %v2785 = vld [vmem:[%s2781 + $0xc] sm:$0xf]
    %v2786 = vld [vmem:[%s2781 + $0x10] sm:$0xf]
    %v2787 = vld [vmem:[%s2781 + $0x14] sm:$0xf]
    %v2788 = vld [vmem:[%s2781 + $0x18] sm:$0xf]
    %v2789 = vld [vmem:[%s2781 + $0x1c] sm:$0xf]
    %v2790 = vld [vmem:[%s2781 + $0x20] sm:$0xf]
    %v2791 = vld [vmem:[%s2781 + $0x24] sm:$0xf]
    %v2792 = vld [vmem:[%s2781 + $0x28] sm:$0xf]
    %v2793 = vld [vmem:[%s2781 + $0x2c] sm:$0xf]
    %v2794 = vld [vmem:[%s2781 + $0x30] sm:$0xf]
    %v2795 = vld [vmem:[%s2781 + $0x34] sm:$0xf]
    %v2796 = vld [vmem:[%s2781 + $0x38] sm:$0xf]
    %v2797 = vld [vmem:[%s2781 + $0x3c] sm:$0xf]
    %v2798 = vld [vmem:[%s2781 + $0x40] sm:$0xf]
    %v2799 = vld [vmem:[%s2781 + $0x44] sm:$0xf]
    %v2800 = vld [vmem:[%s2781 + $0x48] sm:$0xf]
    %v2801 = vld [vmem:[%s2781 + $0x4c] sm:$0xf]
    %v2802 = vld [vmem:[%s2781 + $0x50] sm:$0xf]
    %v2803 = vld [vmem:[%s2781 + $0x54] sm:$0xf]
    %v2804 = vld [vmem:[%s2781 + $0x58] sm:$0xf]
    %v2805 = vld [vmem:[%s2781 + $0x5c] sm:$0xf]
    %v2806 = vld [vmem:[%s2781 + $0x60] sm:$0xf]
    %v2807 = vld [vmem:[%s2781 + $0x64] sm:$0xf]
    %v2808 = vld [vmem:[%s2781 + $0x68] sm:$0xf]
    %v2809 = vld [vmem:[%s2781 + $0x6c] sm:$0xf]
    %v2810 = vld [vmem:[%s2781 + $0x70] sm:$0xf]
    %v2811 = vld [vmem:[%s2781 + $0x74] sm:$0xf]
    %v2812 = vld [vmem:[%s2781 + $0x78] sm:$0xf]
    %v2813 = vld [vmem:[%s2781 + $0x7c] sm:$0xf]
    %v2814 = vld [vmem:[%s2781 + $0x80] sm:$0xf]
    %v2815 = vld [vmem:[%s2781 + $0x84] sm:$0xf]
    %v2816 = vld [vmem:[%s2781 + $0x88] sm:$0xf]
    %v2817 = vld [vmem:[%s2781 + $0x8c] sm:$0xf]
    %v2818 = vld [vmem:[%s2781 + $0x90] sm:$0xf]
    %v2819 = vld [vmem:[%s2781 + $0x94] sm:$0xf]
    %v2820 = vld [vmem:[%s2781 + $0x98] sm:$0xf]
    %v2821 = vld [vmem:[%s2781 + $0x9c] sm:$0xf]
    %v2822 = vld [vmem:[%s2781 + $0xa0] sm:$0xf]
    %v2823 = vld [vmem:[%s2781 + $0xa4] sm:$0xf]
    %v2824 = vld [vmem:[%s2781 + $0xa8] sm:$0xf]
    %v2825 = vld [vmem:[%s2781 + $0xac] sm:$0xf]
    %v2826 = vld [vmem:[%s2781 + $0xb0] sm:$0xf]
    %v2827 = vld [vmem:[%s2781 + $0xb4] sm:$0xf]
    %v2828 = vld [vmem:[%s2781 + $0xb8] sm:$0xf]
    %v2829 = vld [vmem:[%s2781 + $0xbc] sm:$0xf]
    %v2830 = vld [vmem:[%s2781 + $0xc0] sm:$0xf]
    %v2831 = vld [vmem:[%s2781 + $0xc4] sm:$0xf]
    %v2832 = vld [vmem:[%s2781 + $0xc8] sm:$0xf]
    %v2833 = vld [vmem:[%s2781 + $0xcc] sm:$0xf]
    %v2834 = vld [vmem:[%s2781 + $0xd0] sm:$0xf]
    %v2835 = vld [vmem:[%s2781 + $0xd4] sm:$0xf]
    %v2836 = vld [vmem:[%s2781 + $0xd8] sm:$0xf]
    %v2837 = vld [vmem:[%s2781 + $0xdc] sm:$0xf]
    %v2838 = vld [vmem:[%s2781 + $0xe0] sm:$0xf]
    %v2839 = vld [vmem:[%s2781 + $0xe4] sm:$0xf]
    %v2840 = vld [vmem:[%s2781 + $0xe8] sm:$0xf]
    %v2841 = vld [vmem:[%s2781 + $0xec] sm:$0xf]
    %v2842 = vld [vmem:[%s2781 + $0xf0] sm:$0xf]
    %v2843 = vld [vmem:[%s2781 + $0xf4] sm:$0xf]
    %v2844 = vld [vmem:[%s2781 + $0xf8] sm:$0xf]
    %v2845 = vld [vmem:[%s2781 + $0xfc] sm:$0xf]
    %v2846 = vld [vmem:[%s2568 + $0x10] sm:$0xff]
    %v2847 = vld [vmem:[%s2568 + $0x18] sm:$0xff]
    %v2848 = vld [vmem:[%s2568 + $0x50] sm:$0xff]
    %v2849 = vld [vmem:[%s2568 + $0x58] sm:$0xff]
    %v2850 = vld [vmem:[%s2568 + $0x90] sm:$0xff]
    %v2851 = vld [vmem:[%s2568 + $0x98] sm:$0xff]
    %v2852 = vld [vmem:[%s2568 + $0xd0] sm:$0xff]
    %v2853 = vld [vmem:[%s2568 + $0xd8] sm:$0xff]
    %v2854 = vld [vmem:[%s2568 + $0x110] sm:$0xff]
    %v2855 = vld [vmem:[%s2568 + $0x118] sm:$0xff]
    %v2856 = vld [vmem:[%s2568 + $0x150] sm:$0xff]
    %v2857 = vld [vmem:[%s2568 + $0x158] sm:$0xff]
    %v2858 = vld [vmem:[%s2568 + $0x190] sm:$0xff]
    %v2859 = vld [vmem:[%s2568 + $0x198] sm:$0xff]
    %v2860 = vld [vmem:[%s2568 + $0x1d0] sm:$0xff]
    %v2861 = vld [vmem:[%s2568 + $0x1d8] sm:$0xff]
    %v2862 = vld [vmem:[%s2585 + $0x4] sm:$0xf]
    %v2864 = vlaneseq
    %v2865 = vshrl.u32 %v2864, 7
    %v2866 = vsub.s32 0, %v2865
    %v2867 = vrot.slane %v2862, %v2866
    %v2868 = vlaneseq
    %v2869 = vshrl.u32 %v2868, 7
    %v2870 = vsub.s32 1, %v2869
    %v2871 = vrot.slane %v2862, %v2870
    %v2872 = vlaneseq
    %v2873 = vshrl.u32 %v2872, 7
    %v2874 = vsub.s32 2, %v2873
    %v2875 = vrot.slane %v2862, %v2874
    %v2876 = vlaneseq
    %v2877 = vshrl.u32 %v2876, 7
    %v2878 = vsub.s32 3, %v2877
    %v2879 = vrot.slane %v2862, %v2878
    %v2900 = vunpack.c.l.b16 %v2846
    %v2901 = vunpack.c.h.b16 %v2846
    %v2902 = vunpack.c.l.b16 %v2847
    %v2903 = vunpack.c.h.b16 %v2847
    %v2904 = vunpack.c.l.b16 %v2848
    %v2905 = vunpack.c.h.b16 %v2848
    %v2906 = vunpack.c.l.b16 %v2849
    %v2907 = vunpack.c.h.b16 %v2849
    %v2908 = vunpack.c.l.b16 %v2850
    %v2909 = vunpack.c.h.b16 %v2850
    %v2910 = vunpack.c.l.b16 %v2851
    %v2911 = vunpack.c.h.b16 %v2851
    %v2912 = vunpack.c.l.b16 %v2852
    %v2913 = vunpack.c.h.b16 %v2852
    %v2914 = vunpack.c.l.b16 %v2853
    %v2915 = vunpack.c.h.b16 %v2853
    %v2916 = vunpack.c.l.b16 %v2854
    %v2917 = vunpack.c.h.b16 %v2854
    %v2918 = vunpack.c.l.b16 %v2855
    %v2919 = vunpack.c.h.b16 %v2855
    %v2920 = vunpack.c.l.b16 %v2856
    %v2921 = vunpack.c.h.b16 %v2856
    %v2922 = vunpack.c.l.b16 %v2857
    %v2923 = vunpack.c.h.b16 %v2857
    %v2924 = vunpack.c.l.b16 %v2858
    %v2925 = vunpack.c.h.b16 %v2858
    %v2926 = vunpack.c.l.b16 %v2859
    %v2927 = vunpack.c.h.b16 %v2859
    %v2928 = vunpack.c.l.b16 %v2860
    %v2929 = vunpack.c.h.b16 %v2860
    %v2930 = vunpack.c.l.b16 %v2861
    %v2931 = vunpack.c.h.b16 %v2861
    %v2932 = vpack.c.b16 %v2904, %v2900
    %v2933 = vpack.c.b16 %v2905, %v2901
    %v2934 = vpack.c.b16 %v2906, %v2902
    %v2935 = vpack.c.b16 %v2907, %v2903
    %v2936 = vpack.c.b16 %v2912, %v2908
    %v2937 = vpack.c.b16 %v2913, %v2909
    %v2938 = vpack.c.b16 %v2914, %v2910
    %v2939 = vpack.c.b16 %v2915, %v2911
    %v2940 = vpack.c.b16 %v2920, %v2916
    %v2941 = vpack.c.b16 %v2921, %v2917
    %v2942 = vpack.c.b16 %v2922, %v2918
    %v2943 = vpack.c.b16 %v2923, %v2919
    %v2944 = vpack.c.b16 %v2928, %v2924
    %v2945 = vpack.c.b16 %v2929, %v2925
    %v2946 = vpack.c.b16 %v2930, %v2926
    %v2947 = vpack.c.b16 %v2931, %v2927
    %2964 = vmatprep.subr.bf16.mxu0 %v2933
    %2965 = vmatpush1.bf16.msra.mxu0 %v2932
    %2966 = vmatprep.subr.bf16.mxu0 %v2937
    %2967 = vmatpush1.bf16.msra.mxu0 %v2936
    %2968 = vmatprep.subr.bf16.mxu0 %v2941
    %2969 = vmatpush1.bf16.msra.mxu0 %v2940
    %2970 = vmatprep.subr.bf16.mxu0 %v2945
    %2971 = vmatpush1.bf16.msra.mxu0 %v2944
    %2972 = vmatprep.subr.bf16.mxu0 0
    %2973 = vmatpush1.bf16.msra.mxu0 0
    %2974 = vmatprep.subr.bf16.mxu0 0
    %2975 = vmatpush1.bf16.msra.mxu0 0
    %2976 = vmatprep.subr.bf16.mxu0 0
    %2977 = vmatpush1.bf16.msra.mxu0 0
    %2978 = vmatprep.subr.bf16.mxu0 0
    %2979 = vmatpush1.bf16.msra.mxu0 0
    %2980 = vmatprep.subr.bf16.mxu0 0
    %2981 = vmatpush1.bf16.msra.mxu0 0
    %2982 = vmatprep.subr.bf16.mxu0 0
    %2983 = vmatpush1.bf16.msra.mxu0 0
    %2984 = vmatprep.subr.bf16.mxu0 0
    %2985 = vmatpush1.bf16.msra.mxu0 0
    %2986 = vmatprep.subr.bf16.mxu0 0
    %2987 = vmatpush1.bf16.msra.mxu0 0
    %2988 = vmatprep.subr.bf16.mxu0 0
    %2989 = vmatpush1.bf16.msra.mxu0 0
    %2990 = vmatprep.subr.bf16.mxu0 0
    %2991 = vmatpush1.bf16.msra.mxu0 0
    %2992 = vmatprep.subr.bf16.mxu0 0
    %2993 = vmatpush1.bf16.msra.mxu0 0
    %2994 = vmatprep.subr.bf16.mxu0 0
    %2995 = vmatpush1.bf16.msra.mxu0 0
    %2996 = vmatprep.mubr.bf16.mxu0 0
    %2997 = vmatmul.mubr.bf16.gmra.mrb[0].mxu0 %v2689
    %v2998 = vpop.f32.mrb[0].mxu0
    %v2999 = vadd.f32 %v2867, %v2998
    %v3000 = vpop.f32.mrb[0].mxu0
    %v3001 = vadd.f32 %v2871, %v3000
    %v3002 = vpop.f32.mrb[0].mxu0
    %v3003 = vpop.f32.mrb[0].mxu0
    %3004 = vdwg.mxu0
    %3005 = vmatprep.subr.bf16.mxu0 %v2935
    %3006 = vmatpush1.bf16.msra.mxu0 %v2934
    %3007 = vmatprep.subr.bf16.mxu0 %v2939
    %3008 = vmatpush1.bf16.msra.mxu0 %v2938
    %3009 = vmatprep.subr.bf16.mxu0 %v2943
    %3010 = vmatpush1.bf16.msra.mxu0 %v2942
    %3011 = vmatprep.subr.bf16.mxu0 %v2947
    %3012 = vmatpush1.bf16.msra.mxu0 %v2946
    %3013 = vmatprep.subr.bf16.mxu0 0
    %3014 = vmatpush1.bf16.msra.mxu0 0
    %3015 = vmatprep.subr.bf16.mxu0 0
    %3016 = vmatpush1.bf16.msra.mxu0 0
    %3017 = vmatprep.subr.bf16.mxu0 0
    %3018 = vmatpush1.bf16.msra.mxu0 0
    %3019 = vmatprep.subr.bf16.mxu0 0
    %3020 = vmatpush1.bf16.msra.mxu0 0
    %3021 = vmatprep.subr.bf16.mxu0 0
    %3022 = vmatpush1.bf16.msra.mxu0 0
    %3023 = vmatprep.subr.bf16.mxu0 0
    %3024 = vmatpush1.bf16.msra.mxu0 0
    %3025 = vmatprep.subr.bf16.mxu0 0
    %3026 = vmatpush1.bf16.msra.mxu0 0
    %3027 = vmatprep.subr.bf16.mxu0 0
    %3028 = vmatpush1.bf16.msra.mxu0 0
    %3029 = vmatprep.subr.bf16.mxu0 0
    %3030 = vmatpush1.bf16.msra.mxu0 0
    %3031 = vmatprep.subr.bf16.mxu0 0
    %3032 = vmatpush1.bf16.msra.mxu0 0
    %3033 = vmatprep.subr.bf16.mxu0 0
    %3034 = vmatpush1.bf16.msra.mxu0 0
    %3035 = vmatprep.subr.bf16.mxu0 0
    %3036 = vmatpush1.bf16.msra.mxu0 0
    %3037 = vmatprep.mubr.bf16.mxu0 0
    %3038 = vmatmul.mubr.bf16.gmra.mrb[0].mxu0 %v2689
    %v3039 = vpop.f32.mrb[0].mxu0
    %v3040 = vadd.f32 %v2875, %v3039
    %v3041 = vpop.f32.mrb[0].mxu0
    %v3042 = vadd.f32 %v2879, %v3041
    %v3043 = vpop.f32.mrb[0].mxu0
    %v3044 = vpop.f32.mrb[0].mxu0
    %3045 = vdwg.mxu0
    %v3046 = vmax.f32 %v2999, 0.0
    %v3047 = vmax.f32 %v3001, 0.0
    %v3048 = vmax.f32 %v3040, 0.0
    %v3049 = vmax.f32 %v3042, 0.0
    %v3050 = vpack.c.bf16 %v3046, %v3046
    %v3051 = vpack.c.bf16 %v3047, %v3047
    %v3052 = vpack.c.bf16 %v3048, %v3048
    %v3053 = vpack.c.bf16 %v3049, %v3049
    %v3054 = vld [vmem:[%s2781 + $0x100] sm:$0xf]
    %v3055 = vld [vmem:[%s2781 + $0x104] sm:$0xf]
    %v3056 = vld [vmem:[%s2781 + $0x108] sm:$0xf]
    %v3057 = vld [vmem:[%s2781 + $0x10c] sm:$0xf]
    %v3058 = vld [vmem:[%s2781 + $0x110] sm:$0xf]
    %v3059 = vld [vmem:[%s2781 + $0x114] sm:$0xf]
    %v3060 = vld [vmem:[%s2781 + $0x118] sm:$0xf]
    %v3061 = vld [vmem:[%s2781 + $0x11c] sm:$0xf]
    %v3062 = vld [vmem:[%s2781 + $0x120] sm:$0xf]
    %v3063 = vld [vmem:[%s2781 + $0x124] sm:$0xf]
    %v3064 = vld [vmem:[%s2781 + $0x128] sm:$0xf]
    %v3065 = vld [vmem:[%s2781 + $0x12c] sm:$0xf]
    %v3066 = vld [vmem:[%s2781 + $0x130] sm:$0xf]
    %v3067 = vld [vmem:[%s2781 + $0x134] sm:$0xf]
    %v3068 = vld [vmem:[%s2781 + $0x138] sm:$0xf]
    %v3069 = vld [vmem:[%s2781 + $0x13c] sm:$0xf]
    %v3070 = vld [vmem:[%s2781 + $0x140] sm:$0xf]
    %v3071 = vld [vmem:[%s2781 + $0x144] sm:$0xf]
    %v3072 = vld [vmem:[%s2781 + $0x148] sm:$0xf]
    %v3073 = vld [vmem:[%s2781 + $0x14c] sm:$0xf]
    %v3074 = vld [vmem:[%s2781 + $0x150] sm:$0xf]
    %v3075 = vld [vmem:[%s2781 + $0x154] sm:$0xf]
    %v3076 = vld [vmem:[%s2781 + $0x158] sm:$0xf]
    %v3077 = vld [vmem:[%s2781 + $0x15c] sm:$0xf]
    %v3078 = vld [vmem:[%s2781 + $0x160] sm:$0xf]
    %v3079 = vld [vmem:[%s2781 + $0x164] sm:$0xf]
    %v3080 = vld [vmem:[%s2781 + $0x168] sm:$0xf]
    %v3081 = vld [vmem:[%s2781 + $0x16c] sm:$0xf]
    %v3082 = vld [vmem:[%s2781 + $0x170] sm:$0xf]
    %v3083 = vld [vmem:[%s2781 + $0x174] sm:$0xf]
    %v3084 = vld [vmem:[%s2781 + $0x178] sm:$0xf]
    %v3085 = vld [vmem:[%s2781 + $0x17c] sm:$0xf]
    %v3086 = vld [vmem:[%s2781 + $0x180] sm:$0xf]
    %v3087 = vld [vmem:[%s2781 + $0x184] sm:$0xf]
    %v3088 = vld [vmem:[%s2781 + $0x188] sm:$0xf]
    %v3089 = vld [vmem:[%s2781 + $0x18c] sm:$0xf]
    %v3090 = vld [vmem:[%s2781 + $0x190] sm:$0xf]
    %v3091 = vld [vmem:[%s2781 + $0x194] sm:$0xf]
    %v3092 = vld [vmem:[%s2781 + $0x198] sm:$0xf]
    %v3093 = vld [vmem:[%s2781 + $0x19c] sm:$0xf]
    %v3094 = vld [vmem:[%s2781 + $0x1a0] sm:$0xf]
    %v3095 = vld [vmem:[%s2781 + $0x1a4] sm:$0xf]
    %v3096 = vld [vmem:[%s2781 + $0x1a8] sm:$0xf]
    %v3097 = vld [vmem:[%s2781 + $0x1ac] sm:$0xf]
    %v3098 = vld [vmem:[%s2781 + $0x1b0] sm:$0xf]
    %v3099 = vld [vmem:[%s2781 + $0x1b4] sm:$0xf]
    %v3100 = vld [vmem:[%s2781 + $0x1b8] sm:$0xf]
    %v3101 = vld [vmem:[%s2781 + $0x1bc] sm:$0xf]
    %v3102 = vld [vmem:[%s2781 + $0x1c0] sm:$0xf]
    %v3103 = vld [vmem:[%s2781 + $0x1c4] sm:$0xf]
    %v3104 = vld [vmem:[%s2781 + $0x1c8] sm:$0xf]
    %v3105 = vld [vmem:[%s2781 + $0x1cc] sm:$0xf]
    %v3106 = vld [vmem:[%s2781 + $0x1d0] sm:$0xf]
    %v3107 = vld [vmem:[%s2781 + $0x1d4] sm:$0xf]
    %v3108 = vld [vmem:[%s2781 + $0x1d8] sm:$0xf]
    %v3109 = vld [vmem:[%s2781 + $0x1dc] sm:$0xf]
    %v3110 = vld [vmem:[%s2781 + $0x1e0] sm:$0xf]
    %v3111 = vld [vmem:[%s2781 + $0x1e4] sm:$0xf]
    %v3112 = vld [vmem:[%s2781 + $0x1e8] sm:$0xf]
    %v3113 = vld [vmem:[%s2781 + $0x1ec] sm:$0xf]
    %v3114 = vld [vmem:[%s2781 + $0x1f0] sm:$0xf]
    %v3115 = vld [vmem:[%s2781 + $0x1f4] sm:$0xf]
    %v3116 = vld [vmem:[%s2781 + $0x1f8] sm:$0xf]
    %v3117 = vld [vmem:[%s2781 + $0x1fc] sm:$0xf]
    %v3182 = vunpack.c.l.b16 %v3054
    %v3183 = vunpack.c.l.b16 %v3055
    %v3184 = vunpack.c.l.b16 %v3056
    %v3185 = vunpack.c.l.b16 %v3057
    %v3186 = vunpack.c.l.b16 %v3058
    %v3187 = vunpack.c.l.b16 %v3059
    %v3188 = vunpack.c.l.b16 %v3060
    %v3189 = vunpack.c.l.b16 %v3061
    %v3190 = vunpack.c.l.b16 %v3062
    %v3191 = vunpack.c.l.b16 %v3063
    %v3192 = vunpack.c.l.b16 %v3064
    %v3193 = vunpack.c.l.b16 %v3065
    %v3194 = vunpack.c.l.b16 %v3066
    %v3195 = vunpack.c.l.b16 %v3067
    %v3196 = vunpack.c.l.b16 %v3068
    %v3197 = vunpack.c.l.b16 %v3069
    %v3198 = vunpack.c.l.b16 %v3070
    %v3199 = vunpack.c.l.b16 %v3071
    %v3200 = vunpack.c.l.b16 %v3072
    %v3201 = vunpack.c.l.b16 %v3073
    %v3202 = vunpack.c.l.b16 %v3074
    %v3203 = vunpack.c.l.b16 %v3075
    %v3204 = vunpack.c.l.b16 %v3076
    %v3205 = vunpack.c.l.b16 %v3077
    %v3206 = vunpack.c.l.b16 %v3078
    %v3207 = vunpack.c.l.b16 %v3079
    %v3208 = vunpack.c.l.b16 %v3080
    %v3209 = vunpack.c.l.b16 %v3081
    %v3210 = vunpack.c.l.b16 %v3082
    %v3211 = vunpack.c.l.b16 %v3083
    %v3212 = vunpack.c.l.b16 %v3084
    %v3213 = vunpack.c.l.b16 %v3085
    %v3214 = vunpack.c.l.b16 %v3086
    %v3215 = vunpack.c.l.b16 %v3087
    %v3216 = vunpack.c.l.b16 %v3088
    %v3217 = vunpack.c.l.b16 %v3089
    %v3218 = vunpack.c.l.b16 %v3090
    %v3219 = vunpack.c.l.b16 %v3091
    %v3220 = vunpack.c.l.b16 %v3092
    %v3221 = vunpack.c.l.b16 %v3093
    %v3222 = vunpack.c.l.b16 %v3094
    %v3223 = vunpack.c.l.b16 %v3095
    %v3224 = vunpack.c.l.b16 %v3096
    %v3225 = vunpack.c.l.b16 %v3097
    %v3226 = vunpack.c.l.b16 %v3098
    %v3227 = vunpack.c.l.b16 %v3099
    %v3228 = vunpack.c.l.b16 %v3100
    %v3229 = vunpack.c.l.b16 %v3101
    %v3230 = vunpack.c.l.b16 %v3102
    %v3231 = vunpack.c.l.b16 %v3103
    %v3232 = vunpack.c.l.b16 %v3104
    %v3233 = vunpack.c.l.b16 %v3105
    %v3234 = vunpack.c.l.b16 %v3106
    %v3235 = vunpack.c.l.b16 %v3107
    %v3236 = vunpack.c.l.b16 %v3108
    %v3237 = vunpack.c.l.b16 %v3109
    %v3238 = vunpack.c.l.b16 %v3110
    %v3239 = vunpack.c.l.b16 %v3111
    %v3240 = vunpack.c.l.b16 %v3112
    %v3241 = vunpack.c.l.b16 %v3113
    %v3242 = vunpack.c.l.b16 %v3114
    %v3243 = vunpack.c.l.b16 %v3115
    %v3244 = vunpack.c.l.b16 %v3116
    %v3245 = vunpack.c.l.b16 %v3117
    %v3246 = vpack.c.b16 %v3183, %v3182
    %v3247 = vpack.c.b16 %v3185, %v3184
    %v3248 = vpack.c.b16 %v3187, %v3186
    %v3249 = vpack.c.b16 %v3189, %v3188
    %v3250 = vpack.c.b16 %v3191, %v3190
    %v3251 = vpack.c.b16 %v3193, %v3192
    %v3252 = vpack.c.b16 %v3195, %v3194
    %v3253 = vpack.c.b16 %v3197, %v3196
    %v3254 = vpack.c.b16 %v3199, %v3198
    %v3255 = vpack.c.b16 %v3201, %v3200
    %v3256 = vpack.c.b16 %v3203, %v3202
    %v3257 = vpack.c.b16 %v3205, %v3204
    %v3258 = vpack.c.b16 %v3207, %v3206
    %v3259 = vpack.c.b16 %v3209, %v3208
    %v3260 = vpack.c.b16 %v3211, %v3210
    %v3261 = vpack.c.b16 %v3213, %v3212
    %v3262 = vpack.c.b16 %v3215, %v3214
    %v3263 = vpack.c.b16 %v3217, %v3216
    %v3264 = vpack.c.b16 %v3219, %v3218
    %v3265 = vpack.c.b16 %v3221, %v3220
    %v3266 = vpack.c.b16 %v3223, %v3222
    %v3267 = vpack.c.b16 %v3225, %v3224
    %v3268 = vpack.c.b16 %v3227, %v3226
    %v3269 = vpack.c.b16 %v3229, %v3228
    %v3270 = vpack.c.b16 %v3231, %v3230
    %v3271 = vpack.c.b16 %v3233, %v3232
    %v3272 = vpack.c.b16 %v3235, %v3234
    %v3273 = vpack.c.b16 %v3237, %v3236
    %v3274 = vpack.c.b16 %v3239, %v3238
    %v3275 = vpack.c.b16 %v3241, %v3240
    %v3276 = vpack.c.b16 %v3243, %v3242
    %v3277 = vpack.c.b16 %v3245, %v3244
    %3310 = vmatprep.subr.bf16.mxu0 0
    %3311 = vmatpush1.bf16.msra.mxu0 %v3246
    %3312 = vmatprep.subr.bf16.mxu0 0
    %3313 = vmatpush1.bf16.msra.mxu0 %v3247
    %3314 = vmatprep.subr.bf16.mxu0 0
    %3315 = vmatpush1.bf16.msra.mxu0 %v3248
    %3316 = vmatprep.subr.bf16.mxu0 0
    %3317 = vmatpush1.bf16.msra.mxu0 %v3249
    %3318 = vmatprep.subr.bf16.mxu0 0
    %3319 = vmatpush1.bf16.msra.mxu0 %v3250
    %3320 = vmatprep.subr.bf16.mxu0 0
    %3321 = vmatpush1.bf16.msra.mxu0 %v3251
    %3322 = vmatprep.subr.bf16.mxu0 0
    %3323 = vmatpush1.bf16.msra.mxu0 %v3252
    %3324 = vmatprep.subr.bf16.mxu0 0
    %3325 = vmatpush1.bf16.msra.mxu0 %v3253
    %3326 = vmatprep.subr.bf16.mxu0 0
    %3327 = vmatpush1.bf16.msra.mxu0 %v3254
    %3328 = vmatprep.subr.bf16.mxu0 0
    %3329 = vmatpush1.bf16.msra.mxu0 %v3255
    %3330 = vmatprep.subr.bf16.mxu0 0
    %3331 = vmatpush1.bf16.msra.mxu0 %v3256
    %3332 = vmatprep.subr.bf16.mxu0 0
    %3333 = vmatpush1.bf16.msra.mxu0 %v3257
    %3334 = vmatprep.subr.bf16.mxu0 0
    %3335 = vmatpush1.bf16.msra.mxu0 %v3258
    %3336 = vmatprep.subr.bf16.mxu0 0
    %3337 = vmatpush1.bf16.msra.mxu0 %v3259
    %3338 = vmatprep.subr.bf16.mxu0 0
    %3339 = vmatpush1.bf16.msra.mxu0 %v3260
    %3340 = vmatprep.subr.bf16.mxu0 0
    %3341 = vmatpush1.bf16.msra.mxu0 %v3261
    %3342 = vmatprep.mubr.bf16.mxu0 %v3051
    %3343 = vmatmul.mubr.bf16.gmra.mrb[0].mxu0 %v3050
    %v3344 = vpop.f32.mrb[0].mxu0
    %v3345 = vadd.f32 0.0, %v3344
    %v3346 = vpop.f32.mrb[0].mxu0
    %v3347 = vpop.f32.mrb[0].mxu0
    %v3348 = vpop.f32.mrb[0].mxu0
    %3349 = vdwg.mxu0
    %3350 = vmatprep.subr.bf16.mxu0 0
    %3351 = vmatpush1.bf16.msra.mxu0 %v3262
    %3352 = vmatprep.subr.bf16.mxu0 0
    %3353 = vmatpush1.bf16.msra.mxu0 %v3263
    %3354 = vmatprep.subr.bf16.mxu0 0
    %3355 = vmatpush1.bf16.msra.mxu0 %v3264
    %3356 = vmatprep.subr.bf16.mxu0 0
    %3357 = vmatpush1.bf16.msra.mxu0 %v3265
    %3358 = vmatprep.subr.bf16.mxu0 0
    %3359 = vmatpush1.bf16.msra.mxu0 %v3266
    %3360 = vmatprep.subr.bf16.mxu0 0
    %3361 = vmatpush1.bf16.msra.mxu0 %v3267
    %3362 = vmatprep.subr.bf16.mxu0 0
    %3363 = vmatpush1.bf16.msra.mxu0 %v3268
    %3364 = vmatprep.subr.bf16.mxu0 0
    %3365 = vmatpush1.bf16.msra.mxu0 %v3269
    %3366 = vmatprep.subr.bf16.mxu0 0
    %3367 = vmatpush1.bf16.msra.mxu0 %v3270
    %3368 = vmatprep.subr.bf16.mxu0 0
    %3369 = vmatpush1.bf16.msra.mxu0 %v3271
    %3370 = vmatprep.subr.bf16.mxu0 0
    %3371 = vmatpush1.bf16.msra.mxu0 %v3272
    %3372 = vmatprep.subr.bf16.mxu0 0
    %3373 = vmatpush1.bf16.msra.mxu0 %v3273
    %3374 = vmatprep.subr.bf16.mxu0 0
    %3375 = vmatpush1.bf16.msra.mxu0 %v3274
    %3376 = vmatprep.subr.bf16.mxu0 0
    %3377 = vmatpush1.bf16.msra.mxu0 %v3275
    %3378 = vmatprep.subr.bf16.mxu0 0
    %3379 = vmatpush1.bf16.msra.mxu0 %v3276
    %3380 = vmatprep.subr.bf16.mxu0 0
    %3381 = vmatpush1.bf16.msra.mxu0 %v3277
    %3382 = vmatprep.mubr.bf16.mxu0 %v3053
    %3383 = vmatmul.mubr.bf16.gmra.mrb[0].mxu0 %v3052
    %v3384 = vpop.f32.mrb[0].mxu0
    %v3385 = vadd.f32 %v3345, %v3384
    %v3386 = vpop.f32.mrb[0].mxu0
    %v3387 = vpop.f32.mrb[0].mxu0
    %v3388 = vpop.f32.mrb[0].mxu0
    %3389 = vdwg.mxu0
    %v3454 = vunpack.c.l.b16 %v2782
    %v3455 = vunpack.c.l.b16 %v2783
    %v3456 = vunpack.c.l.b16 %v2784
    %v3457 = vunpack.c.l.b16 %v2785
    %v3458 = vunpack.c.l.b16 %v2786
    %v3459 = vunpack.c.l.b16 %v2787
    %v3460 = vunpack.c.l.b16 %v2788
    %v3461 = vunpack.c.l.b16 %v2789
    %v3462 = vunpack.c.l.b16 %v2790
    %v3463 = vunpack.c.l.b16 %v2791
    %v3464 = vunpack.c.l.b16 %v2792
    %v3465 = vunpack.c.l.b16 %v2793
    %v3466 = vunpack.c.l.b16 %v2794
    %v3467 = vunpack.c.l.b16 %v2795
    %v3468 = vunpack.c.l.b16 %v2796
    %v3469 = vunpack.c.l.b16 %v2797
    %v3470 = vunpack.c.l.b16 %v2798
    %v3471 = vunpack.c.l.b16 %v2799
    %v3472 = vunpack.c.l.b16 %v2800
    %v3473 = vunpack.c.l.b16 %v2801
    %v3474 = vunpack.c.l.b16 %v2802
    %v3475 = vunpack.c.l.b16 %v2803
    %v3476 = vunpack.c.l.b16 %v2804
    %v3477 = vunpack.c.l.b16 %v2805
    %v3478 = vunpack.c.l.b16 %v2806
    %v3479 = vunpack.c.l.b16 %v2807
    %v3480 = vunpack.c.l.b16 %v2808
    %v3481 = vunpack.c.l.b16 %v2809
    %v3482 = vunpack.c.l.b16 %v2810
    %v3483 = vunpack.c.l.b16 %v2811
    %v3484 = vunpack.c.l.b16 %v2812
    %v3485 = vunpack.c.l.b16 %v2813
    %v3486 = vunpack.c.l.b16 %v2814
    %v3487 = vunpack.c.l.b16 %v2815
    %v3488 = vunpack.c.l.b16 %v2816
    %v3489 = vunpack.c.l.b16 %v2817
    %v3490 = vunpack.c.l.b16 %v2818
    %v3491 = vunpack.c.l.b16 %v2819
    %v3492 = vunpack.c.l.b16 %v2820
    %v3493 = vunpack.c.l.b16 %v2821
    %v3494 = vunpack.c.l.b16 %v2822
    %v3495 = vunpack.c.l.b16 %v2823
    %v3496 = vunpack.c.l.b16 %v2824
    %v3497 = vunpack.c.l.b16 %v2825
    %v3498 = vunpack.c.l.b16 %v2826
    %v3499 = vunpack.c.l.b16 %v2827
    %v3500 = vunpack.c.l.b16 %v2828
    %v3501 = vunpack.c.l.b16 %v2829
    %v3502 = vunpack.c.l.b16 %v2830
    %v3503 = vunpack.c.l.b16 %v2831
    %v3504 = vunpack.c.l.b16 %v2832
    %v3505 = vunpack.c.l.b16 %v2833
    %v3506 = vunpack.c.l.b16 %v2834
    %v3507 = vunpack.c.l.b16 %v2835
    %v3508 = vunpack.c.l.b16 %v2836
    %v3509 = vunpack.c.l.b16 %v2837
    %v3510 = vunpack.c.l.b16 %v2838
    %v3511 = vunpack.c.l.b16 %v2839
    %v3512 = vunpack.c.l.b16 %v2840
    %v3513 = vunpack.c.l.b16 %v2841
    %v3514 = vunpack.c.l.b16 %v2842
    %v3515 = vunpack.c.l.b16 %v2843
    %v3516 = vunpack.c.l.b16 %v2844
    %v3517 = vunpack.c.l.b16 %v2845
    %v3518 = vpack.c.b16 %v3455, %v3454
    %v3519 = vpack.c.b16 %v3457, %v3456
    %v3520 = vpack.c.b16 %v3459, %v3458
    %v3521 = vpack.c.b16 %v3461, %v3460
    %v3522 = vpack.c.b16 %v3463, %v3462
    %v3523 = vpack.c.b16 %v3465, %v3464
    %v3524 = vpack.c.b16 %v3467, %v3466
    %v3525 = vpack.c.b16 %v3469, %v3468
    %v3526 = vpack.c.b16 %v3471, %v3470
    %v3527 = vpack.c.b16 %v3473, %v3472
    %v3528 = vpack.c.b16 %v3475, %v3474
    %v3529 = vpack.c.b16 %v3477, %v3476
    %v3530 = vpack.c.b16 %v3479, %v3478
    %v3531 = vpack.c.b16 %v3481, %v3480
    %v3532 = vpack.c.b16 %v3483, %v3482
    %v3533 = vpack.c.b16 %v3485, %v3484
    %v3534 = vpack.c.b16 %v3487, %v3486
    %v3535 = vpack.c.b16 %v3489, %v3488
    %v3536 = vpack.c.b16 %v3491, %v3490
    %v3537 = vpack.c.b16 %v3493, %v3492
    %v3538 = vpack.c.b16 %v3495, %v3494
    %v3539 = vpack.c.b16 %v3497, %v3496
    %v3540 = vpack.c.b16 %v3499, %v3498
    %v3541 = vpack.c.b16 %v3501, %v3500
    %v3542 = vpack.c.b16 %v3503, %v3502
    %v3543 = vpack.c.b16 %v3505, %v3504
    %v3544 = vpack.c.b16 %v3507, %v3506
    %v3545 = vpack.c.b16 %v3509, %v3508
    %v3546 = vpack.c.b16 %v3511, %v3510
    %v3547 = vpack.c.b16 %v3513, %v3512
    %v3548 = vpack.c.b16 %v3515, %v3514
    %v3549 = vpack.c.b16 %v3517, %v3516
    %3582 = vmatprep.subr.bf16.mxu0 0
    %3583 = vmatpush1.bf16.msra.mxu0 %v3518
    %3584 = vmatprep.subr.bf16.mxu0 0
    %3585 = vmatpush1.bf16.msra.mxu0 %v3519
    %3586 = vmatprep.subr.bf16.mxu0 0
    %3587 = vmatpush1.bf16.msra.mxu0 %v3520
    %3588 = vmatprep.subr.bf16.mxu0 0
    %3589 = vmatpush1.bf16.msra.mxu0 %v3521
    %3590 = vmatprep.subr.bf16.mxu0 0
    %3591 = vmatpush1.bf16.msra.mxu0 %v3522
    %3592 = vmatprep.subr.bf16.mxu0 0
    %3593 = vmatpush1.bf16.msra.mxu0 %v3523
    %3594 = vmatprep.subr.bf16.mxu0 0
    %3595 = vmatpush1.bf16.msra.mxu0 %v3524
    %3596 = vmatprep.subr.bf16.mxu0 0
    %3597 = vmatpush1.bf16.msra.mxu0 %v3525
    %3598 = vmatprep.subr.bf16.mxu0 0
    %3599 = vmatpush1.bf16.msra.mxu0 %v3526
    %3600 = vmatprep.subr.bf16.mxu0 0
    %3601 = vmatpush1.bf16.msra.mxu0 %v3527
    %3602 = vmatprep.subr.bf16.mxu0 0
    %3603 = vmatpush1.bf16.msra.mxu0 %v3528
    %3604 = vmatprep.subr.bf16.mxu0 0
    %3605 = vmatpush1.bf16.msra.mxu0 %v3529
    %3606 = vmatprep.subr.bf16.mxu0 0
    %3607 = vmatpush1.bf16.msra.mxu0 %v3530
    %3608 = vmatprep.subr.bf16.mxu0 0
    %3609 = vmatpush1.bf16.msra.mxu0 %v3531
    %3610 = vmatprep.subr.bf16.mxu0 0
    %3611 = vmatpush1.bf16.msra.mxu0 %v3532
    %3612 = vmatprep.subr.bf16.mxu0 0
    %3613 = vmatpush1.bf16.msra.mxu0 %v3533
    %3614 = vmatprep.mubr.bf16.mxu0 %v2778
    %3615 = vmatmul.mubr.bf16.gmra.mrb[0].mxu0 %v2777
    %v3616 = vpop.f32.mrb[0].mxu0
    %v3617 = vadd.f32 %v3385, %v3616
    %v3618 = vpop.f32.mrb[0].mxu0
    %v3619 = vpop.f32.mrb[0].mxu0
    %v3620 = vpop.f32.mrb[0].mxu0
    %3621 = vdwg.mxu0
    %3622 = vmatprep.subr.bf16.mxu0 0
    %3623 = vmatpush1.bf16.msra.mxu0 %v3534
    %3624 = vmatprep.subr.bf16.mxu0 0
    %3625 = vmatpush1.bf16.msra.mxu0 %v3535
    %3626 = vmatprep.subr.bf16.mxu0 0
    %3627 = vmatpush1.bf16.msra.mxu0 %v3536
    %3628 = vmatprep.subr.bf16.mxu0 0
    %3629 = vmatpush1.bf16.msra.mxu0 %v3537
    %3630 = vmatprep.subr.bf16.mxu0 0
    %3631 = vmatpush1.bf16.msra.mxu0 %v3538
    %3632 = vmatprep.subr.bf16.mxu0 0
    %3633 = vmatpush1.bf16.msra.mxu0 %v3539
    %3634 = vmatprep.subr.bf16.mxu0 0
    %3635 = vmatpush1.bf16.msra.mxu0 %v3540
    %3636 = vmatprep.subr.bf16.mxu0 0
    %3637 = vmatpush1.bf16.msra.mxu0 %v3541
    %3638 = vmatprep.subr.bf16.mxu0 0
    %3639 = vmatpush1.bf16.msra.mxu0 %v3542
    %3640 = vmatprep.subr.bf16.mxu0 0
    %3641 = vmatpush1.bf16.msra.mxu0 %v3543
    %3642 = vmatprep.subr.bf16.mxu0 0
    %3643 = vmatpush1.bf16.msra.mxu0 %v3544
    %3644 = vmatprep.subr.bf16.mxu0 0
    %3645 = vmatpush1.bf16.msra.mxu0 %v3545
    %3646 = vmatprep.subr.bf16.mxu0 0
    %3647 = vmatpush1.bf16.msra.mxu0 %v3546
    %3648 = vmatprep.subr.bf16.mxu0 0
    %3649 = vmatpush1.bf16.msra.mxu0 %v3547
    %3650 = vmatprep.subr.bf16.mxu0 0
    %3651 = vmatpush1.bf16.msra.mxu0 %v3548
    %3652 = vmatprep.subr.bf16.mxu0 0
    %3653 = vmatpush1.bf16.msra.mxu0 %v3549
    %3654 = vmatprep.mubr.bf16.mxu0 %v2780
    %3655 = vmatmul.mubr.bf16.gmra.mrb[0].mxu0 %v2779
    %v3656 = vpop.f32.mrb[0].mxu0
    %v3657 = vadd.f32 %v3617, %v3656
    %v3658 = vpop.f32.mrb[0].mxu0
    %v3659 = vpop.f32.mrb[0].mxu0
    %v3660 = vpop.f32.mrb[0].mxu0
    %3661 = vdwg.mxu0
    %v3662 = vld [vmem:[%s2568 + $0x20] sm:$0xff]
    %v3663 = vld [vmem:[%s2568 + $0x28] sm:$0xff]
    %v3664 = vld [vmem:[%s2568 + $0x60] sm:$0xff]
    %v3665 = vld [vmem:[%s2568 + $0x68] sm:$0xff]
    %v3666 = vld [vmem:[%s2568 + $0xa0] sm:$0xff]
    %v3667 = vld [vmem:[%s2568 + $0xa8] sm:$0xff]
    %v3668 = vld [vmem:[%s2568 + $0xe0] sm:$0xff]
    %v3669 = vld [vmem:[%s2568 + $0xe8] sm:$0xff]
    %v3670 = vld [vmem:[%s2568 + $0x120] sm:$0xff]
    %v3671 = vld [vmem:[%s2568 + $0x128] sm:$0xff]
    %v3672 = vld [vmem:[%s2568 + $0x160] sm:$0xff]
    %v3673 = vld [vmem:[%s2568 + $0x168] sm:$0xff]
    %v3674 = vld [vmem:[%s2568 + $0x1a0] sm:$0xff]
    %v3675 = vld [vmem:[%s2568 + $0x1a8] sm:$0xff]
    %v3676 = vld [vmem:[%s2568 + $0x1e0] sm:$0xff]
    %v3677 = vld [vmem:[%s2568 + $0x1e8] sm:$0xff]
    %v3678 = vld [vmem:[%s2585 + $0x8] sm:$0xf]
    %v3680 = vlaneseq
    %v3681 = vshrl.u32 %v3680, 7
    %v3682 = vsub.s32 0, %v3681
    %v3683 = vrot.slane %v3678, %v3682
    %v3684 = vlaneseq
    %v3685 = vshrl.u32 %v3684, 7
    %v3686 = vsub.s32 1, %v3685
    %v3687 = vrot.slane %v3678, %v3686
    %v3688 = vlaneseq
    %v3689 = vshrl.u32 %v3688, 7
    %v3690 = vsub.s32 2, %v3689
    %v3691 = vrot.slane %v3678, %v3690
    %v3692 = vlaneseq
    %v3693 = vshrl.u32 %v3692, 7
    %v3694 = vsub.s32 3, %v3693
    %v3695 = vrot.slane %v3678, %v3694
    %v3716 = vunpack.c.l.b16 %v3662
    %v3717 = vunpack.c.h.b16 %v3662
    %v3718 = vunpack.c.l.b16 %v3663
    %v3719 = vunpack.c.h.b16 %v3663
    %v3720 = vunpack.c.l.b16 %v3664
    %v3721 = vunpack.c.h.b16 %v3664
    %v3722 = vunpack.c.l.b16 %v3665
    %v3723 = vunpack.c.h.b16 %v3665
    %v3724 = vunpack.c.l.b16 %v3666
    %v3725 = vunpack.c.h.b16 %v3666
    %v3726 = vunpack.c.l.b16 %v3667
    %v3727 = vunpack.c.h.b16 %v3667
    %v3728 = vunpack.c.l.b16 %v3668
    %v3729 = vunpack.c.h.b16 %v3668
    %v3730 = vunpack.c.l.b16 %v3669
    %v3731 = vunpack.c.h.b16 %v3669
    %v3732 = vunpack.c.l.b16 %v3670
    %v3733 = vunpack.c.h.b16 %v3670
    %v3734 = vunpack.c.l.b16 %v3671
    %v3735 = vunpack.c.h.b16 %v3671
    %v3736 = vunpack.c.l.b16 %v3672
    %v3737 = vunpack.c.h.b16 %v3672
    %v3738 = vunpack.c.l.b16 %v3673
    %v3739 = vunpack.c.h.b16 %v3673
    %v3740 = vunpack.c.l.b16 %v3674
    %v3741 = vunpack.c.h.b16 %v3674
    %v3742 = vunpack.c.l.b16 %v3675
    %v3743 = vunpack.c.h.b16 %v3675
    %v3744 = vunpack.c.l.b16 %v3676
    %v3745 = vunpack.c.h.b16 %v3676
    %v3746 = vunpack.c.l.b16 %v3677
    %v3747 = vunpack.c.h.b16 %v3677
    %v3748 = vpack.c.b16 %v3720, %v3716
    %v3749 = vpack.c.b16 %v3721, %v3717
    %v3750 = vpack.c.b16 %v3722, %v3718
    %v3751 = vpack.c.b16 %v3723, %v3719
    %v3752 = vpack.c.b16 %v3728, %v3724
    %v3753 = vpack.c.b16 %v3729, %v3725
    %v3754 = vpack.c.b16 %v3730, %v3726
    %v3755 = vpack.c.b16 %v3731, %v3727
    %v3756 = vpack.c.b16 %v3736, %v3732
    %v3757 = vpack.c.b16 %v3737, %v3733
    %v3758 = vpack.c.b16 %v3738, %v3734
    %v3759 = vpack.c.b16 %v3739, %v3735
    %v3760 = vpack.c.b16 %v3744, %v3740
    %v3761 = vpack.c.b16 %v3745, %v3741
    %v3762 = vpack.c.b16 %v3746, %v3742
    %v3763 = vpack.c.b16 %v3747, %v3743
    %3780 = vmatprep.subr.bf16.mxu0 %v3749
    %3781 = vmatpush1.bf16.msra.mxu0 %v3748
    %3782 = vmatprep.subr.bf16.mxu0 %v3753
    %3783 = vmatpush1.bf16.msra.mxu0 %v3752
    %3784 = vmatprep.subr.bf16.mxu0 %v3757
    %3785 = vmatpush1.bf16.msra.mxu0 %v3756
    %3786 = vmatprep.subr.bf16.mxu0 %v3761
    %3787 = vmatpush1.bf16.msra.mxu0 %v3760
    %3788 = vmatprep.subr.bf16.mxu0 0
    %3789 = vmatpush1.bf16.msra.mxu0 0
    %3790 = vmatprep.subr.bf16.mxu0 0
    %3791 = vmatpush1.bf16.msra.mxu0 0
    %3792 = vmatprep.subr.bf16.mxu0 0
    %3793 = vmatpush1.bf16.msra.mxu0 0
    %3794 = vmatprep.subr.bf16.mxu0 0
    %3795 = vmatpush1.bf16.msra.mxu0 0
    %3796 = vmatprep.subr.bf16.mxu0 0
    %3797 = vmatpush1.bf16.msra.mxu0 0
    %3798 = vmatprep.subr.bf16.mxu0 0
    %3799 = vmatpush1.bf16.msra.mxu0 0
    %3800 = vmatprep.subr.bf16.mxu0 0
    %3801 = vmatpush1.bf16.msra.mxu0 0
    %3802 = vmatprep.subr.bf16.mxu0 0
    %3803 = vmatpush1.bf16.msra.mxu0 0
    %3804 = vmatprep.subr.bf16.mxu0 0
    %3805 = vmatpush1.bf16.msra.mxu0 0
    %3806 = vmatprep.subr.bf16.mxu0 0
    %3807 = vmatpush1.bf16.msra.mxu0 0
    %3808 = vmatprep.subr.bf16.mxu0 0
    %3809 = vmatpush1.bf16.msra.mxu0 0
    %3810 = vmatprep.subr.bf16.mxu0 0
    %3811 = vmatpush1.bf16.msra.mxu0 0
    %3812 = vmatprep.mubr.bf16.mxu0 0
    %3813 = vmatmul.mubr.bf16.gmra.mrb[0].mxu0 %v2689
    %v3814 = vpop.f32.mrb[0].mxu0
    %v3815 = vadd.f32 %v3683, %v3814
    %v3816 = vpop.f32.mrb[0].mxu0
    %v3817 = vadd.f32 %v3687, %v3816
    %v3818 = vpop.f32.mrb[0].mxu0
    %v3819 = vpop.f32.mrb[0].mxu0
    %3820 = vdwg.mxu0
    %3821 = vmatprep.subr.bf16.mxu0 %v3751
    %3822 = vmatpush1.bf16.msra.mxu0 %v3750
    %3823 = vmatprep.subr.bf16.mxu0 %v3755
    %3824 = vmatpush1.bf16.msra.mxu0 %v3754
    %3825 = vmatprep.subr.bf16.mxu0 %v3759
    %3826 = vmatpush1.bf16.msra.mxu0 %v3758
    %3827 = vmatprep.subr.bf16.mxu0 %v3763
    %3828 = vmatpush1.bf16.msra.mxu0 %v3762
    %3829 = vmatprep.subr.bf16.mxu0 0
    %3830 = vmatpush1.bf16.msra.mxu0 0
    %3831 = vmatprep.subr.bf16.mxu0 0
    %3832 = vmatpush1.bf16.msra.mxu0 0
    %3833 = vmatprep.subr.bf16.mxu0 0
    %3834 = vmatpush1.bf16.msra.mxu0 0
    %3835 = vmatprep.subr.bf16.mxu0 0
    %3836 = vmatpush1.bf16.msra.mxu0 0
    %3837 = vmatprep.subr.bf16.mxu0 0
    %3838 = vmatpush1.bf16.msra.mxu0 0
    %3839 = vmatprep.subr.bf16.mxu0 0
    %3840 = vmatpush1.bf16.msra.mxu0 0
    %3841 = vmatprep.subr.bf16.mxu0 0
    %3842 = vmatpush1.bf16.msra.mxu0 0
    %3843 = vmatprep.subr.bf16.mxu0 0
    %3844 = vmatpush1.bf16.msra.mxu0 0
    %3845 = vmatprep.subr.bf16.mxu0 0
    %3846 = vmatpush1.bf16.msra.mxu0 0
    %3847 = vmatprep.subr.bf16.mxu0 0
    %3848 = vmatpush1.bf16.msra.mxu0 0
    %3849 = vmatprep.subr.bf16.mxu0 0
    %3850 = vmatpush1.bf16.msra.mxu0 0
    %3851 = vmatprep.subr.bf16.mxu0 0
    %3852 = vmatpush1.bf16.msra.mxu0 0
    %3853 = vmatprep.mubr.bf16.mxu0 0
    %3854 = vmatmul.mubr.bf16.gmra.mrb[0].mxu0 %v2689
    %v3855 = vpop.f32.mrb[0].mxu0
    %v3856 = vadd.f32 %v3691, %v3855
    %v3857 = vpop.f32.mrb[0].mxu0
    %v3858 = vadd.f32 %v3695, %v3857
    %v3859 = vpop.f32.mrb[0].mxu0
    %v3860 = vpop.f32.mrb[0].mxu0
    %3861 = vdwg.mxu0
    %v3862 = vmax.f32 %v3815, 0.0
    %v3863 = vmax.f32 %v3817, 0.0
    %v3864 = vmax.f32 %v3856, 0.0
    %v3865 = vmax.f32 %v3858, 0.0
    %v3866 = vpack.c.bf16 %v3862, %v3862
    %v3867 = vpack.c.bf16 %v3863, %v3863
    %v3868 = vpack.c.bf16 %v3864, %v3864
    %v3869 = vpack.c.bf16 %v3865, %v3865
    %v3870 = vld [vmem:[%s2781 + $0x200] sm:$0xf]
    %v3871 = vld [vmem:[%s2781 + $0x204] sm:$0xf]
    %v3872 = vld [vmem:[%s2781 + $0x208] sm:$0xf]
    %v3873 = vld [vmem:[%s2781 + $0x20c] sm:$0xf]
    %v3874 = vld [vmem:[%s2781 + $0x210] sm:$0xf]
    %v3875 = vld [vmem:[%s2781 + $0x214] sm:$0xf]
    %v3876 = vld [vmem:[%s2781 + $0x218] sm:$0xf]
    %v3877 = vld [vmem:[%s2781 + $0x21c] sm:$0xf]
    %v3878 = vld [vmem:[%s2781 + $0x220] sm:$0xf]
    %v3879 = vld [vmem:[%s2781 + $0x224] sm:$0xf]
    %v3880 = vld [vmem:[%s2781 + $0x228] sm:$0xf]
    %v3881 = vld [vmem:[%s2781 + $0x22c] sm:$0xf]
    %v3882 = vld [vmem:[%s2781 + $0x230] sm:$0xf]
    %v3883 = vld [vmem:[%s2781 + $0x234] sm:$0xf]
    %v3884 = vld [vmem:[%s2781 + $0x238] sm:$0xf]
    %v3885 = vld [vmem:[%s2781 + $0x23c] sm:$0xf]
    %v3886 = vld [vmem:[%s2781 + $0x240] sm:$0xf]
    %v3887 = vld [vmem:[%s2781 + $0x244] sm:$0xf]
    %v3888 = vld [vmem:[%s2781 + $0x248] sm:$0xf]
    %v3889 = vld [vmem:[%s2781 + $0x24c] sm:$0xf]
    %v3890 = vld [vmem:[%s2781 + $0x250] sm:$0xf]
    %v3891 = vld [vmem:[%s2781 + $0x254] sm:$0xf]
    %v3892 = vld [vmem:[%s2781 + $0x258] sm:$0xf]
    %v3893 = vld [vmem:[%s2781 + $0x25c] sm:$0xf]
    %v3894 = vld [vmem:[%s2781 + $0x260] sm:$0xf]
    %v3895 = vld [vmem:[%s2781 + $0x264] sm:$0xf]
    %v3896 = vld [vmem:[%s2781 + $0x268] sm:$0xf]
    %v3897 = vld [vmem:[%s2781 + $0x26c] sm:$0xf]
    %v3898 = vld [vmem:[%s2781 + $0x270] sm:$0xf]
    %v3899 = vld [vmem:[%s2781 + $0x274] sm:$0xf]
    %v3900 = vld [vmem:[%s2781 + $0x278] sm:$0xf]
    %v3901 = vld [vmem:[%s2781 + $0x27c] sm:$0xf]
    %v3902 = vld [vmem:[%s2781 + $0x280] sm:$0xf]
    %v3903 = vld [vmem:[%s2781 + $0x284] sm:$0xf]
    %v3904 = vld [vmem:[%s2781 + $0x288] sm:$0xf]
    %v3905 = vld [vmem:[%s2781 + $0x28c] sm:$0xf]
    %v3906 = vld [vmem:[%s2781 + $0x290] sm:$0xf]
    %v3907 = vld [vmem:[%s2781 + $0x294] sm:$0xf]
    %v3908 = vld [vmem:[%s2781 + $0x298] sm:$0xf]
    %v3909 = vld [vmem:[%s2781 + $0x29c] sm:$0xf]
    %v3910 = vld [vmem:[%s2781 + $0x2a0] sm:$0xf]
    %v3911 = vld [vmem:[%s2781 + $0x2a4] sm:$0xf]
    %v3912 = vld [vmem:[%s2781 + $0x2a8] sm:$0xf]
    %v3913 = vld [vmem:[%s2781 + $0x2ac] sm:$0xf]
    %v3914 = vld [vmem:[%s2781 + $0x2b0] sm:$0xf]
    %v3915 = vld [vmem:[%s2781 + $0x2b4] sm:$0xf]
    %v3916 = vld [vmem:[%s2781 + $0x2b8] sm:$0xf]
    %v3917 = vld [vmem:[%s2781 + $0x2bc] sm:$0xf]
    %v3918 = vld [vmem:[%s2781 + $0x2c0] sm:$0xf]
    %v3919 = vld [vmem:[%s2781 + $0x2c4] sm:$0xf]
    %v3920 = vld [vmem:[%s2781 + $0x2c8] sm:$0xf]
    %v3921 = vld [vmem:[%s2781 + $0x2cc] sm:$0xf]
    %v3922 = vld [vmem:[%s2781 + $0x2d0] sm:$0xf]
    %v3923 = vld [vmem:[%s2781 + $0x2d4] sm:$0xf]
    %v3924 = vld [vmem:[%s2781 + $0x2d8] sm:$0xf]
    %v3925 = vld [vmem:[%s2781 + $0x2dc] sm:$0xf]
    %v3926 = vld [vmem:[%s2781 + $0x2e0] sm:$0xf]
    %v3927 = vld [vmem:[%s2781 + $0x2e4] sm:$0xf]
    %v3928 = vld [vmem:[%s2781 + $0x2e8] sm:$0xf]
    %v3929 = vld [vmem:[%s2781 + $0x2ec] sm:$0xf]
    %v3930 = vld [vmem:[%s2781 + $0x2f0] sm:$0xf]
    %v3931 = vld [vmem:[%s2781 + $0x2f4] sm:$0xf]
    %v3932 = vld [vmem:[%s2781 + $0x2f8] sm:$0xf]
    %v3933 = vld [vmem:[%s2781 + $0x2fc] sm:$0xf]
    %v3998 = vunpack.c.l.b16 %v3870
    %v3999 = vunpack.c.l.b16 %v3871
    %v4000 = vunpack.c.l.b16 %v3872
    %v4001 = vunpack.c.l.b16 %v3873
    %v4002 = vunpack.c.l.b16 %v3874
    %v4003 = vunpack.c.l.b16 %v3875
    %v4004 = vunpack.c.l.b16 %v3876
    %v4005 = vunpack.c.l.b16 %v3877
    %v4006 = vunpack.c.l.b16 %v3878
    %v4007 = vunpack.c.l.b16 %v3879
    %v4008 = vunpack.c.l.b16 %v3880
    %v4009 = vunpack.c.l.b16 %v3881
    %v4010 = vunpack.c.l.b16 %v3882
    %v4011 = vunpack.c.l.b16 %v3883
    %v4012 = vunpack.c.l.b16 %v3884
    %v4013 = vunpack.c.l.b16 %v3885
    %v4014 = vunpack.c.l.b16 %v3886
    %v4015 = vunpack.c.l.b16 %v3887
    %v4016 = vunpack.c.l.b16 %v3888
    %v4017 = vunpack.c.l.b16 %v3889
    %v4018 = vunpack.c.l.b16 %v3890
    %v4019 = vunpack.c.l.b16 %v3891
    %v4020 = vunpack.c.l.b16 %v3892
    %v4021 = vunpack.c.l.b16 %v3893
    %v4022 = vunpack.c.l.b16 %v3894
    %v4023 = vunpack.c.l.b16 %v3895
    %v4024 = vunpack.c.l.b16 %v3896
    %v4025 = vunpack.c.l.b16 %v3897
    %v4026 = vunpack.c.l.b16 %v3898
    %v4027 = vunpack.c.l.b16 %v3899
    %v4028 = vunpack.c.l.b16 %v3900
    %v4029 = vunpack.c.l.b16 %v3901
    %v4030 = vunpack.c.l.b16 %v3902
    %v4031 = vunpack.c.l.b16 %v3903
    %v4032 = vunpack.c.l.b16 %v3904
    %v4033 = vunpack.c.l.b16 %v3905
    %v4034 = vunpack.c.l.b16 %v3906
    %v4035 = vunpack.c.l.b16 %v3907
    %v4036 = vunpack.c.l.b16 %v3908
    %v4037 = vunpack.c.l.b16 %v3909
    %v4038 = vunpack.c.l.b16 %v3910
    %v4039 = vunpack.c.l.b16 %v3911
    %v4040 = vunpack.c.l.b16 %v3912
    %v4041 = vunpack.c.l.b16 %v3913
    %v4042 = vunpack.c.l.b16 %v3914
    %v4043 = vunpack.c.l.b16 %v3915
    %v4044 = vunpack.c.l.b16 %v3916
    %v4045 = vunpack.c.l.b16 %v3917
    %v4046 = vunpack.c.l.b16 %v3918
    %v4047 = vunpack.c.l.b16 %v3919
    %v4048 = vunpack.c.l.b16 %v3920
    %v4049 = vunpack.c.l.b16 %v3921
    %v4050 = vunpack.c.l.b16 %v3922
    %v4051 = vunpack.c.l.b16 %v3923
    %v4052 = vunpack.c.l.b16 %v3924
    %v4053 = vunpack.c.l.b16 %v3925
    %v4054 = vunpack.c.l.b16 %v3926
    %v4055 = vunpack.c.l.b16 %v3927
    %v4056 = vunpack.c.l.b16 %v3928
    %v4057 = vunpack.c.l.b16 %v3929
    %v4058 = vunpack.c.l.b16 %v3930
    %v4059 = vunpack.c.l.b16 %v3931
    %v4060 = vunpack.c.l.b16 %v3932
    %v4061 = vunpack.c.l.b16 %v3933
    %v4062 = vpack.c.b16 %v3999, %v3998
    %v4063 = vpack.c.b16 %v4001, %v4000
    %v4064 = vpack.c.b16 %v4003, %v4002
    %v4065 = vpack.c.b16 %v4005, %v4004
    %v4066 = vpack.c.b16 %v4007, %v4006
    %v4067 = vpack.c.b16 %v4009, %v4008
    %v4068 = vpack.c.b16 %v4011, %v4010
    %v4069 = vpack.c.b16 %v4013, %v4012
    %v4070 = vpack.c.b16 %v4015, %v4014
    %v4071 = vpack.c.b16 %v4017, %v4016
    %v4072 = vpack.c.b16 %v4019, %v4018
    %v4073 = vpack.c.b16 %v4021, %v4020
    %v4074 = vpack.c.b16 %v4023, %v4022
    %v4075 = vpack.c.b16 %v4025, %v4024
    %v4076 = vpack.c.b16 %v4027, %v4026
    %v4077 = vpack.c.b16 %v4029, %v4028
    %v4078 = vpack.c.b16 %v4031, %v4030
    %v4079 = vpack.c.b16 %v4033, %v4032
    %v4080 = vpack.c.b16 %v4035, %v4034
    %v4081 = vpack.c.b16 %v4037, %v4036
    %v4082 = vpack.c.b16 %v4039, %v4038
    %v4083 = vpack.c.b16 %v4041, %v4040
    %v4084 = vpack.c.b16 %v4043, %v4042
    %v4085 = vpack.c.b16 %v4045, %v4044
    %v4086 = vpack.c.b16 %v4047, %v4046
    %v4087 = vpack.c.b16 %v4049, %v4048
    %v4088 = vpack.c.b16 %v4051, %v4050
    %v4089 = vpack.c.b16 %v4053, %v4052
    %v4090 = vpack.c.b16 %v4055, %v4054
    %v4091 = vpack.c.b16 %v4057, %v4056
    %v4092 = vpack.c.b16 %v4059, %v4058
    %v4093 = vpack.c.b16 %v4061, %v4060
    %4126 = vmatprep.subr.bf16.mxu0 0
    %4127 = vmatpush1.bf16.msra.mxu0 %v4062
    %4128 = vmatprep.subr.bf16.mxu0 0
    %4129 = vmatpush1.bf16.msra.mxu0 %v4063
    %4130 = vmatprep.subr.bf16.mxu0 0
    %4131 = vmatpush1.bf16.msra.mxu0 %v4064
    %4132 = vmatprep.subr.bf16.mxu0 0
    %4133 = vmatpush1.bf16.msra.mxu0 %v4065
    %4134 = vmatprep.subr.bf16.mxu0 0
    %4135 = vmatpush1.bf16.msra.mxu0 %v4066
    %4136 = vmatprep.subr.bf16.mxu0 0
    %4137 = vmatpush1.bf16.msra.mxu0 %v4067
    %4138 = vmatprep.subr.bf16.mxu0 0
    %4139 = vmatpush1.bf16.msra.mxu0 %v4068
    %4140 = vmatprep.subr.bf16.mxu0 0
    %4141 = vmatpush1.bf16.msra.mxu0 %v4069
    %4142 = vmatprep.subr.bf16.mxu0 0
    %4143 = vmatpush1.bf16.msra.mxu0 %v4070
    %4144 = vmatprep.subr.bf16.mxu0 0
    %4145 = vmatpush1.bf16.msra.mxu0 %v4071
    %4146 = vmatprep.subr.bf16.mxu0 0
    %4147 = vmatpush1.bf16.msra.mxu0 %v4072
    %4148 = vmatprep.subr.bf16.mxu0 0
    %4149 = vmatpush1.bf16.msra.mxu0 %v4073
    %4150 = vmatprep.subr.bf16.mxu0 0
    %4151 = vmatpush1.bf16.msra.mxu0 %v4074
    %4152 = vmatprep.subr.bf16.mxu0 0
    %4153 = vmatpush1.bf16.msra.mxu0 %v4075
    %4154 = vmatprep.subr.bf16.mxu0 0
    %4155 = vmatpush1.bf16.msra.mxu0 %v4076
    %4156 = vmatprep.subr.bf16.mxu0 0
    %4157 = vmatpush1.bf16.msra.mxu0 %v4077
    %4158 = vmatprep.mubr.bf16.mxu0 %v3867
    %4159 = vmatmul.mubr.bf16.gmra.mrb[0].mxu0 %v3866
    %v4160 = vpop.f32.mrb[0].mxu0
    %v4161 = vadd.f32 0.0, %v4160
    %v4162 = vpop.f32.mrb[0].mxu0
    %v4163 = vpop.f32.mrb[0].mxu0
    %v4164 = vpop.f32.mrb[0].mxu0
    %4165 = vdwg.mxu0
    %4166 = vmatprep.subr.bf16.mxu0 0
    %4167 = vmatpush1.bf16.msra.mxu0 %v4078
    %4168 = vmatprep.subr.bf16.mxu0 0
    %4169 = vmatpush1.bf16.msra.mxu0 %v4079
    %4170 = vmatprep.subr.bf16.mxu0 0
    %4171 = vmatpush1.bf16.msra.mxu0 %v4080
    %4172 = vmatprep.subr.bf16.mxu0 0
    %4173 = vmatpush1.bf16.msra.mxu0 %v4081
    %4174 = vmatprep.subr.bf16.mxu0 0
    %4175 = vmatpush1.bf16.msra.mxu0 %v4082
    %4176 = vmatprep.subr.bf16.mxu0 0
    %4177 = vmatpush1.bf16.msra.mxu0 %v4083
    %4178 = vmatprep.subr.bf16.mxu0 0
    %4179 = vmatpush1.bf16.msra.mxu0 %v4084
    %4180 = vmatprep.subr.bf16.mxu0 0
    %4181 = vmatpush1.bf16.msra.mxu0 %v4085
    %4182 = vmatprep.subr.bf16.mxu0 0
    %4183 = vmatpush1.bf16.msra.mxu0 %v4086
    %4184 = vmatprep.subr.bf16.mxu0 0
    %4185 = vmatpush1.bf16.msra.mxu0 %v4087
    %4186 = vmatprep.subr.bf16.mxu0 0
    %4187 = vmatpush1.bf16.msra.mxu0 %v4088
    %4188 = vmatprep.subr.bf16.mxu0 0
    %4189 = vmatpush1.bf16.msra.mxu0 %v4089
    %4190 = vmatprep.subr.bf16.mxu0 0
    %4191 = vmatpush1.bf16.msra.mxu0 %v4090
    %4192 = vmatprep.subr.bf16.mxu0 0
    %4193 = vmatpush1.bf16.msra.mxu0 %v4091
    %4194 = vmatprep.subr.bf16.mxu0 0
    %4195 = vmatpush1.bf16.msra.mxu0 %v4092
    %4196 = vmatprep.subr.bf16.mxu0 0
    %4197 = vmatpush1.bf16.msra.mxu0 %v4093
    %4198 = vmatprep.mubr.bf16.mxu0 %v3869
    %4199 = vmatmul.mubr.bf16.gmra.mrb[0].mxu0 %v3868
    %v4200 = vpop.f32.mrb[0].mxu0
    %v4201 = vadd.f32 %v4161, %v4200
    %v4202 = vpop.f32.mrb[0].mxu0
    %v4203 = vpop.f32.mrb[0].mxu0
    %v4204 = vpop.f32.mrb[0].mxu0
    %4205 = vdwg.mxu0
    %v4206 = vadd.f32 %v3657, %v4201
    %v4207 = vld [vmem:[%s2568 + $0x30] sm:$0xff]
    %v4208 = vld [vmem:[%s2568 + $0x38] sm:$0xff]
    %v4209 = vld [vmem:[%s2568 + $0x70] sm:$0xff]
    %v4210 = vld [vmem:[%s2568 + $0x78] sm:$0xff]
    %v4211 = vld [vmem:[%s2568 + $0xb0] sm:$0xff]
    %v4212 = vld [vmem:[%s2568 + $0xb8] sm:$0xff]
    %v4213 = vld [vmem:[%s2568 + $0xf0] sm:$0xff]
    %v4214 = vld [vmem:[%s2568 + $0xf8] sm:$0xff]
    %v4215 = vld [vmem:[%s2568 + $0x130] sm:$0xff]
    %v4216 = vld [vmem:[%s2568 + $0x138] sm:$0xff]
    %v4217 = vld [vmem:[%s2568 + $0x170] sm:$0xff]
    %v4218 = vld [vmem:[%s2568 + $0x178] sm:$0xff]
    %v4219 = vld [vmem:[%s2568 + $0x1b0] sm:$0xff]
    %v4220 = vld [vmem:[%s2568 + $0x1b8] sm:$0xff]
    %v4221 = vld [vmem:[%s2568 + $0x1f0] sm:$0xff]
    %v4222 = vld [vmem:[%s2568 + $0x1f8] sm:$0xff]
    %v4223 = vld [vmem:[%s2585 + $0xc] sm:$0xf]
    %v4225 = vlaneseq
    %v4226 = vshrl.u32 %v4225, 7
    %v4227 = vsub.s32 0, %v4226
    %v4228 = vrot.slane %v4223, %v4227
    %v4229 = vlaneseq
    %v4230 = vshrl.u32 %v4229, 7
    %v4231 = vsub.s32 1, %v4230
    %v4232 = vrot.slane %v4223, %v4231
    %v4233 = vlaneseq
    %v4234 = vshrl.u32 %v4233, 7
    %v4235 = vsub.s32 2, %v4234
    %v4236 = vrot.slane %v4223, %v4235
    %v4237 = vlaneseq
    %v4238 = vshrl.u32 %v4237, 7
    %v4239 = vsub.s32 3, %v4238
    %v4240 = vrot.slane %v4223, %v4239
    %v4261 = vunpack.c.l.b16 %v4207
    %v4262 = vunpack.c.h.b16 %v4207
    %v4263 = vunpack.c.l.b16 %v4208
    %v4264 = vunpack.c.h.b16 %v4208
    %v4265 = vunpack.c.l.b16 %v4209
    %v4266 = vunpack.c.h.b16 %v4209
    %v4267 = vunpack.c.l.b16 %v4210
    %v4268 = vunpack.c.h.b16 %v4210
    %v4269 = vunpack.c.l.b16 %v4211
    %v4270 = vunpack.c.h.b16 %v4211
    %v4271 = vunpack.c.l.b16 %v4212
    %v4272 = vunpack.c.h.b16 %v4212
    %v4273 = vunpack.c.l.b16 %v4213
    %v4274 = vunpack.c.h.b16 %v4213
    %v4275 = vunpack.c.l.b16 %v4214
    %v4276 = vunpack.c.h.b16 %v4214
    %v4277 = vunpack.c.l.b16 %v4215
    %v4278 = vunpack.c.h.b16 %v4215
    %v4279 = vunpack.c.l.b16 %v4216
    %v4280 = vunpack.c.h.b16 %v4216
    %v4281 = vunpack.c.l.b16 %v4217
    %v4282 = vunpack.c.h.b16 %v4217
    %v4283 = vunpack.c.l.b16 %v4218
    %v4284 = vunpack.c.h.b16 %v4218
    %v4285 = vunpack.c.l.b16 %v4219
    %v4286 = vunpack.c.h.b16 %v4219
    %v4287 = vunpack.c.l.b16 %v4220
    %v4288 = vunpack.c.h.b16 %v4220
    %v4289 = vunpack.c.l.b16 %v4221
    %v4290 = vunpack.c.h.b16 %v4221
    %v4291 = vunpack.c.l.b16 %v4222
    %v4292 = vunpack.c.h.b16 %v4222
    %v4293 = vpack.c.b16 %v4265, %v4261
    %v4294 = vpack.c.b16 %v4266, %v4262
    %v4295 = vpack.c.b16 %v4267, %v4263
    %v4296 = vpack.c.b16 %v4268, %v4264
    %v4297 = vpack.c.b16 %v4273, %v4269
    %v4298 = vpack.c.b16 %v4274, %v4270
    %v4299 = vpack.c.b16 %v4275, %v4271
    %v4300 = vpack.c.b16 %v4276, %v4272
    %v4301 = vpack.c.b16 %v4281, %v4277
    %v4302 = vpack.c.b16 %v4282, %v4278
    %v4303 = vpack.c.b16 %v4283, %v4279
    %v4304 = vpack.c.b16 %v4284, %v4280
    %v4305 = vpack.c.b16 %v4289, %v4285
    %v4306 = vpack.c.b16 %v4290, %v4286
    %v4307 = vpack.c.b16 %v4291, %v4287
    %v4308 = vpack.c.b16 %v4292, %v4288
    %4325 = vmatprep.subr.bf16.mxu0 %v4294
    %4326 = vmatpush1.bf16.msra.mxu0 %v4293
    %4327 = vmatprep.subr.bf16.mxu0 %v4298
    %4328 = vmatpush1.bf16.msra.mxu0 %v4297
    %4329 = vmatprep.subr.bf16.mxu0 %v4302
    %4330 = vmatpush1.bf16.msra.mxu0 %v4301
    %4331 = vmatprep.subr.bf16.mxu0 %v4306
    %4332 = vmatpush1.bf16.msra.mxu0 %v4305
    %4333 = vmatprep.subr.bf16.mxu0 0
    %4334 = vmatpush1.bf16.msra.mxu0 0
    %4335 = vmatprep.subr.bf16.mxu0 0
    %4336 = vmatpush1.bf16.msra.mxu0 0
    %4337 = vmatprep.subr.bf16.mxu0 0
    %4338 = vmatpush1.bf16.msra.mxu0 0
    %4339 = vmatprep.subr.bf16.mxu0 0
    %4340 = vmatpush1.bf16.msra.mxu0 0
    %4341 = vmatprep.subr.bf16.mxu0 0
    %4342 = vmatpush1.bf16.msra.mxu0 0
    %4343 = vmatprep.subr.bf16.mxu0 0
    %4344 = vmatpush1.bf16.msra.mxu0 0
    %4345 = vmatprep.subr.bf16.mxu0 0
    %4346 = vmatpush1.bf16.msra.mxu0 0
    %4347 = vmatprep.subr.bf16.mxu0 0
    %4348 = vmatpush1.bf16.msra.mxu0 0
    %4349 = vmatprep.subr.bf16.mxu0 0
    %4350 = vmatpush1.bf16.msra.mxu0 0
    %4351 = vmatprep.subr.bf16.mxu0 0
    %4352 = vmatpush1.bf16.msra.mxu0 0
    %4353 = vmatprep.subr.bf16.mxu0 0
    %4354 = vmatpush1.bf16.msra.mxu0 0
    %4355 = vmatprep.subr.bf16.mxu0 0
    %4356 = vmatpush1.bf16.msra.mxu0 0
    %4357 = vmatprep.mubr.bf16.mxu0 0
    %4358 = vmatmul.mubr.bf16.gmra.mrb[0].mxu0 %v2689
    %v4359 = vpop.f32.mrb[0].mxu0
    %v4360 = vadd.f32 %v4228, %v4359
    %v4361 = vpop.f32.mrb[0].mxu0
    %v4362 = vadd.f32 %v4232, %v4361
    %v4363 = vpop.f32.mrb[0].mxu0
    %v4364 = vpop.f32.mrb[0].mxu0
    %4365 = vdwg.mxu0
    %4366 = vmatprep.subr.bf16.mxu0 %v4296
    %4367 = vmatpush1.bf16.msra.mxu0 %v4295
    %4368 = vmatprep.subr.bf16.mxu0 %v4300
    %4369 = vmatpush1.bf16.msra.mxu0 %v4299
    %4370 = vmatprep.subr.bf16.mxu0 %v4304
    %4371 = vmatpush1.bf16.msra.mxu0 %v4303
    %4372 = vmatprep.subr.bf16.mxu0 %v4308
    %4373 = vmatpush1.bf16.msra.mxu0 %v4307
    %4374 = vmatprep.subr.bf16.mxu0 0
    %4375 = vmatpush1.bf16.msra.mxu0 0
    %4376 = vmatprep.subr.bf16.mxu0 0
    %4377 = vmatpush1.bf16.msra.mxu0 0
    %4378 = vmatprep.subr.bf16.mxu0 0
    %4379 = vmatpush1.bf16.msra.mxu0 0
    %4380 = vmatprep.subr.bf16.mxu0 0
    %4381 = vmatpush1.bf16.msra.mxu0 0
    %4382 = vmatprep.subr.bf16.mxu0 0
    %4383 = vmatpush1.bf16.msra.mxu0 0
    %4384 = vmatprep.subr.bf16.mxu0 0
    %4385 = vmatpush1.bf16.msra.mxu0 0
    %4386 = vmatprep.subr.bf16.mxu0 0
    %4387 = vmatpush1.bf16.msra.mxu0 0
    %4388 = vmatprep.subr.bf16.mxu0 0
    %4389 = vmatpush1.bf16.msra.mxu0 0
    %4390 = vmatprep.subr.bf16.mxu0 0
    %4391 = vmatpush1.bf16.msra.mxu0 0
    %4392 = vmatprep.subr.bf16.mxu0 0
    %4393 = vmatpush1.bf16.msra.mxu0 0
    %4394 = vmatprep.subr.bf16.mxu0 0
    %4395 = vmatpush1.bf16.msra.mxu0 0
    %4396 = vmatprep.subr.bf16.mxu0 0
    %4397 = vmatpush1.bf16.msra.mxu0 0
    %4398 = vmatprep.mubr.bf16.mxu0 0
    %4399 = vmatmul.mubr.bf16.gmra.mrb[0].mxu0 %v2689
    %v4400 = vpop.f32.mrb[0].mxu0
    %v4401 = vadd.f32 %v4236, %v4400
    %v4402 = vpop.f32.mrb[0].mxu0
    %v4403 = vadd.f32 %v4240, %v4402
    %v4404 = vpop.f32.mrb[0].mxu0
    %v4405 = vpop.f32.mrb[0].mxu0
    %4406 = vdwg.mxu0
    %v4407 = vmax.f32 %v4360, 0.0
    %v4408 = vmax.f32 %v4362, 0.0
    %v4409 = vmax.f32 %v4401, 0.0
    %v4410 = vmax.f32 %v4403, 0.0
    %v4411 = vpack.c.bf16 %v4407, %v4407
    %v4412 = vpack.c.bf16 %v4408, %v4408
    %v4413 = vpack.c.bf16 %v4409, %v4409
    %v4414 = vpack.c.bf16 %v4410, %v4410
    %v4415 = vld [vmem:[%s2781 + $0x300] sm:$0xf]
    %v4416 = vld [vmem:[%s2781 + $0x304] sm:$0xf]
    %v4417 = vld [vmem:[%s2781 + $0x308] sm:$0xf]
    %v4418 = vld [vmem:[%s2781 + $0x30c] sm:$0xf]
    %v4419 = vld [vmem:[%s2781 + $0x310] sm:$0xf]
    %v4420 = vld [vmem:[%s2781 + $0x314] sm:$0xf]
    %v4421 = vld [vmem:[%s2781 + $0x318] sm:$0xf]
    %v4422 = vld [vmem:[%s2781 + $0x31c] sm:$0xf]
    %v4423 = vld [vmem:[%s2781 + $0x320] sm:$0xf]
    %v4424 = vld [vmem:[%s2781 + $0x324] sm:$0xf]
    %v4425 = vld [vmem:[%s2781 + $0x328] sm:$0xf]
    %v4426 = vld [vmem:[%s2781 + $0x32c] sm:$0xf]
    %v4427 = vld [vmem:[%s2781 + $0x330] sm:$0xf]
    %v4428 = vld [vmem:[%s2781 + $0x334] sm:$0xf]
    %v4429 = vld [vmem:[%s2781 + $0x338] sm:$0xf]
    %v4430 = vld [vmem:[%s2781 + $0x33c] sm:$0xf]
    %v4431 = vld [vmem:[%s2781 + $0x340] sm:$0xf]
    %v4432 = vld [vmem:[%s2781 + $0x344] sm:$0xf]
    %v4433 = vld [vmem:[%s2781 + $0x348] sm:$0xf]
    %v4434 = vld [vmem:[%s2781 + $0x34c] sm:$0xf]
    %v4435 = vld [vmem:[%s2781 + $0x350] sm:$0xf]
    %v4436 = vld [vmem:[%s2781 + $0x354] sm:$0xf]
    %v4437 = vld [vmem:[%s2781 + $0x358] sm:$0xf]
    %v4438 = vld [vmem:[%s2781 + $0x35c] sm:$0xf]
    %v4439 = vld [vmem:[%s2781 + $0x360] sm:$0xf]
    %v4440 = vld [vmem:[%s2781 + $0x364] sm:$0xf]
    %v4441 = vld [vmem:[%s2781 + $0x368] sm:$0xf]
    %v4442 = vld [vmem:[%s2781 + $0x36c] sm:$0xf]
    %v4443 = vld [vmem:[%s2781 + $0x370] sm:$0xf]
    %v4444 = vld [vmem:[%s2781 + $0x374] sm:$0xf]
    %v4445 = vld [vmem:[%s2781 + $0x378] sm:$0xf]
    %v4446 = vld [vmem:[%s2781 + $0x37c] sm:$0xf]
    %v4447 = vld [vmem:[%s2781 + $0x380] sm:$0xf]
    %v4448 = vld [vmem:[%s2781 + $0x384] sm:$0xf]
    %v4449 = vld [vmem:[%s2781 + $0x388] sm:$0xf]
    %v4450 = vld [vmem:[%s2781 + $0x38c] sm:$0xf]
    %v4451 = vld [vmem:[%s2781 + $0x390] sm:$0xf]
    %v4452 = vld [vmem:[%s2781 + $0x394] sm:$0xf]
    %v4453 = vld [vmem:[%s2781 + $0x398] sm:$0xf]
    %v4454 = vld [vmem:[%s2781 + $0x39c] sm:$0xf]
    %v4455 = vld [vmem:[%s2781 + $0x3a0] sm:$0xf]
    %v4456 = vld [vmem:[%s2781 + $0x3a4] sm:$0xf]
    %v4457 = vld [vmem:[%s2781 + $0x3a8] sm:$0xf]
    %v4458 = vld [vmem:[%s2781 + $0x3ac] sm:$0xf]
    %v4459 = vld [vmem:[%s2781 + $0x3b0] sm:$0xf]
    %v4460 = vld [vmem:[%s2781 + $0x3b4] sm:$0xf]
    %v4461 = vld [vmem:[%s2781 + $0x3b8] sm:$0xf]
    %v4462 = vld [vmem:[%s2781 + $0x3bc] sm:$0xf]
    %v4463 = vld [vmem:[%s2781 + $0x3c0] sm:$0xf]
    %v4464 = vld [vmem:[%s2781 + $0x3c4] sm:$0xf]
    %v4465 = vld [vmem:[%s2781 + $0x3c8] sm:$0xf]
    %v4466 = vld [vmem:[%s2781 + $0x3cc] sm:$0xf]
    %v4467 = vld [vmem:[%s2781 + $0x3d0] sm:$0xf]
    %v4468 = vld [vmem:[%s2781 + $0x3d4] sm:$0xf]
    %v4469 = vld [vmem:[%s2781 + $0x3d8] sm:$0xf]
    %v4470 = vld [vmem:[%s2781 + $0x3dc] sm:$0xf]
    %v4471 = vld [vmem:[%s2781 + $0x3e0] sm:$0xf]
    %v4472 = vld [vmem:[%s2781 + $0x3e4] sm:$0xf]
    %v4473 = vld [vmem:[%s2781 + $0x3e8] sm:$0xf]
    %v4474 = vld [vmem:[%s2781 + $0x3ec] sm:$0xf]
    %v4475 = vld [vmem:[%s2781 + $0x3f0] sm:$0xf]
    %v4476 = vld [vmem:[%s2781 + $0x3f4] sm:$0xf]
    %v4477 = vld [vmem:[%s2781 + $0x3f8] sm:$0xf]
    %v4478 = vld [vmem:[%s2781 + $0x3fc] sm:$0xf]
    %v4543 = vunpack.c.l.b16 %v4415
    %v4544 = vunpack.c.l.b16 %v4416
    %v4545 = vunpack.c.l.b16 %v4417
    %v4546 = vunpack.c.l.b16 %v4418
    %v4547 = vunpack.c.l.b16 %v4419
    %v4548 = vunpack.c.l.b16 %v4420
    %v4549 = vunpack.c.l.b16 %v4421
    %v4550 = vunpack.c.l.b16 %v4422
    %v4551 = vunpack.c.l.b16 %v4423
    %v4552 = vunpack.c.l.b16 %v4424
    %v4553 = vunpack.c.l.b16 %v4425
    %v4554 = vunpack.c.l.b16 %v4426
    %v4555 = vunpack.c.l.b16 %v4427
    %v4556 = vunpack.c.l.b16 %v4428
    %v4557 = vunpack.c.l.b16 %v4429
    %v4558 = vunpack.c.l.b16 %v4430
    %v4559 = vunpack.c.l.b16 %v4431
    %v4560 = vunpack.c.l.b16 %v4432
    %v4561 = vunpack.c.l.b16 %v4433
    %v4562 = vunpack.c.l.b16 %v4434
    %v4563 = vunpack.c.l.b16 %v4435
    %v4564 = vunpack.c.l.b16 %v4436
    %v4565 = vunpack.c.l.b16 %v4437
    %v4566 = vunpack.c.l.b16 %v4438
    %v4567 = vunpack.c.l.b16 %v4439
    %v4568 = vunpack.c.l.b16 %v4440
    %v4569 = vunpack.c.l.b16 %v4441
    %v4570 = vunpack.c.l.b16 %v4442
    %v4571 = vunpack.c.l.b16 %v4443
    %v4572 = vunpack.c.l.b16 %v4444
    %v4573 = vunpack.c.l.b16 %v4445
    %v4574 = vunpack.c.l.b16 %v4446
    %v4575 = vunpack.c.l.b16 %v4447
    %v4576 = vunpack.c.l.b16 %v4448
    %v4577 = vunpack.c.l.b16 %v4449
    %v4578 = vunpack.c.l.b16 %v4450
    %v4579 = vunpack.c.l.b16 %v4451
    %v4580 = vunpack.c.l.b16 %v4452
    %v4581 = vunpack.c.l.b16 %v4453
    %v4582 = vunpack.c.l.b16 %v4454
    %v4583 = vunpack.c.l.b16 %v4455
    %v4584 = vunpack.c.l.b16 %v4456
    %v4585 = vunpack.c.l.b16 %v4457
    %v4586 = vunpack.c.l.b16 %v4458
    %v4587 = vunpack.c.l.b16 %v4459
    %v4588 = vunpack.c.l.b16 %v4460
    %v4589 = vunpack.c.l.b16 %v4461
    %v4590 = vunpack.c.l.b16 %v4462
    %v4591 = vunpack.c.l.b16 %v4463
    %v4592 = vunpack.c.l.b16 %v4464
    %v4593 = vunpack.c.l.b16 %v4465
    %v4594 = vunpack.c.l.b16 %v4466
    %v4595 = vunpack.c.l.b16 %v4467
    %v4596 = vunpack.c.l.b16 %v4468
    %v4597 = vunpack.c.l.b16 %v4469
    %v4598 = vunpack.c.l.b16 %v4470
    %v4599 = vunpack.c.l.b16 %v4471
    %v4600 = vunpack.c.l.b16 %v4472
    %v4601 = vunpack.c.l.b16 %v4473
    %v4602 = vunpack.c.l.b16 %v4474
    %v4603 = vunpack.c.l.b16 %v4475
    %v4604 = vunpack.c.l.b16 %v4476
    %v4605 = vunpack.c.l.b16 %v4477
    %v4606 = vunpack.c.l.b16 %v4478
    %v4607 = vpack.c.b16 %v4544, %v4543
    %v4608 = vpack.c.b16 %v4546, %v4545
    %v4609 = vpack.c.b16 %v4548, %v4547
    %v4610 = vpack.c.b16 %v4550, %v4549
    %v4611 = vpack.c.b16 %v4552, %v4551
    %v4612 = vpack.c.b16 %v4554, %v4553
    %v4613 = vpack.c.b16 %v4556, %v4555
    %v4614 = vpack.c.b16 %v4558, %v4557
    %v4615 = vpack.c.b16 %v4560, %v4559
    %v4616 = vpack.c.b16 %v4562, %v4561
    %v4617 = vpack.c.b16 %v4564, %v4563
    %v4618 = vpack.c.b16 %v4566, %v4565
    %v4619 = vpack.c.b16 %v4568, %v4567
    %v4620 = vpack.c.b16 %v4570, %v4569
    %v4621 = vpack.c.b16 %v4572, %v4571
    %v4622 = vpack.c.b16 %v4574, %v4573
    %v4623 = vpack.c.b16 %v4576, %v4575
    %v4624 = vpack.c.b16 %v4578, %v4577
    %v4625 = vpack.c.b16 %v4580, %v4579
    %v4626 = vpack.c.b16 %v4582, %v4581
    %v4627 = vpack.c.b16 %v4584, %v4583
    %v4628 = vpack.c.b16 %v4586, %v4585
    %v4629 = vpack.c.b16 %v4588, %v4587
    %v4630 = vpack.c.b16 %v4590, %v4589
    %v4631 = vpack.c.b16 %v4592, %v4591
    %v4632 = vpack.c.b16 %v4594, %v4593
    %v4633 = vpack.c.b16 %v4596, %v4595
    %v4634 = vpack.c.b16 %v4598, %v4597
    %v4635 = vpack.c.b16 %v4600, %v4599
    %v4636 = vpack.c.b16 %v4602, %v4601
    %v4637 = vpack.c.b16 %v4604, %v4603
    %v4638 = vpack.c.b16 %v4606, %v4605
    %4671 = vmatprep.subr.bf16.mxu0 0
    %4672 = vmatpush1.bf16.msra.mxu0 %v4607
    %4673 = vmatprep.subr.bf16.mxu0 0
    %4674 = vmatpush1.bf16.msra.mxu0 %v4608
    %4675 = vmatprep.subr.bf16.mxu0 0
    %4676 = vmatpush1.bf16.msra.mxu0 %v4609
    %4677 = vmatprep.subr.bf16.mxu0 0
    %4678 = vmatpush1.bf16.msra.mxu0 %v4610
    %4679 = vmatprep.subr.bf16.mxu0 0
    %4680 = vmatpush1.bf16.msra.mxu0 %v4611
    %4681 = vmatprep.subr.bf16.mxu0 0
    %4682 = vmatpush1.bf16.msra.mxu0 %v4612
    %4683 = vmatprep.subr.bf16.mxu0 0
    %4684 = vmatpush1.bf16.msra.mxu0 %v4613
    %4685 = vmatprep.subr.bf16.mxu0 0
    %4686 = vmatpush1.bf16.msra.mxu0 %v4614
    %4687 = vmatprep.subr.bf16.mxu0 0
    %4688 = vmatpush1.bf16.msra.mxu0 %v4615
    %4689 = vmatprep.subr.bf16.mxu0 0
    %4690 = vmatpush1.bf16.msra.mxu0 %v4616
    %4691 = vmatprep.subr.bf16.mxu0 0
    %4692 = vmatpush1.bf16.msra.mxu0 %v4617
    %4693 = vmatprep.subr.bf16.mxu0 0
    %4694 = vmatpush1.bf16.msra.mxu0 %v4618
    %4695 = vmatprep.subr.bf16.mxu0 0
    %4696 = vmatpush1.bf16.msra.mxu0 %v4619
    %4697 = vmatprep.subr.bf16.mxu0 0
    %4698 = vmatpush1.bf16.msra.mxu0 %v4620
    %4699 = vmatprep.subr.bf16.mxu0 0
    %4700 = vmatpush1.bf16.msra.mxu0 %v4621
    %4701 = vmatprep.subr.bf16.mxu0 0
    %4702 = vmatpush1.bf16.msra.mxu0 %v4622
    %4703 = vmatprep.mubr.bf16.mxu0 %v4412
    %4704 = vmatmul.mubr.bf16.gmra.mrb[0].mxu0 %v4411
    %v4705 = vpop.f32.mrb[0].mxu0
    %v4706 = vadd.f32 0.0, %v4705
    %v4707 = vpop.f32.mrb[0].mxu0
    %v4708 = vpop.f32.mrb[0].mxu0
    %v4709 = vpop.f32.mrb[0].mxu0
    %4710 = vdwg.mxu0
    %4711 = vmatprep.subr.bf16.mxu0 0
    %4712 = vmatpush1.bf16.msra.mxu0 %v4623
    %4713 = vmatprep.subr.bf16.mxu0 0
    %4714 = vmatpush1.bf16.msra.mxu0 %v4624
    %4715 = vmatprep.subr.bf16.mxu0 0
    %4716 = vmatpush1.bf16.msra.mxu0 %v4625
    %4717 = vmatprep.subr.bf16.mxu0 0
    %4718 = vmatpush1.bf16.msra.mxu0 %v4626
    %4719 = vmatprep.subr.bf16.mxu0 0
    %4720 = vmatpush1.bf16.msra.mxu0 %v4627
    %4721 = vmatprep.subr.bf16.mxu0 0
    %4722 = vmatpush1.bf16.msra.mxu0 %v4628
    %4723 = vmatprep.subr.bf16.mxu0 0
    %4724 = vmatpush1.bf16.msra.mxu0 %v4629
    %4725 = vmatprep.subr.bf16.mxu0 0
    %4726 = vmatpush1.bf16.msra.mxu0 %v4630
    %4727 = vmatprep.subr.bf16.mxu0 0
    %4728 = vmatpush1.bf16.msra.mxu0 %v4631
    %4729 = vmatprep.subr.bf16.mxu0 0
    %4730 = vmatpush1.bf16.msra.mxu0 %v4632
    %4731 = vmatprep.subr.bf16.mxu0 0
    %4732 = vmatpush1.bf16.msra.mxu0 %v4633
    %4733 = vmatprep.subr.bf16.mxu0 0
    %4734 = vmatpush1.bf16.msra.mxu0 %v4634
    %4735 = vmatprep.subr.bf16.mxu0 0
    %4736 = vmatpush1.bf16.msra.mxu0 %v4635
    %4737 = vmatprep.subr.bf16.mxu0 0
    %4738 = vmatpush1.bf16.msra.mxu0 %v4636
    %4739 = vmatprep.subr.bf16.mxu0 0
    %4740 = vmatpush1.bf16.msra.mxu0 %v4637
    %4741 = vmatprep.subr.bf16.mxu0 0
    %4742 = vmatpush1.bf16.msra.mxu0 %v4638
    %4743 = vmatprep.mubr.bf16.mxu0 %v4414
    %4744 = vmatmul.mubr.bf16.gmra.mrb[0].mxu0 %v4413
    %v4745 = vpop.f32.mrb[0].mxu0
    %v4746 = vadd.f32 %v4706, %v4745
    %v4747 = vpop.f32.mrb[0].mxu0
    %v4748 = vpop.f32.mrb[0].mxu0
    %v4749 = vpop.f32.mrb[0].mxu0
    %4750 = vdwg.mxu0
    %v4751 = vadd.f32 %v4206, %v4746
    %v4752 = vadd.f32 %v2566, %v4751
    %s4753 = scalar_lea.vmem %s10, 1
    %v4754 = vld [vmem:[%s4753] sm:$0x1]
    %v4756 = vlaneseq
    %v4757 = vshrl.u32 %v4756, 7
    %v4758 = vsub.s32 0, %v4757
    %v4759 = vrot.slane %v4754, %v4758
    %v4761 = vadd.f32 %v4752, %v4759
    %s4762 = scalar_lea.vmem %s11, 1
    %v4763 = vld [vmem:[%s4762] sm:$0x1]
    %s4764 = scalar_lea.vmem %s12, 1
    %v4765 = vld [vmem:[%s4764] sm:$0x1]
    %v4766 = vsel %vm155, %v4761, 0.0
    %4767 = vadd.xlane.f32.xlu0 %v4766
    %v4768 = vpop.xlane.xlu0 %4767
    %v4769 = vmul.f32 %v4768, %v205
    %v4770 = vsub.f32 %v4761, %v4769
    %v4771 = vmul.f32 %v4770, %v4770
    %v4772 = vsel %vm155, %v4771, 0.0
    %4773 = vadd.xlane.f32.xlu0 %v4772
    %v4774 = vpop.xlane.xlu0 %4773
    %v4775 = vmul.f32 %v4774, %v205
    %v4776 = vadd.f32 %v4775, 1e-05
    %v4777 = vrsqrt.pop %v4776
    %v4778 = vmul.f32 %v4770, %v4777
    %v4780 = vlaneseq
    %v4781 = vshrl.u32 %v4780, 7
    %v4782 = vsub.s32 0, %v4781
    %v4783 = vrot.slane %v4763, %v4782
    %v4785 = vmul.f32 %v4778, %v4783
    %v4787 = vlaneseq
    %v4788 = vshrl.u32 %v4787, 7
    %v4789 = vsub.s32 0, %v4788
    %v4790 = vrot.slane %v4765, %v4789
    %v4792 = vadd.f32 %v4785, %v4790
    %v4793 = vld [vmem:[%s13] sm:$0x1]
    %v4795 = vlaneseq
    %v4796 = vshrl.u32 %v4795, 7
    %v4797 = vsub.s32 0, %v4796
    %v4798 = vrot.slane %v4793, %v4797
    %v4800 = vmul.f32 %v4792, %v4798
    %v4801 = vsel %vm155, %v4800, 0.0
    %4802 = vadd.xlane.f32.xlu0 %v4801
    %v4803 = vpop.xlane.xlu0 %4802
    %v4804 = vld [vmem:[#allocation2] sm:$0x1]
    %4806 = vset.pattern.permute.xlu0 0
    %4807 = vperm.xlu0 %4806, %v4804
    %v4808 = vpop.permute.xlu0 %4807
    %v4810 = vlaneseq
    %v4811 = vshrl.u32 %v4810, 7
    %v4812 = vsub.s32 0, %v4811
    %v4813 = vrot.slane %v4808, %v4812
    %v4814 = vadd.f32 %v4803, %v4813
    %v4816 = vlaneseq
    %v4817 = vand.u32 %v4816, 127
    %v4818 = vlaneseq
    %v4819 = vshrl.u32 %v4818, 7
    %v4820 = vsub.s32 %v4817, %v4819
    %v4821 = vrot.slane %v4814, %v4820
    %vm4823 = vcmask 57344
    %4824 = vst.msk [vmem:[#allocation3] sm:$0x1] %vm4823, %v4821
    // Predicated region
    $region62: #{tpu_custom_call.1} parent=1 // pred_check
      _
    $region63: #{tpu_custom_call.1} parent=1 // pred_check_branch
      %4826 = sbr.rel (0) target = $region65
    $region64: #{tpu_custom_call.1} parent=1 // pred_region
      %s4828 = ssub.s32 16, 16
      %4829 = vsyncadd [#allocation4], %s4828
      %s4831 = sshll.u32 [#allocation3], 4
      %s4832 = int_to_ptr.vmem [resolvable:$true] %s4831
      %4834 = dma.vmem_to_hbm [thread:$0]  %s4832, 16, %s15, [#allocation4]
    $region65: #{tpu_custom_call.1} parent=1 // pred_fallthru
      _
    // Predicated region
    $region66: #{tpu_custom_call.1} parent=1 // pred_check
      _
    $region67: #{tpu_custom_call.1} parent=1 // pred_check_branch
      %4836 = sbr.rel (0) target = $region69
    $region68: #{tpu_custom_call.1} parent=1 // pred_region
      %4837 = dma.done [#allocation4], 16
    $region69: #{tpu_custom_call.1} parent=1 // pred_fallthru
      _
    %4838 = vsyncpa [#allocation4], 1

// kernel: tpu_custom_call.1
$region0: #{tpu_custom_call.1}
  #allocation0 [shape = 'u32[]', space=smem, size = 0x4, offset = 0x4, fixed_abs, tag = 'smem constant byte address 0x4 - core index']
  #allocation1 [shape = 'u32[144,128]{1,0:T(1,128)}', space=vmem, size = 0x12000, scoped, tag = 'internal scratch']
  #allocation2 [shape = 'f32[1,1]{1,0:T(1,128)S(1)}', space=vmem, size = 0x200, scoped, tag = 'scoped memory for tpu_custom_call.1']
  %s0 = inlined_call_operand.vmem [shape: f32[8,16], index: 0, kind: input, shape index: {}]
  %s1 = inlined_call_operand.vmem [shape: bf16[16,64], index: 1, kind: input, shape index: {}]
  %s2 = inlined_call_operand.vmem [shape: f32[1,64], index: 2, kind: input, shape index: {}]
  %s3 = inlined_call_operand.vmem [shape: bf16[2,64,64], index: 3, kind: input, shape index: {}]
  %s4 = inlined_call_operand.vmem [shape: f32[2,1,64], index: 4, kind: input, shape index: {}]
  %s5 = inlined_call_operand.vmem [shape: f32[2,1,64], index: 5, kind: input, shape index: {}]
  %s6 = inlined_call_operand.vmem [shape: f32[2,1,64], index: 6, kind: input, shape index: {}]
  %s7 = inlined_call_operand.vmem [shape: bf16[2,64,2048], index: 7, kind: input, shape index: {}]
  %s8 = inlined_call_operand.vmem [shape: f32[2,1,2048], index: 8, kind: input, shape index: {}]
  %s9 = inlined_call_operand.vmem [shape: bf16[2,2048,64], index: 9, kind: input, shape index: {}]
  %s10 = inlined_call_operand.vmem [shape: f32[2,1,64], index: 10, kind: input, shape index: {}]
  %s11 = inlined_call_operand.vmem [shape: f32[2,1,64], index: 11, kind: input, shape index: {}]
  %s12 = inlined_call_operand.vmem [shape: f32[2,1,64], index: 12, kind: input, shape index: {}]
  %s13 = inlined_call_operand.vmem [shape: f32[1,64], index: 13, kind: input, shape index: {}]
  %s14 = inlined_call_operand.<no memory space> [shape: f32[1,1], index: 14, kind: input, shape index: {}]
  %s15 = inlined_call_operand.hbm [shape: f32[1,8], index: 15, kind: output, shape index: {}]
  %s16 = sld [smem:[#allocation0]]
  $region70: #{tpu_custom_call.1} parent=0
    _
  %s18 = ssub.s32 1, %s16
  %s19 = scalar_select 0, %s18, %s16
  %v20 = vstv %s14
  %21 = vst [vmem:[#allocation2] sm:$0x1] %v20
  $region1: #{tpu_custom_call.1} parent=0
    #allocation3 [shape = 'u8[512]{0}', space=vmem, size = 0x400, scoped, tag = 'output window, operand 0, single buffered']
    #allocation4 [shape = 's32[1]{0}', space=sflag, size = 0x4, scoped, tag = 'scoped memory for tpu_custom_call.1']
    %22 = vsyncpa [#allocation4], 0
    // Predicated region
    $region2: #{tpu_custom_call.1} parent=1 // pred_check
      _
    $region3: #{tpu_custom_call.1} parent=1 // pred_check_branch
      %24 = sbr.rel (0) target = $region5
    $region4: #{tpu_custom_call.1} parent=1 // pred_region
      _
    $region5: #{tpu_custom_call.1} parent=1 // pred_fallthru
      _
    // Predicated region
    $region6: #{tpu_custom_call.1} parent=1 // pred_check
      _
    $region7: #{tpu_custom_call.1} parent=1 // pred_check_branch
      %26 = sbr.rel (0) target = $region9
    $region8: #{tpu_custom_call.1} parent=1 // pred_region
      _
    $region9: #{tpu_custom_call.1} parent=1 // pred_fallthru
      _
    // Predicated region
    $region10: #{tpu_custom_call.1} parent=1 // pred_check
      _
    $region11: #{tpu_custom_call.1} parent=1 // pred_check_branch
      %28 = sbr.rel (0) target = $region13
    $region12: #{tpu_custom_call.1} parent=1 // pred_region
      _
    $region13: #{tpu_custom_call.1} parent=1 // pred_fallthru
      _
    // Predicated region
    $region14: #{tpu_custom_call.1} parent=1 // pred_check
      _
    $region15: #{tpu_custom_call.1} parent=1 // pred_check_branch
      %30 = sbr.rel (0) target = $region17
    $region16: #{tpu_custom_call.1} parent=1 // pred_region
      _
    $region17: #{tpu_custom_call.1} parent=1 // pred_fallthru
      _
    // Predicated region
    $region18: #{tpu_custom_call.1} parent=1 // pred_check
      _
    $region19: #{tpu_custom_call.1} parent=1 // pred_check_branch
      %32 = sbr.rel (0) target = $region21
    $region20: #{tpu_custom_call.1} parent=1 // pred_region
      _
    $region21: #{tpu_custom_call.1} parent=1 // pred_fallthru
      _
    // Predicated region
    $region22: #{tpu_custom_call.1} parent=1 // pred_check
      _
    $region23: #{tpu_custom_call.1} parent=1 // pred_check_branch
      %34 = sbr.rel (0) target = $region25
    $region24: #{tpu_custom_call.1} parent=1 // pred_region
      _
    $region25: #{tpu_custom_call.1} parent=1 // pred_fallthru
      _
    // Predicated region
    $region26: #{tpu_custom_call.1} parent=1 // pred_check
      _
    $region27: #{tpu_custom_call.1} parent=1 // pred_check_branch
      %36 = sbr.rel (0) target = $region29
    $region28: #{tpu_custom_call.1} parent=1 // pred_region
      _
    $region29: #{tpu_custom_call.1} parent=1 // pred_fallthru
      _
    // Predicated region
    $region30: #{tpu_custom_call.1} parent=1 // pred_check
      _
    $region31: #{tpu_custom_call.1} parent=1 // pred_check_branch
      %38 = sbr.rel (0) target = $region33
    $region32: #{tpu_custom_call.1} parent=1 // pred_region
      _
    $region33: #{tpu_custom_call.1} parent=1 // pred_fallthru
      _
    // Predicated region
    $region34: #{tpu_custom_call.1} parent=1 // pred_check
      _
    $region35: #{tpu_custom_call.1} parent=1 // pred_check_branch
      %40 = sbr.rel (0) target = $region37
    $region36: #{tpu_custom_call.1} parent=1 // pred_region
      _
    $region37: #{tpu_custom_call.1} parent=1 // pred_fallthru
      _
    // Predicated region
    $region38: #{tpu_custom_call.1} parent=1 // pred_check
      _
    $region39: #{tpu_custom_call.1} parent=1 // pred_check_branch
      %42 = sbr.rel (0) target = $region41
    $region40: #{tpu_custom_call.1} parent=1 // pred_region
      _
    $region41: #{tpu_custom_call.1} parent=1 // pred_fallthru
      _
    // Predicated region
    $region42: #{tpu_custom_call.1} parent=1 // pred_check
      _
    $region43: #{tpu_custom_call.1} parent=1 // pred_check_branch
      %44 = sbr.rel (0) target = $region45
    $region44: #{tpu_custom_call.1} parent=1 // pred_region
      _
    $region45: #{tpu_custom_call.1} parent=1 // pred_fallthru
      _
    // Predicated region
    $region46: #{tpu_custom_call.1} parent=1 // pred_check
      _
    $region47: #{tpu_custom_call.1} parent=1 // pred_check_branch
      %46 = sbr.rel (0) target = $region49
    $region48: #{tpu_custom_call.1} parent=1 // pred_region
      _
    $region49: #{tpu_custom_call.1} parent=1 // pred_fallthru
      _
    // Predicated region
    $region50: #{tpu_custom_call.1} parent=1 // pred_check
      _
    $region51: #{tpu_custom_call.1} parent=1 // pred_check_branch
      %48 = sbr.rel (0) target = $region53
    $region52: #{tpu_custom_call.1} parent=1 // pred_region
      _
    $region53: #{tpu_custom_call.1} parent=1 // pred_fallthru
      _
    // Predicated region
    $region54: #{tpu_custom_call.1} parent=1 // pred_check
      _
    $region55: #{tpu_custom_call.1} parent=1 // pred_check_branch
      %50 = sbr.rel (0) target = $region57
    $region56: #{tpu_custom_call.1} parent=1 // pred_region
      _
    $region57: #{tpu_custom_call.1} parent=1 // pred_fallthru
      _
    // Predicated region
    $region58: #{tpu_custom_call.1} parent=1 // pred_check
      _
    $region59: #{tpu_custom_call.1} parent=1 // pred_check_branch
      %52 = sbr.rel (0) target = $region61
    $region60: #{tpu_custom_call.1} parent=1 // pred_region
      _
    $region61: #{tpu_custom_call.1} parent=1 // pred_fallthru
      _
    %v54 = vld [vmem:[%s0] sm:$0xff]
    %v55 = vpack.c.bf16 %v54, %v54
    %v56 = vld [vmem:[%s1] sm:$0xf]
    %v57 = vld [vmem:[%s1 + $0x4] sm:$0xf]
    %v58 = vld [vmem:[%s2] sm:$0x1]
    %v60 = vlaneseq
    %v61 = vshrl.u32 %v60, 7
    %v62 = vsub.s32 0, %v61
    %v63 = vrot.slane %v58, %v62
    %v67 = vunpack.c.l.b16 %v56
    %v68 = vunpack.c.l.b16 %v57
    %v69 = vpack.c.b16 %v68, %v67
    %vm71 = vcmask 130048
    %v73 = vsel %vm71, %v55, 0
    %75 = vmatprep.subr.bf16.mxu0 0
    %76 = vmatpush1.bf16.msra.mxu0 %v69
    %77 = vmatprep.subr.bf16.mxu0 0
    %78 = vmatpush1.bf16.msra.mxu0 0
    %79 = vmatprep.subr.bf16.mxu0 0
    %80 = vmatpush1.bf16.msra.mxu0 0
    %81 = vmatprep.subr.bf16.mxu0 0
    %82 = vmatpush1.bf16.msra.mxu0 0
    %83 = vmatprep.subr.bf16.mxu0 0
    %84 = vmatpush1.bf16.msra.mxu0 0
    %85 = vmatprep.subr.bf16.mxu0 0
    %86 = vmatpush1.bf16.msra.mxu0 0
    %87 = vmatprep.subr.bf16.mxu0 0
    %88 = vmatpush1.bf16.msra.mxu0 0
    %89 = vmatprep.subr.bf16.mxu0 0
    %90 = vmatpush1.bf16.msra.mxu0 0
    %91 = vmatprep.subr.bf16.mxu0 0
    %92 = vmatpush1.bf16.msra.mxu0 0
    %93 = vmatprep.subr.bf16.mxu0 0
    %94 = vmatpush1.bf16.msra.mxu0 0
    %95 = vmatprep.subr.bf16.mxu0 0
    %96 = vmatpush1.bf16.msra.mxu0 0
    %97 = vmatprep.subr.bf16.mxu0 0
    %98 = vmatpush1.bf16.msra.mxu0 0
    %99 = vmatprep.subr.bf16.mxu0 0
    %100 = vmatpush1.bf16.msra.mxu0 0
    %101 = vmatprep.subr.bf16.mxu0 0
    %102 = vmatpush1.bf16.msra.mxu0 0
    %103 = vmatprep.subr.bf16.mxu0 0
    %104 = vmatpush1.bf16.msra.mxu0 0
    %105 = vmatprep.subr.bf16.mxu0 0
    %106 = vmatpush1.bf16.msra.mxu0 0
    %107 = vmatprep.mubr.bf16.mxu0 0
    %108 = vmatmul.mubr.bf16.gmra.mrb[0].mxu0 %v73
    %v109 = vpop.f32.mrb[0].mxu0
    %v110 = vadd.f32 %v63, %v109
    %v111 = vpop.f32.mrb[0].mxu0
    %v112 = vpop.f32.mrb[0].mxu0
    %v113 = vpop.f32.mrb[0].mxu0
    %114 = vdwg.mxu0
    %v115 = vpack.c.bf16 %v110, %v110
    %v116 = vld [vmem:[%s3] sm:$0xf]
    %v117 = vld [vmem:[%s3 + $0x4] sm:$0xf]
    %v118 = vld [vmem:[%s3 + $0x8] sm:$0xf]
    %v119 = vld [vmem:[%s3 + $0xc] sm:$0xf]
    %v120 = vld [vmem:[%s3 + $0x10] sm:$0xf]
    %v121 = vld [vmem:[%s3 + $0x14] sm:$0xf]
    %v122 = vld [vmem:[%s3 + $0x18] sm:$0xf]
    %v123 = vld [vmem:[%s3 + $0x1c] sm:$0xf]
    %v124 = vld [vmem:[%s4] sm:$0x1]
    %v126 = vlaneseq
    %v127 = vshrl.u32 %v126, 7
    %v128 = vsub.s32 0, %v127
    %v129 = vrot.slane %v124, %v128
    %v139 = vunpack.c.l.b16 %v116
    %v140 = vunpack.c.l.b16 %v117
    %v141 = vunpack.c.l.b16 %v118
    %v142 = vunpack.c.l.b16 %v119
    %v143 = vunpack.c.l.b16 %v120
    %v144 = vunpack.c.l.b16 %v121
    %v145 = vunpack.c.l.b16 %v122
    %v146 = vunpack.c.l.b16 %v123
    %v147 = vpack.c.b16 %v140, %v139
    %v148 = vpack.c.b16 %v142, %v141
    %v149 = vpack.c.b16 %v144, %v143
    %v150 = vpack.c.b16 %v146, %v145
    %vm155 = vcmask 523264
    %v157 = vsel %vm155, %v115, 0
    %159 = vmatprep.subr.bf16.mxu0 0
    %160 = vmatpush1.bf16.msra.mxu0 %v147
    %161 = vmatprep.subr.bf16.mxu0 0
    %162 = vmatpush1.bf16.msra.mxu0 %v148
    %163 = vmatprep.subr.bf16.mxu0 0
    %164 = vmatpush1.bf16.msra.mxu0 %v149
    %165 = vmatprep.subr.bf16.mxu0 0
    %166 = vmatpush1.bf16.msra.mxu0 %v150
    %167 = vmatprep.subr.bf16.mxu0 0
    %168 = vmatpush1.bf16.msra.mxu0 0
    %169 = vmatprep.subr.bf16.mxu0 0
    %170 = vmatpush1.bf16.msra.mxu0 0
    %171 = vmatprep.subr.bf16.mxu0 0
    %172 = vmatpush1.bf16.msra.mxu0 0
    %173 = vmatprep.subr.bf16.mxu0 0
    %174 = vmatpush1.bf16.msra.mxu0 0
    %175 = vmatprep.subr.bf16.mxu0 0
    %176 = vmatpush1.bf16.msra.mxu0 0
    %177 = vmatprep.subr.bf16.mxu0 0
    %178 = vmatpush1.bf16.msra.mxu0 0
    %179 = vmatprep.subr.bf16.mxu0 0
    %180 = vmatpush1.bf16.msra.mxu0 0
    %181 = vmatprep.subr.bf16.mxu0 0
    %182 = vmatpush1.bf16.msra.mxu0 0
    %183 = vmatprep.subr.bf16.mxu0 0
    %184 = vmatpush1.bf16.msra.mxu0 0
    %185 = vmatprep.subr.bf16.mxu0 0
    %186 = vmatpush1.bf16.msra.mxu0 0
    %187 = vmatprep.subr.bf16.mxu0 0
    %188 = vmatpush1.bf16.msra.mxu0 0
    %189 = vmatprep.subr.bf16.mxu0 0
    %190 = vmatpush1.bf16.msra.mxu0 0
    %191 = vmatprep.mubr.bf16.mxu0 0
    %192 = vmatmul.mubr.bf16.gmra.mrb[0].mxu0 %v157
    %v193 = vpop.f32.mrb[0].mxu0
    %v194 = vadd.f32 %v129, %v193
    %v195 = vpop.f32.mrb[0].mxu0
    %v196 = vpop.f32.mrb[0].mxu0
    %v197 = vpop.f32.mrb[0].mxu0
    %198 = vdwg.mxu0
    %v199 = vadd.f32 %v110, %v194
    %v200 = vld [vmem:[%s5] sm:$0x1]
    %v201 = vld [vmem:[%s6] sm:$0x1]
    %v202 = vsel %vm155, %v199, 0.0
    %203 = vadd.xlane.f32.xlu0 %v202
    %v204 = vpop.xlane.xlu0 %203
    %v205 = vrcp.pop 64.0
    %v206 = vmul.f32 %v204, %v205
    %v207 = vsub.f32 %v199, %v206
    %v208 = vmul.f32 %v207, %v207
    %v209 = vsel %vm155, %v208, 0.0
    %210 = vadd.xlane.f32.xlu0 %v209
    %v211 = vpop.xlane.xlu0 %210
    %v212 = vmul.f32 %v211, %v205
    %v213 = vadd.f32 %v212, 1e-05
    %v214 = vrsqrt.pop %v213
    %v215 = vmul.f32 %v207, %v214
    %v217 = vlaneseq
    %v218 = vshrl.u32 %v217, 7
    %v219 = vsub.s32 0, %v218
    %v220 = vrot.slane %v200, %v219
    %v222 = vmul.f32 %v215, %v220
    %v224 = vlaneseq
    %v225 = vshrl.u32 %v224, 7
    %v226 = vsub.s32 0, %v225
    %v227 = vrot.slane %v201, %v226
    %v229 = vadd.f32 %v222, %v227
    %v230 = vpack.c.bf16 %v229, %v229
    %v231 = vld [vmem:[%s7] sm:$0xff]
    %v232 = vld [vmem:[%s7 + $0x8] sm:$0xff]
    %v233 = vld [vmem:[%s7 + $0x40] sm:$0xff]
    %v234 = vld [vmem:[%s7 + $0x48] sm:$0xff]
    %v235 = vld [vmem:[%s7 + $0x80] sm:$0xff]
    %v236 = vld [vmem:[%s7 + $0x88] sm:$0xff]
    %v237 = vld [vmem:[%s7 + $0xc0] sm:$0xff]
    %v238 = vld [vmem:[%s7 + $0xc8] sm:$0xff]
    %v239 = vld [vmem:[%s7 + $0x100] sm:$0xff]
    %v240 = vld [vmem:[%s7 + $0x108] sm:$0xff]
    %v241 = vld [vmem:[%s7 + $0x140] sm:$0xff]
    %v242 = vld [vmem:[%s7 + $0x148] sm:$0xff]
    %v243 = vld [vmem:[%s7 + $0x180] sm:$0xff]
    %v244 = vld [vmem:[%s7 + $0x188] sm:$0xff]
    %v245 = vld [vmem:[%s7 + $0x1c0] sm:$0xff]
    %v246 = vld [vmem:[%s7 + $0x1c8] sm:$0xff]
    %v247 = vld [vmem:[%s8] sm:$0xf]
    %v249 = vlaneseq
    %v250 = vshrl.u32 %v249, 7
    %v251 = vsub.s32 0, %v250
    %v252 = vrot.slane %v247, %v251
    %v253 = vlaneseq
    %v254 = vshrl.u32 %v253, 7
    %v255 = vsub.s32 1, %v254
    %v256 = vrot.slane %v247, %v255
    %v257 = vlaneseq
    %v258 = vshrl.u32 %v257, 7
    %v259 = vsub.s32 2, %v258
    %v260 = vrot.slane %v247, %v259
    %v261 = vlaneseq
    %v262 = vshrl.u32 %v261, 7
    %v263 = vsub.s32 3, %v262
    %v264 = vrot.slane %v247, %v263
    %v285 = vunpack.c.l.b16 %v231
    %v286 = vunpack.c.h.b16 %v231
    %v287 = vunpack.c.l.b16 %v232
    %v288 = vunpack.c.h.b16 %v232
    %v289 = vunpack.c.l.b16 %v233
    %v290 = vunpack.c.h.b16 %v233
    %v291 = vunpack.c.l.b16 %v234
    %v292 = vunpack.c.h.b16 %v234
    %v293 = vunpack.c.l.b16 %v235
    %v294 = vunpack.c.h.b16 %v235
    %v295 = vunpack.c.l.b16 %v236
    %v296 = vunpack.c.h.b16 %v236
    %v297 = vunpack.c.l.b16 %v237
    %v298 = vunpack.c.h.b16 %v237
    %v299 = vunpack.c.l.b16 %v238
    %v300 = vunpack.c.h.b16 %v238
    %v301 = vunpack.c.l.b16 %v239
    %v302 = vunpack.c.h.b16 %v239
    %v303 = vunpack.c.l.b16 %v240
    %v304 = vunpack.c.h.b16 %v240
    %v305 = vunpack.c.l.b16 %v241
    %v306 = vunpack.c.h.b16 %v241
    %v307 = vunpack.c.l.b16 %v242
    %v308 = vunpack.c.h.b16 %v242
    %v309 = vunpack.c.l.b16 %v243
    %v310 = vunpack.c.h.b16 %v243
    %v311 = vunpack.c.l.b16 %v244
    %v312 = vunpack.c.h.b16 %v244
    %v313 = vunpack.c.l.b16 %v245
    %v314 = vunpack.c.h.b16 %v245
    %v315 = vunpack.c.l.b16 %v246
    %v316 = vunpack.c.h.b16 %v246
    %v317 = vpack.c.b16 %v289, %v285
    %v318 = vpack.c.b16 %v290, %v286
    %v319 = vpack.c.b16 %v291, %v287
    %v320 = vpack.c.b16 %v292, %v288
    %v321 = vpack.c.b16 %v297, %v293
    %v322 = vpack.c.b16 %v298, %v294
    %v323 = vpack.c.b16 %v299, %v295
    %v324 = vpack.c.b16 %v300, %v296
    %v325 = vpack.c.b16 %v305, %v301
    %v326 = vpack.c.b16 %v306, %v302
    %v327 = vpack.c.b16 %v307, %v303
    %v328 = vpack.c.b16 %v308, %v304
    %v329 = vpack.c.b16 %v313, %v309
    %v330 = vpack.c.b16 %v314, %v310
    %v331 = vpack.c.b16 %v315, %v311
    %v332 = vpack.c.b16 %v316, %v312
    %v350 = vsel %vm155, %v230, 0
    %352 = vmatprep.subr.bf16.mxu0 %v318
    %353 = vmatpush1.bf16.msra.mxu0 %v317
    %354 = vmatprep.subr.bf16.mxu0 %v322
    %355 = vmatpush1.bf16.msra.mxu0 %v321
    %356 = vmatprep.subr.bf16.mxu0 %v326
    %357 = vmatpush1.bf16.msra.mxu0 %v325
    %358 = vmatprep.subr.bf16.mxu0 %v330
    %359 = vmatpush1.bf16.msra.mxu0 %v329
    %360 = vmatprep.subr.bf16.mxu0 0
    %361 = vmatpush1.bf16.msra.mxu0 0
    %362 = vmatprep.subr.bf16.mxu0 0
    %363 = vmatpush1.bf16.msra.mxu0 0
    %364 = vmatprep.subr.bf16.mxu0 0
    %365 = vmatpush1.bf16.msra.mxu0 0
    %366 = vmatprep.subr.bf16.mxu0 0
    %367 = vmatpush1.bf16.msra.mxu0 0
    %368 = vmatprep.subr.bf16.mxu0 0
    %369 = vmatpush1.bf16.msra.mxu0 0
    %370 = vmatprep.subr.bf16.mxu0 0
    %371 = vmatpush1.bf16.msra.mxu0 0
    %372 = vmatprep.subr.bf16.mxu0 0
    %373 = vmatpush1.bf16.msra.mxu0 0
    %374 = vmatprep.subr.bf16.mxu0 0
    %375 = vmatpush1.bf16.msra.mxu0 0
    %376 = vmatprep.subr.bf16.mxu0 0
    %377 = vmatpush1.bf16.msra.mxu0 0
    %378 = vmatprep.subr.bf16.mxu0 0
    %379 = vmatpush1.bf16.msra.mxu0 0
    %380 = vmatprep.subr.bf16.mxu0 0
    %381 = vmatpush1.bf16.msra.mxu0 0
    %382 = vmatprep.subr.bf16.mxu0 0
    %383 = vmatpush1.bf16.msra.mxu0 0
    %384 = vmatprep.mubr.bf16.mxu0 0
    %385 = vmatmul.mubr.bf16.gmra.mrb[0].mxu0 %v350
    %v386 = vpop.f32.mrb[0].mxu0
    %v387 = vadd.f32 %v252, %v386
    %v388 = vpop.f32.mrb[0].mxu0
    %v389 = vadd.f32 %v256, %v388
    %v390 = vpop.f32.mrb[0].mxu0
    %v391 = vpop.f32.mrb[0].mxu0
    %392 = vdwg.mxu0
    %393 = vmatprep.subr.bf16.mxu0 %v320
    %394 = vmatpush1.bf16.msra.mxu0 %v319
    %395 = vmatprep.subr.bf16.mxu0 %v324
    %396 = vmatpush1.bf16.msra.mxu0 %v323
    %397 = vmatprep.subr.bf16.mxu0 %v328
    %398 = vmatpush1.bf16.msra.mxu0 %v327
    %399 = vmatprep.subr.bf16.mxu0 %v332
    %400 = vmatpush1.bf16.msra.mxu0 %v331
    %401 = vmatprep.subr.bf16.mxu0 0
    %402 = vmatpush1.bf16.msra.mxu0 0
    %403 = vmatprep.subr.bf16.mxu0 0
    %404 = vmatpush1.bf16.msra.mxu0 0
    %405 = vmatprep.subr.bf16.mxu0 0
    %406 = vmatpush1.bf16.msra.mxu0 0
    %407 = vmatprep.subr.bf16.mxu0 0
    %408 = vmatpush1.bf16.msra.mxu0 0
    %409 = vmatprep.subr.bf16.mxu0 0
    %410 = vmatpush1.bf16.msra.mxu0 0
    %411 = vmatprep.subr.bf16.mxu0 0
    %412 = vmatpush1.bf16.msra.mxu0 0
    %413 = vmatprep.subr.bf16.mxu0 0
    %414 = vmatpush1.bf16.msra.mxu0 0
    %415 = vmatprep.subr.bf16.mxu0 0
    %416 = vmatpush1.bf16.msra.mxu0 0
    %417 = vmatprep.subr.bf16.mxu0 0
    %418 = vmatpush1.bf16.msra.mxu0 0
    %419 = vmatprep.subr.bf16.mxu0 0
    %420 = vmatpush1.bf16.msra.mxu0 0
    %421 = vmatprep.subr.bf16.mxu0 0
    %422 = vmatpush1.bf16.msra.mxu0 0
    %423 = vmatprep.subr.bf16.mxu0 0
    %424 = vmatpush1.bf16.msra.mxu0 0
    %425 = vmatprep.mubr.bf16.mxu0 0
    %426 = vmatmul.mubr.bf16.gmra.mrb[0].mxu0 %v350
    %v427 = vpop.f32.mrb[0].mxu0
    %v428 = vadd.f32 %v260, %v427
    %v429 = vpop.f32.mrb[0].mxu0
    %v430 = vadd.f32 %v264, %v429
    %v431 = vpop.f32.mrb[0].mxu0
    %v432 = vpop.f32.mrb[0].mxu0
    %433 = vdwg.mxu0
    %v434 = vmax.f32 %v387, 0.0
    %v435 = vmax.f32 %v389, 0.0
    %v436 = vmax.f32 %v428, 0.0
    %v437 = vmax.f32 %v430, 0.0
    %v438 = vpack.c.bf16 %v434, %v434
    %v439 = vpack.c.bf16 %v435, %v435
    %v440 = vpack.c.bf16 %v436, %v436
    %v441 = vpack.c.bf16 %v437, %v437
    %v442 = vld [vmem:[%s9] sm:$0xf]
    %v443 = vld [vmem:[%s9 + $0x4] sm:$0xf]
    %v444 = vld [vmem:[%s9 + $0x8] sm:$0xf]
    %v445 = vld [vmem:[%s9 + $0xc] sm:$0xf]
    %v446 = vld [vmem:[%s9 + $0x10] sm:$0xf]
    %v447 = vld [vmem:[%s9 + $0x14] sm:$0xf]
    %v448 = vld [vmem:[%s9 + $0x18] sm:$0xf]
    %v449 = vld [vmem:[%s9 + $0x1c] sm:$0xf]
    %v450 = vld [vmem:[%s9 + $0x20] sm:$0xf]
    %v451 = vld [vmem:[%s9 + $0x24] sm:$0xf]
    %v452 = vld [vmem:[%s9 + $0x28] sm:$0xf]
    %v453 = vld [vmem:[%s9 + $0x2c] sm:$0xf]
    %v454 = vld [vmem:[%s9 + $0x30] sm:$0xf]
    %v455 = vld [vmem:[%s9 + $0x34] sm:$0xf]
    %v456 = vld [vmem:[%s9 + $0x38] sm:$0xf]
    %v457 = vld [vmem:[%s9 + $0x3c] sm:$0xf]
    %v458 = vld [vmem:[%s9 + $0x40] sm:$0xf]
    %v459 = vld [vmem:[%s9 + $0x44] sm:$0xf]
    %v460 = vld [vmem:[%s9 + $0x48] sm:$0xf]
    %v461 = vld [vmem:[%s9 + $0x4c] sm:$0xf]
    %v462 = vld [vmem:[%s9 + $0x50] sm:$0xf]
    %v463 = vld [vmem:[%s9 + $0x54] sm:$0xf]
    %v464 = vld [vmem:[%s9 + $0x58] sm:$0xf]
    %v465 = vld [vmem:[%s9 + $0x5c] sm:$0xf]
    %v466 = vld [vmem:[%s9 + $0x60] sm:$0xf]
    %v467 = vld [vmem:[%s9 + $0x64] sm:$0xf]
    %v468 = vld [vmem:[%s9 + $0x68] sm:$0xf]
    %v469 = vld [vmem:[%s9 + $0x6c] sm:$0xf]
    %v470 = vld [vmem:[%s9 + $0x70] sm:$0xf]
    %v471 = vld [vmem:[%s9 + $0x74] sm:$0xf]
    %v472 = vld [vmem:[%s9 + $0x78] sm:$0xf]
    %v473 = vld [vmem:[%s9 + $0x7c] sm:$0xf]
    %v474 = vld [vmem:[%s9 + $0x80] sm:$0xf]
    %v475 = vld [vmem:[%s9 + $0x84] sm:$0xf]
    %v476 = vld [vmem:[%s9 + $0x88] sm:$0xf]
    %v477 = vld [vmem:[%s9 + $0x8c] sm:$0xf]
    %v478 = vld [vmem:[%s9 + $0x90] sm:$0xf]
    %v479 = vld [vmem:[%s9 + $0x94] sm:$0xf]
    %v480 = vld [vmem:[%s9 + $0x98] sm:$0xf]
    %v481 = vld [vmem:[%s9 + $0x9c] sm:$0xf]
    %v482 = vld [vmem:[%s9 + $0xa0] sm:$0xf]
    %v483 = vld [vmem:[%s9 + $0xa4] sm:$0xf]
    %v484 = vld [vmem:[%s9 + $0xa8] sm:$0xf]
    %v485 = vld [vmem:[%s9 + $0xac] sm:$0xf]
    %v486 = vld [vmem:[%s9 + $0xb0] sm:$0xf]
    %v487 = vld [vmem:[%s9 + $0xb4] sm:$0xf]
    %v488 = vld [vmem:[%s9 + $0xb8] sm:$0xf]
    %v489 = vld [vmem:[%s9 + $0xbc] sm:$0xf]
    %v490 = vld [vmem:[%s9 + $0xc0] sm:$0xf]
    %v491 = vld [vmem:[%s9 + $0xc4] sm:$0xf]
    %v492 = vld [vmem:[%s9 + $0xc8] sm:$0xf]
    %v493 = vld [vmem:[%s9 + $0xcc] sm:$0xf]
    %v494 = vld [vmem:[%s9 + $0xd0] sm:$0xf]
    %v495 = vld [vmem:[%s9 + $0xd4] sm:$0xf]
    %v496 = vld [vmem:[%s9 + $0xd8] sm:$0xf]
    %v497 = vld [vmem:[%s9 + $0xdc] sm:$0xf]
    %v498 = vld [vmem:[%s9 + $0xe0] sm:$0xf]
    %v499 = vld [vmem:[%s9 + $0xe4] sm:$0xf]
    %v500 = vld [vmem:[%s9 + $0xe8] sm:$0xf]
    %v501 = vld [vmem:[%s9 + $0xec] sm:$0xf]
    %v502 = vld [vmem:[%s9 + $0xf0] sm:$0xf]
    %v503 = vld [vmem:[%s9 + $0xf4] sm:$0xf]
    %v504 = vld [vmem:[%s9 + $0xf8] sm:$0xf]
    %v505 = vld [vmem:[%s9 + $0xfc] sm:$0xf]
    %v506 = vld [vmem:[%s7 + $0x10] sm:$0xff]
    %v507 = vld [vmem:[%s7 + $0x18] sm:$0xff]
    %v508 = vld [vmem:[%s7 + $0x50] sm:$0xff]
    %v509 = vld [vmem:[%s7 + $0x58] sm:$0xff]
    %v510 = vld [vmem:[%s7 + $0x90] sm:$0xff]
    %v511 = vld [vmem:[%s7 + $0x98] sm:$0xff]
    %v512 = vld [vmem:[%s7 + $0xd0] sm:$0xff]
    %v513 = vld [vmem:[%s7 + $0xd8] sm:$0xff]
    %v514 = vld [vmem:[%s7 + $0x110] sm:$0xff]
    %v515 = vld [vmem:[%s7 + $0x118] sm:$0xff]
    %v516 = vld [vmem:[%s7 + $0x150] sm:$0xff]
    %v517 = vld [vmem:[%s7 + $0x158] sm:$0xff]
    %v518 = vld [vmem:[%s7 + $0x190] sm:$0xff]
    %v519 = vld [vmem:[%s7 + $0x198] sm:$0xff]
    %v520 = vld [vmem:[%s7 + $0x1d0] sm:$0xff]
    %v521 = vld [vmem:[%s7 + $0x1d8] sm:$0xff]
    %v522 = vld [vmem:[%s8 + $0x4] sm:$0xf]
    %v524 = vlaneseq
    %v525 = vshrl.u32 %v524, 7
    %v526 = vsub.s32 0, %v525
    %v527 = vrot.slane %v522, %v526
    %v528 = vlaneseq
    %v529 = vshrl.u32 %v528, 7
    %v530 = vsub.s32 1, %v529
    %v531 = vrot.slane %v522, %v530
    %v532 = vlaneseq
    %v533 = vshrl.u32 %v532, 7
    %v534 = vsub.s32 2, %v533
    %v535 = vrot.slane %v522, %v534
    %v536 = vlaneseq
    %v537 = vshrl.u32 %v536, 7
    %v538 = vsub.s32 3, %v537
    %v539 = vrot.slane %v522, %v538
    %v560 = vunpack.c.l.b16 %v506
    %v561 = vunpack.c.h.b16 %v506
    %v562 = vunpack.c.l.b16 %v507
    %v563 = vunpack.c.h.b16 %v507
    %v564 = vunpack.c.l.b16 %v508
    %v565 = vunpack.c.h.b16 %v508
    %v566 = vunpack.c.l.b16 %v509
    %v567 = vunpack.c.h.b16 %v509
    %v568 = vunpack.c.l.b16 %v510
    %v569 = vunpack.c.h.b16 %v510
    %v570 = vunpack.c.l.b16 %v511
    %v571 = vunpack.c.h.b16 %v511
    %v572 = vunpack.c.l.b16 %v512
    %v573 = vunpack.c.h.b16 %v512
    %v574 = vunpack.c.l.b16 %v513
    %v575 = vunpack.c.h.b16 %v513
    %v576 = vunpack.c.l.b16 %v514
    %v577 = vunpack.c.h.b16 %v514
    %v578 = vunpack.c.l.b16 %v515
    %v579 = vunpack.c.h.b16 %v515
    %v580 = vunpack.c.l.b16 %v516
    %v581 = vunpack.c.h.b16 %v516
    %v582 = vunpack.c.l.b16 %v517
    %v583 = vunpack.c.h.b16 %v517
    %v584 = vunpack.c.l.b16 %v518
    %v585 = vunpack.c.h.b16 %v518
    %v586 = vunpack.c.l.b16 %v519
    %v587 = vunpack.c.h.b16 %v519
    %v588 = vunpack.c.l.b16 %v520
    %v589 = vunpack.c.h.b16 %v520
    %v590 = vunpack.c.l.b16 %v521
    %v591 = vunpack.c.h.b16 %v521
    %v592 = vpack.c.b16 %v564, %v560
    %v593 = vpack.c.b16 %v565, %v561
    %v594 = vpack.c.b16 %v566, %v562
    %v595 = vpack.c.b16 %v567, %v563
    %v596 = vpack.c.b16 %v572, %v568
    %v597 = vpack.c.b16 %v573, %v569
    %v598 = vpack.c.b16 %v574, %v570
    %v599 = vpack.c.b16 %v575, %v571
    %v600 = vpack.c.b16 %v580, %v576
    %v601 = vpack.c.b16 %v581, %v577
    %v602 = vpack.c.b16 %v582, %v578
    %v603 = vpack.c.b16 %v583, %v579
    %v604 = vpack.c.b16 %v588, %v584
    %v605 = vpack.c.b16 %v589, %v585
    %v606 = vpack.c.b16 %v590, %v586
    %v607 = vpack.c.b16 %v591, %v587
    %624 = vmatprep.subr.bf16.mxu0 %v593
    %625 = vmatpush1.bf16.msra.mxu0 %v592
    %626 = vmatprep.subr.bf16.mxu0 %v597
    %627 = vmatpush1.bf16.msra.mxu0 %v596
    %628 = vmatprep.subr.bf16.mxu0 %v601
    %629 = vmatpush1.bf16.msra.mxu0 %v600
    %630 = vmatprep.subr.bf16.mxu0 %v605
    %631 = vmatpush1.bf16.msra.mxu0 %v604
    %632 = vmatprep.subr.bf16.mxu0 0
    %633 = vmatpush1.bf16.msra.mxu0 0
    %634 = vmatprep.subr.bf16.mxu0 0
    %635 = vmatpush1.bf16.msra.mxu0 0
    %636 = vmatprep.subr.bf16.mxu0 0
    %637 = vmatpush1.bf16.msra.mxu0 0
    %638 = vmatprep.subr.bf16.mxu0 0
    %639 = vmatpush1.bf16.msra.mxu0 0
    %640 = vmatprep.subr.bf16.mxu0 0
    %641 = vmatpush1.bf16.msra.mxu0 0
    %642 = vmatprep.subr.bf16.mxu0 0
    %643 = vmatpush1.bf16.msra.mxu0 0
    %644 = vmatprep.subr.bf16.mxu0 0
    %645 = vmatpush1.bf16.msra.mxu0 0
    %646 = vmatprep.subr.bf16.mxu0 0
    %647 = vmatpush1.bf16.msra.mxu0 0
    %648 = vmatprep.subr.bf16.mxu0 0
    %649 = vmatpush1.bf16.msra.mxu0 0
    %650 = vmatprep.subr.bf16.mxu0 0
    %651 = vmatpush1.bf16.msra.mxu0 0
    %652 = vmatprep.subr.bf16.mxu0 0
    %653 = vmatpush1.bf16.msra.mxu0 0
    %654 = vmatprep.subr.bf16.mxu0 0
    %655 = vmatpush1.bf16.msra.mxu0 0
    %656 = vmatprep.mubr.bf16.mxu0 0
    %657 = vmatmul.mubr.bf16.gmra.mrb[0].mxu0 %v350
    %v658 = vpop.f32.mrb[0].mxu0
    %v659 = vadd.f32 %v527, %v658
    %v660 = vpop.f32.mrb[0].mxu0
    %v661 = vadd.f32 %v531, %v660
    %v662 = vpop.f32.mrb[0].mxu0
    %v663 = vpop.f32.mrb[0].mxu0
    %664 = vdwg.mxu0
    %665 = vmatprep.subr.bf16.mxu0 %v595
    %666 = vmatpush1.bf16.msra.mxu0 %v594
    %667 = vmatprep.subr.bf16.mxu0 %v599
    %668 = vmatpush1.bf16.msra.mxu0 %v598
    %669 = vmatprep.subr.bf16.mxu0 %v603
    %670 = vmatpush1.bf16.msra.mxu0 %v602
    %671 = vmatprep.subr.bf16.mxu0 %v607
    %672 = vmatpush1.bf16.msra.mxu0 %v606
    %673 = vmatprep.subr.bf16.mxu0 0
    %674 = vmatpush1.bf16.msra.mxu0 0
    %675 = vmatprep.subr.bf16.mxu0 0
    %676 = vmatpush1.bf16.msra.mxu0 0
    %677 = vmatprep.subr.bf16.mxu0 0
    %678 = vmatpush1.bf16.msra.mxu0 0
    %679 = vmatprep.subr.bf16.mxu0 0
    %680 = vmatpush1.bf16.msra.mxu0 0
    %681 = vmatprep.subr.bf16.mxu0 0
    %682 = vmatpush1.bf16.msra.mxu0 0
    %683 = vmatprep.subr.bf16.mxu0 0
    %684 = vmatpush1.bf16.msra.mxu0 0
    %685 = vmatprep.subr.bf16.mxu0 0
    %686 = vmatpush1.bf16.msra.mxu0 0
    %687 = vmatprep.subr.bf16.mxu0 0
    %688 = vmatpush1.bf16.msra.mxu0 0
    %689 = vmatprep.subr.bf16.mxu0 0
    %690 = vmatpush1.bf16.msra.mxu0 0
    %691 = vmatprep.subr.bf16.mxu0 0
    %692 = vmatpush1.bf16.msra.mxu0 0
    %693 = vmatprep.subr.bf16.mxu0 0
    %694 = vmatpush1.bf16.msra.mxu0 0
    %695 = vmatprep.subr.bf16.mxu0 0
    %696 = vmatpush1.bf16.msra.mxu0 0
    %697 = vmatprep.mubr.bf16.mxu0 0
    %698 = vmatmul.mubr.bf16.gmra.mrb[0].mxu0 %v350
    %v699 = vpop.f32.mrb[0].mxu0
    %v700 = vadd.f32 %v535, %v699
    %v701 = vpop.f32.mrb[0].mxu0
    %v702 = vadd.f32 %v539, %v701
    %v703 = vpop.f32.mrb[0].mxu0
    %v704 = vpop.f32.mrb[0].mxu0
    %705 = vdwg.mxu0
    %v706 = vmax.f32 %v659, 0.0
    %v707 = vmax.f32 %v661, 0.0
    %v708 = vmax.f32 %v700, 0.0
    %v709 = vmax.f32 %v702, 0.0
    %v710 = vpack.c.bf16 %v706, %v706
    %v711 = vpack.c.bf16 %v707, %v707
    %v712 = vpack.c.bf16 %v708, %v708
    %v713 = vpack.c.bf16 %v709, %v709
    %v714 = vld [vmem:[%s9 + $0x100] sm:$0xf]
    %v715 = vld [vmem:[%s9 + $0x104] sm:$0xf]
    %v716 = vld [vmem:[%s9 + $0x108] sm:$0xf]
    %v717 = vld [vmem:[%s9 + $0x10c] sm:$0xf]
    %v718 = vld [vmem:[%s9 + $0x110] sm:$0xf]
    %v719 = vld [vmem:[%s9 + $0x114] sm:$0xf]
    %v720 = vld [vmem:[%s9 + $0x118] sm:$0xf]
    %v721 = vld [vmem:[%s9 + $0x11c] sm:$0xf]
    %v722 = vld [vmem:[%s9 + $0x120] sm:$0xf]
    %v723 = vld [vmem:[%s9 + $0x124] sm:$0xf]
    %v724 = vld [vmem:[%s9 + $0x128] sm:$0xf]
    %v725 = vld [vmem:[%s9 + $0x12c] sm:$0xf]
    %v726 = vld [vmem:[%s9 + $0x130] sm:$0xf]
    %v727 = vld [vmem:[%s9 + $0x134] sm:$0xf]
    %v728 = vld [vmem:[%s9 + $0x138] sm:$0xf]
    %v729 = vld [vmem:[%s9 + $0x13c] sm:$0xf]
    %v730 = vld [vmem:[%s9 + $0x140] sm:$0xf]
    %v731 = vld [vmem:[%s9 + $0x144] sm:$0xf]
    %v732 = vld [vmem:[%s9 + $0x148] sm:$0xf]
    %v733 = vld [vmem:[%s9 + $0x14c] sm:$0xf]
    %v734 = vld [vmem:[%s9 + $0x150] sm:$0xf]
    %v735 = vld [vmem:[%s9 + $0x154] sm:$0xf]
    %v736 = vld [vmem:[%s9 + $0x158] sm:$0xf]
    %v737 = vld [vmem:[%s9 + $0x15c] sm:$0xf]
    %v738 = vld [vmem:[%s9 + $0x160] sm:$0xf]
    %v739 = vld [vmem:[%s9 + $0x164] sm:$0xf]
    %v740 = vld [vmem:[%s9 + $0x168] sm:$0xf]
    %v741 = vld [vmem:[%s9 + $0x16c] sm:$0xf]
    %v742 = vld [vmem:[%s9 + $0x170] sm:$0xf]
    %v743 = vld [vmem:[%s9 + $0x174] sm:$0xf]
    %v744 = vld [vmem:[%s9 + $0x178] sm:$0xf]
    %v745 = vld [vmem:[%s9 + $0x17c] sm:$0xf]
    %v746 = vld [vmem:[%s9 + $0x180] sm:$0xf]
    %v747 = vld [vmem:[%s9 + $0x184] sm:$0xf]
    %v748 = vld [vmem:[%s9 + $0x188] sm:$0xf]
    %v749 = vld [vmem:[%s9 + $0x18c] sm:$0xf]
    %v750 = vld [vmem:[%s9 + $0x190] sm:$0xf]
    %v751 = vld [vmem:[%s9 + $0x194] sm:$0xf]
    %v752 = vld [vmem:[%s9 + $0x198] sm:$0xf]
    %v753 = vld [vmem:[%s9 + $0x19c] sm:$0xf]
    %v754 = vld [vmem:[%s9 + $0x1a0] sm:$0xf]
    %v755 = vld [vmem:[%s9 + $0x1a4] sm:$0xf]
    %v756 = vld [vmem:[%s9 + $0x1a8] sm:$0xf]
    %v757 = vld [vmem:[%s9 + $0x1ac] sm:$0xf]
    %v758 = vld [vmem:[%s9 + $0x1b0] sm:$0xf]
    %v759 = vld [vmem:[%s9 + $0x1b4] sm:$0xf]
    %v760 = vld [vmem:[%s9 + $0x1b8] sm:$0xf]
    %v761 = vld [vmem:[%s9 + $0x1bc] sm:$0xf]
    %v762 = vld [vmem:[%s9 + $0x1c0] sm:$0xf]
    %v763 = vld [vmem:[%s9 + $0x1c4] sm:$0xf]
    %v764 = vld [vmem:[%s9 + $0x1c8] sm:$0xf]
    %v765 = vld [vmem:[%s9 + $0x1cc] sm:$0xf]
    %v766 = vld [vmem:[%s9 + $0x1d0] sm:$0xf]
    %v767 = vld [vmem:[%s9 + $0x1d4] sm:$0xf]
    %v768 = vld [vmem:[%s9 + $0x1d8] sm:$0xf]
    %v769 = vld [vmem:[%s9 + $0x1dc] sm:$0xf]
    %v770 = vld [vmem:[%s9 + $0x1e0] sm:$0xf]
    %v771 = vld [vmem:[%s9 + $0x1e4] sm:$0xf]
    %v772 = vld [vmem:[%s9 + $0x1e8] sm:$0xf]
    %v773 = vld [vmem:[%s9 + $0x1ec] sm:$0xf]
    %v774 = vld [vmem:[%s9 + $0x1f0] sm:$0xf]
    %v775 = vld [vmem:[%s9 + $0x1f4] sm:$0xf]
    %v776 = vld [vmem:[%s9 + $0x1f8] sm:$0xf]
    %v777 = vld [vmem:[%s9 + $0x1fc] sm:$0xf]
    %v842 = vunpack.c.l.b16 %v714
    %v843 = vunpack.c.l.b16 %v715
    %v844 = vunpack.c.l.b16 %v716
    %v845 = vunpack.c.l.b16 %v717
    %v846 = vunpack.c.l.b16 %v718
    %v847 = vunpack.c.l.b16 %v719
    %v848 = vunpack.c.l.b16 %v720
    %v849 = vunpack.c.l.b16 %v721
    %v850 = vunpack.c.l.b16 %v722
    %v851 = vunpack.c.l.b16 %v723
    %v852 = vunpack.c.l.b16 %v724
    %v853 = vunpack.c.l.b16 %v725
    %v854 = vunpack.c.l.b16 %v726
    %v855 = vunpack.c.l.b16 %v727
    %v856 = vunpack.c.l.b16 %v728
    %v857 = vunpack.c.l.b16 %v729
    %v858 = vunpack.c.l.b16 %v730
    %v859 = vunpack.c.l.b16 %v731
    %v860 = vunpack.c.l.b16 %v732
    %v861 = vunpack.c.l.b16 %v733
    %v862 = vunpack.c.l.b16 %v734
    %v863 = vunpack.c.l.b16 %v735
    %v864 = vunpack.c.l.b16 %v736
    %v865 = vunpack.c.l.b16 %v737
    %v866 = vunpack.c.l.b16 %v738
    %v867 = vunpack.c.l.b16 %v739
    %v868 = vunpack.c.l.b16 %v740
    %v869 = vunpack.c.l.b16 %v741
    %v870 = vunpack.c.l.b16 %v742
    %v871 = vunpack.c.l.b16 %v743
    %v872 = vunpack.c.l.b16 %v744
    %v873 = vunpack.c.l.b16 %v745
    %v874 = vunpack.c.l.b16 %v746
    %v875 = vunpack.c.l.b16 %v747
    %v876 = vunpack.c.l.b16 %v748
    %v877 = vunpack.c.l.b16 %v749
    %v878 = vunpack.c.l.b16 %v750
    %v879 = vunpack.c.l.b16 %v751
    %v880 = vunpack.c.l.b16 %v752
    %v881 = vunpack.c.l.b16 %v753
    %v882 = vunpack.c.l.b16 %v754
    %v883 = vunpack.c.l.b16 %v755
    %v884 = vunpack.c.l.b16 %v756
    %v885 = vunpack.c.l.b16 %v757
    %v886 = vunpack.c.l.b16 %v758
    %v887 = vunpack.c.l.b16 %v759
    %v888 = vunpack.c.l.b16 %v760
    %v889 = vunpack.c.l.b16 %v761
    %v890 = vunpack.c.l.b16 %v762
    %v891 = vunpack.c.l.b16 %v763
    %v892 = vunpack.c.l.b16 %v764
    %v893 = vunpack.c.l.b16 %v765
    %v894 = vunpack.c.l.b16 %v766
    %v895 = vunpack.c.l.b16 %v767
    %v896 = vunpack.c.l.b16 %v768
    %v897 = vunpack.c.l.b16 %v769
    %v898 = vunpack.c.l.b16 %v770
    %v899 = vunpack.c.l.b16 %v771
    %v900 = vunpack.c.l.b16 %v772
    %v901 = vunpack.c.l.b16 %v773
    %v902 = vunpack.c.l.b16 %v774
    %v903 = vunpack.c.l.b16 %v775
    %v904 = vunpack.c.l.b16 %v776
    %v905 = vunpack.c.l.b16 %v777
    %v906 = vpack.c.b16 %v843, %v842
    %v907 = vpack.c.b16 %v845, %v844
    %v908 = vpack.c.b16 %v847, %v846
    %v909 = vpack.c.b16 %v849, %v848
    %v910 = vpack.c.b16 %v851, %v850
    %v911 = vpack.c.b16 %v853, %v852
    %v912 = vpack.c.b16 %v855, %v854
    %v913 = vpack.c.b16 %v857, %v856
    %v914 = vpack.c.b16 %v859, %v858
    %v915 = vpack.c.b16 %v861, %v860
    %v916 = vpack.c.b16 %v863, %v862
    %v917 = vpack.c.b16 %v865, %v864
    %v918 = vpack.c.b16 %v867, %v866
    %v919 = vpack.c.b16 %v869, %v868
    %v920 = vpack.c.b16 %v871, %v870
    %v921 = vpack.c.b16 %v873, %v872
    %v922 = vpack.c.b16 %v875, %v874
    %v923 = vpack.c.b16 %v877, %v876
    %v924 = vpack.c.b16 %v879, %v878
    %v925 = vpack.c.b16 %v881, %v880
    %v926 = vpack.c.b16 %v883, %v882
    %v927 = vpack.c.b16 %v885, %v884
    %v928 = vpack.c.b16 %v887, %v886
    %v929 = vpack.c.b16 %v889, %v888
    %v930 = vpack.c.b16 %v891, %v890
    %v931 = vpack.c.b16 %v893, %v892
    %v932 = vpack.c.b16 %v895, %v894
    %v933 = vpack.c.b16 %v897, %v896
    %v934 = vpack.c.b16 %v899, %v898
    %v935 = vpack.c.b16 %v901, %v900
    %v936 = vpack.c.b16 %v903, %v902
    %v937 = vpack.c.b16 %v905, %v904
    %970 = vmatprep.subr.bf16.mxu0 0
    %971 = vmatpush1.bf16.msra.mxu0 %v906
    %972 = vmatprep.subr.bf16.mxu0 0
    %973 = vmatpush1.bf16.msra.mxu0 %v907
    %974 = vmatprep.subr.bf16.mxu0 0
    %975 = vmatpush1.bf16.msra.mxu0 %v908
    %976 = vmatprep.subr.bf16.mxu0 0
    %977 = vmatpush1.bf16.msra.mxu0 %v909
    %978 = vmatprep.subr.bf16.mxu0 0
    %979 = vmatpush1.bf16.msra.mxu0 %v910
    %980 = vmatprep.subr.bf16.mxu0 0
    %981 = vmatpush1.bf16.msra.mxu0 %v911
    %982 = vmatprep.subr.bf16.mxu0 0
    %983 = vmatpush1.bf16.msra.mxu0 %v912
    %984 = vmatprep.subr.bf16.mxu0 0
    %985 = vmatpush1.bf16.msra.mxu0 %v913
    %986 = vmatprep.subr.bf16.mxu0 0
    %987 = vmatpush1.bf16.msra.mxu0 %v914
    %988 = vmatprep.subr.bf16.mxu0 0
    %989 = vmatpush1.bf16.msra.mxu0 %v915
    %990 = vmatprep.subr.bf16.mxu0 0
    %991 = vmatpush1.bf16.msra.mxu0 %v916
    %992 = vmatprep.subr.bf16.mxu0 0
    %993 = vmatpush1.bf16.msra.mxu0 %v917
    %994 = vmatprep.subr.bf16.mxu0 0
    %995 = vmatpush1.bf16.msra.mxu0 %v918
    %996 = vmatprep.subr.bf16.mxu0 0
    %997 = vmatpush1.bf16.msra.mxu0 %v919
    %998 = vmatprep.subr.bf16.mxu0 0
    %999 = vmatpush1.bf16.msra.mxu0 %v920
    %1000 = vmatprep.subr.bf16.mxu0 0
    %1001 = vmatpush1.bf16.msra.mxu0 %v921
    %1002 = vmatprep.mubr.bf16.mxu0 %v711
    %1003 = vmatmul.mubr.bf16.gmra.mrb[0].mxu0 %v710
    %v1004 = vpop.f32.mrb[0].mxu0
    %v1005 = vadd.f32 0.0, %v1004
    %v1006 = vpop.f32.mrb[0].mxu0
    %v1007 = vpop.f32.mrb[0].mxu0
    %v1008 = vpop.f32.mrb[0].mxu0
    %1009 = vdwg.mxu0
    %1010 = vmatprep.subr.bf16.mxu0 0
    %1011 = vmatpush1.bf16.msra.mxu0 %v922
    %1012 = vmatprep.subr.bf16.mxu0 0
    %1013 = vmatpush1.bf16.msra.mxu0 %v923
    %1014 = vmatprep.subr.bf16.mxu0 0
    %1015 = vmatpush1.bf16.msra.mxu0 %v924
    %1016 = vmatprep.subr.bf16.mxu0 0
    %1017 = vmatpush1.bf16.msra.mxu0 %v925
    %1018 = vmatprep.subr.bf16.mxu0 0
    %1019 = vmatpush1.bf16.msra.mxu0 %v926
    %1020 = vmatprep.subr.bf16.mxu0 0
    %1021 = vmatpush1.bf16.msra.mxu0 %v927
    %1022 = vmatprep.subr.bf16.mxu0 0
    %1023 = vmatpush1.bf16.msra.mxu0 %v928
    %1024 = vmatprep.subr.bf16.mxu0 0
    %1025 = vmatpush1.bf16.msra.mxu0 %v929
    %1026 = vmatprep.subr.bf16.mxu0 0
    %1027 = vmatpush1.bf16.msra.mxu0 %v930
    %1028 = vmatprep.subr.bf16.mxu0 0
    %1029 = vmatpush1.bf16.msra.mxu0 %v931
    %1030 = vmatprep.subr.bf16.mxu0 0
    %1031 = vmatpush1.bf16.msra.mxu0 %v932
    %1032 = vmatprep.subr.bf16.mxu0 0
    %1033 = vmatpush1.bf16.msra.mxu0 %v933
    %1034 = vmatprep.subr.bf16.mxu0 0
    %1035 = vmatpush1.bf16.msra.mxu0 %v934
    %1036 = vmatprep.subr.bf16.mxu0 0
    %1037 = vmatpush1.bf16.msra.mxu0 %v935
    %1038 = vmatprep.subr.bf16.mxu0 0
    %1039 = vmatpush1.bf16.msra.mxu0 %v936
    %1040 = vmatprep.subr.bf16.mxu0 0
    %1041 = vmatpush1.bf16.msra.mxu0 %v937
    %1042 = vmatprep.mubr.bf16.mxu0 %v713
    %1043 = vmatmul.mubr.bf16.gmra.mrb[0].mxu0 %v712
    %v1044 = vpop.f32.mrb[0].mxu0
    %v1045 = vadd.f32 %v1005, %v1044
    %v1046 = vpop.f32.mrb[0].mxu0
    %v1047 = vpop.f32.mrb[0].mxu0
    %v1048 = vpop.f32.mrb[0].mxu0
    %1049 = vdwg.mxu0
    %v1114 = vunpack.c.l.b16 %v442
    %v1115 = vunpack.c.l.b16 %v443
    %v1116 = vunpack.c.l.b16 %v444
    %v1117 = vunpack.c.l.b16 %v445
    %v1118 = vunpack.c.l.b16 %v446
    %v1119 = vunpack.c.l.b16 %v447
    %v1120 = vunpack.c.l.b16 %v448
    %v1121 = vunpack.c.l.b16 %v449
    %v1122 = vunpack.c.l.b16 %v450
    %v1123 = vunpack.c.l.b16 %v451
    %v1124 = vunpack.c.l.b16 %v452
    %v1125 = vunpack.c.l.b16 %v453
    %v1126 = vunpack.c.l.b16 %v454
    %v1127 = vunpack.c.l.b16 %v455
    %v1128 = vunpack.c.l.b16 %v456
    %v1129 = vunpack.c.l.b16 %v457
    %v1130 = vunpack.c.l.b16 %v458
    %v1131 = vunpack.c.l.b16 %v459
    %v1132 = vunpack.c.l.b16 %v460
    %v1133 = vunpack.c.l.b16 %v461
    %v1134 = vunpack.c.l.b16 %v462
    %v1135 = vunpack.c.l.b16 %v463
    %v1136 = vunpack.c.l.b16 %v464
    %v1137 = vunpack.c.l.b16 %v465
    %v1138 = vunpack.c.l.b16 %v466
    %v1139 = vunpack.c.l.b16 %v467
    %v1140 = vunpack.c.l.b16 %v468
    %v1141 = vunpack.c.l.b16 %v469
    %v1142 = vunpack.c.l.b16 %v470
    %v1143 = vunpack.c.l.b16 %v471
    %v1144 = vunpack.c.l.b16 %v472
    %v1145 = vunpack.c.l.b16 %v473
    %v1146 = vunpack.c.l.b16 %v474
    %v1147 = vunpack.c.l.b16 %v475
    %v1148 = vunpack.c.l.b16 %v476
    %v1149 = vunpack.c.l.b16 %v477
    %v1150 = vunpack.c.l.b16 %v478
    %v1151 = vunpack.c.l.b16 %v479
    %v1152 = vunpack.c.l.b16 %v480
    %v1153 = vunpack.c.l.b16 %v481
    %v1154 = vunpack.c.l.b16 %v482
    %v1155 = vunpack.c.l.b16 %v483
    %v1156 = vunpack.c.l.b16 %v484
    %v1157 = vunpack.c.l.b16 %v485
    %v1158 = vunpack.c.l.b16 %v486
    %v1159 = vunpack.c.l.b16 %v487
    %v1160 = vunpack.c.l.b16 %v488
    %v1161 = vunpack.c.l.b16 %v489
    %v1162 = vunpack.c.l.b16 %v490
    %v1163 = vunpack.c.l.b16 %v491
    %v1164 = vunpack.c.l.b16 %v492
    %v1165 = vunpack.c.l.b16 %v493
    %v1166 = vunpack.c.l.b16 %v494
    %v1167 = vunpack.c.l.b16 %v495
    %v1168 = vunpack.c.l.b16 %v496
    %v1169 = vunpack.c.l.b16 %v497
    %v1170 = vunpack.c.l.b16 %v498
    %v1171 = vunpack.c.l.b16 %v499
    %v1172 = vunpack.c.l.b16 %v500
    %v1173 = vunpack.c.l.b16 %v501
    %v1174 = vunpack.c.l.b16 %v502
    %v1175 = vunpack.c.l.b16 %v503
    %v1176 = vunpack.c.l.b16 %v504
    %v1177 = vunpack.c.l.b16 %v505
    %v1178 = vpack.c.b16 %v1115, %v1114
    %v1179 = vpack.c.b16 %v1117, %v1116
    %v1180 = vpack.c.b16 %v1119, %v1118
    %v1181 = vpack.c.b16 %v1121, %v1120
    %v1182 = vpack.c.b16 %v1123, %v1122
    %v1183 = vpack.c.b16 %v1125, %v1124
    %v1184 = vpack.c.b16 %v1127, %v1126
    %v1185 = vpack.c.b16 %v1129, %v1128
    %v1186 = vpack.c.b16 %v1131, %v1130
    %v1187 = vpack.c.b16 %v1133, %v1132
    %v1188 = vpack.c.b16 %v1135, %v1134
    %v1189 = vpack.c.b16 %v1137, %v1136
    %v1190 = vpack.c.b16 %v1139, %v1138
    %v1191 = vpack.c.b16 %v1141, %v1140
    %v1192 = vpack.c.b16 %v1143, %v1142
    %v1193 = vpack.c.b16 %v1145, %v1144
    %v1194 = vpack.c.b16 %v1147, %v1146
    %v1195 = vpack.c.b16 %v1149, %v1148
    %v1196 = vpack.c.b16 %v1151, %v1150
    %v1197 = vpack.c.b16 %v1153, %v1152
    %v1198 = vpack.c.b16 %v1155, %v1154
    %v1199 = vpack.c.b16 %v1157, %v1156
    %v1200 = vpack.c.b16 %v1159, %v1158
    %v1201 = vpack.c.b16 %v1161, %v1160
    %v1202 = vpack.c.b16 %v1163, %v1162
    %v1203 = vpack.c.b16 %v1165, %v1164
    %v1204 = vpack.c.b16 %v1167, %v1166
    %v1205 = vpack.c.b16 %v1169, %v1168
    %v1206 = vpack.c.b16 %v1171, %v1170
    %v1207 = vpack.c.b16 %v1173, %v1172
    %v1208 = vpack.c.b16 %v1175, %v1174
    %v1209 = vpack.c.b16 %v1177, %v1176
    %1242 = vmatprep.subr.bf16.mxu0 0
    %1243 = vmatpush1.bf16.msra.mxu0 %v1178
    %1244 = vmatprep.subr.bf16.mxu0 0
    %1245 = vmatpush1.bf16.msra.mxu0 %v1179
    %1246 = vmatprep.subr.bf16.mxu0 0
    %1247 = vmatpush1.bf16.msra.mxu0 %v1180
    %1248 = vmatprep.subr.bf16.mxu0 0
    %1249 = vmatpush1.bf16.msra.mxu0 %v1181
    %1250 = vmatprep.subr.bf16.mxu0 0
    %1251 = vmatpush1.bf16.msra.mxu0 %v1182
    %1252 = vmatprep.subr.bf16.mxu0 0
    %1253 = vmatpush1.bf16.msra.mxu0 %v1183
    %1254 = vmatprep.subr.bf16.mxu0 0
    %1255 = vmatpush1.bf16.msra.mxu0 %v1184
    %1256 = vmatprep.subr.bf16.mxu0 0
    %1257 = vmatpush1.bf16.msra.mxu0 %v1185
    %1258 = vmatprep.subr.bf16.mxu0 0
    %1259 = vmatpush1.bf16.msra.mxu0 %v1186
    %1260 = vmatprep.subr.bf16.mxu0 0
    %1261 = vmatpush1.bf16.msra.mxu0 %v1187
    %1262 = vmatprep.subr.bf16.mxu0 0
    %1263 = vmatpush1.bf16.msra.mxu0 %v1188
    %1264 = vmatprep.subr.bf16.mxu0 0
    %1265 = vmatpush1.bf16.msra.mxu0 %v1189
    %1266 = vmatprep.subr.bf16.mxu0 0
    %1267 = vmatpush1.bf16.msra.mxu0 %v1190
    %1268 = vmatprep.subr.bf16.mxu0 0
    %1269 = vmatpush1.bf16.msra.mxu0 %v1191
    %1270 = vmatprep.subr.bf16.mxu0 0
    %1271 = vmatpush1.bf16.msra.mxu0 %v1192
    %1272 = vmatprep.subr.bf16.mxu0 0
    %1273 = vmatpush1.bf16.msra.mxu0 %v1193
    %1274 = vmatprep.mubr.bf16.mxu0 %v439
    %1275 = vmatmul.mubr.bf16.gmra.mrb[0].mxu0 %v438
    %v1276 = vpop.f32.mrb[0].mxu0
    %v1277 = vadd.f32 %v1045, %v1276
    %v1278 = vpop.f32.mrb[0].mxu0
    %v1279 = vpop.f32.mrb[0].mxu0
    %v1280 = vpop.f32.mrb[0].mxu0
    %1281 = vdwg.mxu0
    %1282 = vmatprep.subr.bf16.mxu0 0
    %1283 = vmatpush1.bf16.msra.mxu0 %v1194
    %1284 = vmatprep.subr.bf16.mxu0 0
    %1285 = vmatpush1.bf16.msra.mxu0 %v1195
    %1286 = vmatprep.subr.bf16.mxu0 0
    %1287 = vmatpush1.bf16.msra.mxu0 %v1196
    %1288 = vmatprep.subr.bf16.mxu0 0
    %1289 = vmatpush1.bf16.msra.mxu0 %v1197
    %1290 = vmatprep.subr.bf16.mxu0 0
    %1291 = vmatpush1.bf16.msra.mxu0 %v1198
    %1292 = vmatprep.subr.bf16.mxu0 0
    %1293 = vmatpush1.bf16.msra.mxu0 %v1199
    %1294 = vmatprep.subr.bf16.mxu0 0
    %1295 = vmatpush1.bf16.msra.mxu0 %v1200
    %1296 = vmatprep.subr.bf16.mxu0 0
    %1297 = vmatpush1.bf16.msra.mxu0 %v1201
    %1298 = vmatprep.subr.bf16.mxu0 0
    %1299 = vmatpush1.bf16.msra.mxu0 %v1202
    %1300 = vmatprep.subr.bf16.mxu0 0
    %1301 = vmatpush1.bf16.msra.mxu0 %v1203
    %1302 = vmatprep.subr.bf16.mxu0 0
    %1303 = vmatpush1.bf16.msra.mxu0 %v1204
    %1304 = vmatprep.subr.bf16.mxu0 0
    %1305 = vmatpush1.bf16.msra.mxu0 %v1205
    %1306 = vmatprep.subr.bf16.mxu0 0
    %1307 = vmatpush1.bf16.msra.mxu0 %v1206
    %1308 = vmatprep.subr.bf16.mxu0 0
    %1309 = vmatpush1.bf16.msra.mxu0 %v1207
    %1310 = vmatprep.subr.bf16.mxu0 0
    %1311 = vmatpush1.bf16.msra.mxu0 %v1208
    %1312 = vmatprep.subr.bf16.mxu0 0
    %1313 = vmatpush1.bf16.msra.mxu0 %v1209
    %1314 = vmatprep.mubr.bf16.mxu0 %v441
    %1315 = vmatmul.mubr.bf16.gmra.mrb[0].mxu0 %v440
    %v1316 = vpop.f32.mrb[0].mxu0
    %v1317 = vadd.f32 %v1277, %v1316
    %v1318 = vpop.f32.mrb[0].mxu0
    %v1319 = vpop.f32.mrb[0].mxu0
    %v1320 = vpop.f32.mrb[0].mxu0
    %1321 = vdwg.mxu0
    %v1322 = vld [vmem:[%s7 + $0x20] sm:$0xff]
    %v1323 = vld [vmem:[%s7 + $0x28] sm:$0xff]
    %v1324 = vld [vmem:[%s7 + $0x60] sm:$0xff]
    %v1325 = vld [vmem:[%s7 + $0x68] sm:$0xff]
    %v1326 = vld [vmem:[%s7 + $0xa0] sm:$0xff]
    %v1327 = vld [vmem:[%s7 + $0xa8] sm:$0xff]
    %v1328 = vld [vmem:[%s7 + $0xe0] sm:$0xff]
    %v1329 = vld [vmem:[%s7 + $0xe8] sm:$0xff]
    %v1330 = vld [vmem:[%s7 + $0x120] sm:$0xff]
    %v1331 = vld [vmem:[%s7 + $0x128] sm:$0xff]
    %v1332 = vld [vmem:[%s7 + $0x160] sm:$0xff]
    %v1333 = vld [vmem:[%s7 + $0x168] sm:$0xff]
    %v1334 = vld [vmem:[%s7 + $0x1a0] sm:$0xff]
    %v1335 = vld [vmem:[%s7 + $0x1a8] sm:$0xff]
    %v1336 = vld [vmem:[%s7 + $0x1e0] sm:$0xff]
    %v1337 = vld [vmem:[%s7 + $0x1e8] sm:$0xff]
    %v1338 = vld [vmem:[%s8 + $0x8] sm:$0xf]
    %v1340 = vlaneseq
    %v1341 = vshrl.u32 %v1340, 7
    %v1342 = vsub.s32 0, %v1341
    %v1343 = vrot.slane %v1338, %v1342
    %v1344 = vlaneseq
    %v1345 = vshrl.u32 %v1344, 7
    %v1346 = vsub.s32 1, %v1345
    %v1347 = vrot.slane %v1338, %v1346
    %v1348 = vlaneseq
    %v1349 = vshrl.u32 %v1348, 7
    %v1350 = vsub.s32 2, %v1349
    %v1351 = vrot.slane %v1338, %v1350
    %v1352 = vlaneseq
    %v1353 = vshrl.u32 %v1352, 7
    %v1354 = vsub.s32 3, %v1353
    %v1355 = vrot.slane %v1338, %v1354
    %v1376 = vunpack.c.l.b16 %v1322
    %v1377 = vunpack.c.h.b16 %v1322
    %v1378 = vunpack.c.l.b16 %v1323
    %v1379 = vunpack.c.h.b16 %v1323
    %v1380 = vunpack.c.l.b16 %v1324
    %v1381 = vunpack.c.h.b16 %v1324
    %v1382 = vunpack.c.l.b16 %v1325
    %v1383 = vunpack.c.h.b16 %v1325
    %v1384 = vunpack.c.l.b16 %v1326
    %v1385 = vunpack.c.h.b16 %v1326
    %v1386 = vunpack.c.l.b16 %v1327
    %v1387 = vunpack.c.h.b16 %v1327
    %v1388 = vunpack.c.l.b16 %v1328
    %v1389 = vunpack.c.h.b16 %v1328
    %v1390 = vunpack.c.l.b16 %v1329
    %v1391 = vunpack.c.h.b16 %v1329
    %v1392 = vunpack.c.l.b16 %v1330
    %v1393 = vunpack.c.h.b16 %v1330
    %v1394 = vunpack.c.l.b16 %v1331
    %v1395 = vunpack.c.h.b16 %v1331
    %v1396 = vunpack.c.l.b16 %v1332
    %v1397 = vunpack.c.h.b16 %v1332
    %v1398 = vunpack.c.l.b16 %v1333
    %v1399 = vunpack.c.h.b16 %v1333
    %v1400 = vunpack.c.l.b16 %v1334
    %v1401 = vunpack.c.h.b16 %v1334
    %v1402 = vunpack.c.l.b16 %v1335
    %v1403 = vunpack.c.h.b16 %v1335
    %v1404 = vunpack.c.l.b16 %v1336
    %v1405 = vunpack.c.h.b16 %v1336
    %v1406 = vunpack.c.l.b16 %v1337
    %v1407 = vunpack.c.h.b16 %v1337
    %v1408 = vpack.c.b16 %v1380, %v1376
    %v1409 = vpack.c.b16 %v1381, %v1377
    %v1410 = vpack.c.b16 %v1382, %v1378
    %v1411 = vpack.c.b16 %v1383, %v1379
    %v1412 = vpack.c.b16 %v1388, %v1384
    %v1413 = vpack.c.b16 %v1389, %v1385
    %v1414 = vpack.c.b16 %v1390, %v1386
    %v1415 = vpack.c.b16 %v1391, %v1387
    %v1416 = vpack.c.b16 %v1396, %v1392
    %v1417 = vpack.c.b16 %v1397, %v1393
    %v1418 = vpack.c.b16 %v1398, %v1394
    %v1419 = vpack.c.b16 %v1399, %v1395
    %v1420 = vpack.c.b16 %v1404, %v1400
    %v1421 = vpack.c.b16 %v1405, %v1401
    %v1422 = vpack.c.b16 %v1406, %v1402
    %v1423 = vpack.c.b16 %v1407, %v1403
    %1440 = vmatprep.subr.bf16.mxu0 %v1409
    %1441 = vmatpush1.bf16.msra.mxu0 %v1408
    %1442 = vmatprep.subr.bf16.mxu0 %v1413
    %1443 = vmatpush1.bf16.msra.mxu0 %v1412
    %1444 = vmatprep.subr.bf16.mxu0 %v1417
    %1445 = vmatpush1.bf16.msra.mxu0 %v1416
    %1446 = vmatprep.subr.bf16.mxu0 %v1421
    %1447 = vmatpush1.bf16.msra.mxu0 %v1420
    %1448 = vmatprep.subr.bf16.mxu0 0
    %1449 = vmatpush1.bf16.msra.mxu0 0
    %1450 = vmatprep.subr.bf16.mxu0 0
    %1451 = vmatpush1.bf16.msra.mxu0 0
    %1452 = vmatprep.subr.bf16.mxu0 0
    %1453 = vmatpush1.bf16.msra.mxu0 0
    %1454 = vmatprep.subr.bf16.mxu0 0
    %1455 = vmatpush1.bf16.msra.mxu0 0
    %1456 = vmatprep.subr.bf16.mxu0 0
    %1457 = vmatpush1.bf16.msra.mxu0 0
    %1458 = vmatprep.subr.bf16.mxu0 0
    %1459 = vmatpush1.bf16.msra.mxu0 0
    %1460 = vmatprep.subr.bf16.mxu0 0
    %1461 = vmatpush1.bf16.msra.mxu0 0
    %1462 = vmatprep.subr.bf16.mxu0 0
    %1463 = vmatpush1.bf16.msra.mxu0 0
    %1464 = vmatprep.subr.bf16.mxu0 0
    %1465 = vmatpush1.bf16.msra.mxu0 0
    %1466 = vmatprep.subr.bf16.mxu0 0
    %1467 = vmatpush1.bf16.msra.mxu0 0
    %1468 = vmatprep.subr.bf16.mxu0 0
    %1469 = vmatpush1.bf16.msra.mxu0 0
    %1470 = vmatprep.subr.bf16.mxu0 0
    %1471 = vmatpush1.bf16.msra.mxu0 0
    %1472 = vmatprep.mubr.bf16.mxu0 0
    %1473 = vmatmul.mubr.bf16.gmra.mrb[0].mxu0 %v350
    %v1474 = vpop.f32.mrb[0].mxu0
    %v1475 = vadd.f32 %v1343, %v1474
    %v1476 = vpop.f32.mrb[0].mxu0
    %v1477 = vadd.f32 %v1347, %v1476
    %v1478 = vpop.f32.mrb[0].mxu0
    %v1479 = vpop.f32.mrb[0].mxu0
    %1480 = vdwg.mxu0
    %1481 = vmatprep.subr.bf16.mxu0 %v1411
    %1482 = vmatpush1.bf16.msra.mxu0 %v1410
    %1483 = vmatprep.subr.bf16.mxu0 %v1415
    %1484 = vmatpush1.bf16.msra.mxu0 %v1414
    %1485 = vmatprep.subr.bf16.mxu0 %v1419
    %1486 = vmatpush1.bf16.msra.mxu0 %v1418
    %1487 = vmatprep.subr.bf16.mxu0 %v1423
    %1488 = vmatpush1.bf16.msra.mxu0 %v1422
    %1489 = vmatprep.subr.bf16.mxu0 0
    %1490 = vmatpush1.bf16.msra.mxu0 0
    %1491 = vmatprep.subr.bf16.mxu0 0
    %1492 = vmatpush1.bf16.msra.mxu0 0
    %1493 = vmatprep.subr.bf16.mxu0 0
    %1494 = vmatpush1.bf16.msra.mxu0 0
    %1495 = vmatprep.subr.bf16.mxu0 0
    %1496 = vmatpush1.bf16.msra.mxu0 0
    %1497 = vmatprep.subr.bf16.mxu0 0
    %1498 = vmatpush1.bf16.msra.mxu0 0
    %1499 = vmatprep.subr.bf16.mxu0 0
    %1500 = vmatpush1.bf16.msra.mxu0 0
    %1501 = vmatprep.subr.bf16.mxu0 0
    %1502 = vmatpush1.bf16.msra.mxu0 0
    %1503 = vmatprep.subr.bf16.mxu0 0
    %1504 = vmatpush1.bf16.msra.mxu0 0
    %1505 = vmatprep.subr.bf16.mxu0 0
    %1506 = vmatpush1.bf16.msra.mxu0 0
    %1507 = vmatprep.subr.bf16.mxu0 0
    %1508 = vmatpush1.bf16.msra.mxu0 0
    %1509 = vmatprep.subr.bf16.mxu0 0
    %1510 = vmatpush1.bf16.msra.mxu0 0
    %1511 = vmatprep.subr.bf16.mxu0 0
    %1512 = vmatpush1.bf16.msra.mxu0 0
    %1513 = vmatprep.mubr.bf16.mxu0 0
    %1514 = vmatmul.mubr.bf16.gmra.mrb[0].mxu0 %v350
    %v1515 = vpop.f32.mrb[0].mxu0
    %v1516 = vadd.f32 %v1351, %v1515
    %v1517 = vpop.f32.mrb[0].mxu0
    %v1518 = vadd.f32 %v1355, %v1517
    %v1519 = vpop.f32.mrb[0].mxu0
    %v1520 = vpop.f32.mrb[0].mxu0
    %1521 = vdwg.mxu0
    %v1522 = vmax.f32 %v1475, 0.0
    %v1523 = vmax.f32 %v1477, 0.0
    %v1524 = vmax.f32 %v1516, 0.0
    %v1525 = vmax.f32 %v1518, 0.0
    %v1526 = vpack.c.bf16 %v1522, %v1522
    %v1527 = vpack.c.bf16 %v1523, %v1523
    %v1528 = vpack.c.bf16 %v1524, %v1524
    %v1529 = vpack.c.bf16 %v1525, %v1525
    %v1530 = vld [vmem:[%s9 + $0x200] sm:$0xf]
    %v1531 = vld [vmem:[%s9 + $0x204] sm:$0xf]
    %v1532 = vld [vmem:[%s9 + $0x208] sm:$0xf]
    %v1533 = vld [vmem:[%s9 + $0x20c] sm:$0xf]
    %v1534 = vld [vmem:[%s9 + $0x210] sm:$0xf]
    %v1535 = vld [vmem:[%s9 + $0x214] sm:$0xf]
    %v1536 = vld [vmem:[%s9 + $0x218] sm:$0xf]
    %v1537 = vld [vmem:[%s9 + $0x21c] sm:$0xf]
    %v1538 = vld [vmem:[%s9 + $0x220] sm:$0xf]
    %v1539 = vld [vmem:[%s9 + $0x224] sm:$0xf]
    %v1540 = vld [vmem:[%s9 + $0x228] sm:$0xf]
    %v1541 = vld [vmem:[%s9 + $0x22c] sm:$0xf]
    %v1542 = vld [vmem:[%s9 + $0x230] sm:$0xf]
    %v1543 = vld [vmem:[%s9 + $0x234] sm:$0xf]
    %v1544 = vld [vmem:[%s9 + $0x238] sm:$0xf]
    %v1545 = vld [vmem:[%s9 + $0x23c] sm:$0xf]
    %v1546 = vld [vmem:[%s9 + $0x240] sm:$0xf]
    %v1547 = vld [vmem:[%s9 + $0x244] sm:$0xf]
    %v1548 = vld [vmem:[%s9 + $0x248] sm:$0xf]
    %v1549 = vld [vmem:[%s9 + $0x24c] sm:$0xf]
    %v1550 = vld [vmem:[%s9 + $0x250] sm:$0xf]
    %v1551 = vld [vmem:[%s9 + $0x254] sm:$0xf]
    %v1552 = vld [vmem:[%s9 + $0x258] sm:$0xf]
    %v1553 = vld [vmem:[%s9 + $0x25c] sm:$0xf]
    %v1554 = vld [vmem:[%s9 + $0x260] sm:$0xf]
    %v1555 = vld [vmem:[%s9 + $0x264] sm:$0xf]
    %v1556 = vld [vmem:[%s9 + $0x268] sm:$0xf]
    %v1557 = vld [vmem:[%s9 + $0x26c] sm:$0xf]
    %v1558 = vld [vmem:[%s9 + $0x270] sm:$0xf]
    %v1559 = vld [vmem:[%s9 + $0x274] sm:$0xf]
    %v1560 = vld [vmem:[%s9 + $0x278] sm:$0xf]
    %v1561 = vld [vmem:[%s9 + $0x27c] sm:$0xf]
    %v1562 = vld [vmem:[%s9 + $0x280] sm:$0xf]
    %v1563 = vld [vmem:[%s9 + $0x284] sm:$0xf]
    %v1564 = vld [vmem:[%s9 + $0x288] sm:$0xf]
    %v1565 = vld [vmem:[%s9 + $0x28c] sm:$0xf]
    %v1566 = vld [vmem:[%s9 + $0x290] sm:$0xf]
    %v1567 = vld [vmem:[%s9 + $0x294] sm:$0xf]
    %v1568 = vld [vmem:[%s9 + $0x298] sm:$0xf]
    %v1569 = vld [vmem:[%s9 + $0x29c] sm:$0xf]
    %v1570 = vld [vmem:[%s9 + $0x2a0] sm:$0xf]
    %v1571 = vld [vmem:[%s9 + $0x2a4] sm:$0xf]
    %v1572 = vld [vmem:[%s9 + $0x2a8] sm:$0xf]
    %v1573 = vld [vmem:[%s9 + $0x2ac] sm:$0xf]
    %v1574 = vld [vmem:[%s9 + $0x2b0] sm:$0xf]
    %v1575 = vld [vmem:[%s9 + $0x2b4] sm:$0xf]
    %v1576 = vld [vmem:[%s9 + $0x2b8] sm:$0xf]
    %v1577 = vld [vmem:[%s9 + $0x2bc] sm:$0xf]
    %v1578 = vld [vmem:[%s9 + $0x2c0] sm:$0xf]
    %v1579 = vld [vmem:[%s9 + $0x2c4] sm:$0xf]
    %v1580 = vld [vmem:[%s9 + $0x2c8] sm:$0xf]
    %v1581 = vld [vmem:[%s9 + $0x2cc] sm:$0xf]
    %v1582 = vld [vmem:[%s9 + $0x2d0] sm:$0xf]
    %v1583 = vld [vmem:[%s9 + $0x2d4] sm:$0xf]
    %v1584 = vld [vmem:[%s9 + $0x2d8] sm:$0xf]
    %v1585 = vld [vmem:[%s9 + $0x2dc] sm:$0xf]
    %v1586 = vld [vmem:[%s9 + $0x2e0] sm:$0xf]
    %v1587 = vld [vmem:[%s9 + $0x2e4] sm:$0xf]
    %v1588 = vld [vmem:[%s9 + $0x2e8] sm:$0xf]
    %v1589 = vld [vmem:[%s9 + $0x2ec] sm:$0xf]
    %v1590 = vld [vmem:[%s9 + $0x2f0] sm:$0xf]
    %v1591 = vld [vmem:[%s9 + $0x2f4] sm:$0xf]
    %v1592 = vld [vmem:[%s9 + $0x2f8] sm:$0xf]
    %v1593 = vld [vmem:[%s9 + $0x2fc] sm:$0xf]
    %v1658 = vunpack.c.l.b16 %v1530
    %v1659 = vunpack.c.l.b16 %v1531
    %v1660 = vunpack.c.l.b16 %v1532
    %v1661 = vunpack.c.l.b16 %v1533
    %v1662 = vunpack.c.l.b16 %v1534
    %v1663 = vunpack.c.l.b16 %v1535
    %v1664 = vunpack.c.l.b16 %v1536
    %v1665 = vunpack.c.l.b16 %v1537
    %v1666 = vunpack.c.l.b16 %v1538
    %v1667 = vunpack.c.l.b16 %v1539
    %v1668 = vunpack.c.l.b16 %v1540
    %v1669 = vunpack.c.l.b16 %v1541
    %v1670 = vunpack.c.l.b16 %v1542
    %v1671 = vunpack.c.l.b16 %v1543
    %v1672 = vunpack.c.l.b16 %v1544
    %v1673 = vunpack.c.l.b16 %v1545
    %v1674 = vunpack.c.l.b16 %v1546
    %v1675 = vunpack.c.l.b16 %v1547
    %v1676 = vunpack.c.l.b16 %v1548
    %v1677 = vunpack.c.l.b16 %v1549
    %v1678 = vunpack.c.l.b16 %v1550
    %v1679 = vunpack.c.l.b16 %v1551
    %v1680 = vunpack.c.l.b16 %v1552
    %v1681 = vunpack.c.l.b16 %v1553
    %v1682 = vunpack.c.l.b16 %v1554
    %v1683 = vunpack.c.l.b16 %v1555
    %v1684 = vunpack.c.l.b16 %v1556
    %v1685 = vunpack.c.l.b16 %v1557
    %v1686 = vunpack.c.l.b16 %v1558
    %v1687 = vunpack.c.l.b16 %v1559
    %v1688 = vunpack.c.l.b16 %v1560
    %v1689 = vunpack.c.l.b16 %v1561
    %v1690 = vunpack.c.l.b16 %v1562
    %v1691 = vunpack.c.l.b16 %v1563
    %v1692 = vunpack.c.l.b16 %v1564
    %v1693 = vunpack.c.l.b16 %v1565
    %v1694 = vunpack.c.l.b16 %v1566
    %v1695 = vunpack.c.l.b16 %v1567
    %v1696 = vunpack.c.l.b16 %v1568
    %v1697 = vunpack.c.l.b16 %v1569
    %v1698 = vunpack.c.l.b16 %v1570
    %v1699 = vunpack.c.l.b16 %v1571
    %v1700 = vunpack.c.l.b16 %v1572
    %v1701 = vunpack.c.l.b16 %v1573
    %v1702 = vunpack.c.l.b16 %v1574
    %v1703 = vunpack.c.l.b16 %v1575
    %v1704 = vunpack.c.l.b16 %v1576
    %v1705 = vunpack.c.l.b16 %v1577
    %v1706 = vunpack.c.l.b16 %v1578
    %v1707 = vunpack.c.l.b16 %v1579
    %v1708 = vunpack.c.l.b16 %v1580
    %v1709 = vunpack.c.l.b16 %v1581
    %v1710 = vunpack.c.l.b16 %v1582
    %v1711 = vunpack.c.l.b16 %v1583
    %v1712 = vunpack.c.l.b16 %v1584
    %v1713 = vunpack.c.l.b16 %v1585
    %v1714 = vunpack.c.l.b16 %v1586
    %v1715 = vunpack.c.l.b16 %v1587
    %v1716 = vunpack.c.l.b16 %v1588
    %v1717 = vunpack.c.l.b16 %v1589
    %v1718 = vunpack.c.l.b16 %v1590
    %v1719 = vunpack.c.l.b16 %v1591
    %v1720 = vunpack.c.l.b16 %v1592
    %v1721 = vunpack.c.l.b16 %v1593
    %v1722 = vpack.c.b16 %v1659, %v1658
    %v1723 = vpack.c.b16 %v1661, %v1660
    %v1724 = vpack.c.b16 %v1663, %v1662
    %v1725 = vpack.c.b16 %v1665, %v1664
    %v1726 = vpack.c.b16 %v1667, %v1666
    %v1727 = vpack.c.b16 %v1669, %v1668
    %v1728 = vpack.c.b16 %v1671, %v1670
    %v1729 = vpack.c.b16 %v1673, %v1672
    %v1730 = vpack.c.b16 %v1675, %v1674
    %v1731 = vpack.c.b16 %v1677, %v1676
    %v1732 = vpack.c.b16 %v1679, %v1678
    %v1733 = vpack.c.b16 %v1681, %v1680
    %v1734 = vpack.c.b16 %v1683, %v1682
    %v1735 = vpack.c.b16 %v1685, %v1684
    %v1736 = vpack.c.b16 %v1687, %v1686
    %v1737 = vpack.c.b16 %v1689, %v1688
    %v1738 = vpack.c.b16 %v1691, %v1690
    %v1739 = vpack.c.b16 %v1693, %v1692
    %v1740 = vpack.c.b16 %v1695, %v1694
    %v1741 = vpack.c.b16 %v1697, %v1696
    %v1742 = vpack.c.b16 %v1699, %v1698
    %v1743 = vpack.c.b16 %v1701, %v1700
    %v1744 = vpack.c.b16 %v1703, %v1702
    %v1745 = vpack.c.b16 %v1705, %v1704
    %v1746 = vpack.c.b16 %v1707, %v1706
    %v1747 = vpack.c.b16 %v1709, %v1708
    %v1748 = vpack.c.b16 %v1711, %v1710
    %v1749 = vpack.c.b16 %v1713, %v1712
    %v1750 = vpack.c.b16 %v1715, %v1714
    %v1751 = vpack.c.b16 %v1717, %v1716
    %v1752 = vpack.c.b16 %v1719, %v1718
    %v1753 = vpack.c.b16 %v1721, %v1720
    %1786 = vmatprep.subr.bf16.mxu0 0
    %1787 = vmatpush1.bf16.msra.mxu0 %v1722
    %1788 = vmatprep.subr.bf16.mxu0 0
    %1789 = vmatpush1.bf16.msra.mxu0 %v1723
    %1790 = vmatprep.subr.bf16.mxu0 0
    %1791 = vmatpush1.bf16.msra.mxu0 %v1724
    %1792 = vmatprep.subr.bf16.mxu0 0
    %1793 = vmatpush1.bf16.msra.mxu0 %v1725
    %1794 = vmatprep.subr.bf16.mxu0 0
    %1795 = vmatpush1.bf16.msra.mxu0 %v1726
    %1796 = vmatprep.subr.bf16.mxu0 0
    %1797 = vmatpush1.bf16.msra.mxu0 %v1727
    %1798 = vmatprep.subr.bf16.mxu0 0
    %1799 = vmatpush1.bf16.msra.mxu0 %v1728
    %1800 = vmatprep.subr.bf16.mxu0 0
    %1801 = vmatpush1.bf16.msra.mxu0 %v1729
    %1802 = vmatprep.subr.bf16.mxu0 0
    %1803 = vmatpush1.bf16.msra.mxu0 %v1730
    %1804 = vmatprep.subr.bf16.mxu0 0
    %1805 = vmatpush1.bf16.msra.mxu0 %v1731
    %1806 = vmatprep.subr.bf16.mxu0 0
    %1807 = vmatpush1.bf16.msra.mxu0 %v1732
    %1808 = vmatprep.subr.bf16.mxu0 0
    %1809 = vmatpush1.bf16.msra.mxu0 %v1733
    %1810 = vmatprep.subr.bf16.mxu0 0
    %1811 = vmatpush1.bf16.msra.mxu0 %v1734
    %1812 = vmatprep.subr.bf16.mxu0 0
    %1813 = vmatpush1.bf16.msra.mxu0 %v1735
    %1814 = vmatprep.subr.bf16.mxu0 0
    %1815 = vmatpush1.bf16.msra.mxu0 %v1736
    %1816 = vmatprep.subr.bf16.mxu0 0
    %1817 = vmatpush1.bf16.msra.mxu0 %v1737
    %1818 = vmatprep.mubr.bf16.mxu0 %v1527
    %1819 = vmatmul.mubr.bf16.gmra.mrb[0].mxu0 %v1526
    %v1820 = vpop.f32.mrb[0].mxu0
    %v1821 = vadd.f32 0.0, %v1820
    %v1822 = vpop.f32.mrb[0].mxu0
    %v1823 = vpop.f32.mrb[0].mxu0
    %v1824 = vpop.f32.mrb[0].mxu0
    %1825 = vdwg.mxu0
    %1826 = vmatprep.subr.bf16.mxu0 0
    %1827 = vmatpush1.bf16.msra.mxu0 %v1738
    %1828 = vmatprep.subr.bf16.mxu0 0
    %1829 = vmatpush1.bf16.msra.mxu0 %v1739
    %1830 = vmatprep.subr.bf16.mxu0 0
    %1831 = vmatpush1.bf16.msra.mxu0 %v1740
    %1832 = vmatprep.subr.bf16.mxu0 0
    %1833 = vmatpush1.bf16.msra.mxu0 %v1741
    %1834 = vmatprep.subr.bf16.mxu0 0
    %1835 = vmatpush1.bf16.msra.mxu0 %v1742
    %1836 = vmatprep.subr.bf16.mxu0 0
    %1837 = vmatpush1.bf16.msra.mxu0 %v1743
    %1838 = vmatprep.subr.bf16.mxu0 0
    %1839 = vmatpush1.bf16.msra.mxu0 %v1744
    %1840 = vmatprep.subr.bf16.mxu0 0
    %1841 = vmatpush1.bf16.msra.mxu0 %v1745
    %1842 = vmatprep.subr.bf16.mxu0 0
    %1843 = vmatpush1.bf16.msra.mxu0 %v1746
    %1844 = vmatprep.subr.bf16.mxu0 0
    %1845 = vmatpush1.bf16.msra.mxu0 %v1747
    %1846 = vmatprep.subr.bf16.mxu0 0
    %1847 = vmatpush1.bf16.msra.mxu0 %v1748
    %1848 = vmatprep.subr.bf16.mxu0 0
    %1849 = vmatpush1.bf16.msra.mxu0 %v1749
    %1850 = vmatprep.subr.bf16.mxu0 0
    %1851 = vmatpush1.bf16.msra.mxu0 %v1750
    %1852 = vmatprep.subr.bf16.mxu0 0
    %1853 = vmatpush1.bf16.msra.mxu0 %v1751
    %1854 = vmatprep.subr.bf16.mxu0 0
    %1855 = vmatpush1.bf16.msra.mxu0 %v1752
    %1856 = vmatprep.subr.bf16.mxu0 0
    %1857 = vmatpush1.bf16.msra.mxu0 %v1753
    %1858 = vmatprep.mubr.bf16.mxu0 %v1529
    %1859 = vmatmul.mubr.bf16.gmra.mrb[0].mxu0 %v1528
    %v1860 = vpop.f32.mrb[0].mxu0
    %v1861 = vadd.f32 %v1821, %v1860
    %v1862 = vpop.f32.mrb[0].mxu0
    %v1863 = vpop.f32.mrb[0].mxu0
    %v1864 = vpop.f32.mrb[0].mxu0
    %1865 = vdwg.mxu0
    %v1866 = vadd.f32 %v1317, %v1861
    %v1867 = vld [vmem:[%s7 + $0x30] sm:$0xff]
    %v1868 = vld [vmem:[%s7 + $0x38] sm:$0xff]
    %v1869 = vld [vmem:[%s7 + $0x70] sm:$0xff]
    %v1870 = vld [vmem:[%s7 + $0x78] sm:$0xff]
    %v1871 = vld [vmem:[%s7 + $0xb0] sm:$0xff]
    %v1872 = vld [vmem:[%s7 + $0xb8] sm:$0xff]
    %v1873 = vld [vmem:[%s7 + $0xf0] sm:$0xff]
    %v1874 = vld [vmem:[%s7 + $0xf8] sm:$0xff]
    %v1875 = vld [vmem:[%s7 + $0x130] sm:$0xff]
    %v1876 = vld [vmem:[%s7 + $0x138] sm:$0xff]
    %v1877 = vld [vmem:[%s7 + $0x170] sm:$0xff]
    %v1878 = vld [vmem:[%s7 + $0x178] sm:$0xff]
    %v1879 = vld [vmem:[%s7 + $0x1b0] sm:$0xff]
    %v1880 = vld [vmem:[%s7 + $0x1b8] sm:$0xff]
    %v1881 = vld [vmem:[%s7 + $0x1f0] sm:$0xff]
    %v1882 = vld [vmem:[%s7 + $0x1f8] sm:$0xff]
    %v1883 = vld [vmem:[%s8 + $0xc] sm:$0xf]
    %v1885 = vlaneseq
    %v1886 = vshrl.u32 %v1885, 7
    %v1887 = vsub.s32 0, %v1886
    %v1888 = vrot.slane %v1883, %v1887
    %v1889 = vlaneseq
    %v1890 = vshrl.u32 %v1889, 7
    %v1891 = vsub.s32 1, %v1890
    %v1892 = vrot.slane %v1883, %v1891
    %v1893 = vlaneseq
    %v1894 = vshrl.u32 %v1893, 7
    %v1895 = vsub.s32 2, %v1894
    %v1896 = vrot.slane %v1883, %v1895
    %v1897 = vlaneseq
    %v1898 = vshrl.u32 %v1897, 7
    %v1899 = vsub.s32 3, %v1898
    %v1900 = vrot.slane %v1883, %v1899
    %v1921 = vunpack.c.l.b16 %v1867
    %v1922 = vunpack.c.h.b16 %v1867
    %v1923 = vunpack.c.l.b16 %v1868
    %v1924 = vunpack.c.h.b16 %v1868
    %v1925 = vunpack.c.l.b16 %v1869
    %v1926 = vunpack.c.h.b16 %v1869
    %v1927 = vunpack.c.l.b16 %v1870
    %v1928 = vunpack.c.h.b16 %v1870
    %v1929 = vunpack.c.l.b16 %v1871
    %v1930 = vunpack.c.h.b16 %v1871
    %v1931 = vunpack.c.l.b16 %v1872
    %v1932 = vunpack.c.h.b16 %v1872
    %v1933 = vunpack.c.l.b16 %v1873
    %v1934 = vunpack.c.h.b16 %v1873
    %v1935 = vunpack.c.l.b16 %v1874
    %v1936 = vunpack.c.h.b16 %v1874
    %v1937 = vunpack.c.l.b16 %v1875
    %v1938 = vunpack.c.h.b16 %v1875
    %v1939 = vunpack.c.l.b16 %v1876
    %v1940 = vunpack.c.h.b16 %v1876
    %v1941 = vunpack.c.l.b16 %v1877
    %v1942 = vunpack.c.h.b16 %v1877
    %v1943 = vunpack.c.l.b16 %v1878
    %v1944 = vunpack.c.h.b16 %v1878
    %v1945 = vunpack.c.l.b16 %v1879
    %v1946 = vunpack.c.h.b16 %v1879
    %v1947 = vunpack.c.l.b16 %v1880
    %v1948 = vunpack.c.h.b16 %v1880
    %v1949 = vunpack.c.l.b16 %v1881
    %v1950 = vunpack.c.h.b16 %v1881
    %v1951 = vunpack.c.l.b16 %v1882
    %v1952 = vunpack.c.h.b16 %v1882
    %v1953 = vpack.c.b16 %v1925, %v1921
    %v1954 = vpack.c.b16 %v1926, %v1922
    %v1955 = vpack.c.b16 %v1927, %v1923
    %v1956 = vpack.c.b16 %v1928, %v1924
    %v1957 = vpack.c.b16 %v1933, %v1929
    %v1958 = vpack.c.b16 %v1934, %v1930
    %v1959 = vpack.c.b16 %v1935, %v1931
    %v1960 = vpack.c.b16 %v1936, %v1932
    %v1961 = vpack.c.b16 %v1941, %v1937
    %v1962 = vpack.c.b16 %v1942, %v1938
    %v1963 = vpack.c.b16 %v1943, %v1939
    %v1964 = vpack.c.b16 %v1944, %v1940
    %v1965 = vpack.c.b16 %v1949, %v1945
    %v1966 = vpack.c.b16 %v1950, %v1946
    %v1967 = vpack.c.b16 %v1951, %v1947
    %v1968 = vpack.c.b16 %v1952, %v1948
    %1985 = vmatprep.subr.bf16.mxu0 %v1954
    %1986 = vmatpush1.bf16.msra.mxu0 %v1953
    %1987 = vmatprep.subr.bf16.mxu0 %v1958
    %1988 = vmatpush1.bf16.msra.mxu0 %v1957
    %1989 = vmatprep.subr.bf16.mxu0 %v1962
    %1990 = vmatpush1.bf16.msra.mxu0 %v1961
    %1991 = vmatprep.subr.bf16.mxu0 %v1966
    %1992 = vmatpush1.bf16.msra.mxu0 %v1965
    %1993 = vmatprep.subr.bf16.mxu0 0
    %1994 = vmatpush1.bf16.msra.mxu0 0
    %1995 = vmatprep.subr.bf16.mxu0 0
    %1996 = vmatpush1.bf16.msra.mxu0 0
    %1997 = vmatprep.subr.bf16.mxu0 0
    %1998 = vmatpush1.bf16.msra.mxu0 0
    %1999 = vmatprep.subr.bf16.mxu0 0
    %2000 = vmatpush1.bf16.msra.mxu0 0
    %2001 = vmatprep.subr.bf16.mxu0 0
    %2002 = vmatpush1.bf16.msra.mxu0 0
    %2003 = vmatprep.subr.bf16.mxu0 0
    %2004 = vmatpush1.bf16.msra.mxu0 0
    %2005 = vmatprep.subr.bf16.mxu0 0
    %2006 = vmatpush1.bf16.msra.mxu0 0
    %2007 = vmatprep.subr.bf16.mxu0 0
    %2008 = vmatpush1.bf16.msra.mxu0 0
    %2009 = vmatprep.subr.bf16.mxu0 0
    %2010 = vmatpush1.bf16.msra.mxu0 0
    %2011 = vmatprep.subr.bf16.mxu0 0
    %2012 = vmatpush1.bf16.msra.mxu0 0
    %2013 = vmatprep.subr.bf16.mxu0 0
    %2014 = vmatpush1.bf16.msra.mxu0 0
    %2015 = vmatprep.subr.bf16.mxu0 0
    %2016 = vmatpush1.bf16.msra.mxu0 0
    %2017 = vmatprep.mubr.bf16.mxu0 0
    %2018 = vmatmul.mubr.bf16.gmra.mrb[0].mxu0 %v350
    %v2019 = vpop.f32.mrb[0].mxu0
    %v2020 = vadd.f32 %v1888, %v2019
    %v2021 = vpop.f32.mrb[0].mxu0
    %v2022 = vadd.f32 %v1892, %v2021
    %v2023 = vpop.f32.mrb[0].mxu0
    %v2024 = vpop.f32.mrb[0].mxu0
    %2025 = vdwg.mxu0
    %2026 = vmatprep.subr.bf16.mxu0 %v1956
    %2027 = vmatpush1.bf16.msra.mxu0 %v1955
    %2028 = vmatprep.subr.bf16.mxu0 %v1960
    %2029 = vmatpush1.bf16.msra.mxu0 %v1959
    %2030 = vmatprep.subr.bf16.mxu0 %v1964
    %2031 = vmatpush1.bf16.msra.mxu0 %v1963
    %2032 = vmatprep.subr.bf16.mxu0 %v1968
    %2033 = vmatpush1.bf16.msra.mxu0 %v1967
    %2034 = vmatprep.subr.bf16.mxu0 0
    %2035 = vmatpush1.bf16.msra.mxu0 0
    %2036 = vmatprep.subr.bf16.mxu0 0
    %2037 = vmatpush1.bf16.msra.mxu0 0
    %2038 = vmatprep.subr.bf16.mxu0 0
    %2039 = vmatpush1.bf16.msra.mxu0 0
    %2040 = vmatprep.subr.bf16.mxu0 0
    %2041 = vmatpush1.bf16.msra.mxu0 0
    %2042 = vmatprep.subr.bf16.mxu0 0
    %2043 = vmatpush1.bf16.msra.mxu0 0
    %2044 = vmatprep.subr.bf16.mxu0 0
    %2045 = vmatpush1.bf16.msra.mxu0 0
    %2046 = vmatprep.subr.bf16.mxu0 0
    %2047 = vmatpush1.bf16.msra.mxu0 0
    %2048 = vmatprep.subr.bf16.mxu0 0
    %2049 = vmatpush1.bf16.msra.mxu0 0
    %2050 = vmatprep.subr.bf16.mxu0 0
    %2051 = vmatpush1.bf16.msra.mxu0 0
    %2052 = vmatprep.subr.bf16.mxu0 0
    %2053 = vmatpush1.bf16.msra.mxu0 0
    %2054 = vmatprep.subr.bf16.mxu0 0
    %2055 = vmatpush1.bf16.msra.mxu0 0
    %2056 = vmatprep.subr.bf16.mxu0 0
    %2057 = vmatpush1.bf16.msra.mxu0 0
    %2058 = vmatprep.mubr.bf16.mxu0 0
    %2059 = vmatmul.mubr.bf16.gmra.mrb[0].mxu0 %v350
    %v2060 = vpop.f32.mrb[0].mxu0
    %v2061 = vadd.f32 %v1896, %v2060
    %v2062 = vpop.f32.mrb[0].mxu0
    %v2063 = vadd.f32 %v1900, %v2062
    %v2064 = vpop.f32.mrb[0].mxu0
    %v2065 = vpop.f32.mrb[0].mxu0
    %2066 = vdwg.mxu0
    %v2067 = vmax.f32 %v2020, 0.0
    %v2068 = vmax.f32 %v2022, 0.0
    %v2069 = vmax.f32 %v2061, 0.0
    %v2070 = vmax.f32 %v2063, 0.0
    %v2071 = vpack.c.bf16 %v2067, %v2067
    %v2072 = vpack.c.bf16 %v2068, %v2068
    %v2073 = vpack.c.bf16 %v2069, %v2069
    %v2074 = vpack.c.bf16 %v2070, %v2070
    %v2075 = vld [vmem:[%s9 + $0x300] sm:$0xf]
    %v2076 = vld [vmem:[%s9 + $0x304] sm:$0xf]
    %v2077 = vld [vmem:[%s9 + $0x308] sm:$0xf]
    %v2078 = vld [vmem:[%s9 + $0x30c] sm:$0xf]
    %v2079 = vld [vmem:[%s9 + $0x310] sm:$0xf]
    %v2080 = vld [vmem:[%s9 + $0x314] sm:$0xf]
    %v2081 = vld [vmem:[%s9 + $0x318] sm:$0xf]
    %v2082 = vld [vmem:[%s9 + $0x31c] sm:$0xf]
    %v2083 = vld [vmem:[%s9 + $0x320] sm:$0xf]
    %v2084 = vld [vmem:[%s9 + $0x324] sm:$0xf]
    %v2085 = vld [vmem:[%s9 + $0x328] sm:$0xf]
    %v2086 = vld [vmem:[%s9 + $0x32c] sm:$0xf]
    %v2087 = vld [vmem:[%s9 + $0x330] sm:$0xf]
    %v2088 = vld [vmem:[%s9 + $0x334] sm:$0xf]
    %v2089 = vld [vmem:[%s9 + $0x338] sm:$0xf]
    %v2090 = vld [vmem:[%s9 + $0x33c] sm:$0xf]
    %v2091 = vld [vmem:[%s9 + $0x340] sm:$0xf]
    %v2092 = vld [vmem:[%s9 + $0x344] sm:$0xf]
    %v2093 = vld [vmem:[%s9 + $0x348] sm:$0xf]
    %v2094 = vld [vmem:[%s9 + $0x34c] sm:$0xf]
    %v2095 = vld [vmem:[%s9 + $0x350] sm:$0xf]
    %v2096 = vld [vmem:[%s9 + $0x354] sm:$0xf]
    %v2097 = vld [vmem:[%s9 + $0x358] sm:$0xf]
    %v2098 = vld [vmem:[%s9 + $0x35c] sm:$0xf]
    %v2099 = vld [vmem:[%s9 + $0x360] sm:$0xf]
    %v2100 = vld [vmem:[%s9 + $0x364] sm:$0xf]
    %v2101 = vld [vmem:[%s9 + $0x368] sm:$0xf]
    %v2102 = vld [vmem:[%s9 + $0x36c] sm:$0xf]
    %v2103 = vld [vmem:[%s9 + $0x370] sm:$0xf]
    %v2104 = vld [vmem:[%s9 + $0x374] sm:$0xf]
    %v2105 = vld [vmem:[%s9 + $0x378] sm:$0xf]
    %v2106 = vld [vmem:[%s9 + $0x37c] sm:$0xf]
    %v2107 = vld [vmem:[%s9 + $0x380] sm:$0xf]
    %v2108 = vld [vmem:[%s9 + $0x384] sm:$0xf]
    %v2109 = vld [vmem:[%s9 + $0x388] sm:$0xf]
    %v2110 = vld [vmem:[%s9 + $0x38c] sm:$0xf]
    %v2111 = vld [vmem:[%s9 + $0x390] sm:$0xf]
    %v2112 = vld [vmem:[%s9 + $0x394] sm:$0xf]
    %v2113 = vld [vmem:[%s9 + $0x398] sm:$0xf]
    %v2114 = vld [vmem:[%s9 + $0x39c] sm:$0xf]
    %v2115 = vld [vmem:[%s9 + $0x3a0] sm:$0xf]
    %v2116 = vld [vmem:[%s9 + $0x3a4] sm:$0xf]
    %v2117 = vld [vmem:[%s9 + $0x3a8] sm:$0xf]
    %v2118 = vld [vmem:[%s9 + $0x3ac] sm:$0xf]
    %v2119 = vld [vmem:[%s9 + $0x3b0] sm:$0xf]
    %v2120 = vld [vmem:[%s9 + $0x3b4] sm:$0xf]
    %v2121 = vld [vmem:[%s9 + $0x3b8] sm:$0xf]
    %v2122 = vld [vmem:[%s9 + $0x3bc] sm:$0xf]
    %v2123 = vld [vmem:[%s9 + $0x3c0] sm:$0xf]
    %v2124 = vld [vmem:[%s9 + $0x3c4] sm:$0xf]
    %v2125 = vld [vmem:[%s9 + $0x3c8] sm:$0xf]
    %v2126 = vld [vmem:[%s9 + $0x3cc] sm:$0xf]
    %v2127 = vld [vmem:[%s9 + $0x3d0] sm:$0xf]
    %v2128 = vld [vmem:[%s9 + $0x3d4] sm:$0xf]
    %v2129 = vld [vmem:[%s9 + $0x3d8] sm:$0xf]
    %v2130 = vld [vmem:[%s9 + $0x3dc] sm:$0xf]
    %v2131 = vld [vmem:[%s9 + $0x3e0] sm:$0xf]
    %v2132 = vld [vmem:[%s9 + $0x3e4] sm:$0xf]
    %v2133 = vld [vmem:[%s9 + $0x3e8] sm:$0xf]
    %v2134 = vld [vmem:[%s9 + $0x3ec] sm:$0xf]
    %v2135 = vld [vmem:[%s9 + $0x3f0] sm:$0xf]
    %v2136 = vld [vmem:[%s9 + $0x3f4] sm:$0xf]
    %v2137 = vld [vmem:[%s9 + $0x3f8] sm:$0xf]
    %v2138 = vld [vmem:[%s9 + $0x3fc] sm:$0xf]
    %v2203 = vunpack.c.l.b16 %v2075
    %v2204 = vunpack.c.l.b16 %v2076
    %v2205 = vunpack.c.l.b16 %v2077
    %v2206 = vunpack.c.l.b16 %v2078
    %v2207 = vunpack.c.l.b16 %v2079
    %v2208 = vunpack.c.l.b16 %v2080
    %v2209 = vunpack.c.l.b16 %v2081
    %v2210 = vunpack.c.l.b16 %v2082
    %v2211 = vunpack.c.l.b16 %v2083
    %v2212 = vunpack.c.l.b16 %v2084
    %v2213 = vunpack.c.l.b16 %v2085
    %v2214 = vunpack.c.l.b16 %v2086
    %v2215 = vunpack.c.l.b16 %v2087
    %v2216 = vunpack.c.l.b16 %v2088
    %v2217 = vunpack.c.l.b16 %v2089
    %v2218 = vunpack.c.l.b16 %v2090
    %v2219 = vunpack.c.l.b16 %v2091
    %v2220 = vunpack.c.l.b16 %v2092
    %v2221 = vunpack.c.l.b16 %v2093
    %v2222 = vunpack.c.l.b16 %v2094
    %v2223 = vunpack.c.l.b16 %v2095
    %v2224 = vunpack.c.l.b16 %v2096
    %v2225 = vunpack.c.l.b16 %v2097
    %v2226 = vunpack.c.l.b16 %v2098
    %v2227 = vunpack.c.l.b16 %v2099
    %v2228 = vunpack.c.l.b16 %v2100
    %v2229 = vunpack.c.l.b16 %v2101
    %v2230 = vunpack.c.l.b16 %v2102
    %v2231 = vunpack.c.l.b16 %v2103
    %v2232 = vunpack.c.l.b16 %v2104
    %v2233 = vunpack.c.l.b16 %v2105
    %v2234 = vunpack.c.l.b16 %v2106
    %v2235 = vunpack.c.l.b16 %v2107
    %v2236 = vunpack.c.l.b16 %v2108
    %v2237 = vunpack.c.l.b16 %v2109
    %v2238 = vunpack.c.l.b16 %v2110
    %v2239 = vunpack.c.l.b16 %v2111
    %v2240 = vunpack.c.l.b16 %v2112
    %v2241 = vunpack.c.l.b16 %v2113
    %v2242 = vunpack.c.l.b16 %v2114
    %v2243 = vunpack.c.l.b16 %v2115
    %v2244 = vunpack.c.l.b16 %v2116
    %v2245 = vunpack.c.l.b16 %v2117
    %v2246 = vunpack.c.l.b16 %v2118
    %v2247 = vunpack.c.l.b16 %v2119
    %v2248 = vunpack.c.l.b16 %v2120
    %v2249 = vunpack.c.l.b16 %v2121
    %v2250 = vunpack.c.l.b16 %v2122
    %v2251 = vunpack.c.l.b16 %v2123
    %v2252 = vunpack.c.l.b16 %v2124
    %v2253 = vunpack.c.l.b16 %v2125
    %v2254 = vunpack.c.l.b16 %v2126
    %v2255 = vunpack.c.l.b16 %v2127
    %v2256 = vunpack.c.l.b16 %v2128
    %v2257 = vunpack.c.l.b16 %v2129
    %v2258 = vunpack.c.l.b16 %v2130
    %v2259 = vunpack.c.l.b16 %v2131
    %v2260 = vunpack.c.l.b16 %v2132
    %v2261 = vunpack.c.l.b16 %v2133
    %v2262 = vunpack.c.l.b16 %v2134
    %v2263 = vunpack.c.l.b16 %v2135
    %v2264 = vunpack.c.l.b16 %v2136
    %v2265 = vunpack.c.l.b16 %v2137
    %v2266 = vunpack.c.l.b16 %v2138
    %v2267 = vpack.c.b16 %v2204, %v2203
    %v2268 = vpack.c.b16 %v2206, %v2205
    %v2269 = vpack.c.b16 %v2208, %v2207
    %v2270 = vpack.c.b16 %v2210, %v2209
    %v2271 = vpack.c.b16 %v2212, %v2211
    %v2272 = vpack.c.b16 %v2214, %v2213
    %v2273 = vpack.c.b16 %v2216, %v2215
    %v2274 = vpack.c.b16 %v2218, %v2217
    %v2275 = vpack.c.b16 %v2220, %v2219
    %v2276 = vpack.c.b16 %v2222, %v2221
    %v2277 = vpack.c.b16 %v2224, %v2223
    %v2278 = vpack.c.b16 %v2226, %v2225
    %v2279 = vpack.c.b16 %v2228, %v2227
    %v2280 = vpack.c.b16 %v2230, %v2229
    %v2281 = vpack.c.b16 %v2232, %v2231
    %v2282 = vpack.c.b16 %v2234, %v2233
    %v2283 = vpack.c.b16 %v2236, %v2235
    %v2284 = vpack.c.b16 %v2238, %v2237
    %v2285 = vpack.c.b16 %v2240, %v2239
    %v2286 = vpack.c.b16 %v2242, %v2241
    %v2287 = vpack.c.b16 %v2244, %v2243
    %v2288 = vpack.c.b16 %v2246, %v2245
    %v2289 = vpack.c.b16 %v2248, %v2247
    %v2290 = vpack.c.b16 %v2250, %v2249
    %v2291 = vpack.c.b16 %v2252, %v2251
    %v2292 = vpack.c.b16 %v2254, %v2253
    %v2293 = vpack.c.b16 %v2256, %v2255
    %v2294 = vpack.c.b16 %v2258, %v2257
    %v2295 = vpack.c.b16 %v2260, %v2259
    %v2296 = vpack.c.b16 %v2262, %v2261
    %v2297 = vpack.c.b16 %v2264, %v2263
    %v2298 = vpack.c.b16 %v2266, %v2265
    %2331 = vmatprep.subr.bf16.mxu0 0
    %2332 = vmatpush1.bf16.msra.mxu0 %v2267
    %2333 = vmatprep.subr.bf16.mxu0 0
    %2334 = vmatpush1.bf16.msra.mxu0 %v2268
    %2335 = vmatprep.subr.bf16.mxu0 0
    %2336 = vmatpush1.bf16.msra.mxu0 %v2269
    %2337 = vmatprep.subr.bf16.mxu0 0
    %2338 = vmatpush1.bf16.msra.mxu0 %v2270
    %2339 = vmatprep.subr.bf16.mxu0 0
    %2340 = vmatpush1.bf16.msra.mxu0 %v2271
    %2341 = vmatprep.subr.bf16.mxu0 0
    %2342 = vmatpush1.bf16.msra.mxu0 %v2272
    %2343 = vmatprep.subr.bf16.mxu0 0
    %2344 = vmatpush1.bf16.msra.mxu0 %v2273
    %2345 = vmatprep.subr.bf16.mxu0 0
    %2346 = vmatpush1.bf16.msra.mxu0 %v2274
    %2347 = vmatprep.subr.bf16.mxu0 0
    %2348 = vmatpush1.bf16.msra.mxu0 %v2275
    %2349 = vmatprep.subr.bf16.mxu0 0
    %2350 = vmatpush1.bf16.msra.mxu0 %v2276
    %2351 = vmatprep.subr.bf16.mxu0 0
    %2352 = vmatpush1.bf16.msra.mxu0 %v2277
    %2353 = vmatprep.subr.bf16.mxu0 0
    %2354 = vmatpush1.bf16.msra.mxu0 %v2278
    %2355 = vmatprep.subr.bf16.mxu0 0
    %2356 = vmatpush1.bf16.msra.mxu0 %v2279
    %2357 = vmatprep.subr.bf16.mxu0 0
    %2358 = vmatpush1.bf16.msra.mxu0 %v2280
    %2359 = vmatprep.subr.bf16.mxu0 0
    %2360 = vmatpush1.bf16.msra.mxu0 %v2281
    %2361 = vmatprep.subr.bf16.mxu0 0
    %2362 = vmatpush1.bf16.msra.mxu0 %v2282
    %2363 = vmatprep.mubr.bf16.mxu0 %v2072
    %2364 = vmatmul.mubr.bf16.gmra.mrb[0].mxu0 %v2071
    %v2365 = vpop.f32.mrb[0].mxu0
    %v2366 = vadd.f32 0.0, %v2365
    %v2367 = vpop.f32.mrb[0].mxu0
    %v2368 = vpop.f32.mrb[0].mxu0
    %v2369 = vpop.f32.mrb[0].mxu0
    %2370 = vdwg.mxu0
    %2371 = vmatprep.subr.bf16.mxu0 0
    %2372 = vmatpush1.bf16.msra.mxu0 %v2283
    %2373 = vmatprep.subr.bf16.mxu0 0
    %2374 = vmatpush1.bf16.msra.mxu0 %v2284
    %2375 = vmatprep.subr.bf16.mxu0 0
    %2376 = vmatpush1.bf16.msra.mxu0 %v2285
    %2377 = vmatprep.subr.bf16.mxu0 0
    %2378 = vmatpush1.bf16.msra.mxu0 %v2286
    %2379 = vmatprep.subr.bf16.mxu0 0
    %2380 = vmatpush1.bf16.msra.mxu0 %v2287
    %2381 = vmatprep.subr.bf16.mxu0 0
    %2382 = vmatpush1.bf16.msra.mxu0 %v2288
    %2383 = vmatprep.subr.bf16.mxu0 0
    %2384 = vmatpush1.bf16.msra.mxu0 %v2289
    %2385 = vmatprep.subr.bf16.mxu0 0
    %2386 = vmatpush1.bf16.msra.mxu0 %v2290
    %2387 = vmatprep.subr.bf16.mxu0 0
    %2388 = vmatpush1.bf16.msra.mxu0 %v2291
    %2389 = vmatprep.subr.bf16.mxu0 0
    %2390 = vmatpush1.bf16.msra.mxu0 %v2292
    %2391 = vmatprep.subr.bf16.mxu0 0
    %2392 = vmatpush1.bf16.msra.mxu0 %v2293
    %2393 = vmatprep.subr.bf16.mxu0 0
    %2394 = vmatpush1.bf16.msra.mxu0 %v2294
    %2395 = vmatprep.subr.bf16.mxu0 0
    %2396 = vmatpush1.bf16.msra.mxu0 %v2295
    %2397 = vmatprep.subr.bf16.mxu0 0
    %2398 = vmatpush1.bf16.msra.mxu0 %v2296
    %2399 = vmatprep.subr.bf16.mxu0 0
    %2400 = vmatpush1.bf16.msra.mxu0 %v2297
    %2401 = vmatprep.subr.bf16.mxu0 0
    %2402 = vmatpush1.bf16.msra.mxu0 %v2298
    %2403 = vmatprep.mubr.bf16.mxu0 %v2074
    %2404 = vmatmul.mubr.bf16.gmra.mrb[0].mxu0 %v2073
    %v2405 = vpop.f32.mrb[0].mxu0
    %v2406 = vadd.f32 %v2366, %v2405
    %v2407 = vpop.f32.mrb[0].mxu0
    %v2408 = vpop.f32.mrb[0].mxu0
    %v2409 = vpop.f32.mrb[0].mxu0
    %2410 = vdwg.mxu0
    %v2411 = vadd.f32 %v1866, %v2406
    %v2412 = vadd.f32 %v229, %v2411
    %v2413 = vld [vmem:[%s10] sm:$0x1]
    %v2415 = vlaneseq
    %v2416 = vshrl.u32 %v2415, 7
    %v2417 = vsub.s32 0, %v2416
    %v2418 = vrot.slane %v2413, %v2417
    %v2420 = vadd.f32 %v2412, %v2418
    %v2421 = vld [vmem:[%s11] sm:$0x1]
    %v2422 = vld [vmem:[%s12] sm:$0x1]
    %v2423 = vsel %vm155, %v2420, 0.0
    %2424 = vadd.xlane.f32.xlu0 %v2423
    %v2425 = vpop.xlane.xlu0 %2424
    %v2426 = vmul.f32 %v2425, %v205
    %v2427 = vsub.f32 %v2420, %v2426
    %v2428 = vmul.f32 %v2427, %v2427
    %v2429 = vsel %vm155, %v2428, 0.0
    %2430 = vadd.xlane.f32.xlu0 %v2429
    %v2431 = vpop.xlane.xlu0 %2430
    %v2432 = vmul.f32 %v2431, %v205
    %v2433 = vadd.f32 %v2432, 1e-05
    %v2434 = vrsqrt.pop %v2433
    %v2435 = vmul.f32 %v2427, %v2434
    %v2437 = vlaneseq
    %v2438 = vshrl.u32 %v2437, 7
    %v2439 = vsub.s32 0, %v2438
    %v2440 = vrot.slane %v2421, %v2439
    %v2442 = vmul.f32 %v2435, %v2440
    %v2444 = vlaneseq
    %v2445 = vshrl.u32 %v2444, 7
    %v2446 = vsub.s32 0, %v2445
    %v2447 = vrot.slane %v2422, %v2446
    %v2449 = vadd.f32 %v2442, %v2447
    %v2450 = vpack.c.bf16 %v2449, %v2449
    %s2451 = scalar_lea.vmem %s3, 32
    %v2452 = vld [vmem:[%s2451] sm:$0xf]
    %v2453 = vld [vmem:[%s2451 + $0x4] sm:$0xf]
    %v2454 = vld [vmem:[%s2451 + $0x8] sm:$0xf]
    %v2455 = vld [vmem:[%s2451 + $0xc] sm:$0xf]
    %v2456 = vld [vmem:[%s2451 + $0x10] sm:$0xf]
    %v2457 = vld [vmem:[%s2451 + $0x14] sm:$0xf]
    %v2458 = vld [vmem:[%s2451 + $0x18] sm:$0xf]
    %v2459 = vld [vmem:[%s2451 + $0x1c] sm:$0xf]
    %s2460 = scalar_lea.vmem %s4, 1
    %v2461 = vld [vmem:[%s2460] sm:$0x1]
    %v2463 = vlaneseq
    %v2464 = vshrl.u32 %v2463, 7
    %v2465 = vsub.s32 0, %v2464
    %v2466 = vrot.slane %v2461, %v2465
    %v2476 = vunpack.c.l.b16 %v2452
    %v2477 = vunpack.c.l.b16 %v2453
    %v2478 = vunpack.c.l.b16 %v2454
    %v2479 = vunpack.c.l.b16 %v2455
    %v2480 = vunpack.c.l.b16 %v2456
    %v2481 = vunpack.c.l.b16 %v2457
    %v2482 = vunpack.c.l.b16 %v2458
    %v2483 = vunpack.c.l.b16 %v2459
    %v2484 = vpack.c.b16 %v2477, %v2476
    %v2485 = vpack.c.b16 %v2479, %v2478
    %v2486 = vpack.c.b16 %v2481, %v2480
    %v2487 = vpack.c.b16 %v2483, %v2482
    %v2493 = vsel %vm155, %v2450, 0
    %2495 = vmatprep.subr.bf16.mxu0 0
    %2496 = vmatpush1.bf16.msra.mxu0 %v2484
    %2497 = vmatprep.subr.bf16.mxu0 0
    %2498 = vmatpush1.bf16.msra.mxu0 %v2485
    %2499 = vmatprep.subr.bf16.mxu0 0
    %2500 = vmatpush1.bf16.msra.mxu0 %v2486
    %2501 = vmatprep.subr.bf16.mxu0 0
    %2502 = vmatpush1.bf16.msra.mxu0 %v2487
    %2503 = vmatprep.subr.bf16.mxu0 0
    %2504 = vmatpush1.bf16.msra.mxu0 0
    %2505 = vmatprep.subr.bf16.mxu0 0
    %2506 = vmatpush1.bf16.msra.mxu0 0
    %2507 = vmatprep.subr.bf16.mxu0 0
    %2508 = vmatpush1.bf16.msra.mxu0 0
    %2509 = vmatprep.subr.bf16.mxu0 0
    %2510 = vmatpush1.bf16.msra.mxu0 0
    %2511 = vmatprep.subr.bf16.mxu0 0
    %2512 = vmatpush1.bf16.msra.mxu0 0
    %2513 = vmatprep.subr.bf16.mxu0 0
    %2514 = vmatpush1.bf16.msra.mxu0 0
    %2515 = vmatprep.subr.bf16.mxu0 0
    %2516 = vmatpush1.bf16.msra.mxu0 0
    %2517 = vmatprep.subr.bf16.mxu0 0
    %2518 = vmatpush1.bf16.msra.mxu0 0
    %2519 = vmatprep.subr.bf16.mxu0 0
    %2520 = vmatpush1.bf16.msra.mxu0 0
    %2521 = vmatprep.subr.bf16.mxu0 0
    %2522 = vmatpush1.bf16.msra.mxu0 0
    %2523 = vmatprep.subr.bf16.mxu0 0
    %2524 = vmatpush1.bf16.msra.mxu0 0
    %2525 = vmatprep.subr.bf16.mxu0 0
    %2526 = vmatpush1.bf16.msra.mxu0 0
    %2527 = vmatprep.mubr.bf16.mxu0 0
    %2528 = vmatmul.mubr.bf16.gmra.mrb[0].mxu0 %v2493
    %v2529 = vpop.f32.mrb[0].mxu0
    %v2530 = vadd.f32 %v2466, %v2529
    %v2531 = vpop.f32.mrb[0].mxu0
    %v2532 = vpop.f32.mrb[0].mxu0
    %v2533 = vpop.f32.mrb[0].mxu0
    %2534 = vdwg.mxu0
    %v2535 = vadd.f32 %v2449, %v2530
    %s2536 = scalar_lea.vmem %s5, 1
    %v2537 = vld [vmem:[%s2536] sm:$0x1]
    %s2538 = scalar_lea.vmem %s6, 1
    %v2539 = vld [vmem:[%s2538] sm:$0x1]
    %v2540 = vsel %vm155, %v2535, 0.0
    %2541 = vadd.xlane.f32.xlu0 %v2540
    %v2542 = vpop.xlane.xlu0 %2541
    %v2543 = vmul.f32 %v2542, %v205
    %v2544 = vsub.f32 %v2535, %v2543
    %v2545 = vmul.f32 %v2544, %v2544
    %v2546 = vsel %vm155, %v2545, 0.0
    %2547 = vadd.xlane.f32.xlu0 %v2546
    %v2548 = vpop.xlane.xlu0 %2547
    %v2549 = vmul.f32 %v2548, %v205
    %v2550 = vadd.f32 %v2549, 1e-05
    %v2551 = vrsqrt.pop %v2550
    %v2552 = vmul.f32 %v2544, %v2551
    %v2554 = vlaneseq
    %v2555 = vshrl.u32 %v2554, 7
    %v2556 = vsub.s32 0, %v2555
    %v2557 = vrot.slane %v2537, %v2556
    %v2559 = vmul.f32 %v2552, %v2557
    %v2561 = vlaneseq
    %v2562 = vshrl.u32 %v2561, 7
    %v2563 = vsub.s32 0, %v2562
    %v2564 = vrot.slane %v2539, %v2563
    %v2566 = vadd.f32 %v2559, %v2564
    %v2567 = vpack.c.bf16 %v2566, %v2566
    %s2568 = scalar_lea.vmem %s7, 512
    %v2569 = vld [vmem:[%s2568] sm:$0xff]
    %v2570 = vld [vmem:[%s2568 + $0x8] sm:$0xff]
    %v2571 = vld [vmem:[%s2568 + $0x40] sm:$0xff]
    %v2572 = vld [vmem:[%s2568 + $0x48] sm:$0xff]
    %v2573 = vld [vmem:[%s2568 + $0x80] sm:$0xff]
    %v2574 = vld [vmem:[%s2568 + $0x88] sm:$0xff]
    %v2575 = vld [vmem:[%s2568 + $0xc0] sm:$0xff]
    %v2576 = vld [vmem:[%s2568 + $0xc8] sm:$0xff]
    %v2577 = vld [vmem:[%s2568 + $0x100] sm:$0xff]
    %v2578 = vld [vmem:[%s2568 + $0x108] sm:$0xff]
    %v2579 = vld [vmem:[%s2568 + $0x140] sm:$0xff]
    %v2580 = vld [vmem:[%s2568 + $0x148] sm:$0xff]
    %v2581 = vld [vmem:[%s2568 + $0x180] sm:$0xff]
    %v2582 = vld [vmem:[%s2568 + $0x188] sm:$0xff]
    %v2583 = vld [vmem:[%s2568 + $0x1c0] sm:$0xff]
    %v2584 = vld [vmem:[%s2568 + $0x1c8] sm:$0xff]
    %s2585 = scalar_lea.vmem %s8, 16
    %v2586 = vld [vmem:[%s2585] sm:$0xf]
    %v2588 = vlaneseq
    %v2589 = vshrl.u32 %v2588, 7
    %v2590 = vsub.s32 0, %v2589
    %v2591 = vrot.slane %v2586, %v2590
    %v2592 = vlaneseq
    %v2593 = vshrl.u32 %v2592, 7
    %v2594 = vsub.s32 1, %v2593
    %v2595 = vrot.slane %v2586, %v2594
    %v2596 = vlaneseq
    %v2597 = vshrl.u32 %v2596, 7
    %v2598 = vsub.s32 2, %v2597
    %v2599 = vrot.slane %v2586, %v2598
    %v2600 = vlaneseq
    %v2601 = vshrl.u32 %v2600, 7
    %v2602 = vsub.s32 3, %v2601
    %v2603 = vrot.slane %v2586, %v2602
    %v2624 = vunpack.c.l.b16 %v2569
    %v2625 = vunpack.c.h.b16 %v2569
    %v2626 = vunpack.c.l.b16 %v2570
    %v2627 = vunpack.c.h.b16 %v2570
    %v2628 = vunpack.c.l.b16 %v2571
    %v2629 = vunpack.c.h.b16 %v2571
    %v2630 = vunpack.c.l.b16 %v2572
    %v2631 = vunpack.c.h.b16 %v2572
    %v2632 = vunpack.c.l.b16 %v2573
    %v2633 = vunpack.c.h.b16 %v2573
    %v2634 = vunpack.c.l.b16 %v2574
    %v2635 = vunpack.c.h.b16 %v2574
    %v2636 = vunpack.c.l.b16 %v2575
    %v2637 = vunpack.c.h.b16 %v2575
    %v2638 = vunpack.c.l.b16 %v2576
    %v2639 = vunpack.c.h.b16 %v2576
    %v2640 = vunpack.c.l.b16 %v2577
    %v2641 = vunpack.c.h.b16 %v2577
    %v2642 = vunpack.c.l.b16 %v2578
    %v2643 = vunpack.c.h.b16 %v2578
    %v2644 = vunpack.c.l.b16 %v2579
    %v2645 = vunpack.c.h.b16 %v2579
    %v2646 = vunpack.c.l.b16 %v2580
    %v2647 = vunpack.c.h.b16 %v2580
    %v2648 = vunpack.c.l.b16 %v2581
    %v2649 = vunpack.c.h.b16 %v2581
    %v2650 = vunpack.c.l.b16 %v2582
    %v2651 = vunpack.c.h.b16 %v2582
    %v2652 = vunpack.c.l.b16 %v2583
    %v2653 = vunpack.c.h.b16 %v2583
    %v2654 = vunpack.c.l.b16 %v2584
    %v2655 = vunpack.c.h.b16 %v2584
    %v2656 = vpack.c.b16 %v2628, %v2624
    %v2657 = vpack.c.b16 %v2629, %v2625
    %v2658 = vpack.c.b16 %v2630, %v2626
    %v2659 = vpack.c.b16 %v2631, %v2627
    %v2660 = vpack.c.b16 %v2636, %v2632
    %v2661 = vpack.c.b16 %v2637, %v2633
    %v2662 = vpack.c.b16 %v2638, %v2634
    %v2663 = vpack.c.b16 %v2639, %v2635
    %v2664 = vpack.c.b16 %v2644, %v2640
    %v2665 = vpack.c.b16 %v2645, %v2641
    %v2666 = vpack.c.b16 %v2646, %v2642
    %v2667 = vpack.c.b16 %v2647, %v2643
    %v2668 = vpack.c.b16 %v2652, %v2648
    %v2669 = vpack.c.b16 %v2653, %v2649
    %v2670 = vpack.c.b16 %v2654, %v2650
    %v2671 = vpack.c.b16 %v2655, %v2651
    %v2689 = vsel %vm155, %v2567, 0
    %2691 = vmatprep.subr.bf16.mxu0 %v2657
    %2692 = vmatpush1.bf16.msra.mxu0 %v2656
    %2693 = vmatprep.subr.bf16.mxu0 %v2661
    %2694 = vmatpush1.bf16.msra.mxu0 %v2660
    %2695 = vmatprep.subr.bf16.mxu0 %v2665
    %2696 = vmatpush1.bf16.msra.mxu0 %v2664
    %2697 = vmatprep.subr.bf16.mxu0 %v2669
    %2698 = vmatpush1.bf16.msra.mxu0 %v2668
    %2699 = vmatprep.subr.bf16.mxu0 0
    %2700 = vmatpush1.bf16.msra.mxu0 0
    %2701 = vmatprep.subr.bf16.mxu0 0
    %2702 = vmatpush1.bf16.msra.mxu0 0
    %2703 = vmatprep.subr.bf16.mxu0 0
    %2704 = vmatpush1.bf16.msra.mxu0 0
    %2705 = vmatprep.subr.bf16.mxu0 0
    %2706 = vmatpush1.bf16.msra.mxu0 0
    %2707 = vmatprep.subr.bf16.mxu0 0
    %2708 = vmatpush1.bf16.msra.mxu0 0
    %2709 = vmatprep.subr.bf16.mxu0 0
    %2710 = vmatpush1.bf16.msra.mxu0 0
    %2711 = vmatprep.subr.bf16.mxu0 0
    %2712 = vmatpush1.bf16.msra.mxu0 0
    %2713 = vmatprep.subr.bf16.mxu0 0
    %2714 = vmatpush1.bf16.msra.mxu0 0
    %2715 = vmatprep.subr.bf16.mxu0 0
    %2716 = vmatpush1.bf16.msra.mxu0 0
    %2717 = vmatprep.subr.bf16.mxu0 0
    %2718 = vmatpush1.bf16.msra.mxu0 0
    %2719 = vmatprep.subr.bf16.mxu0 0
    %2720 = vmatpush1.bf16.msra.mxu0 0
    %2721 = vmatprep.subr.bf16.mxu0 0
    %2722 = vmatpush1.bf16.msra.mxu0 0
    %2723 = vmatprep.mubr.bf16.mxu0 0
    %2724 = vmatmul.mubr.bf16.gmra.mrb[0].mxu0 %v2689
    %v2725 = vpop.f32.mrb[0].mxu0
    %v2726 = vadd.f32 %v2591, %v2725
    %v2727 = vpop.f32.mrb[0].mxu0
    %v2728 = vadd.f32 %v2595, %v2727
    %v2729 = vpop.f32.mrb[0].mxu0
    %v2730 = vpop.f32.mrb[0].mxu0
    %2731 = vdwg.mxu0
    %2732 = vmatprep.subr.bf16.mxu0 %v2659
    %2733 = vmatpush1.bf16.msra.mxu0 %v2658
    %2734 = vmatprep.subr.bf16.mxu0 %v2663
    %2735 = vmatpush1.bf16.msra.mxu0 %v2662
    %2736 = vmatprep.subr.bf16.mxu0 %v2667
    %2737 = vmatpush1.bf16.msra.mxu0 %v2666
    %2738 = vmatprep.subr.bf16.mxu0 %v2671
    %2739 = vmatpush1.bf16.msra.mxu0 %v2670
    %2740 = vmatprep.subr.bf16.mxu0 0
    %2741 = vmatpush1.bf16.msra.mxu0 0
    %2742 = vmatprep.subr.bf16.mxu0 0
    %2743 = vmatpush1.bf16.msra.mxu0 0
    %2744 = vmatprep.subr.bf16.mxu0 0
    %2745 = vmatpush1.bf16.msra.mxu0 0
    %2746 = vmatprep.subr.bf16.mxu0 0
    %2747 = vmatpush1.bf16.msra.mxu0 0
    %2748 = vmatprep.subr.bf16.mxu0 0
    %2749 = vmatpush1.bf16.msra.mxu0 0
    %2750 = vmatprep.subr.bf16.mxu0 0
    %2751 = vmatpush1.bf16.msra.mxu0 0
    %2752 = vmatprep.subr.bf16.mxu0 0
    %2753 = vmatpush1.bf16.msra.mxu0 0
    %2754 = vmatprep.subr.bf16.mxu0 0
    %2755 = vmatpush1.bf16.msra.mxu0 0
    %2756 = vmatprep.subr.bf16.mxu0 0
    %2757 = vmatpush1.bf16.msra.mxu0 0
    %2758 = vmatprep.subr.bf16.mxu0 0
    %2759 = vmatpush1.bf16.msra.mxu0 0
    %2760 = vmatprep.subr.bf16.mxu0 0
    %2761 = vmatpush1.bf16.msra.mxu0 0
    %2762 = vmatprep.subr.bf16.mxu0 0
    %2763 = vmatpush1.bf16.msra.mxu0 0
    %2764 = vmatprep.mubr.bf16.mxu0 0
    %2765 = vmatmul.mubr.bf16.gmra.mrb[0].mxu0 %v2689
    %v2766 = vpop.f32.mrb[0].mxu0
    %v2767 = vadd.f32 %v2599, %v2766
    %v2768 = vpop.f32.mrb[0].mxu0
    %v2769 = vadd.f32 %v2603, %v2768
    %v2770 = vpop.f32.mrb[0].mxu0
    %v2771 = vpop.f32.mrb[0].mxu0
    %2772 = vdwg.mxu0
    %v2773 = vmax.f32 %v2726, 0.0
    %v2774 = vmax.f32 %v2728, 0.0
    %v2775 = vmax.f32 %v2767, 0.0
    %v2776 = vmax.f32 %v2769, 0.0
    %v2777 = vpack.c.bf16 %v2773, %v2773
    %v2778 = vpack.c.bf16 %v2774, %v2774
    %v2779 = vpack.c.bf16 %v2775, %v2775
    %v2780 = vpack.c.bf16 %v2776, %v2776
    %s2781 = scalar_lea.vmem %s9, 1024
    %v2782 = vld [vmem:[%s2781] sm:$0xf]
    %v2783 = vld [vmem:[%s2781 + $0x4] sm:$0xf]
    %v2784 = vld [vmem:[%s2781 + $0x8] sm:$0xf]
    %v2785 = vld [vmem:[%s2781 + $0xc] sm:$0xf]
    %v2786 = vld [vmem:[%s2781 + $0x10] sm:$0xf]
    %v2787 = vld [vmem:[%s2781 + $0x14] sm:$0xf]
    %v2788 = vld [vmem:[%s2781 + $0x18] sm:$0xf]
    %v2789 = vld [vmem:[%s2781 + $0x1c] sm:$0xf]
    %v2790 = vld [vmem:[%s2781 + $0x20] sm:$0xf]
    %v2791 = vld [vmem:[%s2781 + $0x24] sm:$0xf]
    %v2792 = vld [vmem:[%s2781 + $0x28] sm:$0xf]
    %v2793 = vld [vmem:[%s2781 + $0x2c] sm:$0xf]
    %v2794 = vld [vmem:[%s2781 + $0x30] sm:$0xf]
    %v2795 = vld [vmem:[%s2781 + $0x34] sm:$0xf]
    %v2796 = vld [vmem:[%s2781 + $0x38] sm:$0xf]
    %v2797 = vld [vmem:[%s2781 + $0x3c] sm:$0xf]
    %v2798 = vld [vmem:[%s2781 + $0x40] sm:$0xf]
    %v2799 = vld [vmem:[%s2781 + $0x44] sm:$0xf]
    %v2800 = vld [vmem:[%s2781 + $0x48] sm:$0xf]
    %v2801 = vld [vmem:[%s2781 + $0x4c] sm:$0xf]
    %v2802 = vld [vmem:[%s2781 + $0x50] sm:$0xf]
    %v2803 = vld [vmem:[%s2781 + $0x54] sm:$0xf]
    %v2804 = vld [vmem:[%s2781 + $0x58] sm:$0xf]
    %v2805 = vld [vmem:[%s2781 + $0x5c] sm:$0xf]
    %v2806 = vld [vmem:[%s2781 + $0x60] sm:$0xf]
    %v2807 = vld [vmem:[%s2781 + $0x64] sm:$0xf]
    %v2808 = vld [vmem:[%s2781 + $0x68] sm:$0xf]
    %v2809 = vld [vmem:[%s2781 + $0x6c] sm:$0xf]
    %v2810 = vld [vmem:[%s2781 + $0x70] sm:$0xf]
    %v2811 = vld [vmem:[%s2781 + $0x74] sm:$0xf]
    %v2812 = vld [vmem:[%s2781 + $0x78] sm:$0xf]
    %v2813 = vld [vmem:[%s2781 + $0x7c] sm:$0xf]
    %v2814 = vld [vmem:[%s2781 + $0x80] sm:$0xf]
    %v2815 = vld [vmem:[%s2781 + $0x84] sm:$0xf]
    %v2816 = vld [vmem:[%s2781 + $0x88] sm:$0xf]
    %v2817 = vld [vmem:[%s2781 + $0x8c] sm:$0xf]
    %v2818 = vld [vmem:[%s2781 + $0x90] sm:$0xf]
    %v2819 = vld [vmem:[%s2781 + $0x94] sm:$0xf]
    %v2820 = vld [vmem:[%s2781 + $0x98] sm:$0xf]
    %v2821 = vld [vmem:[%s2781 + $0x9c] sm:$0xf]
    %v2822 = vld [vmem:[%s2781 + $0xa0] sm:$0xf]
    %v2823 = vld [vmem:[%s2781 + $0xa4] sm:$0xf]
    %v2824 = vld [vmem:[%s2781 + $0xa8] sm:$0xf]
    %v2825 = vld [vmem:[%s2781 + $0xac] sm:$0xf]
    %v2826 = vld [vmem:[%s2781 + $0xb0] sm:$0xf]
    %v2827 = vld [vmem:[%s2781 + $0xb4] sm:$0xf]
    %v2828 = vld [vmem:[%s2781 + $0xb8] sm:$0xf]
    %v2829 = vld [vmem:[%s2781 + $0xbc] sm:$0xf]
    %v2830 = vld [vmem:[%s2781 + $0xc0] sm:$0xf]
    %v2831 = vld [vmem:[%s2781 + $0xc4] sm:$0xf]
    %v2832 = vld [vmem:[%s2781 + $0xc8] sm:$0xf]
    %v2833 = vld [vmem:[%s2781 + $0xcc] sm:$0xf]
    %v2834 = vld [vmem:[%s2781 + $0xd0] sm:$0xf]
    %v2835 = vld [vmem:[%s2781 + $0xd4] sm:$0xf]
    %v2836 = vld [vmem:[%s2781 + $0xd8] sm:$0xf]
    %v2837 = vld [vmem:[%s2781 + $0xdc] sm:$0xf]
    %v2838 = vld [vmem:[%s2781 + $0xe0] sm:$0xf]
    %v2839 = vld [vmem:[%s2781 + $0xe4] sm:$0xf]
    %v2840 = vld [vmem:[%s2781 + $0xe8] sm:$0xf]
    %v2841 = vld [vmem:[%s2781 + $0xec] sm:$0xf]
    %v2842 = vld [vmem:[%s2781 + $0xf0] sm:$0xf]
    %v2843 = vld [vmem:[%s2781 + $0xf4] sm:$0xf]
    %v2844 = vld [vmem:[%s2781 + $0xf8] sm:$0xf]
    %v2845 = vld [vmem:[%s2781 + $0xfc] sm:$0xf]
    %v2846 = vld [vmem:[%s2568 + $0x10] sm:$0xff]
    %v2847 = vld [vmem:[%s2568 + $0x18] sm:$0xff]
    %v2848 = vld [vmem:[%s2568 + $0x50] sm:$0xff]
    %v2849 = vld [vmem:[%s2568 + $0x58] sm:$0xff]
    %v2850 = vld [vmem:[%s2568 + $0x90] sm:$0xff]
    %v2851 = vld [vmem:[%s2568 + $0x98] sm:$0xff]
    %v2852 = vld [vmem:[%s2568 + $0xd0] sm:$0xff]
    %v2853 = vld [vmem:[%s2568 + $0xd8] sm:$0xff]
    %v2854 = vld [vmem:[%s2568 + $0x110] sm:$0xff]
    %v2855 = vld [vmem:[%s2568 + $0x118] sm:$0xff]
    %v2856 = vld [vmem:[%s2568 + $0x150] sm:$0xff]
    %v2857 = vld [vmem:[%s2568 + $0x158] sm:$0xff]
    %v2858 = vld [vmem:[%s2568 + $0x190] sm:$0xff]
    %v2859 = vld [vmem:[%s2568 + $0x198] sm:$0xff]
    %v2860 = vld [vmem:[%s2568 + $0x1d0] sm:$0xff]
    %v2861 = vld [vmem:[%s2568 + $0x1d8] sm:$0xff]
    %v2862 = vld [vmem:[%s2585 + $0x4] sm:$0xf]
    %v2864 = vlaneseq
    %v2865 = vshrl.u32 %v2864, 7
    %v2866 = vsub.s32 0, %v2865
    %v2867 = vrot.slane %v2862, %v2866
    %v2868 = vlaneseq
    %v2869 = vshrl.u32 %v2868, 7
    %v2870 = vsub.s32 1, %v2869
    %v2871 = vrot.slane %v2862, %v2870
    %v2872 = vlaneseq
    %v2873 = vshrl.u32 %v2872, 7
    %v2874 = vsub.s32 2, %v2873
    %v2875 = vrot.slane %v2862, %v2874
    %v2876 = vlaneseq
    %v2877 = vshrl.u32 %v2876, 7
    %v2878 = vsub.s32 3, %v2877
    %v2879 = vrot.slane %v2862, %v2878
    %v2900 = vunpack.c.l.b16 %v2846
    %v2901 = vunpack.c.h.b16 %v2846
    %v2902 = vunpack.c.l.b16 %v2847
    %v2903 = vunpack.c.h.b16 %v2847
    %v2904 = vunpack.c.l.b16 %v2848
    %v2905 = vunpack.c.h.b16 %v2848
    %v2906 = vunpack.c.l.b16 %v2849
    %v2907 = vunpack.c.h.b16 %v2849
    %v2908 = vunpack.c.l.b16 %v2850
    %v2909 = vunpack.c.h.b16 %v2850
    %v2910 = vunpack.c.l.b16 %v2851
    %v2911 = vunpack.c.h.b16 %v2851
    %v2912 = vunpack.c.l.b16 %v2852
    %v2913 = vunpack.c.h.b16 %v2852
    %v2914 = vunpack.c.l.b16 %v2853
    %v2915 = vunpack.c.h.b16 %v2853
    %v2916 = vunpack.c.l.b16 %v2854
    %v2917 = vunpack.c.h.b16 %v2854
    %v2918 = vunpack.c.l.b16 %v2855
    %v2919 = vunpack.c.h.b16 %v2855
    %v2920 = vunpack.c.l.b16 %v2856
    %v2921 = vunpack.c.h.b16 %v2856
    %v2922 = vunpack.c.l.b16 %v2857
    %v2923 = vunpack.c.h.b16 %v2857
    %v2924 = vunpack.c.l.b16 %v2858
    %v2925 = vunpack.c.h.b16 %v2858
    %v2926 = vunpack.c.l.b16 %v2859
    %v2927 = vunpack.c.h.b16 %v2859
    %v2928 = vunpack.c.l.b16 %v2860
    %v2929 = vunpack.c.h.b16 %v2860
    %v2930 = vunpack.c.l.b16 %v2861
    %v2931 = vunpack.c.h.b16 %v2861
    %v2932 = vpack.c.b16 %v2904, %v2900
    %v2933 = vpack.c.b16 %v2905, %v2901
    %v2934 = vpack.c.b16 %v2906, %v2902
    %v2935 = vpack.c.b16 %v2907, %v2903
    %v2936 = vpack.c.b16 %v2912, %v2908
    %v2937 = vpack.c.b16 %v2913, %v2909
    %v2938 = vpack.c.b16 %v2914, %v2910
    %v2939 = vpack.c.b16 %v2915, %v2911
    %v2940 = vpack.c.b16 %v2920, %v2916
    %v2941 = vpack.c.b16 %v2921, %v2917
    %v2942 = vpack.c.b16 %v2922, %v2918
    %v2943 = vpack.c.b16 %v2923, %v2919
    %v2944 = vpack.c.b16 %v2928, %v2924
    %v2945 = vpack.c.b16 %v2929, %v2925
    %v2946 = vpack.c.b16 %v2930, %v2926
    %v2947 = vpack.c.b16 %v2931, %v2927
    %2964 = vmatprep.subr.bf16.mxu0 %v2933
    %2965 = vmatpush1.bf16.msra.mxu0 %v2932
    %2966 = vmatprep.subr.bf16.mxu0 %v2937
    %2967 = vmatpush1.bf16.msra.mxu0 %v2936
    %2968 = vmatprep.subr.bf16.mxu0 %v2941
    %2969 = vmatpush1.bf16.msra.mxu0 %v2940
    %2970 = vmatprep.subr.bf16.mxu0 %v2945
    %2971 = vmatpush1.bf16.msra.mxu0 %v2944
    %2972 = vmatprep.subr.bf16.mxu0 0
    %2973 = vmatpush1.bf16.msra.mxu0 0
    %2974 = vmatprep.subr.bf16.mxu0 0
    %2975 = vmatpush1.bf16.msra.mxu0 0
    %2976 = vmatprep.subr.bf16.mxu0 0
    %2977 = vmatpush1.bf16.msra.mxu0 0
    %2978 = vmatprep.subr.bf16.mxu0 0
    %2979 = vmatpush1.bf16.msra.mxu0 0
    %2980 = vmatprep.subr.bf16.mxu0 0
    %2981 = vmatpush1.bf16.msra.mxu0 0
    %2982 = vmatprep.subr.bf16.mxu0 0
    %2983 = vmatpush1.bf16.msra.mxu0 0
    %2984 = vmatprep.subr.bf16.mxu0 0
    %2985 = vmatpush1.bf16.msra.mxu0 0
    %2986 = vmatprep.subr.bf16.mxu0 0
    %2987 = vmatpush1.bf16.msra.mxu0 0
    %2988 = vmatprep.subr.bf16.mxu0 0
    %2989 = vmatpush1.bf16.msra.mxu0 0
    %2990 = vmatprep.subr.bf16.mxu0 0
    %2991 = vmatpush1.bf16.msra.mxu0 0
    %2992 = vmatprep.subr.bf16.mxu0 0
    %2993 = vmatpush1.bf16.msra.mxu0 0
    %2994 = vmatprep.subr.bf16.mxu0 0
    %2995 = vmatpush1.bf16.msra.mxu0 0
    %2996 = vmatprep.mubr.bf16.mxu0 0
    %2997 = vmatmul.mubr.bf16.gmra.mrb[0].mxu0 %v2689
    %v2998 = vpop.f32.mrb[0].mxu0
    %v2999 = vadd.f32 %v2867, %v2998
    %v3000 = vpop.f32.mrb[0].mxu0
    %v3001 = vadd.f32 %v2871, %v3000
    %v3002 = vpop.f32.mrb[0].mxu0
    %v3003 = vpop.f32.mrb[0].mxu0
    %3004 = vdwg.mxu0
    %3005 = vmatprep.subr.bf16.mxu0 %v2935
    %3006 = vmatpush1.bf16.msra.mxu0 %v2934
    %3007 = vmatprep.subr.bf16.mxu0 %v2939
    %3008 = vmatpush1.bf16.msra.mxu0 %v2938
    %3009 = vmatprep.subr.bf16.mxu0 %v2943
    %3010 = vmatpush1.bf16.msra.mxu0 %v2942
    %3011 = vmatprep.subr.bf16.mxu0 %v2947
    %3012 = vmatpush1.bf16.msra.mxu0 %v2946
    %3013 = vmatprep.subr.bf16.mxu0 0
    %3014 = vmatpush1.bf16.msra.mxu0 0
    %3015 = vmatprep.subr.bf16.mxu0 0
    %3016 = vmatpush1.bf16.msra.mxu0 0
    %3017 = vmatprep.subr.bf16.mxu0 0
    %3018 = vmatpush1.bf16.msra.mxu0 0
    %3019 = vmatprep.subr.bf16.mxu0 0
    %3020 = vmatpush1.bf16.msra.mxu0 0
    %3021 = vmatprep.subr.bf16.mxu0 0
    %3022 = vmatpush1.bf16.msra.mxu0 0
    %3023 = vmatprep.subr.bf16.mxu0 0
    %3024 = vmatpush1.bf16.msra.mxu0 0
    %3025 = vmatprep.subr.bf16.mxu0 0
    %3026 = vmatpush1.bf16.msra.mxu0 0
    %3027 = vmatprep.subr.bf16.mxu0 0
    %3028 = vmatpush1.bf16.msra.mxu0 0
    %3029 = vmatprep.subr.bf16.mxu0 0
    %3030 = vmatpush1.bf16.msra.mxu0 0
    %3031 = vmatprep.subr.bf16.mxu0 0
    %3032 = vmatpush1.bf16.msra.mxu0 0
    %3033 = vmatprep.subr.bf16.mxu0 0
    %3034 = vmatpush1.bf16.msra.mxu0 0
    %3035 = vmatprep.subr.bf16.mxu0 0
    %3036 = vmatpush1.bf16.msra.mxu0 0
    %3037 = vmatprep.mubr.bf16.mxu0 0
    %3038 = vmatmul.mubr.bf16.gmra.mrb[0].mxu0 %v2689
    %v3039 = vpop.f32.mrb[0].mxu0
    %v3040 = vadd.f32 %v2875, %v3039
    %v3041 = vpop.f32.mrb[0].mxu0
    %v3042 = vadd.f32 %v2879, %v3041
    %v3043 = vpop.f32.mrb[0].mxu0
    %v3044 = vpop.f32.mrb[0].mxu0
    %3045 = vdwg.mxu0
    %v3046 = vmax.f32 %v2999, 0.0
    %v3047 = vmax.f32 %v3001, 0.0
    %v3048 = vmax.f32 %v3040, 0.0
    %v3049 = vmax.f32 %v3042, 0.0
    %v3050 = vpack.c.bf16 %v3046, %v3046
    %v3051 = vpack.c.bf16 %v3047, %v3047
    %v3052 = vpack.c.bf16 %v3048, %v3048
    %v3053 = vpack.c.bf16 %v3049, %v3049
    %v3054 = vld [vmem:[%s2781 + $0x100] sm:$0xf]
    %v3055 = vld [vmem:[%s2781 + $0x104] sm:$0xf]
    %v3056 = vld [vmem:[%s2781 + $0x108] sm:$0xf]
    %v3057 = vld [vmem:[%s2781 + $0x10c] sm:$0xf]
    %v3058 = vld [vmem:[%s2781 + $0x110] sm:$0xf]
    %v3059 = vld [vmem:[%s2781 + $0x114] sm:$0xf]
    %v3060 = vld [vmem:[%s2781 + $0x118] sm:$0xf]
    %v3061 = vld [vmem:[%s2781 + $0x11c] sm:$0xf]
    %v3062 = vld [vmem:[%s2781 + $0x120] sm:$0xf]
    %v3063 = vld [vmem:[%s2781 + $0x124] sm:$0xf]
    %v3064 = vld [vmem:[%s2781 + $0x128] sm:$0xf]
    %v3065 = vld [vmem:[%s2781 + $0x12c] sm:$0xf]
    %v3066 = vld [vmem:[%s2781 + $0x130] sm:$0xf]
    %v3067 = vld [vmem:[%s2781 + $0x134] sm:$0xf]
    %v3068 = vld [vmem:[%s2781 + $0x138] sm:$0xf]
    %v3069 = vld [vmem:[%s2781 + $0x13c] sm:$0xf]
    %v3070 = vld [vmem:[%s2781 + $0x140] sm:$0xf]
    %v3071 = vld [vmem:[%s2781 + $0x144] sm:$0xf]
    %v3072 = vld [vmem:[%s2781 + $0x148] sm:$0xf]
    %v3073 = vld [vmem:[%s2781 + $0x14c] sm:$0xf]
    %v3074 = vld [vmem:[%s2781 + $0x150] sm:$0xf]
    %v3075 = vld [vmem:[%s2781 + $0x154] sm:$0xf]
    %v3076 = vld [vmem:[%s2781 + $0x158] sm:$0xf]
    %v3077 = vld [vmem:[%s2781 + $0x15c] sm:$0xf]
    %v3078 = vld [vmem:[%s2781 + $0x160] sm:$0xf]
    %v3079 = vld [vmem:[%s2781 + $0x164] sm:$0xf]
    %v3080 = vld [vmem:[%s2781 + $0x168] sm:$0xf]
    %v3081 = vld [vmem:[%s2781 + $0x16c] sm:$0xf]
    %v3082 = vld [vmem:[%s2781 + $0x170] sm:$0xf]
    %v3083 = vld [vmem:[%s2781 + $0x174] sm:$0xf]
    %v3084 = vld [vmem:[%s2781 + $0x178] sm:$0xf]
    %v3085 = vld [vmem:[%s2781 + $0x17c] sm:$0xf]
    %v3086 = vld [vmem:[%s2781 + $0x180] sm:$0xf]
    %v3087 = vld [vmem:[%s2781 + $0x184] sm:$0xf]
    %v3088 = vld [vmem:[%s2781 + $0x188] sm:$0xf]
    %v3089 = vld [vmem:[%s2781 + $0x18c] sm:$0xf]
    %v3090 = vld [vmem:[%s2781 + $0x190] sm:$0xf]
    %v3091 = vld [vmem:[%s2781 + $0x194] sm:$0xf]
    %v3092 = vld [vmem:[%s2781 + $0x198] sm:$0xf]
    %v3093 = vld [vmem:[%s2781 + $0x19c] sm:$0xf]
    %v3094 = vld [vmem:[%s2781 + $0x1a0] sm:$0xf]
    %v3095 = vld [vmem:[%s2781 + $0x1a4] sm:$0xf]
    %v3096 = vld [vmem:[%s2781 + $0x1a8] sm:$0xf]
    %v3097 = vld [vmem:[%s2781 + $0x1ac] sm:$0xf]
    %v3098 = vld [vmem:[%s2781 + $0x1b0] sm:$0xf]
    %v3099 = vld [vmem:[%s2781 + $0x1b4] sm:$0xf]
    %v3100 = vld [vmem:[%s2781 + $0x1b8] sm:$0xf]
    %v3101 = vld [vmem:[%s2781 + $0x1bc] sm:$0xf]
    %v3102 = vld [vmem:[%s2781 + $0x1c0] sm:$0xf]
    %v3103 = vld [vmem:[%s2781 + $0x1c4] sm:$0xf]
    %v3104 = vld [vmem:[%s2781 + $0x1c8] sm:$0xf]
    %v3105 = vld [vmem:[%s2781 + $0x1cc] sm:$0xf]
    %v3106 = vld [vmem:[%s2781 + $0x1d0] sm:$0xf]
    %v3107 = vld [vmem:[%s2781 + $0x1d4] sm:$0xf]
    %v3108 = vld [vmem:[%s2781 + $0x1d8] sm:$0xf]
    %v3109 = vld [vmem:[%s2781 + $0x1dc] sm:$0xf]
    %v3110 = vld [vmem:[%s2781 + $0x1e0] sm:$0xf]
    %v3111 = vld [vmem:[%s2781 + $0x1e4] sm:$0xf]
    %v3112 = vld [vmem:[%s2781 + $0x1e8] sm:$0xf]
    %v3113 = vld [vmem:[%s2781 + $0x1ec] sm:$0xf]
    %v3114 = vld [vmem:[%s2781 + $0x1f0] sm:$0xf]
    %v3115 = vld [vmem:[%s2781 + $0x1f4] sm:$0xf]
    %v3116 = vld [vmem:[%s2781 + $0x1f8] sm:$0xf]
    %v3117 = vld [vmem:[%s2781 + $0x1fc] sm:$0xf]
    %v3182 = vunpack.c.l.b16 %v3054
    %v3183 = vunpack.c.l.b16 %v3055
    %v3184 = vunpack.c.l.b16 %v3056
    %v3185 = vunpack.c.l.b16 %v3057
    %v3186 = vunpack.c.l.b16 %v3058
    %v3187 = vunpack.c.l.b16 %v3059
    %v3188 = vunpack.c.l.b16 %v3060
    %v3189 = vunpack.c.l.b16 %v3061
    %v3190 = vunpack.c.l.b16 %v3062
    %v3191 = vunpack.c.l.b16 %v3063
    %v3192 = vunpack.c.l.b16 %v3064
    %v3193 = vunpack.c.l.b16 %v3065
    %v3194 = vunpack.c.l.b16 %v3066
    %v3195 = vunpack.c.l.b16 %v3067
    %v3196 = vunpack.c.l.b16 %v3068
    %v3197 = vunpack.c.l.b16 %v3069
    %v3198 = vunpack.c.l.b16 %v3070
    %v3199 = vunpack.c.l.b16 %v3071
    %v3200 = vunpack.c.l.b16 %v3072
    %v3201 = vunpack.c.l.b16 %v3073
    %v3202 = vunpack.c.l.b16 %v3074
    %v3203 = vunpack.c.l.b16 %v3075
    %v3204 = vunpack.c.l.b16 %v3076
    %v3205 = vunpack.c.l.b16 %v3077
    %v3206 = vunpack.c.l.b16 %v3078
    %v3207 = vunpack.c.l.b16 %v3079
    %v3208 = vunpack.c.l.b16 %v3080
    %v3209 = vunpack.c.l.b16 %v3081
    %v3210 = vunpack.c.l.b16 %v3082
    %v3211 = vunpack.c.l.b16 %v3083
    %v3212 = vunpack.c.l.b16 %v3084
    %v3213 = vunpack.c.l.b16 %v3085
    %v3214 = vunpack.c.l.b16 %v3086
    %v3215 = vunpack.c.l.b16 %v3087
    %v3216 = vunpack.c.l.b16 %v3088
    %v3217 = vunpack.c.l.b16 %v3089
    %v3218 = vunpack.c.l.b16 %v3090
    %v3219 = vunpack.c.l.b16 %v3091
    %v3220 = vunpack.c.l.b16 %v3092
    %v3221 = vunpack.c.l.b16 %v3093
    %v3222 = vunpack.c.l.b16 %v3094
    %v3223 = vunpack.c.l.b16 %v3095
    %v3224 = vunpack.c.l.b16 %v3096
    %v3225 = vunpack.c.l.b16 %v3097
    %v3226 = vunpack.c.l.b16 %v3098
    %v3227 = vunpack.c.l.b16 %v3099
    %v3228 = vunpack.c.l.b16 %v3100
    %v3229 = vunpack.c.l.b16 %v3101
    %v3230 = vunpack.c.l.b16 %v3102
    %v3231 = vunpack.c.l.b16 %v3103
    %v3232 = vunpack.c.l.b16 %v3104
    %v3233 = vunpack.c.l.b16 %v3105
    %v3234 = vunpack.c.l.b16 %v3106
    %v3235 = vunpack.c.l.b16 %v3107
    %v3236 = vunpack.c.l.b16 %v3108
    %v3237 = vunpack.c.l.b16 %v3109
    %v3238 = vunpack.c.l.b16 %v3110
    %v3239 = vunpack.c.l.b16 %v3111
    %v3240 = vunpack.c.l.b16 %v3112
    %v3241 = vunpack.c.l.b16 %v3113
    %v3242 = vunpack.c.l.b16 %v3114
    %v3243 = vunpack.c.l.b16 %v3115
    %v3244 = vunpack.c.l.b16 %v3116
    %v3245 = vunpack.c.l.b16 %v3117
    %v3246 = vpack.c.b16 %v3183, %v3182
    %v3247 = vpack.c.b16 %v3185, %v3184
    %v3248 = vpack.c.b16 %v3187, %v3186
    %v3249 = vpack.c.b16 %v3189, %v3188
    %v3250 = vpack.c.b16 %v3191, %v3190
    %v3251 = vpack.c.b16 %v3193, %v3192
    %v3252 = vpack.c.b16 %v3195, %v3194
    %v3253 = vpack.c.b16 %v3197, %v3196
    %v3254 = vpack.c.b16 %v3199, %v3198
    %v3255 = vpack.c.b16 %v3201, %v3200
    %v3256 = vpack.c.b16 %v3203, %v3202
    %v3257 = vpack.c.b16 %v3205, %v3204
    %v3258 = vpack.c.b16 %v3207, %v3206
    %v3259 = vpack.c.b16 %v3209, %v3208
    %v3260 = vpack.c.b16 %v3211, %v3210
    %v3261 = vpack.c.b16 %v3213, %v3212
    %v3262 = vpack.c.b16 %v3215, %v3214
    %v3263 = vpack.c.b16 %v3217, %v3216
    %v3264 = vpack.c.b16 %v3219, %v3218
    %v3265 = vpack.c.b16 %v3221, %v3220
    %v3266 = vpack.c.b16 %v3223, %v3222
    %v3267 = vpack.c.b16 %v3225, %v3224
    %v3268 = vpack.c.b16 %v3227, %v3226
    %v3269 = vpack.c.b16 %v3229, %v3228
    %v3270 = vpack.c.b16 %v3231, %v3230
    %v3271 = vpack.c.b16 %v3233, %v3232
    %v3272 = vpack.c.b16 %v3235, %v3234
    %v3273 = vpack.c.b16 %v3237, %v3236
    %v3274 = vpack.c.b16 %v3239, %v3238
    %v3275 = vpack.c.b16 %v3241, %v3240
    %v3276 = vpack.c.b16 %v3243, %v3242
    %v3277 = vpack.c.b16 %v3245, %v3244
    %3310 = vmatprep.subr.bf16.mxu0 0
    %3311 = vmatpush1.bf16.msra.mxu0 %v3246
    %3312 = vmatprep.subr.bf16.mxu0 0
    %3313 = vmatpush1.bf16.msra.mxu0 %v3247
    %3314 = vmatprep.subr.bf16.mxu0 0
    %3315 = vmatpush1.bf16.msra.mxu0 %v3248
    %3316 = vmatprep.subr.bf16.mxu0 0
    %3317 = vmatpush1.bf16.msra.mxu0 %v3249
    %3318 = vmatprep.subr.bf16.mxu0 0
    %3319 = vmatpush1.bf16.msra.mxu0 %v3250
    %3320 = vmatprep.subr.bf16.mxu0 0
    %3321 = vmatpush1.bf16.msra.mxu0 %v3251
    %3322 = vmatprep.subr.bf16.mxu0 0
    %3323 = vmatpush1.bf16.msra.mxu0 %v3252
    %3324 = vmatprep.subr.bf16.mxu0 0
    %3325 = vmatpush1.bf16.msra.mxu0 %v3253
    %3326 = vmatprep.subr.bf16.mxu0 0
    %3327 = vmatpush1.bf16.msra.mxu0 %v3254
    %3328 = vmatprep.subr.bf16.mxu0 0
    %3329 = vmatpush1.bf16.msra.mxu0 %v3255
    %3330 = vmatprep.subr.bf16.mxu0 0
    %3331 = vmatpush1.bf16.msra.mxu0 %v3256
    %3332 = vmatprep.subr.bf16.mxu0 0
    %3333 = vmatpush1.bf16.msra.mxu0 %v3257
    %3334 = vmatprep.subr.bf16.mxu0 0
    %3335 = vmatpush1.bf16.msra.mxu0 %v3258
    %3336 = vmatprep.subr.bf16.mxu0 0
    %3337 = vmatpush1.bf16.msra.mxu0 %v3259
    %3338 = vmatprep.subr.bf16.mxu0 0
    %3339 = vmatpush1.bf16.msra.mxu0 %v3260
    %3340 = vmatprep.subr.bf16.mxu0 0
    %3341 = vmatpush1.bf16.msra.mxu0 %v3261
    %3342 = vmatprep.mubr.bf16.mxu0 %v3051
    %3343 = vmatmul.mubr.bf16.gmra.mrb[0].mxu0 %v3050
    %v3344 = vpop.f32.mrb[0].mxu0
    %v3345 = vadd.f32 0.0, %v3344
    %v3346 = vpop.f32.mrb[0].mxu0
    %v3347 = vpop.f32.mrb[0].mxu0
    %v3348 = vpop.f32.mrb[0].mxu0
    %3349 = vdwg.mxu0
    %3350 = vmatprep.subr.bf16.mxu0 0
    %3351 = vmatpush1.bf16.msra.mxu0 %v3262
    %3352 = vmatprep.subr.bf16.mxu0 0
    %3353 = vmatpush1.bf16.msra.mxu0 %v3263
    %3354 = vmatprep.subr.bf16.mxu0 0
    %3355 = vmatpush1.bf16.msra.mxu0 %v3264
    %3356 = vmatprep.subr.bf16.mxu0 0
    %3357 = vmatpush1.bf16.msra.mxu0 %v3265
    %3358 = vmatprep.subr.bf16.mxu0 0
    %3359 = vmatpush1.bf16.msra.mxu0 %v3266
    %3360 = vmatprep.subr.bf16.mxu0 0
    %3361 = vmatpush1.bf16.msra.mxu0 %v3267
    %3362 = vmatprep.subr.bf16.mxu0 0
    %3363 = vmatpush1.bf16.msra.mxu0 %v3268
    %3364 = vmatprep.subr.bf16.mxu0 0
    %3365 = vmatpush1.bf16.msra.mxu0 %v3269
    %3366 = vmatprep.subr.bf16.mxu0 0
    %3367 = vmatpush1.bf16.msra.mxu0 %v3270
    %3368 = vmatprep.subr.bf16.mxu0 0
    %3369 = vmatpush1.bf16.msra.mxu0 %v3271
    %3370 = vmatprep.subr.bf16.mxu0 0
    %3371 = vmatpush1.bf16.msra.mxu0 %v3272
    %3372 = vmatprep.subr.bf16.mxu0 0
    %3373 = vmatpush1.bf16.msra.mxu0 %v3273
    %3374 = vmatprep.subr.bf16.mxu0 0
    %3375 = vmatpush1.bf16.msra.mxu0 %v3274
    %3376 = vmatprep.subr.bf16.mxu0 0
    %3377 = vmatpush1.bf16.msra.mxu0 %v3275
    %3378 = vmatprep.subr.bf16.mxu0 0
    %3379 = vmatpush1.bf16.msra.mxu0 %v3276
    %3380 = vmatprep.subr.bf16.mxu0 0
    %3381 = vmatpush1.bf16.msra.mxu0 %v3277
    %3382 = vmatprep.mubr.bf16.mxu0 %v3053
    %3383 = vmatmul.mubr.bf16.gmra.mrb[0].mxu0 %v3052
    %v3384 = vpop.f32.mrb[0].mxu0
    %v3385 = vadd.f32 %v3345, %v3384
    %v3386 = vpop.f32.mrb[0].mxu0
    %v3387 = vpop.f32.mrb[0].mxu0
    %v3388 = vpop.f32.mrb[0].mxu0
    %3389 = vdwg.mxu0
    %v3454 = vunpack.c.l.b16 %v2782
    %v3455 = vunpack.c.l.b16 %v2783
    %v3456 = vunpack.c.l.b16 %v2784
    %v3457 = vunpack.c.l.b16 %v2785
    %v3458 = vunpack.c.l.b16 %v2786
    %v3459 = vunpack.c.l.b16 %v2787
    %v3460 = vunpack.c.l.b16 %v2788
    %v3461 = vunpack.c.l.b16 %v2789
    %v3462 = vunpack.c.l.b16 %v2790
    %v3463 = vunpack.c.l.b16 %v2791
    %v3464 = vunpack.c.l.b16 %v2792
    %v3465 = vunpack.c.l.b16 %v2793
    %v3466 = vunpack.c.l.b16 %v2794
    %v3467 = vunpack.c.l.b16 %v2795
    %v3468 = vunpack.c.l.b16 %v2796
    %v3469 = vunpack.c.l.b16 %v2797
    %v3470 = vunpack.c.l.b16 %v2798
    %v3471 = vunpack.c.l.b16 %v2799
    %v3472 = vunpack.c.l.b16 %v2800
    %v3473 = vunpack.c.l.b16 %v2801
    %v3474 = vunpack.c.l.b16 %v2802
    %v3475 = vunpack.c.l.b16 %v2803
    %v3476 = vunpack.c.l.b16 %v2804
    %v3477 = vunpack.c.l.b16 %v2805
    %v3478 = vunpack.c.l.b16 %v2806
    %v3479 = vunpack.c.l.b16 %v2807
    %v3480 = vunpack.c.l.b16 %v2808
    %v3481 = vunpack.c.l.b16 %v2809
    %v3482 = vunpack.c.l.b16 %v2810
    %v3483 = vunpack.c.l.b16 %v2811
    %v3484 = vunpack.c.l.b16 %v2812
    %v3485 = vunpack.c.l.b16 %v2813
    %v3486 = vunpack.c.l.b16 %v2814
    %v3487 = vunpack.c.l.b16 %v2815
    %v3488 = vunpack.c.l.b16 %v2816
    %v3489 = vunpack.c.l.b16 %v2817
    %v3490 = vunpack.c.l.b16 %v2818
    %v3491 = vunpack.c.l.b16 %v2819
    %v3492 = vunpack.c.l.b16 %v2820
    %v3493 = vunpack.c.l.b16 %v2821
    %v3494 = vunpack.c.l.b16 %v2822
    %v3495 = vunpack.c.l.b16 %v2823
    %v3496 = vunpack.c.l.b16 %v2824
    %v3497 = vunpack.c.l.b16 %v2825
    %v3498 = vunpack.c.l.b16 %v2826
    %v3499 = vunpack.c.l.b16 %v2827
    %v3500 = vunpack.c.l.b16 %v2828
    %v3501 = vunpack.c.l.b16 %v2829
    %v3502 = vunpack.c.l.b16 %v2830
    %v3503 = vunpack.c.l.b16 %v2831
    %v3504 = vunpack.c.l.b16 %v2832
    %v3505 = vunpack.c.l.b16 %v2833
    %v3506 = vunpack.c.l.b16 %v2834
    %v3507 = vunpack.c.l.b16 %v2835
    %v3508 = vunpack.c.l.b16 %v2836
    %v3509 = vunpack.c.l.b16 %v2837
    %v3510 = vunpack.c.l.b16 %v2838
    %v3511 = vunpack.c.l.b16 %v2839
    %v3512 = vunpack.c.l.b16 %v2840
    %v3513 = vunpack.c.l.b16 %v2841
    %v3514 = vunpack.c.l.b16 %v2842
    %v3515 = vunpack.c.l.b16 %v2843
    %v3516 = vunpack.c.l.b16 %v2844
    %v3517 = vunpack.c.l.b16 %v2845
    %v3518 = vpack.c.b16 %v3455, %v3454
    %v3519 = vpack.c.b16 %v3457, %v3456
    %v3520 = vpack.c.b16 %v3459, %v3458
    %v3521 = vpack.c.b16 %v3461, %v3460
    %v3522 = vpack.c.b16 %v3463, %v3462
    %v3523 = vpack.c.b16 %v3465, %v3464
    %v3524 = vpack.c.b16 %v3467, %v3466
    %v3525 = vpack.c.b16 %v3469, %v3468
    %v3526 = vpack.c.b16 %v3471, %v3470
    %v3527 = vpack.c.b16 %v3473, %v3472
    %v3528 = vpack.c.b16 %v3475, %v3474
    %v3529 = vpack.c.b16 %v3477, %v3476
    %v3530 = vpack.c.b16 %v3479, %v3478
    %v3531 = vpack.c.b16 %v3481, %v3480
    %v3532 = vpack.c.b16 %v3483, %v3482
    %v3533 = vpack.c.b16 %v3485, %v3484
    %v3534 = vpack.c.b16 %v3487, %v3486
    %v3535 = vpack.c.b16 %v3489, %v3488
    %v3536 = vpack.c.b16 %v3491, %v3490
    %v3537 = vpack.c.b16 %v3493, %v3492
    %v3538 = vpack.c.b16 %v3495, %v3494
    %v3539 = vpack.c.b16 %v3497, %v3496
    %v3540 = vpack.c.b16 %v3499, %v3498
    %v3541 = vpack.c.b16 %v3501, %v3500
    %v3542 = vpack.c.b16 %v3503, %v3502
    %v3543 = vpack.c.b16 %v3505, %v3504
    %v3544 = vpack.c.b16 %v3507, %v3506
    %v3545 = vpack.c.b16 %v3509, %v3508
    %v3546 = vpack.c.b16 %v3511, %v3510
    %v3547 = vpack.c.b16 %v3513, %v3512
    %v3548 = vpack.c.b16 %v3515, %v3514
    %v3549 = vpack.c.b16 %v3517, %v3516
    %3582 = vmatprep.subr.bf16.mxu0 0
    %3583 = vmatpush1.bf16.msra.mxu0 %v3518
    %3584 = vmatprep.subr.bf16.mxu0 0
    %3585 = vmatpush1.bf16.msra.mxu0 %v3519
    %3586 = vmatprep.subr.bf16.mxu0 0
    %3587 = vmatpush1.bf16.msra.mxu0 %v3520
    %3588 = vmatprep.subr.bf16.mxu0 0
    %3589 = vmatpush1.bf16.msra.mxu0 %v3521
    %3590 = vmatprep.subr.bf16.mxu0 0
    %3591 = vmatpush1.bf16.msra.mxu0 %v3522
    %3592 = vmatprep.subr.bf16.mxu0 0
    %3593 = vmatpush1.bf16.msra.mxu0 %v3523
    %3594 = vmatprep.subr.bf16.mxu0 0
    %3595 = vmatpush1.bf16.msra.mxu0 %v3524
    %3596 = vmatprep.subr.bf16.mxu0 0
    %3597 = vmatpush1.bf16.msra.mxu0 %v3525
    %3598 = vmatprep.subr.bf16.mxu0 0
    %3599 = vmatpush1.bf16.msra.mxu0 %v3526
    %3600 = vmatprep.subr.bf16.mxu0 0
    %3601 = vmatpush1.bf16.msra.mxu0 %v3527
    %3602 = vmatprep.subr.bf16.mxu0 0
    %3603 = vmatpush1.bf16.msra.mxu0 %v3528
    %3604 = vmatprep.subr.bf16.mxu0 0
    %3605 = vmatpush1.bf16.msra.mxu0 %v3529
    %3606 = vmatprep.subr.bf16.mxu0 0
    %3607 = vmatpush1.bf16.msra.mxu0 %v3530
    %3608 = vmatprep.subr.bf16.mxu0 0
    %3609 = vmatpush1.bf16.msra.mxu0 %v3531
    %3610 = vmatprep.subr.bf16.mxu0 0
    %3611 = vmatpush1.bf16.msra.mxu0 %v3532
    %3612 = vmatprep.subr.bf16.mxu0 0
    %3613 = vmatpush1.bf16.msra.mxu0 %v3533
    %3614 = vmatprep.mubr.bf16.mxu0 %v2778
    %3615 = vmatmul.mubr.bf16.gmra.mrb[0].mxu0 %v2777
    %v3616 = vpop.f32.mrb[0].mxu0
    %v3617 = vadd.f32 %v3385, %v3616
    %v3618 = vpop.f32.mrb[0].mxu0
    %v3619 = vpop.f32.mrb[0].mxu0
    %v3620 = vpop.f32.mrb[0].mxu0
    %3621 = vdwg.mxu0
    %3622 = vmatprep.subr.bf16.mxu0 0
    %3623 = vmatpush1.bf16.msra.mxu0 %v3534
    %3624 = vmatprep.subr.bf16.mxu0 0
    %3625 = vmatpush1.bf16.msra.mxu0 %v3535
    %3626 = vmatprep.subr.bf16.mxu0 0
    %3627 = vmatpush1.bf16.msra.mxu0 %v3536
    %3628 = vmatprep.subr.bf16.mxu0 0
    %3629 = vmatpush1.bf16.msra.mxu0 %v3537
    %3630 = vmatprep.subr.bf16.mxu0 0
    %3631 = vmatpush1.bf16.msra.mxu0 %v3538
    %3632 = vmatprep.subr.bf16.mxu0 0
    %3633 = vmatpush1.bf16.msra.mxu0 %v3539
    %3634 = vmatprep.subr.bf16.mxu0 0
    %3635 = vmatpush1.bf16.msra.mxu0 %v3540
    %3636 = vmatprep.subr.bf16.mxu0 0
    %3637 = vmatpush1.bf16.msra.mxu0 %v3541
    %3638 = vmatprep.subr.bf16.mxu0 0
    %3639 = vmatpush1.bf16.msra.mxu0 %v3542
    %3640 = vmatprep.subr.bf16.mxu0 0
    %3641 = vmatpush1.bf16.msra.mxu0 %v3543
    %3642 = vmatprep.subr.bf16.mxu0 0
    %3643 = vmatpush1.bf16.msra.mxu0 %v3544
    %3644 = vmatprep.subr.bf16.mxu0 0
    %3645 = vmatpush1.bf16.msra.mxu0 %v3545
    %3646 = vmatprep.subr.bf16.mxu0 0
    %3647 = vmatpush1.bf16.msra.mxu0 %v3546
    %3648 = vmatprep.subr.bf16.mxu0 0
    %3649 = vmatpush1.bf16.msra.mxu0 %v3547
    %3650 = vmatprep.subr.bf16.mxu0 0
    %3651 = vmatpush1.bf16.msra.mxu0 %v3548
    %3652 = vmatprep.subr.bf16.mxu0 0
    %3653 = vmatpush1.bf16.msra.mxu0 %v3549
    %3654 = vmatprep.mubr.bf16.mxu0 %v2780
    %3655 = vmatmul.mubr.bf16.gmra.mrb[0].mxu0 %v2779
    %v3656 = vpop.f32.mrb[0].mxu0
    %v3657 = vadd.f32 %v3617, %v3656
    %v3658 = vpop.f32.mrb[0].mxu0
    %v3659 = vpop.f32.mrb[0].mxu0
    %v3660 = vpop.f32.mrb[0].mxu0
    %3661 = vdwg.mxu0
    %v3662 = vld [vmem:[%s2568 + $0x20] sm:$0xff]
    %v3663 = vld [vmem:[%s2568 + $0x28] sm:$0xff]
    %v3664 = vld [vmem:[%s2568 + $0x60] sm:$0xff]
    %v3665 = vld [vmem:[%s2568 + $0x68] sm:$0xff]
    %v3666 = vld [vmem:[%s2568 + $0xa0] sm:$0xff]
    %v3667 = vld [vmem:[%s2568 + $0xa8] sm:$0xff]
    %v3668 = vld [vmem:[%s2568 + $0xe0] sm:$0xff]
    %v3669 = vld [vmem:[%s2568 + $0xe8] sm:$0xff]
    %v3670 = vld [vmem:[%s2568 + $0x120] sm:$0xff]
    %v3671 = vld [vmem:[%s2568 + $0x128] sm:$0xff]
    %v3672 = vld [vmem:[%s2568 + $0x160] sm:$0xff]
    %v3673 = vld [vmem:[%s2568 + $0x168] sm:$0xff]
    %v3674 = vld [vmem:[%s2568 + $0x1a0] sm:$0xff]
    %v3675 = vld [vmem:[%s2568 + $0x1a8] sm:$0xff]
    %v3676 = vld [vmem:[%s2568 + $0x1e0] sm:$0xff]
    %v3677 = vld [vmem:[%s2568 + $0x1e8] sm:$0xff]
    %v3678 = vld [vmem:[%s2585 + $0x8] sm:$0xf]
    %v3680 = vlaneseq
    %v3681 = vshrl.u32 %v3680, 7
    %v3682 = vsub.s32 0, %v3681
    %v3683 = vrot.slane %v3678, %v3682
    %v3684 = vlaneseq
    %v3685 = vshrl.u32 %v3684, 7
    %v3686 = vsub.s32 1, %v3685
    %v3687 = vrot.slane %v3678, %v3686
    %v3688 = vlaneseq
    %v3689 = vshrl.u32 %v3688, 7
    %v3690 = vsub.s32 2, %v3689
    %v3691 = vrot.slane %v3678, %v3690
    %v3692 = vlaneseq
    %v3693 = vshrl.u32 %v3692, 7
    %v3694 = vsub.s32 3, %v3693
    %v3695 = vrot.slane %v3678, %v3694
    %v3716 = vunpack.c.l.b16 %v3662
    %v3717 = vunpack.c.h.b16 %v3662
    %v3718 = vunpack.c.l.b16 %v3663
    %v3719 = vunpack.c.h.b16 %v3663
    %v3720 = vunpack.c.l.b16 %v3664
    %v3721 = vunpack.c.h.b16 %v3664
    %v3722 = vunpack.c.l.b16 %v3665
    %v3723 = vunpack.c.h.b16 %v3665
    %v3724 = vunpack.c.l.b16 %v3666
    %v3725 = vunpack.c.h.b16 %v3666
    %v3726 = vunpack.c.l.b16 %v3667
    %v3727 = vunpack.c.h.b16 %v3667
    %v3728 = vunpack.c.l.b16 %v3668
    %v3729 = vunpack.c.h.b16 %v3668
    %v3730 = vunpack.c.l.b16 %v3669
    %v3731 = vunpack.c.h.b16 %v3669
    %v3732 = vunpack.c.l.b16 %v3670
    %v3733 = vunpack.c.h.b16 %v3670
    %v3734 = vunpack.c.l.b16 %v3671
    %v3735 = vunpack.c.h.b16 %v3671
    %v3736 = vunpack.c.l.b16 %v3672
    %v3737 = vunpack.c.h.b16 %v3672
    %v3738 = vunpack.c.l.b16 %v3673
    %v3739 = vunpack.c.h.b16 %v3673
    %v3740 = vunpack.c.l.b16 %v3674
    %v3741 = vunpack.c.h.b16 %v3674
    %v3742 = vunpack.c.l.b16 %v3675
    %v3743 = vunpack.c.h.b16 %v3675
    %v3744 = vunpack.c.l.b16 %v3676
    %v3745 = vunpack.c.h.b16 %v3676
    %v3746 = vunpack.c.l.b16 %v3677
    %v3747 = vunpack.c.h.b16 %v3677
    %v3748 = vpack.c.b16 %v3720, %v3716
    %v3749 = vpack.c.b16 %v3721, %v3717
    %v3750 = vpack.c.b16 %v3722, %v3718
    %v3751 = vpack.c.b16 %v3723, %v3719
    %v3752 = vpack.c.b16 %v3728, %v3724
    %v3753 = vpack.c.b16 %v3729, %v3725
    %v3754 = vpack.c.b16 %v3730, %v3726
    %v3755 = vpack.c.b16 %v3731, %v3727
    %v3756 = vpack.c.b16 %v3736, %v3732
    %v3757 = vpack.c.b16 %v3737, %v3733
    %v3758 = vpack.c.b16 %v3738, %v3734
    %v3759 = vpack.c.b16 %v3739, %v3735
    %v3760 = vpack.c.b16 %v3744, %v3740
    %v3761 = vpack.c.b16 %v3745, %v3741
    %v3762 = vpack.c.b16 %v3746, %v3742
    %v3763 = vpack.c.b16 %v3747, %v3743
    %3780 = vmatprep.subr.bf16.mxu0 %v3749
    %3781 = vmatpush1.bf16.msra.mxu0 %v3748
    %3782 = vmatprep.subr.bf16.mxu0 %v3753
    %3783 = vmatpush1.bf16.msra.mxu0 %v3752
    %3784 = vmatprep.subr.bf16.mxu0 %v3757
    %3785 = vmatpush1.bf16.msra.mxu0 %v3756
    %3786 = vmatprep.subr.bf16.mxu0 %v3761
    %3787 = vmatpush1.bf16.msra.mxu0 %v3760
    %3788 = vmatprep.subr.bf16.mxu0 0
    %3789 = vmatpush1.bf16.msra.mxu0 0
    %3790 = vmatprep.subr.bf16.mxu0 0
    %3791 = vmatpush1.bf16.msra.mxu0 0
    %3792 = vmatprep.subr.bf16.mxu0 0
    %3793 = vmatpush1.bf16.msra.mxu0 0
    %3794 = vmatprep.subr.bf16.mxu0 0
    %3795 = vmatpush1.bf16.msra.mxu0 0
    %3796 = vmatprep.subr.bf16.mxu0 0
    %3797 = vmatpush1.bf16.msra.mxu0 0
    %3798 = vmatprep.subr.bf16.mxu0 0
    %3799 = vmatpush1.bf16.msra.mxu0 0
    %3800 = vmatprep.subr.bf16.mxu0 0
    %3801 = vmatpush1.bf16.msra.mxu0 0
    %3802 = vmatprep.subr.bf16.mxu0 0
    %3803 = vmatpush1.bf16.msra.mxu0 0
    %3804 = vmatprep.subr.bf16.mxu0 0
    %3805 = vmatpush1.bf16.msra.mxu0 0
    %3806 = vmatprep.subr.bf16.mxu0 0
    %3807 = vmatpush1.bf16.msra.mxu0 0
    %3808 = vmatprep.subr.bf16.mxu0 0
    %3809 = vmatpush1.bf16.msra.mxu0 0
    %3810 = vmatprep.subr.bf16.mxu0 0
    %3811 = vmatpush1.bf16.msra.mxu0 0
    %3812 = vmatprep.mubr.bf16.mxu0 0
    %3813 = vmatmul.mubr.bf16.gmra.mrb[0].mxu0 %v2689
    %v3814 = vpop.f32.mrb[0].mxu0
    %v3815 = vadd.f32 %v3683, %v3814
    %v3816 = vpop.f32.mrb[0].mxu0
    %v3817 = vadd.f32 %v3687, %v3816
    %v3818 = vpop.f32.mrb[0].mxu0
    %v3819 = vpop.f32.mrb[0].mxu0
    %3820 = vdwg.mxu0
    %3821 = vmatprep.subr.bf16.mxu0 %v3751
    %3822 = vmatpush1.bf16.msra.mxu0 %v3750
    %3823 = vmatprep.subr.bf16.mxu0 %v3755
    %3824 = vmatpush1.bf16.msra.mxu0 %v3754
    %3825 = vmatprep.subr.bf16.mxu0 %v3759
    %3826 = vmatpush1.bf16.msra.mxu0 %v3758
    %3827 = vmatprep.subr.bf16.mxu0 %v3763
    %3828 = vmatpush1.bf16.msra.mxu0 %v3762
    %3829 = vmatprep.subr.bf16.mxu0 0
    %3830 = vmatpush1.bf16.msra.mxu0 0
    %3831 = vmatprep.subr.bf16.mxu0 0
    %3832 = vmatpush1.bf16.msra.mxu0 0
    %3833 = vmatprep.subr.bf16.mxu0 0
    %3834 = vmatpush1.bf16.msra.mxu0 0
    %3835 = vmatprep.subr.bf16.mxu0 0
    %3836 = vmatpush1.bf16.msra.mxu0 0
    %3837 = vmatprep.subr.bf16.mxu0 0
    %3838 = vmatpush1.bf16.msra.mxu0 0
    %3839 = vmatprep.subr.bf16.mxu0 0
    %3840 = vmatpush1.bf16.msra.mxu0 0
    %3841 = vmatprep.subr.bf16.mxu0 0
    %3842 = vmatpush1.bf16.msra.mxu0 0
    %3843 = vmatprep.subr.bf16.mxu0 0
    %3844 = vmatpush1.bf16.msra.mxu0 0
    %3845 = vmatprep.subr.bf16.mxu0 0
    %3846 = vmatpush1.bf16.msra.mxu0 0
    %3847 = vmatprep.subr.bf16.mxu0 0
    %3848 = vmatpush1.bf16.msra.mxu0 0
    %3849 = vmatprep.subr.bf16.mxu0 0
    %3850 = vmatpush1.bf16.msra.mxu0 0
    %3851 = vmatprep.subr.bf16.mxu0 0
    %3852 = vmatpush1.bf16.msra.mxu0 0
    %3853 = vmatprep.mubr.bf16.mxu0 0
    %3854 = vmatmul.mubr.bf16.gmra.mrb[0].mxu0 %v2689
    %v3855 = vpop.f32.mrb[0].mxu0
    %v3856 = vadd.f32 %v3691, %v3855
    %v3857 = vpop.f32.mrb[0].mxu0
    %v3858 = vadd.f32 %v3695, %v3857
    %v3859 = vpop.f32.mrb[0].mxu0
    %v3860 = vpop.f32.mrb[0].mxu0
    %3861 = vdwg.mxu0
    %v3862 = vmax.f32 %v3815, 0.0
    %v3863 = vmax.f32 %v3817, 0.0
    %v3864 = vmax.f32 %v3856, 0.0
    %v3865 = vmax.f32 %v3858, 0.0
    %v3866 = vpack.c.bf16 %v3862, %v3862
    %v3867 = vpack.c.bf16 %v3863, %v3863
    %v3868 = vpack.c.bf16 %v3864, %v3864
    %v3869 = vpack.c.bf16 %v3865, %v3865
    %v3870 = vld [vmem:[%s2781 + $0x200] sm:$0xf]
    %v3871 = vld [vmem:[%s2781 + $0x204] sm:$0xf]
    %v3872 = vld [vmem:[%s2781 + $0x208] sm:$0xf]
    %v3873 = vld [vmem:[%s2781 + $0x20c] sm:$0xf]
    %v3874 = vld [vmem:[%s2781 + $0x210] sm:$0xf]
    %v3875 = vld [vmem:[%s2781 + $0x214] sm:$0xf]
    %v3876 = vld [vmem:[%s2781 + $0x218] sm:$0xf]
    %v3877 = vld [vmem:[%s2781 + $0x21c] sm:$0xf]
    %v3878 = vld [vmem:[%s2781 + $0x220] sm:$0xf]
    %v3879 = vld [vmem:[%s2781 + $0x224] sm:$0xf]
    %v3880 = vld [vmem:[%s2781 + $0x228] sm:$0xf]
    %v3881 = vld [vmem:[%s2781 + $0x22c] sm:$0xf]
    %v3882 = vld [vmem:[%s2781 + $0x230] sm:$0xf]
    %v3883 = vld [vmem:[%s2781 + $0x234] sm:$0xf]
    %v3884 = vld [vmem:[%s2781 + $0x238] sm:$0xf]
    %v3885 = vld [vmem:[%s2781 + $0x23c] sm:$0xf]
    %v3886 = vld [vmem:[%s2781 + $0x240] sm:$0xf]
    %v3887 = vld [vmem:[%s2781 + $0x244] sm:$0xf]
    %v3888 = vld [vmem:[%s2781 + $0x248] sm:$0xf]
    %v3889 = vld [vmem:[%s2781 + $0x24c] sm:$0xf]
    %v3890 = vld [vmem:[%s2781 + $0x250] sm:$0xf]
    %v3891 = vld [vmem:[%s2781 + $0x254] sm:$0xf]
    %v3892 = vld [vmem:[%s2781 + $0x258] sm:$0xf]
    %v3893 = vld [vmem:[%s2781 + $0x25c] sm:$0xf]
    %v3894 = vld [vmem:[%s2781 + $0x260] sm:$0xf]
    %v3895 = vld [vmem:[%s2781 + $0x264] sm:$0xf]
    %v3896 = vld [vmem:[%s2781 + $0x268] sm:$0xf]
    %v3897 = vld [vmem:[%s2781 + $0x26c] sm:$0xf]
    %v3898 = vld [vmem:[%s2781 + $0x270] sm:$0xf]
    %v3899 = vld [vmem:[%s2781 + $0x274] sm:$0xf]
    %v3900 = vld [vmem:[%s2781 + $0x278] sm:$0xf]
    %v3901 = vld [vmem:[%s2781 + $0x27c] sm:$0xf]
    %v3902 = vld [vmem:[%s2781 + $0x280] sm:$0xf]
    %v3903 = vld [vmem:[%s2781 + $0x284] sm:$0xf]
    %v3904 = vld [vmem:[%s2781 + $0x288] sm:$0xf]
    %v3905 = vld [vmem:[%s2781 + $0x28c] sm:$0xf]
    %v3906 = vld [vmem:[%s2781 + $0x290] sm:$0xf]
    %v3907 = vld [vmem:[%s2781 + $0x294] sm:$0xf]
    %v3908 = vld [vmem:[%s2781 + $0x298] sm:$0xf]
    %v3909 = vld [vmem:[%s2781 + $0x29c] sm:$0xf]
    %v3910 = vld [vmem:[%s2781 + $0x2a0] sm:$0xf]
    %v3911 = vld [vmem:[%s2781 + $0x2a4] sm:$0xf]
    %v3912 = vld [vmem:[%s2781 + $0x2a8] sm:$0xf]
    %v3913 = vld [vmem:[%s2781 + $0x2ac] sm:$0xf]
    %v3914 = vld [vmem:[%s2781 + $0x2b0] sm:$0xf]
    %v3915 = vld [vmem:[%s2781 + $0x2b4] sm:$0xf]
    %v3916 = vld [vmem:[%s2781 + $0x2b8] sm:$0xf]
    %v3917 = vld [vmem:[%s2781 + $0x2bc] sm:$0xf]
    %v3918 = vld [vmem:[%s2781 + $0x2c0] sm:$0xf]
    %v3919 = vld [vmem:[%s2781 + $0x2c4] sm:$0xf]
    %v3920 = vld [vmem:[%s2781 + $0x2c8] sm:$0xf]
    %v3921 = vld [vmem:[%s2781 + $0x2cc] sm:$0xf]
    %v3922 = vld [vmem:[%s2781 + $0x2d0] sm:$0xf]
    %v3923 = vld [vmem:[%s2781 + $0x2d4] sm:$0xf]
    %v3924 = vld [vmem:[%s2781 + $0x2d8] sm:$0xf]
    %v3925 = vld [vmem:[%s2781 + $0x2dc] sm:$0xf]
    %v3926 = vld [vmem:[%s2781 + $0x2e0] sm:$0xf]
    %v3927 = vld [vmem:[%s2781 + $0x2e4] sm:$0xf]
    %v3928 = vld [vmem:[%s2781 + $0x2e8] sm:$0xf]
    %v3929 = vld [vmem:[%s2781 + $0x2ec] sm:$0xf]
    %v3930 = vld [vmem:[%s2781 + $0x2f0] sm:$0xf]
    %v3931 = vld [vmem:[%s2781 + $0x2f4] sm:$0xf]
    %v3932 = vld [vmem:[%s2781 + $0x2f8] sm:$0xf]
    %v3933 = vld [vmem:[%s2781 + $0x2fc] sm:$0xf]
    %v3998 = vunpack.c.l.b16 %v3870
    %v3999 = vunpack.c.l.b16 %v3871
    %v4000 = vunpack.c.l.b16 %v3872
    %v4001 = vunpack.c.l.b16 %v3873
    %v4002 = vunpack.c.l.b16 %v3874
    %v4003 = vunpack.c.l.b16 %v3875
    %v4004 = vunpack.c.l.b16 %v3876
    %v4005 = vunpack.c.l.b16 %v3877
    %v4006 = vunpack.c.l.b16 %v3878
    %v4007 = vunpack.c.l.b16 %v3879
    %v4008 = vunpack.c.l.b16 %v3880
    %v4009 = vunpack.c.l.b16 %v3881
    %v4010 = vunpack.c.l.b16 %v3882
    %v4011 = vunpack.c.l.b16 %v3883
    %v4012 = vunpack.c.l.b16 %v3884
    %v4013 = vunpack.c.l.b16 %v3885
    %v4014 = vunpack.c.l.b16 %v3886
    %v4015 = vunpack.c.l.b16 %v3887
    %v4016 = vunpack.c.l.b16 %v3888
    %v4017 = vunpack.c.l.b16 %v3889
    %v4018 = vunpack.c.l.b16 %v3890
    %v4019 = vunpack.c.l.b16 %v3891
    %v4020 = vunpack.c.l.b16 %v3892
    %v4021 = vunpack.c.l.b16 %v3893
    %v4022 = vunpack.c.l.b16 %v3894
    %v4023 = vunpack.c.l.b16 %v3895
    %v4024 = vunpack.c.l.b16 %v3896
    %v4025 = vunpack.c.l.b16 %v3897
    %v4026 = vunpack.c.l.b16 %v3898
    %v4027 = vunpack.c.l.b16 %v3899
    %v4028 = vunpack.c.l.b16 %v3900
    %v4029 = vunpack.c.l.b16 %v3901
    %v4030 = vunpack.c.l.b16 %v3902
    %v4031 = vunpack.c.l.b16 %v3903
    %v4032 = vunpack.c.l.b16 %v3904
    %v4033 = vunpack.c.l.b16 %v3905
    %v4034 = vunpack.c.l.b16 %v3906
    %v4035 = vunpack.c.l.b16 %v3907
    %v4036 = vunpack.c.l.b16 %v3908
    %v4037 = vunpack.c.l.b16 %v3909
    %v4038 = vunpack.c.l.b16 %v3910
    %v4039 = vunpack.c.l.b16 %v3911
    %v4040 = vunpack.c.l.b16 %v3912
    %v4041 = vunpack.c.l.b16 %v3913
    %v4042 = vunpack.c.l.b16 %v3914
    %v4043 = vunpack.c.l.b16 %v3915
    %v4044 = vunpack.c.l.b16 %v3916
    %v4045 = vunpack.c.l.b16 %v3917
    %v4046 = vunpack.c.l.b16 %v3918
    %v4047 = vunpack.c.l.b16 %v3919
    %v4048 = vunpack.c.l.b16 %v3920
    %v4049 = vunpack.c.l.b16 %v3921
    %v4050 = vunpack.c.l.b16 %v3922
    %v4051 = vunpack.c.l.b16 %v3923
    %v4052 = vunpack.c.l.b16 %v3924
    %v4053 = vunpack.c.l.b16 %v3925
    %v4054 = vunpack.c.l.b16 %v3926
    %v4055 = vunpack.c.l.b16 %v3927
    %v4056 = vunpack.c.l.b16 %v3928
    %v4057 = vunpack.c.l.b16 %v3929
    %v4058 = vunpack.c.l.b16 %v3930
    %v4059 = vunpack.c.l.b16 %v3931
    %v4060 = vunpack.c.l.b16 %v3932
    %v4061 = vunpack.c.l.b16 %v3933
    %v4062 = vpack.c.b16 %v3999, %v3998
    %v4063 = vpack.c.b16 %v4001, %v4000
    %v4064 = vpack.c.b16 %v4003, %v4002
    %v4065 = vpack.c.b16 %v4005, %v4004
    %v4066 = vpack.c.b16 %v4007, %v4006
    %v4067 = vpack.c.b16 %v4009, %v4008
    %v4068 = vpack.c.b16 %v4011, %v4010
    %v4069 = vpack.c.b16 %v4013, %v4012
    %v4070 = vpack.c.b16 %v4015, %v4014
    %v4071 = vpack.c.b16 %v4017, %v4016
    %v4072 = vpack.c.b16 %v4019, %v4018
    %v4073 = vpack.c.b16 %v4021, %v4020
    %v4074 = vpack.c.b16 %v4023, %v4022
    %v4075 = vpack.c.b16 %v4025, %v4024
    %v4076 = vpack.c.b16 %v4027, %v4026
    %v4077 = vpack.c.b16 %v4029, %v4028
    %v4078 = vpack.c.b16 %v4031, %v4030
    %v4079 = vpack.c.b16 %v4033, %v4032
    %v4080 = vpack.c.b16 %v4035, %v4034
    %v4081 = vpack.c.b16 %v4037, %v4036
    %v4082 = vpack.c.b16 %v4039, %v4038
    %v4083 = vpack.c.b16 %v4041, %v4040
    %v4084 = vpack.c.b16 %v4043, %v4042
    %v4085 = vpack.c.b16 %v4045, %v4044
    %v4086 = vpack.c.b16 %v4047, %v4046
    %v4087 = vpack.c.b16 %v4049, %v4048
    %v4088 = vpack.c.b16 %v4051, %v4050
    %v4089 = vpack.c.b16 %v4053, %v4052
    %v4090 = vpack.c.b16 %v4055, %v4054
    %v4091 = vpack.c.b16 %v4057, %v4056
    %v4092 = vpack.c.b16 %v4059, %v4058
    %v4093 = vpack.c.b16 %v4061, %v4060
    %4126 = vmatprep.subr.bf16.mxu0 0
    %4127 = vmatpush1.bf16.msra.mxu0 %v4062
    %4128 = vmatprep.subr.bf16.mxu0 0
    %4129 = vmatpush1.bf16.msra.mxu0 %v4063
    %4130 = vmatprep.subr.bf16.mxu0 0
    %4131 = vmatpush1.bf16.msra.mxu0 %v4064
    %4132 = vmatprep.subr.bf16.mxu0 0
    %4133 = vmatpush1.bf16.msra.mxu0 %v4065
    %4134 = vmatprep.subr.bf16.mxu0 0
    %4135 = vmatpush1.bf16.msra.mxu0 %v4066
    %4136 = vmatprep.subr.bf16.mxu0 0
    %4137 = vmatpush1.bf16.msra.mxu0 %v4067
    %4138 = vmatprep.subr.bf16.mxu0 0
    %4139 = vmatpush1.bf16.msra.mxu0 %v4068
    %4140 = vmatprep.subr.bf16.mxu0 0
    %4141 = vmatpush1.bf16.msra.mxu0 %v4069
    %4142 = vmatprep.subr.bf16.mxu0 0
    %4143 = vmatpush1.bf16.msra.mxu0 %v4070
    %4144 = vmatprep.subr.bf16.mxu0 0
    %4145 = vmatpush1.bf16.msra.mxu0 %v4071
    %4146 = vmatprep.subr.bf16.mxu0 0
    %4147 = vmatpush1.bf16.msra.mxu0 %v4072
    %4148 = vmatprep.subr.bf16.mxu0 0
    %4149 = vmatpush1.bf16.msra.mxu0 %v4073
    %4150 = vmatprep.subr.bf16.mxu0 0
    %4151 = vmatpush1.bf16.msra.mxu0 %v4074
    %4152 = vmatprep.subr.bf16.mxu0 0
    %4153 = vmatpush1.bf16.msra.mxu0 %v4075
    %4154 = vmatprep.subr.bf16.mxu0 0
    %4155 = vmatpush1.bf16.msra.mxu0 %v4076
    %4156 = vmatprep.subr.bf16.mxu0 0
    %4157 = vmatpush1.bf16.msra.mxu0 %v4077
    %4158 = vmatprep.mubr.bf16.mxu0 %v3867
    %4159 = vmatmul.mubr.bf16.gmra.mrb[0].mxu0 %v3866
    %v4160 = vpop.f32.mrb[0].mxu0
    %v4161 = vadd.f32 0.0, %v4160
    %v4162 = vpop.f32.mrb[0].mxu0
    %v4163 = vpop.f32.mrb[0].mxu0
    %v4164 = vpop.f32.mrb[0].mxu0
    %4165 = vdwg.mxu0
    %4166 = vmatprep.subr.bf16.mxu0 0
    %4167 = vmatpush1.bf16.msra.mxu0 %v4078
    %4168 = vmatprep.subr.bf16.mxu0 0
    %4169 = vmatpush1.bf16.msra.mxu0 %v4079
    %4170 = vmatprep.subr.bf16.mxu0 0
    %4171 = vmatpush1.bf16.msra.mxu0 %v4080
    %4172 = vmatprep.subr.bf16.mxu0 0
    %4173 = vmatpush1.bf16.msra.mxu0 %v4081
    %4174 = vmatprep.subr.bf16.mxu0 0
    %4175 = vmatpush1.bf16.msra.mxu0 %v4082
    %4176 = vmatprep.subr.bf16.mxu0 0
    %4177 = vmatpush1.bf16.msra.mxu0 %v4083
    %4178 = vmatprep.subr.bf16.mxu0 0
    %4179 = vmatpush1.bf16.msra.mxu0 %v4084
    %4180 = vmatprep.subr.bf16.mxu0 0
    %4181 = vmatpush1.bf16.msra.mxu0 %v4085
    %4182 = vmatprep.subr.bf16.mxu0 0
    %4183 = vmatpush1.bf16.msra.mxu0 %v4086
    %4184 = vmatprep.subr.bf16.mxu0 0
    %4185 = vmatpush1.bf16.msra.mxu0 %v4087
    %4186 = vmatprep.subr.bf16.mxu0 0
    %4187 = vmatpush1.bf16.msra.mxu0 %v4088
    %4188 = vmatprep.subr.bf16.mxu0 0
    %4189 = vmatpush1.bf16.msra.mxu0 %v4089
    %4190 = vmatprep.subr.bf16.mxu0 0
    %4191 = vmatpush1.bf16.msra.mxu0 %v4090
    %4192 = vmatprep.subr.bf16.mxu0 0
    %4193 = vmatpush1.bf16.msra.mxu0 %v4091
    %4194 = vmatprep.subr.bf16.mxu0 0
    %4195 = vmatpush1.bf16.msra.mxu0 %v4092
    %4196 = vmatprep.subr.bf16.mxu0 0
    %4197 = vmatpush1.bf16.msra.mxu0 %v4093
    %4198 = vmatprep.mubr.bf16.mxu0 %v3869
    %4199 = vmatmul.mubr.bf16.gmra.mrb[0].mxu0 %v3868
    %v4200 = vpop.f32.mrb[0].mxu0
    %v4201 = vadd.f32 %v4161, %v4200
    %v4202 = vpop.f32.mrb[0].mxu0
    %v4203 = vpop.f32.mrb[0].mxu0
    %v4204 = vpop.f32.mrb[0].mxu0
    %4205 = vdwg.mxu0
    %v4206 = vadd.f32 %v3657, %v4201
    %v4207 = vld [vmem:[%s2568 + $0x30] sm:$0xff]
    %v4208 = vld [vmem:[%s2568 + $0x38] sm:$0xff]
    %v4209 = vld [vmem:[%s2568 + $0x70] sm:$0xff]
    %v4210 = vld [vmem:[%s2568 + $0x78] sm:$0xff]
    %v4211 = vld [vmem:[%s2568 + $0xb0] sm:$0xff]
    %v4212 = vld [vmem:[%s2568 + $0xb8] sm:$0xff]
    %v4213 = vld [vmem:[%s2568 + $0xf0] sm:$0xff]
    %v4214 = vld [vmem:[%s2568 + $0xf8] sm:$0xff]
    %v4215 = vld [vmem:[%s2568 + $0x130] sm:$0xff]
    %v4216 = vld [vmem:[%s2568 + $0x138] sm:$0xff]
    %v4217 = vld [vmem:[%s2568 + $0x170] sm:$0xff]
    %v4218 = vld [vmem:[%s2568 + $0x178] sm:$0xff]
    %v4219 = vld [vmem:[%s2568 + $0x1b0] sm:$0xff]
    %v4220 = vld [vmem:[%s2568 + $0x1b8] sm:$0xff]
    %v4221 = vld [vmem:[%s2568 + $0x1f0] sm:$0xff]
    %v4222 = vld [vmem:[%s2568 + $0x1f8] sm:$0xff]
    %v4223 = vld [vmem:[%s2585 + $0xc] sm:$0xf]
    %v4225 = vlaneseq
    %v4226 = vshrl.u32 %v4225, 7
    %v4227 = vsub.s32 0, %v4226
    %v4228 = vrot.slane %v4223, %v4227
    %v4229 = vlaneseq
    %v4230 = vshrl.u32 %v4229, 7
    %v4231 = vsub.s32 1, %v4230
    %v4232 = vrot.slane %v4223, %v4231
    %v4233 = vlaneseq
    %v4234 = vshrl.u32 %v4233, 7
    %v4235 = vsub.s32 2, %v4234
    %v4236 = vrot.slane %v4223, %v4235
    %v4237 = vlaneseq
    %v4238 = vshrl.u32 %v4237, 7
    %v4239 = vsub.s32 3, %v4238
    %v4240 = vrot.slane %v4223, %v4239
    %v4261 = vunpack.c.l.b16 %v4207
    %v4262 = vunpack.c.h.b16 %v4207
    %v4263 = vunpack.c.l.b16 %v4208
    %v4264 = vunpack.c.h.b16 %v4208
    %v4265 = vunpack.c.l.b16 %v4209
    %v4266 = vunpack.c.h.b16 %v4209
    %v4267 = vunpack.c.l.b16 %v4210
    %v4268 = vunpack.c.h.b16 %v4210
    %v4269 = vunpack.c.l.b16 %v4211
    %v4270 = vunpack.c.h.b16 %v4211
    %v4271 = vunpack.c.l.b16 %v4212
    %v4272 = vunpack.c.h.b16 %v4212
    %v4273 = vunpack.c.l.b16 %v4213
    %v4274 = vunpack.c.h.b16 %v4213
    %v4275 = vunpack.c.l.b16 %v4214
    %v4276 = vunpack.c.h.b16 %v4214
    %v4277 = vunpack.c.l.b16 %v4215
    %v4278 = vunpack.c.h.b16 %v4215
    %v4279 = vunpack.c.l.b16 %v4216
    %v4280 = vunpack.c.h.b16 %v4216
    %v4281 = vunpack.c.l.b16 %v4217
    %v4282 = vunpack.c.h.b16 %v4217
    %v4283 = vunpack.c.l.b16 %v4218
    %v4284 = vunpack.c.h.b16 %v4218
    %v4285 = vunpack.c.l.b16 %v4219
    %v4286 = vunpack.c.h.b16 %v4219
    %v4287 = vunpack.c.l.b16 %v4220
    %v4288 = vunpack.c.h.b16 %v4220
    %v4289 = vunpack.c.l.b16 %v4221
    %v4290 = vunpack.c.h.b16 %v4221
    %v4291 = vunpack.c.l.b16 %v4222
    %v4292 = vunpack.c.h.b16 %v4222
    %v4293 = vpack.c.b16 %v4265, %v4261
    %v4294 = vpack.c.b16 %v4266, %v4262
    %v4295 = vpack.c.b16 %v4267, %v4263
    %v4296 = vpack.c.b16 %v4268, %v4264
    %v4297 = vpack.c.b16 %v4273, %v4269
    %v4298 = vpack.c.b16 %v4274, %v4270
    %v4299 = vpack.c.b16 %v4275, %v4271
    %v4300 = vpack.c.b16 %v4276, %v4272
    %v4301 = vpack.c.b16 %v4281, %v4277
    %v4302 = vpack.c.b16 %v4282, %v4278
    %v4303 = vpack.c.b16 %v4283, %v4279
    %v4304 = vpack.c.b16 %v4284, %v4280
    %v4305 = vpack.c.b16 %v4289, %v4285
    %v4306 = vpack.c.b16 %v4290, %v4286
    %v4307 = vpack.c.b16 %v4291, %v4287
    %v4308 = vpack.c.b16 %v4292, %v4288
    %4325 = vmatprep.subr.bf16.mxu0 %v4294
    %4326 = vmatpush1.bf16.msra.mxu0 %v4293
    %4327 = vmatprep.subr.bf16.mxu0 %v4298
    %4328 = vmatpush1.bf16.msra.mxu0 %v4297
    %4329 = vmatprep.subr.bf16.mxu0 %v4302
    %4330 = vmatpush1.bf16.msra.mxu0 %v4301
    %4331 = vmatprep.subr.bf16.mxu0 %v4306
    %4332 = vmatpush1.bf16.msra.mxu0 %v4305
    %4333 = vmatprep.subr.bf16.mxu0 0
    %4334 = vmatpush1.bf16.msra.mxu0 0
    %4335 = vmatprep.subr.bf16.mxu0 0
    %4336 = vmatpush1.bf16.msra.mxu0 0
    %4337 = vmatprep.subr.bf16.mxu0 0
    %4338 = vmatpush1.bf16.msra.mxu0 0
    %4339 = vmatprep.subr.bf16.mxu0 0
    %4340 = vmatpush1.bf16.msra.mxu0 0
    %4341 = vmatprep.subr.bf16.mxu0 0
    %4342 = vmatpush1.bf16.msra.mxu0 0
    %4343 = vmatprep.subr.bf16.mxu0 0
    %4344 = vmatpush1.bf16.msra.mxu0 0
    %4345 = vmatprep.subr.bf16.mxu0 0
    %4346 = vmatpush1.bf16.msra.mxu0 0
    %4347 = vmatprep.subr.bf16.mxu0 0
    %4348 = vmatpush1.bf16.msra.mxu0 0
    %4349 = vmatprep.subr.bf16.mxu0 0
    %4350 = vmatpush1.bf16.msra.mxu0 0
    %4351 = vmatprep.subr.bf16.mxu0 0
    %4352 = vmatpush1.bf16.msra.mxu0 0
    %4353 = vmatprep.subr.bf16.mxu0 0
    %4354 = vmatpush1.bf16.msra.mxu0 0
    %4355 = vmatprep.subr.bf16.mxu0 0
    %4356 = vmatpush1.bf16.msra.mxu0 0
    %4357 = vmatprep.mubr.bf16.mxu0 0
    %4358 = vmatmul.mubr.bf16.gmra.mrb[0].mxu0 %v2689
    %v4359 = vpop.f32.mrb[0].mxu0
    %v4360 = vadd.f32 %v4228, %v4359
    %v4361 = vpop.f32.mrb[0].mxu0
    %v4362 = vadd.f32 %v4232, %v4361
    %v4363 = vpop.f32.mrb[0].mxu0
    %v4364 = vpop.f32.mrb[0].mxu0
    %4365 = vdwg.mxu0
    %4366 = vmatprep.subr.bf16.mxu0 %v4296
    %4367 = vmatpush1.bf16.msra.mxu0 %v4295
    %4368 = vmatprep.subr.bf16.mxu0 %v4300
    %4369 = vmatpush1.bf16.msra.mxu0 %v4299
    %4370 = vmatprep.subr.bf16.mxu0 %v4304
    %4371 = vmatpush1.bf16.msra.mxu0 %v4303
    %4372 = vmatprep.subr.bf16.mxu0 %v4308
    %4373 = vmatpush1.bf16.msra.mxu0 %v4307
    %4374 = vmatprep.subr.bf16.mxu0 0
    %4375 = vmatpush1.bf16.msra.mxu0 0
    %4376 = vmatprep.subr.bf16.mxu0 0
    %4377 = vmatpush1.bf16.msra.mxu0 0
    %4378 = vmatprep.subr.bf16.mxu0 0
    %4379 = vmatpush1.bf16.msra.mxu0 0
    %4380 = vmatprep.subr.bf16.mxu0 0
    %4381 = vmatpush1.bf16.msra.mxu0 0
    %4382 = vmatprep.subr.bf16.mxu0 0
    %4383 = vmatpush1.bf16.msra.mxu0 0
    %4384 = vmatprep.subr.bf16.mxu0 0
    %4385 = vmatpush1.bf16.msra.mxu0 0
    %4386 = vmatprep.subr.bf16.mxu0 0
    %4387 = vmatpush1.bf16.msra.mxu0 0
    %4388 = vmatprep.subr.bf16.mxu0 0
    %4389 = vmatpush1.bf16.msra.mxu0 0
    %4390 = vmatprep.subr.bf16.mxu0 0
    %4391 = vmatpush1.bf16.msra.mxu0 0
    %4392 = vmatprep.subr.bf16.mxu0 0
    %4393 = vmatpush1.bf16.msra.mxu0 0
    %4394 = vmatprep.subr.bf16.mxu0 0
    %4395 = vmatpush1.bf16.msra.mxu0 0
    %4396 = vmatprep.subr.bf16.mxu0 0
    %4397 = vmatpush1.bf16.msra.mxu0 0
    %4398 = vmatprep.mubr.bf16.mxu0 0
    %4399 = vmatmul.mubr.bf16.gmra.mrb[0].mxu0 %v2689
    %v4400 = vpop.f32.mrb[0].mxu0
    %v4401 = vadd.f32 %v4236, %v4400
    %v4402 = vpop.f32.mrb[0].mxu0
    %v4403 = vadd.f32 %v4240, %v4402
    %v4404 = vpop.f32.mrb[0].mxu0
    %v4405 = vpop.f32.mrb[0].mxu0
    %4406 = vdwg.mxu0
    %v4407 = vmax.f32 %v4360, 0.0
    %v4408 = vmax.f32 %v4362, 0.0
    %v4409 = vmax.f32 %v4401, 0.0
    %v4410 = vmax.f32 %v4403, 0.0
    %v4411 = vpack.c.bf16 %v4407, %v4407
    %v4412 = vpack.c.bf16 %v4408, %v4408
    %v4413 = vpack.c.bf16 %v4409, %v4409
    %v4414 = vpack.c.bf16 %v4410, %v4410
    %v4415 = vld [vmem:[%s2781 + $0x300] sm:$0xf]
    %v4416 = vld [vmem:[%s2781 + $0x304] sm:$0xf]
    %v4417 = vld [vmem:[%s2781 + $0x308] sm:$0xf]
    %v4418 = vld [vmem:[%s2781 + $0x30c] sm:$0xf]
    %v4419 = vld [vmem:[%s2781 + $0x310] sm:$0xf]
    %v4420 = vld [vmem:[%s2781 + $0x314] sm:$0xf]
    %v4421 = vld [vmem:[%s2781 + $0x318] sm:$0xf]
    %v4422 = vld [vmem:[%s2781 + $0x31c] sm:$0xf]
    %v4423 = vld [vmem:[%s2781 + $0x320] sm:$0xf]
    %v4424 = vld [vmem:[%s2781 + $0x324] sm:$0xf]
    %v4425 = vld [vmem:[%s2781 + $0x328] sm:$0xf]
    %v4426 = vld [vmem:[%s2781 + $0x32c] sm:$0xf]
    %v4427 = vld [vmem:[%s2781 + $0x330] sm:$0xf]
    %v4428 = vld [vmem:[%s2781 + $0x334] sm:$0xf]
    %v4429 = vld [vmem:[%s2781 + $0x338] sm:$0xf]
    %v4430 = vld [vmem:[%s2781 + $0x33c] sm:$0xf]
    %v4431 = vld [vmem:[%s2781 + $0x340] sm:$0xf]
    %v4432 = vld [vmem:[%s2781 + $0x344] sm:$0xf]
    %v4433 = vld [vmem:[%s2781 + $0x348] sm:$0xf]
    %v4434 = vld [vmem:[%s2781 + $0x34c] sm:$0xf]
    %v4435 = vld [vmem:[%s2781 + $0x350] sm:$0xf]
    %v4436 = vld [vmem:[%s2781 + $0x354] sm:$0xf]
    %v4437 = vld [vmem:[%s2781 + $0x358] sm:$0xf]
    %v4438 = vld [vmem:[%s2781 + $0x35c] sm:$0xf]
    %v4439 = vld [vmem:[%s2781 + $0x360] sm:$0xf]
    %v4440 = vld [vmem:[%s2781 + $0x364] sm:$0xf]
    %v4441 = vld [vmem:[%s2781 + $0x368] sm:$0xf]
    %v4442 = vld [vmem:[%s2781 + $0x36c] sm:$0xf]
    %v4443 = vld [vmem:[%s2781 + $0x370] sm:$0xf]
    %v4444 = vld [vmem:[%s2781 + $0x374] sm:$0xf]
    %v4445 = vld [vmem:[%s2781 + $0x378] sm:$0xf]
    %v4446 = vld [vmem:[%s2781 + $0x37c] sm:$0xf]
    %v4447 = vld [vmem:[%s2781 + $0x380] sm:$0xf]
    %v4448 = vld [vmem:[%s2781 + $0x384] sm:$0xf]
    %v4449 = vld [vmem:[%s2781 + $0x388] sm:$0xf]
    %v4450 = vld [vmem:[%s2781 + $0x38c] sm:$0xf]
    %v4451 = vld [vmem:[%s2781 + $0x390] sm:$0xf]
    %v4452 = vld [vmem:[%s2781 + $0x394] sm:$0xf]
    %v4453 = vld [vmem:[%s2781 + $0x398] sm:$0xf]
    %v4454 = vld [vmem:[%s2781 + $0x39c] sm:$0xf]
    %v4455 = vld [vmem:[%s2781 + $0x3a0] sm:$0xf]
    %v4456 = vld [vmem:[%s2781 + $0x3a4] sm:$0xf]
    %v4457 = vld [vmem:[%s2781 + $0x3a8] sm:$0xf]
    %v4458 = vld [vmem:[%s2781 + $0x3ac] sm:$0xf]
    %v4459 = vld [vmem:[%s2781 + $0x3b0] sm:$0xf]
    %v4460 = vld [vmem:[%s2781 + $0x3b4] sm:$0xf]
    %v4461 = vld [vmem:[%s2781 + $0x3b8] sm:$0xf]
    %v4462 = vld [vmem:[%s2781 + $0x3bc] sm:$0xf]
    %v4463 = vld [vmem:[%s2781 + $0x3c0] sm:$0xf]
    %v4464 = vld [vmem:[%s2781 + $0x3c4] sm:$0xf]
    %v4465 = vld [vmem:[%s2781 + $0x3c8] sm:$0xf]
    %v4466 = vld [vmem:[%s2781 + $0x3cc] sm:$0xf]
    %v4467 = vld [vmem:[%s2781 + $0x3d0] sm:$0xf]
    %v4468 = vld [vmem:[%s2781 + $0x3d4] sm:$0xf]
    %v4469 = vld [vmem:[%s2781 + $0x3d8] sm:$0xf]
    %v4470 = vld [vmem:[%s2781 + $0x3dc] sm:$0xf]
    %v4471 = vld [vmem:[%s2781 + $0x3e0] sm:$0xf]
    %v4472 = vld [vmem:[%s2781 + $0x3e4] sm:$0xf]
    %v4473 = vld [vmem:[%s2781 + $0x3e8] sm:$0xf]
    %v4474 = vld [vmem:[%s2781 + $0x3ec] sm:$0xf]
    %v4475 = vld [vmem:[%s2781 + $0x3f0] sm:$0xf]
    %v4476 = vld [vmem:[%s2781 + $0x3f4] sm:$0xf]
    %v4477 = vld [vmem:[%s2781 + $0x3f8] sm:$0xf]
    %v4478 = vld [vmem:[%s2781 + $0x3fc] sm:$0xf]
    %v4543 = vunpack.c.l.b16 %v4415
    %v4544 = vunpack.c.l.b16 %v4416
    %v4545 = vunpack.c.l.b16 %v4417
    %v4546 = vunpack.c.l.b16 %v4418
    %v4547 = vunpack.c.l.b16 %v4419
    %v4548 = vunpack.c.l.b16 %v4420
    %v4549 = vunpack.c.l.b16 %v4421
    %v4550 = vunpack.c.l.b16 %v4422
    %v4551 = vunpack.c.l.b16 %v4423
    %v4552 = vunpack.c.l.b16 %v4424
    %v4553 = vunpack.c.l.b16 %v4425
    %v4554 = vunpack.c.l.b16 %v4426
    %v4555 = vunpack.c.l.b16 %v4427
    %v4556 = vunpack.c.l.b16 %v4428
    %v4557 = vunpack.c.l.b16 %v4429
    %v4558 = vunpack.c.l.b16 %v4430
    %v4559 = vunpack.c.l.b16 %v4431
    %v4560 = vunpack.c.l.b16 %v4432
    %v4561 = vunpack.c.l.b16 %v4433
    %v4562 = vunpack.c.l.b16 %v4434
    %v4563 = vunpack.c.l.b16 %v4435
    %v4564 = vunpack.c.l.b16 %v4436
    %v4565 = vunpack.c.l.b16 %v4437
    %v4566 = vunpack.c.l.b16 %v4438
    %v4567 = vunpack.c.l.b16 %v4439
    %v4568 = vunpack.c.l.b16 %v4440
    %v4569 = vunpack.c.l.b16 %v4441
    %v4570 = vunpack.c.l.b16 %v4442
    %v4571 = vunpack.c.l.b16 %v4443
    %v4572 = vunpack.c.l.b16 %v4444
    %v4573 = vunpack.c.l.b16 %v4445
    %v4574 = vunpack.c.l.b16 %v4446
    %v4575 = vunpack.c.l.b16 %v4447
    %v4576 = vunpack.c.l.b16 %v4448
    %v4577 = vunpack.c.l.b16 %v4449
    %v4578 = vunpack.c.l.b16 %v4450
    %v4579 = vunpack.c.l.b16 %v4451
    %v4580 = vunpack.c.l.b16 %v4452
    %v4581 = vunpack.c.l.b16 %v4453
    %v4582 = vunpack.c.l.b16 %v4454
    %v4583 = vunpack.c.l.b16 %v4455
    %v4584 = vunpack.c.l.b16 %v4456
    %v4585 = vunpack.c.l.b16 %v4457
    %v4586 = vunpack.c.l.b16 %v4458
    %v4587 = vunpack.c.l.b16 %v4459
    %v4588 = vunpack.c.l.b16 %v4460
    %v4589 = vunpack.c.l.b16 %v4461
    %v4590 = vunpack.c.l.b16 %v4462
    %v4591 = vunpack.c.l.b16 %v4463
    %v4592 = vunpack.c.l.b16 %v4464
    %v4593 = vunpack.c.l.b16 %v4465
    %v4594 = vunpack.c.l.b16 %v4466
    %v4595 = vunpack.c.l.b16 %v4467
    %v4596 = vunpack.c.l.b16 %v4468
    %v4597 = vunpack.c.l.b16 %v4469
    %v4598 = vunpack.c.l.b16 %v4470
    %v4599 = vunpack.c.l.b16 %v4471
    %v4600 = vunpack.c.l.b16 %v4472
    %v4601 = vunpack.c.l.b16 %v4473
    %v4602 = vunpack.c.l.b16 %v4474
    %v4603 = vunpack.c.l.b16 %v4475
    %v4604 = vunpack.c.l.b16 %v4476
    %v4605 = vunpack.c.l.b16 %v4477
    %v4606 = vunpack.c.l.b16 %v4478
    %v4607 = vpack.c.b16 %v4544, %v4543
    %v4608 = vpack.c.b16 %v4546, %v4545
    %v4609 = vpack.c.b16 %v4548, %v4547
    %v4610 = vpack.c.b16 %v4550, %v4549
    %v4611 = vpack.c.b16 %v4552, %v4551
    %v4612 = vpack.c.b16 %v4554, %v4553
    %v4613 = vpack.c.b16 %v4556, %v4555
    %v4614 = vpack.c.b16 %v4558, %v4557
    %v4615 = vpack.c.b16 %v4560, %v4559
    %v4616 = vpack.c.b16 %v4562, %v4561
    %v4617 = vpack.c.b16 %v4564, %v4563
    %v4618 = vpack.c.b16 %v4566, %v4565
    %v4619 = vpack.c.b16 %v4568, %v4567
    %v4620 = vpack.c.b16 %v4570, %v4569
    %v4621 = vpack.c.b16 %v4572, %v4571
    %v4622 = vpack.c.b16 %v4574, %v4573
    %v4623 = vpack.c.b16 %v4576, %v4575
    %v4624 = vpack.c.b16 %v4578, %v4577
    %v4625 = vpack.c.b16 %v4580, %v4579
    %v4626 = vpack.c.b16 %v4582, %v4581
    %v4627 = vpack.c.b16 %v4584, %v4583
    %v4628 = vpack.c.b16 %v4586, %v4585
    %v4629 = vpack.c.b16 %v4588, %v4587
    %v4630 = vpack.c.b16 %v4590, %v4589
    %v4631 = vpack.c.b16 %v4592, %v4591
    %v4632 = vpack.c.b16 %v4594, %v4593
    %v4633 = vpack.c.b16 %v4596, %v4595
    %v4634 = vpack.c.b16 %v4598, %v4597
    %v4635 = vpack.c.b16 %v4600, %v4599
    %v4636 = vpack.c.b16 %v4602, %v4601
    %v4637 = vpack.c.b16 %v4604, %v4603
    %v4638 = vpack.c.b16 %v4606, %v4605
    %4671 = vmatprep.subr.bf16.mxu0 0
    %4672 = vmatpush1.bf16.msra.mxu0 %v4607
    %4673 = vmatprep.subr.bf16.mxu0 0
    %4674 = vmatpush1.bf16.msra.mxu0 %v4608
    %4675 = vmatprep.subr.bf16.mxu0 0
    %4676 = vmatpush1.bf16.msra.mxu0 %v4609
    %4677 = vmatprep.subr.bf16.mxu0 0
    %4678 = vmatpush1.bf16.msra.mxu0 %v4610
    %4679 = vmatprep.subr.bf16.mxu0 0
    %4680 = vmatpush1.bf16.msra.mxu0 %v4611
    %4681 = vmatprep.subr.bf16.mxu0 0
    %4682 = vmatpush1.bf16.msra.mxu0 %v4612
    %4683 = vmatprep.subr.bf16.mxu0 0
    %4684 = vmatpush1.bf16.msra.mxu0 %v4613
    %4685 = vmatprep.subr.bf16.mxu0 0
    %4686 = vmatpush1.bf16.msra.mxu0 %v4614
    %4687 = vmatprep.subr.bf16.mxu0 0
    %4688 = vmatpush1.bf16.msra.mxu0 %v4615
    %4689 = vmatprep.subr.bf16.mxu0 0
    %4690 = vmatpush1.bf16.msra.mxu0 %v4616
    %4691 = vmatprep.subr.bf16.mxu0 0
    %4692 = vmatpush1.bf16.msra.mxu0 %v4617
    %4693 = vmatprep.subr.bf16.mxu0 0
    %4694 = vmatpush1.bf16.msra.mxu0 %v4618
    %4695 = vmatprep.subr.bf16.mxu0 0
    %4696 = vmatpush1.bf16.msra.mxu0 %v4619
    %4697 = vmatprep.subr.bf16.mxu0 0
    %4698 = vmatpush1.bf16.msra.mxu0 %v4620
    %4699 = vmatprep.subr.bf16.mxu0 0
    %4700 = vmatpush1.bf16.msra.mxu0 %v4621
    %4701 = vmatprep.subr.bf16.mxu0 0
    %4702 = vmatpush1.bf16.msra.mxu0 %v4622
    %4703 = vmatprep.mubr.bf16.mxu0 %v4412
    %4704 = vmatmul.mubr.bf16.gmra.mrb[0].mxu0 %v4411
    %v4705 = vpop.f32.mrb[0].mxu0
    %v4706 = vadd.f32 0.0, %v4705
    %v4707 = vpop.f32.mrb[0].mxu0
    %v4708 = vpop.f32.mrb[0].mxu0
    %v4709 = vpop.f32.mrb[0].mxu0
    %4710 = vdwg.mxu0
    %4711 = vmatprep.subr.bf16.mxu0 0
    %4712 = vmatpush1.bf16.msra.mxu0 %v4623
    %4713 = vmatprep.subr.bf16.mxu0 0
    %4714 = vmatpush1.bf16.msra.mxu0 %v4624
    %4715 = vmatprep.subr.bf16.mxu0 0
    %4716 = vmatpush1.bf16.msra.mxu0 %v4625
    %4717 = vmatprep.subr.bf16.mxu0 0
    %4718 = vmatpush1.bf16.msra.mxu0 %v4626
    %4719 = vmatprep.subr.bf16.mxu0 0
    %4720 = vmatpush1.bf16.msra.mxu0 %v4627
    %4721 = vmatprep.subr.bf16.mxu0 0
    %4722 = vmatpush1.bf16.msra.mxu0 %v4628
    %4723 = vmatprep.subr.bf16.mxu0 0
    %4724 = vmatpush1.bf16.msra.mxu0 %v4629
    %4725 = vmatprep.subr.bf16.mxu0 0
    %4726 = vmatpush1.bf16.msra.mxu0 %v4630
    %4727 = vmatprep.subr.bf16.mxu0 0
    %4728 = vmatpush1.bf16.msra.mxu0 %v4631
    %4729 = vmatprep.subr.bf16.mxu0 0
    %4730 = vmatpush1.bf16.msra.mxu0 %v4632
    %4731 = vmatprep.subr.bf16.mxu0 0
    %4732 = vmatpush1.bf16.msra.mxu0 %v4633
    %4733 = vmatprep.subr.bf16.mxu0 0
    %4734 = vmatpush1.bf16.msra.mxu0 %v4634
    %4735 = vmatprep.subr.bf16.mxu0 0
    %4736 = vmatpush1.bf16.msra.mxu0 %v4635
    %4737 = vmatprep.subr.bf16.mxu0 0
    %4738 = vmatpush1.bf16.msra.mxu0 %v4636
    %4739 = vmatprep.subr.bf16.mxu0 0
    %4740 = vmatpush1.bf16.msra.mxu0 %v4637
    %4741 = vmatprep.subr.bf16.mxu0 0
    %4742 = vmatpush1.bf16.msra.mxu0 %v4638
    %4743 = vmatprep.mubr.bf16.mxu0 %v4414
    %4744 = vmatmul.mubr.bf16.gmra.mrb[0].mxu0 %v4413
    %v4745 = vpop.f32.mrb[0].mxu0
    %v4746 = vadd.f32 %v4706, %v4745
    %v4747 = vpop.f32.mrb[0].mxu0
    %v4748 = vpop.f32.mrb[0].mxu0
    %v4749 = vpop.f32.mrb[0].mxu0
    %4750 = vdwg.mxu0
    %v4751 = vadd.f32 %v4206, %v4746
    %v4752 = vadd.f32 %v2566, %v4751
    %s4753 = scalar_lea.vmem %s10, 1
    %v4754 = vld [vmem:[%s4753] sm:$0x1]
    %v4756 = vlaneseq
    %v4757 = vshrl.u32 %v4756, 7
    %v4758 = vsub.s32 0, %v4757
    %v4759 = vrot.slane %v4754, %v4758
    %v4761 = vadd.f32 %v4752, %v4759
    %s4762 = scalar_lea.vmem %s11, 1
    %v4763 = vld [vmem:[%s4762] sm:$0x1]
    %s4764 = scalar_lea.vmem %s12, 1
    %v4765 = vld [vmem:[%s4764] sm:$0x1]
    %v4766 = vsel %vm155, %v4761, 0.0
    %4767 = vadd.xlane.f32.xlu0 %v4766
    %v4768 = vpop.xlane.xlu0 %4767
    %v4769 = vmul.f32 %v4768, %v205
    %v4770 = vsub.f32 %v4761, %v4769
    %v4771 = vmul.f32 %v4770, %v4770
    %v4772 = vsel %vm155, %v4771, 0.0
    %4773 = vadd.xlane.f32.xlu0 %v4772
    %v4774 = vpop.xlane.xlu0 %4773
    %v4775 = vmul.f32 %v4774, %v205
    %v4776 = vadd.f32 %v4775, 1e-05
    %v4777 = vrsqrt.pop %v4776
    %v4778 = vmul.f32 %v4770, %v4777
    %v4780 = vlaneseq
    %v4781 = vshrl.u32 %v4780, 7
    %v4782 = vsub.s32 0, %v4781
    %v4783 = vrot.slane %v4763, %v4782
    %v4785 = vmul.f32 %v4778, %v4783
    %v4787 = vlaneseq
    %v4788 = vshrl.u32 %v4787, 7
    %v4789 = vsub.s32 0, %v4788
    %v4790 = vrot.slane %v4765, %v4789
    %v4792 = vadd.f32 %v4785, %v4790
    %v4793 = vld [vmem:[%s13] sm:$0x1]
    %v4795 = vlaneseq
    %v4796 = vshrl.u32 %v4795, 7
    %v4797 = vsub.s32 0, %v4796
    %v4798 = vrot.slane %v4793, %v4797
    %v4800 = vmul.f32 %v4792, %v4798
    %v4801 = vsel %vm155, %v4800, 0.0
    %4802 = vadd.xlane.f32.xlu0 %v4801
    %v4803 = vpop.xlane.xlu0 %4802
    %v4804 = vld [vmem:[#allocation2] sm:$0x1]
    %4806 = vset.pattern.permute.xlu0 0
    %4807 = vperm.xlu0 %4806, %v4804
    %v4808 = vpop.permute.xlu0 %4807
    %v4810 = vlaneseq
    %v4811 = vshrl.u32 %v4810, 7
    %v4812 = vsub.s32 0, %v4811
    %v4813 = vrot.slane %v4808, %v4812
    %v4814 = vadd.f32 %v4803, %v4813
    %v4816 = vlaneseq
    %v4817 = vand.u32 %v4816, 127
    %v4818 = vlaneseq
    %v4819 = vshrl.u32 %v4818, 7
    %v4820 = vsub.s32 %v4817, %v4819
    %v4821 = vrot.slane %v4814, %v4820
    %vm4823 = vcmask 57344
    %4824 = vst.msk [vmem:[#allocation3] sm:$0x1] %vm4823, %v4821
    // Predicated region
    $region62: #{tpu_custom_call.1} parent=1 // pred_check
      _
    $region63: #{tpu_custom_call.1} parent=1 // pred_check_branch
      %4826 = sbr.rel (0) target = $region65
    $region64: #{tpu_custom_call.1} parent=1 // pred_region
      %s4828 = ssub.s32 16, 16
      %4829 = vsyncadd [#allocation4], %s4828
      %s4831 = sshll.u32 [#allocation3], 4
      %s4832 = int_to_ptr.vmem [resolvable:$true] %s4831
      %4834 = dma.vmem_to_hbm [thread:$0]  %s4832, 16, %s15, [#allocation4]
    $region65: #{tpu_custom_call.1} parent=1 // pred_fallthru
      _
    // Predicated region
    $region66: #{tpu_custom_call.1} parent=1 // pred_check
      _
    $region67: #{tpu_custom_call.1} parent=1 // pred_check_branch
      %4836 = sbr.rel (0) target = $region69
    $region68: #{tpu_custom_call.1} parent=1 // pred_region
      %4837 = dma.done [#allocation4], 16
    $region69: #{tpu_custom_call.1} parent=1 // pred_fallthru
      _
    %4838 = vsyncpa [#allocation4], 1

</llo_original>
